<compile_context>
chip_gen: v7x
topology: tpu7x:2x2x1
jax: 0.10.0
libtpu: 0.0.40
codegen_flags: <defaults>
</compile_context>

<pallas_src>
import jax
import jax.numpy as jnp
from jax import lax
from jax.experimental import pallas as pl
from jax.experimental.pallas import tpu as pltpu

EPS = 1e-6
INV_SQRT2 = 0.7071067811865476


# ------------------------------ in-kernel math --------------------------------

def _ln(y, g, b):
    u = jnp.mean(y, axis=-1, keepdims=True)
    s = jnp.mean(jnp.square(y - u), axis=-1, keepdims=True)
    return (y - u) * lax.rsqrt(s + EPS) * g + b


def _gelu(y):
    return 0.5 * y * (1.0 + lax.erf(y * INV_SQRT2))


# --------------------------- fused Pallas kernels ------------------------------

def _build_pixel_kernel(bt, P, D, D2, f0, f1, f2):
    """Call 1: all per-pixel matmul work of the three stages, fused in VMEM."""

    def kernel(x_ref, wx_ref, bx_ref, ln1g_ref, ln1b_ref, w4b_ref, b4b_ref,
               o4_ref, o2_ref, o1_ref):
        x2 = x_ref[...].reshape(bt * P, D)
        # One shared matmul: columns = [s4.ct1 (4*D2) | s2.(ct1 o 1x1) (4*f1) | s1.1x1 (f2)]
        y_all = jnp.dot(x2, wx_ref[...], preferred_element_type=jnp.float32) + bx_ref[...]

        # stage scale=4.0 : per ct1 sub-pixel slab: LN -> GELU -> folded (convT2 o 1x1)
        parts = []
        for k1 in range(4):
            slab = y_all[:, k1 * D2:(k1 + 1) * D2]
            t = _gelu(_ln(slab, ln1g_ref[...], ln1b_ref[...]))
            parts.append(jnp.dot(t, w4b_ref[...], preferred_element_type=jnp.float32)
                         + b4b_ref[...])
        # packed columns ordered (ky1, kx1, ky2, kx2, f0); lane width 16*f0
        o4_ref[...] = jnp.concatenate(parts, axis=1).reshape(bt, P, 16 * f0)

        # stage scale=2.0 : folded (convT1 o 1x1) already computed in y_all
        o2_ref[...] = y_all[:, 4 * D2:4 * D2 + 4 * f1].reshape(bt, P, 4 * f1)

        # stage scale=1.0 : 1x1 conv already computed in y_all
        off = 4 * D2 + 4 * f1
        o1_ref[...] = y_all[:, off:off + f2].reshape(bt, P, f2)

    return kernel


def _build_conv3_kernel(bt, h, w, f0, f1, f2):
    """Call 2: per-stage (pre-conv LN -> im2col 3x3 conv -> LN), channel-major store."""

    def conv3_stage(xp, g1, b1, w9, g3, b3, H, W, C):
        # xp: (bt, H+2, W+2, C) zero-padded *pre-LayerNorm* activation.
        z = _ln(xp, g1, b1)
        # re-zero the halo ring (the reference pads the post-LN tensor with zeros)
        rows = lax.broadcasted_iota(jnp.int32, (bt, H + 2, W + 2, 1), 1)
        cols = lax.broadcasted_iota(jnp.int32, (bt, H + 2, W + 2, 1), 2)
        interior = (rows >= 1) & (rows <= H) & (cols >= 1) & (cols <= W)
        z = jnp.where(interior, z, 0.0)
        # im2col: one (bt*H*W, 9*C) patch matrix, one MXU matmul with K = 9*C
        pats = []
        for ky in range(3):
            for kx in range(3):
                pats.append(z[:, ky:ky + H, kx:kx + W, :].reshape(bt * H * W, C))
        pat = jnp.concatenate(pats, axis=1)
        y = jnp.dot(pat, w9, preferred_element_type=jnp.float32)
        y = _ln(y, g3, b3)
        # channel-major (NCHW-flat) layout: spatial is the lane axis of the store
        return jnp.transpose(y.reshape(bt, H * W, C), (0, 2, 1))

    def kernel(xp4_ref, g41_ref, b41_ref, w43_ref, g43_ref, b43_ref,
               xp2_ref, g21_ref, b21_ref, w23_ref, g23_ref, b23_ref,
               xp1_ref, g11_ref, b11_ref, w13_ref, g13_ref, b13_ref,
               o4_ref, o2_ref, o1_ref):
        o4_ref[...] = conv3_stage(xp4_ref[...], g41_ref[...], b41_ref[...],
                                  w43_ref[...], g43_ref[...], b43_ref[...],
                                  4 * h, 4 * w, f0)
        o2_ref[...] = conv3_stage(xp2_ref[...], g21_ref[...], b21_ref[...],
                                  w23_ref[...], g23_ref[...], b23_ref[...],
                                  2 * h, 2 * w, f1)
        o1_ref[...] = conv3_stage(xp1_ref[...], g11_ref[...], b11_ref[...],
                                  w13_ref[...], g13_ref[...], b13_ref[...],
                                  h, w, f2)

    return kernel


# ---------------------- weight packing (hoisted, done once) --------------------

def _pack_convT(w):   # torch ConvTranspose2d weight (Cin, Cout, 2, 2) -> (Cin, 4*Cout)
    cin, cout = w.shape[0], w.shape[1]
    return jnp.transpose(w, (0, 2, 3, 1)).reshape(cin, 4 * cout)   # cols (ky, kx, c)


def _pack_1x1(w):     # torch Conv2d weight (Cout, Cin, 1, 1) -> (Cin, Cout)
    return jnp.transpose(w[:, :, 0, 0])


def _pack_3x3(w):     # torch Conv2d weight (Cout, Cin, 3, 3) -> (9*Cin, Cout)
    cout, cin = w.shape[0], w.shape[1]
    return jnp.transpose(w, (2, 3, 1, 0)).reshape(9 * cin, cout)   # rows (ky, kx, ci)


def _fold_convT_1x1(wct, bct, w1x1):
    # (convT 2x2/s2 with bias) followed by bias-free 1x1 conv  ==  one packed matmul
    cin, cout = wct.shape[0], wct.shape[1]
    f = w1x1.shape[0]
    wp = _pack_convT(wct).reshape(cin, 4, cout)
    wc = _pack_1x1(w1x1)                                   # (cout, f)
    wf = jnp.einsum('dkc,cf->dkf', wp, wc).reshape(cin, 4 * f)
    bf = jnp.tile(bct @ wc, 4)
    return wf, bf


def _row(v):
    return v.reshape(1, -1)


def pack_fpn_params(params):
    """Pack/fold all weights once (call outside the steady-state forward)."""
    p4, p2, p1 = params['s4'], params['s2'], params['s1']
    f2 = p1['c1_w'].shape[0]

    w4a = _pack_convT(p4['ct1_w'])
    b4a = jnp.tile(p4['ct1_b'], 4)
    w2f, b2f = _fold_convT_1x1(p2['ct1_w'], p2['ct1_b'], p2['c1_w'])
    w1c = _pack_1x1(p1['c1_w'])

    wx = jnp.concatenate([w4a, w2f, w1c], axis=1)
    bx = jnp.concatenate([b4a, b2f, jnp.zeros((f2,), jnp.float32)])

    w4b, b4b = _fold_convT_1x1(p4['ct2_w'], p4['ct2_b'], p4['c1_w'])

    return dict(
        wx=wx, bx=_row(bx),
        ln1_g=_row(p4['ln1_g']), ln1_b=_row(p4['ln1_b']),
        w4b=w4b, b4b=_row(b4b),
        c4_g=_row(p4['c1_g']), c4_b=_row(p4['c1_b']),
        w4c3=_pack_3x3(p4['c3_w']), g4c3=_row(p4['c3_g']), b4c3=_row(p4['c3_b']),
        c2_g=_row(p2['c1_g']), c2_b=_row(p2['c1_b']),
        w2c3=_pack_3x3(p2['c3_w']), g2c3=_row(p2['c3_g']), b2c3=_row(p2['c3_b']),
        c1_g=_row(p1['c1_g']), c1_b=_row(p1['c1_b']),
        w1c3=_pack_3x3(p1['c3_w']), g1c3=_row(p1['c3_g']), b1c3=_row(p1['c3_b']),
    )


# --------------------------------- forward -------------------------------------

def _batch_tile(bsz):
    # Fold batch elements into the matmul M dimension per grid step while keeping
    # >=2 grid steps (2 TensorCores on v7x) whenever the batch allows it.
    if bsz % 2 == 0 and bsz > 2:
        return bsz // 2
    return 1


def fpn_forward_packed(packed, x_seq, ids_restore=None):
    # ids_restore accepted for API parity; the PyTorch forward never uses it.
    bsz, n, d = x_seq.shape
    h = int(round(float(n) ** 0.5))
    assert h * h == n, "sequence length must be a perfect square"
    w = h
    P = n
    D = packed['wx'].shape[0]
    assert D == d
    D2 = packed['ln1_g'].shape[1]
    f0 = packed['c4_g'].shape[1]
    f1 = packed['c2_g'].shape[1]
    f2 = packed['c1_g'].shape[1]

    bt = _batch_tile(bsz)
    steps = bsz // bt

    def full_spec(a):
        zeros = (0,) * a.ndim
        return pl.BlockSpec(a.shape, lambda i, z=zeros: z)

    # ---- call 1: fused per-pixel chains (shared-x matmul + folded convT o 1x1) -----
    ins1 = (x_seq, packed['wx'], packed['bx'], packed['ln1_g'], packed['ln1_b'],
            packed['w4b'], packed['b4b'])
    in_specs1 = [pl.BlockSpec((bt, P, D), lambda i: (i, 0, 0))]
    in_specs1 += [full_spec(a) for a in ins1[1:]]
    y4, y2, y1 = pl.pallas_call(
        _build_pixel_kernel(bt, P, D, D2, f0, f1, f2),
        out_shape=(jax.ShapeDtypeStruct((bsz, P, 16 * f0), jnp.float32),
                   jax.ShapeDtypeStruct((bsz, P, 4 * f1), jnp.float32),
                   jax.ShapeDtypeStruct((bsz, P, f2), jnp.float32)),
        grid=(steps,),
        in_specs=in_specs1,
        out_specs=(pl.BlockSpec((bt, P, 16 * f0), lambda i: (i, 0, 0)),
                   pl.BlockSpec((bt, P, 4 * f1), lambda i: (i, 0, 0)),
                   pl.BlockSpec((bt, P, f2), lambda i: (i, 0, 0))),
        compiler_params=pltpu.CompilerParams(dimension_semantics=("parallel",)),
    )(*ins1)

    # ---- tiny XLA glue: pixel-shuffle (KB-scale) + halo zero-pad (pre-LayerNorm) ----
    # y4 columns are (ky1, kx1, ky2, kx2, f): spatial Y = 4i + 2*ky1 + ky2.
    y4 = y4.reshape(bsz, h, w, 2, 2, 2, 2, f0)
    y4 = jnp.transpose(y4, (0, 1, 3, 5, 2, 4, 6, 7)).reshape(bsz, 4 * h, 4 * w, f0)
    # y2 columns are (ky, kx, f): spatial Y = 2i + ky.
    y2 = y2.reshape(bsz, h, w, 2, 2, f1)
    y2 = jnp.transpose(y2, (0, 1, 3, 2, 4, 5)).reshape(bsz, 2 * h, 2 * w, f1)
    y1 = y1.reshape(bsz, h, w, f2)
    pad = ((0, 0), (1, 1), (1, 1), (0, 0))
    xp4, xp2, xp1 = jnp.pad(y4, pad), jnp.pad(y2, pad), jnp.pad(y1, pad)

    # ---- call 2: fused (pre-conv LN -> im2col 3x3 conv -> LN), channel-major out ----
    # TODO(synk): at production sizes add a spatial (row-halo) tile axis and set
    #             vmem_limit_bytes for v7x's 64 MiB VMEM.
    ins2 = (xp4, packed['c4_g'], packed['c4_b'], packed['w4c3'], packed['g4c3'], packed['b4c3'],
            xp2, packed['c2_g'], packed['c2_b'], packed['w2c3'], packed['g2c3'], packed['b2c3'],
            xp1, packed['c1_g'], packed['c1_b'], packed['w1c3'], packed['g1c3'], packed['b1c3'])
    in_specs2 = [pl.BlockSpec((bt, 4 * h + 2, 4 * w + 2, f0), lambda i: (i, 0, 0, 0))]
    in_specs2 += [full_spec(a) for a in ins2[1:6]]
    in_specs2 += [pl.BlockSpec((bt, 2 * h + 2, 2 * w + 2, f1), lambda i: (i, 0, 0, 0))]
    in_specs2 += [full_spec(a) for a in ins2[7:12]]
    in_specs2 += [pl.BlockSpec((bt, h + 2, w + 2, f2), lambda i: (i, 0, 0, 0))]
    in_specs2 += [full_spec(a) for a in ins2[13:18]]

    o4, o2, o1 = pl.pallas_call(
        _build_conv3_kernel(bt, h, w, f0, f1, f2),
        out_shape=(jax.ShapeDtypeStruct((bsz, f0, 16 * P), jnp.float32),
                   jax.ShapeDtypeStruct((bsz, f1, 4 * P), jnp.float32),
                   jax.ShapeDtypeStruct((bsz, f2, P), jnp.float32)),
        grid=(steps,),
        in_specs=in_specs2,
        out_specs=(pl.BlockSpec((bt, f0, 16 * P), lambda i: (i, 0, 0)),
                   pl.BlockSpec((bt, f1, 4 * P), lambda i: (i, 0, 0)),
                   pl.BlockSpec((bt, f2, P), lambda i: (i, 0, 0))),
        compiler_params=pltpu.CompilerParams(dimension_semantics=("parallel",)),
    )(*ins2)

    # Channel-major stores -> PyTorch NCHW outputs via free reshapes (no transposes).
    return {'layer1': o4.reshape(bsz, f0, 4 * h, 4 * w),
            'layer2': o2.reshape(bsz, f1, 2 * h, 2 * w),
            'layer3': o1.reshape(bsz, f2, h, w)}


def fpn_forward(params, x_seq, ids_restore=None):
    # Convenience wrapper (packs every call). Prefer pack_fpn_params once + the
    # packed forward in steady state.
    return fpn_forward_packed(pack_fpn_params(params), x_seq, ids_restore)


# --------------------------------- params --------------------------------------

def init_fpn_params(key, decoder_embed_dim=32, fpn_output_dim=(8, 16, 32)):
    D = decoder_embed_dim
    keys = iter(jax.random.split(key, 16))

    def nrm(shape, scale=0.1):
        return scale * jax.random.normal(next(keys), shape, jnp.float32)

    f0, f1, f2 = fpn_output_dim
    params = {
        's4': dict(
            ct1_w=nrm((D, D // 2, 2, 2)), ct1_b=nrm((D // 2,)),
            ln1_g=jnp.ones((D // 2,), jnp.float32), ln1_b=jnp.zeros((D // 2,), jnp.float32),
            ct2_w=nrm((D // 2, D // 4, 2, 2)), ct2_b=nrm((D // 4,)),
            c1_w=nrm((f0, D // 4, 1, 1)),
            c1_g=jnp.ones((f0,), jnp.float32), c1_b=jnp.zeros((f0,), jnp.float32),
            c3_w=nrm((f0, f0, 3, 3)),
            c3_g=jnp.ones((f0,), jnp.float32), c3_b=jnp.zeros((f0,), jnp.float32),
        ),
        's2': dict(
            ct1_w=nrm((D, D // 2, 2, 2)), ct1_b=nrm((D // 2,)),
            c1_w=nrm((f1, D // 2, 1, 1)),
            c1_g=jnp.ones((f1,), jnp.float32), c1_b=jnp.zeros((f1,), jnp.float32),
            c3_w=nrm((f1, f1, 3, 3)),
            c3_g=jnp.ones((f1,), jnp.float32), c3_b=jnp.zeros((f1,), jnp.float32),
        ),
        's1': dict(
            c1_w=nrm((f2, D, 1, 1)),
            c1_g=jnp.ones((f2,), jnp.float32), c1_b=jnp.zeros((f2,), jnp.float32),
            c3_w=nrm((f2, f2, 3, 3)),
            c3_g=jnp.ones((f2,), jnp.float32), c3_b=jnp.zeros((f2,), jnp.float32),
        ),
    }
    return params


# --------------------------- pure-JAX reference ---------------------------------

def _ref_ln(x, g, b):
    u = jnp.mean(x, axis=-1, keepdims=True)
    s = jnp.mean(jnp.square(x - u), axis=-1, keepdims=True)
    return (x - u) / jnp.sqrt(s + EPS) * g + b


def _ref_gelu(x):
    return 0.5 * x * (1.0 + lax.erf(x * INV_SQRT2))


def _ref_convT(x, w, b):
    bsz, hh, ww, _ = x.shape
    cout = w.shape[1]
    out = jnp.zeros((bsz, 2 * hh, 2 * ww, cout), jnp.float32)
    for ky in range(2):
        for kx in range(2):
            val = jnp.einsum('bhwc,cd->bhwd', x, w[:, :, ky, kx]) + b
            out = out.at[:, ky::2, kx::2, :].set(val)
    return out


def _ref_conv1x1(x, w):
    return jnp.einsum('bhwc,dc->bhwd', x, w[:, :, 0, 0])


def _ref_conv3x3(x, w):
    hh, ww = x.shape[1], x.shape[2]
    xpad = jnp.pad(x, ((0, 0), (1, 1), (1, 1), (0, 0)))
    out = 0.0
    for ky in range(3):
        for kx in range(3):
            out = out + jnp.einsum('bhwc,dc->bhwd',
                                   xpad[:, ky:ky + hh, kx:kx + ww, :], w[:, :, ky, kx])
    return out


def ref_forward(params, x_seq):
    bsz, n, d = x_seq.shape
    h = w = int(n ** 0.5)
    x = x_seq.reshape(bsz, h, w, d)
    p = params['s4']
    y = _ref_convT(x, p['ct1_w'], p['ct1_b'])
    y = _ref_gelu(_ref_ln(y, p['ln1_g'], p['ln1_b']))
    y = _ref_convT(y, p['ct2_w'], p['ct2_b'])
    y = _ref_ln(_ref_conv1x1(y, p['c1_w']), p['c1_g'], p['c1_b'])
    y = _ref_ln(_ref_conv3x3(y, p['c3_w']), p['c3_g'], p['c3_b'])
    l1 = jnp.transpose(y, (0, 3, 1, 2))
    p = params['s2']
    y = _ref_convT(x, p['ct1_w'], p['ct1_b'])
    y = _ref_ln(_ref_conv1x1(y, p['c1_w']), p['c1_g'], p['c1_b'])
    y = _ref_ln(_ref_conv3x3(y, p['c3_w']), p['c3_g'], p['c3_b'])
    l2 = jnp.transpose(y, (0, 3, 1, 2))
    p = params['s1']
    y = _ref_ln(_ref_conv1x1(x, p['c1_w']), p['c1_g'], p['c1_b'])
    y = _ref_ln(_ref_conv3x3(y, p['c3_w']), p['c3_g'], p['c3_b'])
    l3 = jnp.transpose(y, (0, 3, 1, 2))
    return {'layer1': l1, 'layer2': l2, 'layer3': l3}


# ------------------------------------ main ---------------------------------------

if __name__ == "__main__":
    key = jax.random.PRNGKey(0)
    kx_, kp = jax.random.split(key, 2)
    B, N, D = 2, 16, 32                       # seq=16 -> h=w=4
    fpn_dims = (8, 16, 32)
    x_seq = jax.random.normal(kx_, (B, N, D), jnp.float32)
    ids_restore = jnp.tile(jnp.arange(N)[None], (B, 1))   # unused by forward
    params = init_fpn_params(kp, decoder_embed_dim=D, fpn_output_dim=fpn_dims)

    packed = pack_fpn_params(params)          # weight packing hoisted out of the hot path
    packed = jax.block_until_ready(packed)

    fwd = jax.jit(fpn_forward_packed)
    out = fwd(packed, x_seq, ids_restore)
    out = jax.block_until_ready(out)

    assert out['layer1'].shape == (B, fpn_dims[0], 16, 16)
    assert out['layer2'].shape == (B, fpn_dims[1], 8, 8)
    assert out['layer3'].shape == (B, fpn_dims[2], 4, 4)

    ref = ref_forward(params, x_seq)
    for k in ('layer1', 'layer2', 'layer3'):
        assert jnp.allclose(out[k], ref[k], atol=2e-4, rtol=2e-4), k

    print("KERNEL_OK")
</pallas_src>

<mosaic_0001>
module attributes {stable_mosaic.version = 11 : i64} {
  func.func @kernel(%arg0: i32, %arg1: memref<1x16x32xf32, #tpu.memory_space<vmem>>, %arg2: memref<32x160xf32, #tpu.memory_space<vmem>>, %arg3: memref<1x160xf32, #tpu.memory_space<vmem>>, %arg4: memref<1x16xf32, #tpu.memory_space<vmem>>, %arg5: memref<1x16xf32, #tpu.memory_space<vmem>>, %arg6: memref<16x32xf32, #tpu.memory_space<vmem>>, %arg7: memref<1x32xf32, #tpu.memory_space<vmem>>, %arg8: memref<1x16x128xf32, #tpu.memory_space<vmem>>, %arg9: memref<1x16x64xf32, #tpu.memory_space<vmem>>, %arg10: memref<1x16x32xf32, #tpu.memory_space<vmem>>) attributes {dimension_semantics = [#tpu.dimension_semantics<parallel>], iteration_bounds = array<i64: 2>, scalar_prefetch = 0 : i64, scratch_operands = 0 : i64, tpu.core_type = #tpu.core_type<tc>, window_params = [{transform_indices = @transform_0, window_bounds = array<i64: 1, 16, 32>}, {pipeline_mode = #tpu.pipeline_mode<synchronous>, transform_indices = @transform_1, window_bounds = array<i64: 32, 160>}, {pipeline_mode = #tpu.pipeline_mode<synchronous>, transform_indices = @transform_2, window_bounds = array<i64: 1, 160>}, {pipeline_mode = #tpu.pipeline_mode<synchronous>, transform_indices = @transform_3, window_bounds = array<i64: 1, 16>}, {pipeline_mode = #tpu.pipeline_mode<synchronous>, transform_indices = @transform_4, window_bounds = array<i64: 1, 16>}, {pipeline_mode = #tpu.pipeline_mode<synchronous>, transform_indices = @transform_5, window_bounds = array<i64: 16, 32>}, {pipeline_mode = #tpu.pipeline_mode<synchronous>, transform_indices = @transform_6, window_bounds = array<i64: 1, 32>}, {transform_indices = @transform_7, window_bounds = array<i64: 1, 16, 128>}, {transform_indices = @transform_8, window_bounds = array<i64: 1, 16, 64>}, {transform_indices = @transform_9, window_bounds = array<i64: 1, 16, 32>}]} {
    %c0 = arith.constant 0 : index
    %c0_0 = arith.constant 0 : index
    %c0_1 = arith.constant 0 : index
    %0 = vector.load %arg1[%c0, %c0_0, %c0_1] : memref<1x16x32xf32, #tpu.memory_space<vmem>>, vector<1x16x32xf32>
    %1 = vector.shape_cast %0 : vector<1x16x32xf32> to vector<16x32xf32>
    %c0_2 = arith.constant 0 : index
    %c0_3 = arith.constant 0 : index
    %2 = vector.load %arg2[%c0_2, %c0_3] : memref<32x160xf32, #tpu.memory_space<vmem>>, vector<32x160xf32>
    %cst = arith.constant dense<0.000000e+00> : vector<16x160xf32>
    %3 = tpu.matmul %1, %2, %cst {dimension_numbers = #tpu.dot_dimension_numbers<[1], [0], [0], [1], [0, 0, 1, 1], [], []>} : vector<16x32xf32>, vector<32x160xf32>, vector<16x160xf32> -> vector<16x160xf32>
    %c0_4 = arith.constant 0 : index
    %c0_5 = arith.constant 0 : index
    %4 = vector.load %arg3[%c0_4, %c0_5] : memref<1x160xf32, #tpu.memory_space<vmem>>, vector<1x160xf32>
    %5 = vector.broadcast %4 : vector<1x160xf32> to vector<16x160xf32>
    %6 = arith.addf %3, %5 : vector<16x160xf32>
    %7 = vector.extract_strided_slice %6 {offsets = [0, 0], sizes = [16, 16], strides = [1, 1]} : vector<16x160xf32> to vector<16x16xf32>
    %c0_6 = arith.constant 0 : index
    %c0_7 = arith.constant 0 : index
    %8 = vector.load %arg4[%c0_6, %c0_7] : memref<1x16xf32, #tpu.memory_space<vmem>>, vector<1x16xf32>
    %c0_8 = arith.constant 0 : index
    %c0_9 = arith.constant 0 : index
    %9 = vector.load %arg5[%c0_8, %c0_9] : memref<1x16xf32, #tpu.memory_space<vmem>>, vector<1x16xf32>
    %cst_10 = arith.constant dense<0.000000e+00> : vector<16xf32>
    %10 = vector.multi_reduction <add>, %7, %cst_10 [1] : vector<16x16xf32> to vector<16xf32>
    %11 = vector.shape_cast %10 : vector<16xf32> to vector<16x1xf32>
    %cst_11 = arith.constant 1.600000e+01 : f32
    %12 = vector.broadcast %cst_11 : f32 to vector<16x1xf32>
    %13 = arith.divf %11, %12 : vector<16x1xf32>
    %14 = vector.broadcast %13 : vector<16x1xf32> to vector<16x16xf32>
    %15 = arith.subf %7, %14 : vector<16x16xf32>
    %16 = arith.mulf %15, %15 : vector<16x16xf32>
    %cst_12 = arith.constant dense<0.000000e+00> : vector<16xf32>
    %17 = vector.multi_reduction <add>, %16, %cst_12 [1] : vector<16x16xf32> to vector<16xf32>
    %18 = vector.shape_cast %17 : vector<16xf32> to vector<16x1xf32>
    %cst_13 = arith.constant 1.600000e+01 : f32
    %19 = vector.broadcast %cst_13 : f32 to vector<16x1xf32>
    %20 = arith.divf %18, %19 : vector<16x1xf32>
    %21 = vector.broadcast %13 : vector<16x1xf32> to vector<16x16xf32>
    %22 = arith.subf %7, %21 : vector<16x16xf32>
    %cst_14 = arith.constant 9.99999997E-7 : f32
    %23 = vector.broadcast %cst_14 : f32 to vector<16x1xf32>
    %24 = arith.addf %20, %23 : vector<16x1xf32>
    %25 = math.rsqrt %24 : vector<16x1xf32>
    %26 = vector.broadcast %25 : vector<16x1xf32> to vector<16x16xf32>
    %27 = arith.mulf %22, %26 : vector<16x16xf32>
    %28 = vector.broadcast %8 : vector<1x16xf32> to vector<16x16xf32>
    %29 = arith.mulf %27, %28 : vector<16x16xf32>
    %30 = vector.broadcast %9 : vector<1x16xf32> to vector<16x16xf32>
    %31 = arith.addf %29, %30 : vector<16x16xf32>
    %cst_15 = arith.constant 5.000000e-01 : f32
    %32 = vector.broadcast %cst_15 : f32 to vector<16x16xf32>
    %33 = arith.mulf %32, %31 : vector<16x16xf32>
    %cst_16 = arith.constant 0.707106769 : f32
    %34 = vector.broadcast %cst_16 : f32 to vector<16x16xf32>
    %35 = arith.mulf %31, %34 : vector<16x16xf32>
    %36 = math.erf %35 : vector<16x16xf32>
    %cst_17 = arith.constant 1.000000e+00 : f32
    %37 = vector.broadcast %cst_17 : f32 to vector<16x16xf32>
    %38 = arith.addf %37, %36 : vector<16x16xf32>
    %39 = arith.mulf %33, %38 : vector<16x16xf32>
    %c0_18 = arith.constant 0 : index
    %c0_19 = arith.constant 0 : index
    %40 = vector.load %arg6[%c0_18, %c0_19] : memref<16x32xf32, #tpu.memory_space<vmem>>, vector<16x32xf32>
    %cst_20 = arith.constant dense<0.000000e+00> : vector<16x32xf32>
    %41 = tpu.matmul %39, %40, %cst_20 {dimension_numbers = #tpu.dot_dimension_numbers<[1], [0], [0], [1], [0, 0, 1, 1], [], []>} : vector<16x16xf32>, vector<16x32xf32>, vector<16x32xf32> -> vector<16x32xf32>
    %c0_21 = arith.constant 0 : index
    %c0_22 = arith.constant 0 : index
    %42 = vector.load %arg7[%c0_21, %c0_22] : memref<1x32xf32, #tpu.memory_space<vmem>>, vector<1x32xf32>
    %43 = vector.broadcast %42 : vector<1x32xf32> to vector<16x32xf32>
    %44 = arith.addf %41, %43 : vector<16x32xf32>
    %45 = vector.extract_strided_slice %6 {offsets = [0, 16], sizes = [16, 16], strides = [1, 1]} : vector<16x160xf32> to vector<16x16xf32>
    %c0_23 = arith.constant 0 : index
    %c0_24 = arith.constant 0 : index
    %46 = vector.load %arg4[%c0_23, %c0_24] : memref<1x16xf32, #tpu.memory_space<vmem>>, vector<1x16xf32>
    %c0_25 = arith.constant 0 : index
    %c0_26 = arith.constant 0 : index
    %47 = vector.load %arg5[%c0_25, %c0_26] : memref<1x16xf32, #tpu.memory_space<vmem>>, vector<1x16xf32>
    %cst_27 = arith.constant dense<0.000000e+00> : vector<16xf32>
    %48 = vector.multi_reduction <add>, %45, %cst_27 [1] : vector<16x16xf32> to vector<16xf32>
    %49 = vector.shape_cast %48 : vector<16xf32> to vector<16x1xf32>
    %cst_28 = arith.constant 1.600000e+01 : f32
    %50 = vector.broadcast %cst_28 : f32 to vector<16x1xf32>
    %51 = arith.divf %49, %50 : vector<16x1xf32>
    %52 = vector.broadcast %51 : vector<16x1xf32> to vector<16x16xf32>
    %53 = arith.subf %45, %52 : vector<16x16xf32>
    %54 = arith.mulf %53, %53 : vector<16x16xf32>
    %cst_29 = arith.constant dense<0.000000e+00> : vector<16xf32>
    %55 = vector.multi_reduction <add>, %54, %cst_29 [1] : vector<16x16xf32> to vector<16xf32>
    %56 = vector.shape_cast %55 : vector<16xf32> to vector<16x1xf32>
    %cst_30 = arith.constant 1.600000e+01 : f32
    %57 = vector.broadcast %cst_30 : f32 to vector<16x1xf32>
    %58 = arith.divf %56, %57 : vector<16x1xf32>
    %59 = vector.broadcast %51 : vector<16x1xf32> to vector<16x16xf32>
    %60 = arith.subf %45, %59 : vector<16x16xf32>
    %cst_31 = arith.constant 9.99999997E-7 : f32
    %61 = vector.broadcast %cst_31 : f32 to vector<16x1xf32>
    %62 = arith.addf %58, %61 : vector<16x1xf32>
    %63 = math.rsqrt %62 : vector<16x1xf32>
    %64 = vector.broadcast %63 : vector<16x1xf32> to vector<16x16xf32>
    %65 = arith.mulf %60, %64 : vector<16x16xf32>
    %66 = vector.broadcast %46 : vector<1x16xf32> to vector<16x16xf32>
    %67 = arith.mulf %65, %66 : vector<16x16xf32>
    %68 = vector.broadcast %47 : vector<1x16xf32> to vector<16x16xf32>
    %69 = arith.addf %67, %68 : vector<16x16xf32>
    %cst_32 = arith.constant 5.000000e-01 : f32
    %70 = vector.broadcast %cst_32 : f32 to vector<16x16xf32>
    %71 = arith.mulf %70, %69 : vector<16x16xf32>
    %cst_33 = arith.constant 0.707106769 : f32
    %72 = vector.broadcast %cst_33 : f32 to vector<16x16xf32>
    %73 = arith.mulf %69, %72 : vector<16x16xf32>
    %74 = math.erf %73 : vector<16x16xf32>
    %cst_34 = arith.constant 1.000000e+00 : f32
    %75 = vector.broadcast %cst_34 : f32 to vector<16x16xf32>
    %76 = arith.addf %75, %74 : vector<16x16xf32>
    %77 = arith.mulf %71, %76 : vector<16x16xf32>
    %c0_35 = arith.constant 0 : index
    %c0_36 = arith.constant 0 : index
    %78 = vector.load %arg6[%c0_35, %c0_36] : memref<16x32xf32, #tpu.memory_space<vmem>>, vector<16x32xf32>
    %cst_37 = arith.constant dense<0.000000e+00> : vector<16x32xf32>
    %79 = tpu.matmul %77, %78, %cst_37 {dimension_numbers = #tpu.dot_dimension_numbers<[1], [0], [0], [1], [0, 0, 1, 1], [], []>} : vector<16x16xf32>, vector<16x32xf32>, vector<16x32xf32> -> vector<16x32xf32>
    %c0_38 = arith.constant 0 : index
    %c0_39 = arith.constant 0 : index
    %80 = vector.load %arg7[%c0_38, %c0_39] : memref<1x32xf32, #tpu.memory_space<vmem>>, vector<1x32xf32>
    %81 = vector.broadcast %80 : vector<1x32xf32> to vector<16x32xf32>
    %82 = arith.addf %79, %81 : vector<16x32xf32>
    %83 = vector.extract_strided_slice %6 {offsets = [0, 32], sizes = [16, 16], strides = [1, 1]} : vector<16x160xf32> to vector<16x16xf32>
    %c0_40 = arith.constant 0 : index
    %c0_41 = arith.constant 0 : index
    %84 = vector.load %arg4[%c0_40, %c0_41] : memref<1x16xf32, #tpu.memory_space<vmem>>, vector<1x16xf32>
    %c0_42 = arith.constant 0 : index
    %c0_43 = arith.constant 0 : index
    %85 = vector.load %arg5[%c0_42, %c0_43] : memref<1x16xf32, #tpu.memory_space<vmem>>, vector<1x16xf32>
    %cst_44 = arith.constant dense<0.000000e+00> : vector<16xf32>
    %86 = vector.multi_reduction <add>, %83, %cst_44 [1] : vector<16x16xf32> to vector<16xf32>
    %87 = vector.shape_cast %86 : vector<16xf32> to vector<16x1xf32>
    %cst_45 = arith.constant 1.600000e+01 : f32
    %88 = vector.broadcast %cst_45 : f32 to vector<16x1xf32>
    %89 = arith.divf %87, %88 : vector<16x1xf32>
    %90 = vector.broadcast %89 : vector<16x1xf32> to vector<16x16xf32>
    %91 = arith.subf %83, %90 : vector<16x16xf32>
    %92 = arith.mulf %91, %91 : vector<16x16xf32>
    %cst_46 = arith.constant dense<0.000000e+00> : vector<16xf32>
    %93 = vector.multi_reduction <add>, %92, %cst_46 [1] : vector<16x16xf32> to vector<16xf32>
    %94 = vector.shape_cast %93 : vector<16xf32> to vector<16x1xf32>
    %cst_47 = arith.constant 1.600000e+01 : f32
    %95 = vector.broadcast %cst_47 : f32 to vector<16x1xf32>
    %96 = arith.divf %94, %95 : vector<16x1xf32>
    %97 = vector.broadcast %89 : vector<16x1xf32> to vector<16x16xf32>
    %98 = arith.subf %83, %97 : vector<16x16xf32>
    %cst_48 = arith.constant 9.99999997E-7 : f32
    %99 = vector.broadcast %cst_48 : f32 to vector<16x1xf32>
    %100 = arith.addf %96, %99 : vector<16x1xf32>
    %101 = math.rsqrt %100 : vector<16x1xf32>
    %102 = vector.broadcast %101 : vector<16x1xf32> to vector<16x16xf32>
    %103 = arith.mulf %98, %102 : vector<16x16xf32>
    %104 = vector.broadcast %84 : vector<1x16xf32> to vector<16x16xf32>
    %105 = arith.mulf %103, %104 : vector<16x16xf32>
    %106 = vector.broadcast %85 : vector<1x16xf32> to vector<16x16xf32>
    %107 = arith.addf %105, %106 : vector<16x16xf32>
    %cst_49 = arith.constant 5.000000e-01 : f32
    %108 = vector.broadcast %cst_49 : f32 to vector<16x16xf32>
    %109 = arith.mulf %108, %107 : vector<16x16xf32>
    %cst_50 = arith.constant 0.707106769 : f32
    %110 = vector.broadcast %cst_50 : f32 to vector<16x16xf32>
    %111 = arith.mulf %107, %110 : vector<16x16xf32>
    %112 = math.erf %111 : vector<16x16xf32>
    %cst_51 = arith.constant 1.000000e+00 : f32
    %113 = vector.broadcast %cst_51 : f32 to vector<16x16xf32>
    %114 = arith.addf %113, %112 : vector<16x16xf32>
    %115 = arith.mulf %109, %114 : vector<16x16xf32>
    %c0_52 = arith.constant 0 : index
    %c0_53 = arith.constant 0 : index
    %116 = vector.load %arg6[%c0_52, %c0_53] : memref<16x32xf32, #tpu.memory_space<vmem>>, vector<16x32xf32>
    %cst_54 = arith.constant dense<0.000000e+00> : vector<16x32xf32>
    %117 = tpu.matmul %115, %116, %cst_54 {dimension_numbers = #tpu.dot_dimension_numbers<[1], [0], [0], [1], [0, 0, 1, 1], [], []>} : vector<16x16xf32>, vector<16x32xf32>, vector<16x32xf32> -> vector<16x32xf32>
    %c0_55 = arith.constant 0 : index
    %c0_56 = arith.constant 0 : index
    %118 = vector.load %arg7[%c0_55, %c0_56] : memref<1x32xf32, #tpu.memory_space<vmem>>, vector<1x32xf32>
    %119 = vector.broadcast %118 : vector<1x32xf32> to vector<16x32xf32>
    %120 = arith.addf %117, %119 : vector<16x32xf32>
    %121 = vector.extract_strided_slice %6 {offsets = [0, 48], sizes = [16, 16], strides = [1, 1]} : vector<16x160xf32> to vector<16x16xf32>
    %c0_57 = arith.constant 0 : index
    %c0_58 = arith.constant 0 : index
    %122 = vector.load %arg4[%c0_57, %c0_58] : memref<1x16xf32, #tpu.memory_space<vmem>>, vector<1x16xf32>
    %c0_59 = arith.constant 0 : index
    %c0_60 = arith.constant 0 : index
    %123 = vector.load %arg5[%c0_59, %c0_60] : memref<1x16xf32, #tpu.memory_space<vmem>>, vector<1x16xf32>
    %cst_61 = arith.constant dense<0.000000e+00> : vector<16xf32>
    %124 = vector.multi_reduction <add>, %121, %cst_61 [1] : vector<16x16xf32> to vector<16xf32>
    %125 = vector.shape_cast %124 : vector<16xf32> to vector<16x1xf32>
    %cst_62 = arith.constant 1.600000e+01 : f32
    %126 = vector.broadcast %cst_62 : f32 to vector<16x1xf32>
    %127 = arith.divf %125, %126 : vector<16x1xf32>
    %128 = vector.broadcast %127 : vector<16x1xf32> to vector<16x16xf32>
    %129 = arith.subf %121, %128 : vector<16x16xf32>
    %130 = arith.mulf %129, %129 : vector<16x16xf32>
    %cst_63 = arith.constant dense<0.000000e+00> : vector<16xf32>
    %131 = vector.multi_reduction <add>, %130, %cst_63 [1] : vector<16x16xf32> to vector<16xf32>
    %132 = vector.shape_cast %131 : vector<16xf32> to vector<16x1xf32>
    %cst_64 = arith.constant 1.600000e+01 : f32
    %133 = vector.broadcast %cst_64 : f32 to vector<16x1xf32>
    %134 = arith.divf %132, %133 : vector<16x1xf32>
    %135 = vector.broadcast %127 : vector<16x1xf32> to vector<16x16xf32>
    %136 = arith.subf %121, %135 : vector<16x16xf32>
    %cst_65 = arith.constant 9.99999997E-7 : f32
    %137 = vector.broadcast %cst_65 : f32 to vector<16x1xf32>
    %138 = arith.addf %134, %137 : vector<16x1xf32>
    %139 = math.rsqrt %138 : vector<16x1xf32>
    %140 = vector.broadcast %139 : vector<16x1xf32> to vector<16x16xf32>
    %141 = arith.mulf %136, %140 : vector<16x16xf32>
    %142 = vector.broadcast %122 : vector<1x16xf32> to vector<16x16xf32>
    %143 = arith.mulf %141, %142 : vector<16x16xf32>
    %144 = vector.broadcast %123 : vector<1x16xf32> to vector<16x16xf32>
    %145 = arith.addf %143, %144 : vector<16x16xf32>
    %cst_66 = arith.constant 5.000000e-01 : f32
    %146 = vector.broadcast %cst_66 : f32 to vector<16x16xf32>
    %147 = arith.mulf %146, %145 : vector<16x16xf32>
    %cst_67 = arith.constant 0.707106769 : f32
    %148 = vector.broadcast %cst_67 : f32 to vector<16x16xf32>
    %149 = arith.mulf %145, %148 : vector<16x16xf32>
    %150 = math.erf %149 : vector<16x16xf32>
    %cst_68 = arith.constant 1.000000e+00 : f32
    %151 = vector.broadcast %cst_68 : f32 to vector<16x16xf32>
    %152 = arith.addf %151, %150 : vector<16x16xf32>
    %153 = arith.mulf %147, %152 : vector<16x16xf32>
    %c0_69 = arith.constant 0 : index
    %c0_70 = arith.constant 0 : index
    %154 = vector.load %arg6[%c0_69, %c0_70] : memref<16x32xf32, #tpu.memory_space<vmem>>, vector<16x32xf32>
    %cst_71 = arith.constant dense<0.000000e+00> : vector<16x32xf32>
    %155 = tpu.matmul %153, %154, %cst_71 {dimension_numbers = #tpu.dot_dimension_numbers<[1], [0], [0], [1], [0, 0, 1, 1], [], []>} : vector<16x16xf32>, vector<16x32xf32>, vector<16x32xf32> -> vector<16x32xf32>
    %c0_72 = arith.constant 0 : index
    %c0_73 = arith.constant 0 : index
    %156 = vector.load %arg7[%c0_72, %c0_73] : memref<1x32xf32, #tpu.memory_space<vmem>>, vector<1x32xf32>
    %157 = vector.broadcast %156 : vector<1x32xf32> to vector<16x32xf32>
    %158 = arith.addf %155, %157 : vector<16x32xf32>
    %159 = tpu.concatenate %44, %82, %120, %158 in 1 : vector<16x32xf32>, vector<16x32xf32>, vector<16x32xf32>, vector<16x32xf32> -> vector<16x128xf32>
    %160 = vector.shape_cast %159 : vector<16x128xf32> to vector<1x16x128xf32>
    %c0_74 = arith.constant 0 : index
    %c0_75 = arith.constant 0 : index
    %c0_76 = arith.constant 0 : index
    %161 = vector.load %arg8[%c0_74, %c0_75, %c0_76] : memref<1x16x128xf32, #tpu.memory_space<vmem>>, vector<1x16x128xf32>
    tpu.vector_store %arg8[%c0_74, %c0_75, %c0_76], %160 {strides = array<i32>} : memref<1x16x128xf32, #tpu.memory_space<vmem>>, vector<1x16x128xf32>,
    %162 = vector.extract_strided_slice %6 {offsets = [0, 64], sizes = [16, 64], strides = [1, 1]} : vector<16x160xf32> to vector<16x64xf32>
    %163 = vector.shape_cast %162 : vector<16x64xf32> to vector<1x16x64xf32>
    %c0_77 = arith.constant 0 : index
    %c0_78 = arith.constant 0 : index
    %c0_79 = arith.constant 0 : index
    %164 = vector.load %arg9[%c0_77, %c0_78, %c0_79] : memref<1x16x64xf32, #tpu.memory_space<vmem>>, vector<1x16x64xf32>
    tpu.vector_store %arg9[%c0_77, %c0_78, %c0_79], %163 {strides = array<i32>} : memref<1x16x64xf32, #tpu.memory_space<vmem>>, vector<1x16x64xf32>,
    %165 = vector.extract_strided_slice %6 {offsets = [0, 128], sizes = [16, 32], strides = [1, 1]} : vector<16x160xf32> to vector<16x32xf32>
    %166 = vector.shape_cast %165 : vector<16x32xf32> to vector<1x16x32xf32>
    %c0_80 = arith.constant 0 : index
    %c0_81 = arith.constant 0 : index
    %c0_82 = arith.constant 0 : index
    %167 = vector.load %arg10[%c0_80, %c0_81, %c0_82] : memref<1x16x32xf32, #tpu.memory_space<vmem>>, vector<1x16x32xf32>
    tpu.vector_store %arg10[%c0_80, %c0_81, %c0_82], %166 {strides = array<i32>} : memref<1x16x32xf32, #tpu.memory_space<vmem>>, vector<1x16x32xf32>,
    return
  }
  func.func @transform_0(%arg0: i32) -> (i32, i32, i32) {
    %c0_i32 = arith.constant 0 : i32
    %c0_i32_0 = arith.constant 0 : i32
    %c0_i32_1 = arith.constant 0 : i32
    return %arg0, %c0_i32, %c0_i32_0 : i32, i32, i32
  }
  func.func @transform_1(%arg0: i32) -> (i32, i32) {
    %c0_i32 = arith.constant 0 : i32
    %c0_i32_0 = arith.constant 0 : i32
    %c0_i32_1 = arith.constant 0 : i32
    return %c0_i32, %c0_i32_0 : i32, i32
  }
  func.func @transform_2(%arg0: i32) -> (i32, i32) {
    %c0_i32 = arith.constant 0 : i32
    %c0_i32_0 = arith.constant 0 : i32
    %c0_i32_1 = arith.constant 0 : i32
    return %c0_i32, %c0_i32_0 : i32, i32
  }
  func.func @transform_3(%arg0: i32) -> (i32, i32) {
    %c0_i32 = arith.constant 0 : i32
    %c0_i32_0 = arith.constant 0 : i32
    %c0_i32_1 = arith.constant 0 : i32
    return %c0_i32, %c0_i32_0 : i32, i32
  }
  func.func @transform_4(%arg0: i32) -> (i32, i32) {
    %c0_i32 = arith.constant 0 : i32
    %c0_i32_0 = arith.constant 0 : i32
    %c0_i32_1 = arith.constant 0 : i32
    return %c0_i32, %c0_i32_0 : i32, i32
  }
  func.func @transform_5(%arg0: i32) -> (i32, i32) {
    %c0_i32 = arith.constant 0 : i32
    %c0_i32_0 = arith.constant 0 : i32
    %c0_i32_1 = arith.constant 0 : i32
    return %c0_i32, %c0_i32_0 : i32, i32
  }
  func.func @transform_6(%arg0: i32) -> (i32, i32) {
    %c0_i32 = arith.constant 0 : i32
    %c0_i32_0 = arith.constant 0 : i32
    %c0_i32_1 = arith.constant 0 : i32
    return %c0_i32, %c0_i32_0 : i32, i32
  }
  func.func @transform_7(%arg0: i32) -> (i32, i32, i32) {
    %c0_i32 = arith.constant 0 : i32
    %c0_i32_0 = arith.constant 0 : i32
    %c0_i32_1 = arith.constant 0 : i32
    return %arg0, %c0_i32, %c0_i32_0 : i32, i32, i32
  }
  func.func @transform_8(%arg0: i32) -> (i32, i32, i32) {
    %c0_i32 = arith.constant 0 : i32
    %c0_i32_0 = arith.constant 0 : i32
    %c0_i32_1 = arith.constant 0 : i32
    return %arg0, %c0_i32, %c0_i32_0 : i32, i32, i32
  }
  func.func @transform_9(%arg0: i32) -> (i32, i32, i32) {
    %c0_i32 = arith.constant 0 : i32
    %c0_i32_0 = arith.constant 0 : i32
    %c0_i32_1 = arith.constant 0 : i32
    return %arg0, %c0_i32, %c0_i32_0 : i32, i32, i32
  }
}

module attributes {stable_mosaic.version = 11 : i64} {
  func.func @kernel(%arg0: i32, %arg1: memref<1x18x18x8xf32, #tpu.memory_space<vmem>>, %arg2: memref<1x8xf32, #tpu.memory_space<vmem>>, %arg3: memref<1x8xf32, #tpu.memory_space<vmem>>, %arg4: memref<72x8xf32, #tpu.memory_space<vmem>>, %arg5: memref<1x8xf32, #tpu.memory_space<vmem>>, %arg6: memref<1x8xf32, #tpu.memory_space<vmem>>, %arg7: memref<1x10x10x16xf32, #tpu.memory_space<vmem>>, %arg8: memref<1x16xf32, #tpu.memory_space<vmem>>, %arg9: memref<1x16xf32, #tpu.memory_space<vmem>>, %arg10: memref<144x16xf32, #tpu.memory_space<vmem>>, %arg11: memref<1x16xf32, #tpu.memory_space<vmem>>, %arg12: memref<1x16xf32, #tpu.memory_space<vmem>>, %arg13: memref<1x6x6x32xf32, #tpu.memory_space<vmem>>, %arg14: memref<1x32xf32, #tpu.memory_space<vmem>>, %arg15: memref<1x32xf32, #tpu.memory_space<vmem>>, %arg16: memref<288x32xf32, #tpu.memory_space<vmem>>, %arg17: memref<1x32xf32, #tpu.memory_space<vmem>>, %arg18: memref<1x32xf32, #tpu.memory_space<vmem>>, %arg19: memref<1x8x256xf32, #tpu.memory_space<vmem>>, %arg20: memref<1x16x64xf32, #tpu.memory_space<vmem>>, %arg21: memref<1x32x16xf32, #tpu.memory_space<vmem>>) attributes {dimension_semantics = [#tpu.dimension_semantics<parallel>], iteration_bounds = array<i64: 2>, scalar_prefetch = 0 : i64, scratch_operands = 0 : i64, tpu.core_type = #tpu.core_type<tc>, window_params = [{transform_indices = @transform_0, window_bounds = array<i64: 1, 18, 18, 8>}, {pipeline_mode = #tpu.pipeline_mode<synchronous>, transform_indices = @transform_1, window_bounds = array<i64: 1, 8>}, {pipeline_mode = #tpu.pipeline_mode<synchronous>, transform_indices = @transform_2, window_bounds = array<i64: 1, 8>}, {pipeline_mode = #tpu.pipeline_mode<synchronous>, transform_indices = @transform_3, window_bounds = array<i64: 72, 8>}, {pipeline_mode = #tpu.pipeline_mode<synchronous>, transform_indices = @transform_4, window_bounds = array<i64: 1, 8>}, {pipeline_mode = #tpu.pipeline_mode<synchronous>, transform_indices = @transform_5, window_bounds = array<i64: 1, 8>}, {transform_indices = @transform_6, window_bounds = array<i64: 1, 10, 10, 16>}, {pipeline_mode = #tpu.pipeline_mode<synchronous>, transform_indices = @transform_7, window_bounds = array<i64: 1, 16>}, {pipeline_mode = #tpu.pipeline_mode<synchronous>, transform_indices = @transform_8, window_bounds = array<i64: 1, 16>}, {pipeline_mode = #tpu.pipeline_mode<synchronous>, transform_indices = @transform_9, window_bounds = array<i64: 144, 16>}, {pipeline_mode = #tpu.pipeline_mode<synchronous>, transform_indices = @transform_10, window_bounds = array<i64: 1, 16>}, {pipeline_mode = #tpu.pipeline_mode<synchronous>, transform_indices = @transform_11, window_bounds = array<i64: 1, 16>}, {transform_indices = @transform_12, window_bounds = array<i64: 1, 6, 6, 32>}, {pipeline_mode = #tpu.pipeline_mode<synchronous>, transform_indices = @transform_13, window_bounds = array<i64: 1, 32>}, {pipeline_mode = #tpu.pipeline_mode<synchronous>, transform_indices = @transform_14, window_bounds = array<i64: 1, 32>}, {pipeline_mode = #tpu.pipeline_mode<synchronous>, transform_indices = @transform_15, window_bounds = array<i64: 288, 32>}, {pipeline_mode = #tpu.pipeline_mode<synchronous>, transform_indices = @transform_16, window_bounds = array<i64: 1, 32>}, {pipeline_mode = #tpu.pipeline_mode<synchronous>, transform_indices = @transform_17, window_bounds = array<i64: 1, 32>}, {transform_indices = @transform_18, window_bounds = array<i64: 1, 8, 256>}, {transform_indices = @transform_19, window_bounds = array<i64: 1, 16, 64>}, {transform_indices = @transform_20, window_bounds = array<i64: 1, 32, 16>}]} {
    %c0 = arith.constant 0 : index
    %c0_0 = arith.constant 0 : index
    %c0_1 = arith.constant 0 : index
    %c0_2 = arith.constant 0 : index
    %0 = vector.load %arg1[%c0, %c0_0, %c0_1, %c0_2] : memref<1x18x18x8xf32, #tpu.memory_space<vmem>>, vector<1x18x18x8xf32>
    %c0_3 = arith.constant 0 : index
    %c0_4 = arith.constant 0 : index
    %1 = vector.load %arg2[%c0_3, %c0_4] : memref<1x8xf32, #tpu.memory_space<vmem>>, vector<1x8xf32>
    %c0_5 = arith.constant 0 : index
    %c0_6 = arith.constant 0 : index
    %2 = vector.load %arg3[%c0_5, %c0_6] : memref<1x8xf32, #tpu.memory_space<vmem>>, vector<1x8xf32>
    %c0_7 = arith.constant 0 : index
    %c0_8 = arith.constant 0 : index
    %3 = vector.load %arg4[%c0_7, %c0_8] : memref<72x8xf32, #tpu.memory_space<vmem>>, vector<72x8xf32>
    %c0_9 = arith.constant 0 : index
    %c0_10 = arith.constant 0 : index
    %4 = vector.load %arg5[%c0_9, %c0_10] : memref<1x8xf32, #tpu.memory_space<vmem>>, vector<1x8xf32>
    %c0_11 = arith.constant 0 : index
    %c0_12 = arith.constant 0 : index
    %5 = vector.load %arg6[%c0_11, %c0_12] : memref<1x8xf32, #tpu.memory_space<vmem>>, vector<1x8xf32>
    %cst = arith.constant dense<0.000000e+00> : vector<1x18x18xf32>
    %6 = vector.multi_reduction <add>, %0, %cst [3] : vector<1x18x18x8xf32> to vector<1x18x18xf32>
    %7 = vector.shape_cast %6 : vector<1x18x18xf32> to vector<1x18x18x1xf32>
    %cst_13 = arith.constant 8.000000e+00 : f32
    %8 = vector.broadcast %cst_13 : f32 to vector<1x18x18x1xf32>
    %9 = arith.divf %7, %8 : vector<1x18x18x1xf32>
    %10 = vector.broadcast %9 : vector<1x18x18x1xf32> to vector<1x18x18x8xf32>
    %11 = arith.subf %0, %10 : vector<1x18x18x8xf32>
    %12 = arith.mulf %11, %11 : vector<1x18x18x8xf32>
    %cst_14 = arith.constant dense<0.000000e+00> : vector<1x18x18xf32>
    %13 = vector.multi_reduction <add>, %12, %cst_14 [3] : vector<1x18x18x8xf32> to vector<1x18x18xf32>
    %14 = vector.shape_cast %13 : vector<1x18x18xf32> to vector<1x18x18x1xf32>
    %cst_15 = arith.constant 8.000000e+00 : f32
    %15 = vector.broadcast %cst_15 : f32 to vector<1x18x18x1xf32>
    %16 = arith.divf %14, %15 : vector<1x18x18x1xf32>
    %17 = vector.broadcast %9 : vector<1x18x18x1xf32> to vector<1x18x18x8xf32>
    %18 = arith.subf %0, %17 : vector<1x18x18x8xf32>
    %cst_16 = arith.constant 9.99999997E-7 : f32
    %19 = vector.broadcast %cst_16 : f32 to vector<1x18x18x1xf32>
    %20 = arith.addf %16, %19 : vector<1x18x18x1xf32>
    %21 = math.rsqrt %20 : vector<1x18x18x1xf32>
    %22 = vector.broadcast %21 : vector<1x18x18x1xf32> to vector<1x18x18x8xf32>
    %23 = arith.mulf %18, %22 : vector<1x18x18x8xf32>
    %24 = vector.shape_cast %1 : vector<1x8xf32> to vector<1x1x1x8xf32>
    %25 = vector.broadcast %24 : vector<1x1x1x8xf32> to vector<1x18x18x8xf32>
    %26 = arith.mulf %23, %25 : vector<1x18x18x8xf32>
    %27 = vector.shape_cast %2 : vector<1x8xf32> to vector<1x1x1x8xf32>
    %28 = vector.broadcast %27 : vector<1x1x1x8xf32> to vector<1x18x18x8xf32>
    %29 = arith.addf %26, %28 : vector<1x18x18x8xf32>
    %30 = tpu.iota {dimensions = array<i32: 1>} : vector<1x18x18x1xi32>
    %31 = tpu.iota {dimensions = array<i32: 2>} : vector<1x18x18x1xi32>
    %c1_i32 = arith.constant 1 : i32
    %32 = vector.broadcast %c1_i32 : i32 to vector<1x18x18x1xi32>
    %33 = arith.cmpi sge, %30, %32 : vector<1x18x18x1xi32>
    %c16_i32 = arith.constant 16 : i32
    %34 = vector.broadcast %c16_i32 : i32 to vector<1x18x18x1xi32>
    %35 = arith.cmpi sle, %30, %34 : vector<1x18x18x1xi32>
    %36 = arith.andi %33, %35 : vector<1x18x18x1xi1>
    %c1_i32_17 = arith.constant 1 : i32
    %37 = vector.broadcast %c1_i32_17 : i32 to vector<1x18x18x1xi32>
    %38 = arith.cmpi sge, %31, %37 : vector<1x18x18x1xi32>
    %39 = arith.andi %36, %38 : vector<1x18x18x1xi1>
    %c16_i32_18 = arith.constant 16 : i32
    %40 = vector.broadcast %c16_i32_18 : i32 to vector<1x18x18x1xi32>
    %41 = arith.cmpi sle, %31, %40 : vector<1x18x18x1xi32>
    %42 = arith.andi %39, %41 : vector<1x18x18x1xi1>
    %cst_19 = arith.constant 0.000000e+00 : f32
    %43 = vector.shape_cast %42 : vector<1x18x18x1xi1> to vector<1x18x18x1xi1>
    %44 = vector.broadcast %43 : vector<1x18x18x1xi1> to vector<1x18x18x8xi1>
    %45 = vector.broadcast %cst_19 : f32 to vector<1x18x18x8xf32>
    %46 = arith.select %44, %29, %45 : vector<1x18x18x8xi1>, vector<1x18x18x8xf32>
    %47 = vector.extract_strided_slice %46 {offsets = [0, 0, 0, 0], sizes = [1, 16, 16, 8], strides = [1, 1, 1, 1]} : vector<1x18x18x8xf32> to vector<1x16x16x8xf32>
    %48 = vector.shape_cast %47 : vector<1x16x16x8xf32> to vector<256x8xf32>
    %49 = vector.extract_strided_slice %46 {offsets = [0, 0, 1, 0], sizes = [1, 16, 16, 8], strides = [1, 1, 1, 1]} : vector<1x18x18x8xf32> to vector<1x16x16x8xf32>
    %50 = vector.shape_cast %49 : vector<1x16x16x8xf32> to vector<256x8xf32>
    %51 = vector.extract_strided_slice %46 {offsets = [0, 0, 2, 0], sizes = [1, 16, 16, 8], strides = [1, 1, 1, 1]} : vector<1x18x18x8xf32> to vector<1x16x16x8xf32>
    %52 = vector.shape_cast %51 : vector<1x16x16x8xf32> to vector<256x8xf32>
    %53 = vector.extract_strided_slice %46 {offsets = [0, 1, 0, 0], sizes = [1, 16, 16, 8], strides = [1, 1, 1, 1]} : vector<1x18x18x8xf32> to vector<1x16x16x8xf32>
    %54 = vector.shape_cast %53 : vector<1x16x16x8xf32> to vector<256x8xf32>
    %55 = vector.extract_strided_slice %46 {offsets = [0, 1, 1, 0], sizes = [1, 16, 16, 8], strides = [1, 1, 1, 1]} : vector<1x18x18x8xf32> to vector<1x16x16x8xf32>
    %56 = vector.shape_cast %55 : vector<1x16x16x8xf32> to vector<256x8xf32>
    %57 = vector.extract_strided_slice %46 {offsets = [0, 1, 2, 0], sizes = [1, 16, 16, 8], strides = [1, 1, 1, 1]} : vector<1x18x18x8xf32> to vector<1x16x16x8xf32>
    %58 = vector.shape_cast %57 : vector<1x16x16x8xf32> to vector<256x8xf32>
    %59 = vector.extract_strided_slice %46 {offsets = [0, 2, 0, 0], sizes = [1, 16, 16, 8], strides = [1, 1, 1, 1]} : vector<1x18x18x8xf32> to vector<1x16x16x8xf32>
    %60 = vector.shape_cast %59 : vector<1x16x16x8xf32> to vector<256x8xf32>
    %61 = vector.extract_strided_slice %46 {offsets = [0, 2, 1, 0], sizes = [1, 16, 16, 8], strides = [1, 1, 1, 1]} : vector<1x18x18x8xf32> to vector<1x16x16x8xf32>
    %62 = vector.shape_cast %61 : vector<1x16x16x8xf32> to vector<256x8xf32>
    %63 = vector.extract_strided_slice %46 {offsets = [0, 2, 2, 0], sizes = [1, 16, 16, 8], strides = [1, 1, 1, 1]} : vector<1x18x18x8xf32> to vector<1x16x16x8xf32>
    %64 = vector.shape_cast %63 : vector<1x16x16x8xf32> to vector<256x8xf32>
    %65 = tpu.concatenate %48, %50, %52, %54, %56, %58, %60, %62, %64 in 1 : vector<256x8xf32>, vector<256x8xf32>, vector<256x8xf32>, vector<256x8xf32>, vector<256x8xf32>, vector<256x8xf32>, vector<256x8xf32>, vector<256x8xf32>, vector<256x8xf32> -> vector<256x72xf32>
    %cst_20 = arith.constant dense<0.000000e+00> : vector<256x8xf32>
    %66 = tpu.matmul %65, %3, %cst_20 {dimension_numbers = #tpu.dot_dimension_numbers<[1], [0], [0], [1], [0, 0, 1, 1], [], []>} : vector<256x72xf32>, vector<72x8xf32>, vector<256x8xf32> -> vector<256x8xf32>
    %cst_21 = arith.constant dense<0.000000e+00> : vector<256xf32>
    %67 = vector.multi_reduction <add>, %66, %cst_21 [1] : vector<256x8xf32> to vector<256xf32>
    %68 = vector.shape_cast %67 : vector<256xf32> to vector<256x1xf32>
    %cst_22 = arith.constant 8.000000e+00 : f32
    %69 = vector.broadcast %cst_22 : f32 to vector<256x1xf32>
    %70 = arith.divf %68, %69 : vector<256x1xf32>
    %71 = vector.broadcast %70 : vector<256x1xf32> to vector<256x8xf32>
    %72 = arith.subf %66, %71 : vector<256x8xf32>
    %73 = arith.mulf %72, %72 : vector<256x8xf32>
    %cst_23 = arith.constant dense<0.000000e+00> : vector<256xf32>
    %74 = vector.multi_reduction <add>, %73, %cst_23 [1] : vector<256x8xf32> to vector<256xf32>
    %75 = vector.shape_cast %74 : vector<256xf32> to vector<256x1xf32>
    %cst_24 = arith.constant 8.000000e+00 : f32
    %76 = vector.broadcast %cst_24 : f32 to vector<256x1xf32>
    %77 = arith.divf %75, %76 : vector<256x1xf32>
    %78 = vector.broadcast %70 : vector<256x1xf32> to vector<256x8xf32>
    %79 = arith.subf %66, %78 : vector<256x8xf32>
    %cst_25 = arith.constant 9.99999997E-7 : f32
    %80 = vector.broadcast %cst_25 : f32 to vector<256x1xf32>
    %81 = arith.addf %77, %80 : vector<256x1xf32>
    %82 = math.rsqrt %81 : vector<256x1xf32>
    %83 = vector.broadcast %82 : vector<256x1xf32> to vector<256x8xf32>
    %84 = arith.mulf %79, %83 : vector<256x8xf32>
    %85 = vector.broadcast %4 : vector<1x8xf32> to vector<256x8xf32>
    %86 = arith.mulf %84, %85 : vector<256x8xf32>
    %87 = vector.broadcast %5 : vector<1x8xf32> to vector<256x8xf32>
    %88 = arith.addf %86, %87 : vector<256x8xf32>
    %89 = vector.shape_cast %88 : vector<256x8xf32> to vector<1x256x8xf32>
    %90 = tpu.transpose %89, [0, 2, 1] : vector<1x256x8xf32> -> vector<1x8x256xf32>
    %c0_26 = arith.constant 0 : index
    %c0_27 = arith.constant 0 : index
    %c0_28 = arith.constant 0 : index
    %91 = vector.load %arg19[%c0_26, %c0_27, %c0_28] : memref<1x8x256xf32, #tpu.memory_space<vmem>>, vector<1x8x256xf32>
    tpu.vector_store %arg19[%c0_26, %c0_27, %c0_28], %90 {strides = array<i32>} : memref<1x8x256xf32, #tpu.memory_space<vmem>>, vector<1x8x256xf32>,
    %c0_29 = arith.constant 0 : index
    %c0_30 = arith.constant 0 : index
    %c0_31 = arith.constant 0 : index
    %c0_32 = arith.constant 0 : index
    %92 = vector.load %arg7[%c0_29, %c0_30, %c0_31, %c0_32] : memref<1x10x10x16xf32, #tpu.memory_space<vmem>>, vector<1x10x10x16xf32>
    %c0_33 = arith.constant 0 : index
    %c0_34 = arith.constant 0 : index
    %93 = vector.load %arg8[%c0_33, %c0_34] : memref<1x16xf32, #tpu.memory_space<vmem>>, vector<1x16xf32>
    %c0_35 = arith.constant 0 : index
    %c0_36 = arith.constant 0 : index
    %94 = vector.load %arg9[%c0_35, %c0_36] : memref<1x16xf32, #tpu.memory_space<vmem>>, vector<1x16xf32>
    %c0_37 = arith.constant 0 : index
    %c0_38 = arith.constant 0 : index
    %95 = vector.load %arg10[%c0_37, %c0_38] : memref<144x16xf32, #tpu.memory_space<vmem>>, vector<144x16xf32>
    %c0_39 = arith.constant 0 : index
    %c0_40 = arith.constant 0 : index
    %96 = vector.load %arg11[%c0_39, %c0_40] : memref<1x16xf32, #tpu.memory_space<vmem>>, vector<1x16xf32>
    %c0_41 = arith.constant 0 : index
    %c0_42 = arith.constant 0 : index
    %97 = vector.load %arg12[%c0_41, %c0_42] : memref<1x16xf32, #tpu.memory_space<vmem>>, vector<1x16xf32>
    %cst_43 = arith.constant dense<0.000000e+00> : vector<1x10x10xf32>
    %98 = vector.multi_reduction <add>, %92, %cst_43 [3] : vector<1x10x10x16xf32> to vector<1x10x10xf32>
    %99 = vector.shape_cast %98 : vector<1x10x10xf32> to vector<1x10x10x1xf32>
    %cst_44 = arith.constant 1.600000e+01 : f32
    %100 = vector.broadcast %cst_44 : f32 to vector<1x10x10x1xf32>
    %101 = arith.divf %99, %100 : vector<1x10x10x1xf32>
    %102 = vector.broadcast %101 : vector<1x10x10x1xf32> to vector<1x10x10x16xf32>
    %103 = arith.subf %92, %102 : vector<1x10x10x16xf32>
    %104 = arith.mulf %103, %103 : vector<1x10x10x16xf32>
    %cst_45 = arith.constant dense<0.000000e+00> : vector<1x10x10xf32>
    %105 = vector.multi_reduction <add>, %104, %cst_45 [3] : vector<1x10x10x16xf32> to vector<1x10x10xf32>
    %106 = vector.shape_cast %105 : vector<1x10x10xf32> to vector<1x10x10x1xf32>
    %cst_46 = arith.constant 1.600000e+01 : f32
    %107 = vector.broadcast %cst_46 : f32 to vector<1x10x10x1xf32>
    %108 = arith.divf %106, %107 : vector<1x10x10x1xf32>
    %109 = vector.broadcast %101 : vector<1x10x10x1xf32> to vector<1x10x10x16xf32>
    %110 = arith.subf %92, %109 : vector<1x10x10x16xf32>
    %cst_47 = arith.constant 9.99999997E-7 : f32
    %111 = vector.broadcast %cst_47 : f32 to vector<1x10x10x1xf32>
    %112 = arith.addf %108, %111 : vector<1x10x10x1xf32>
    %113 = math.rsqrt %112 : vector<1x10x10x1xf32>
    %114 = vector.broadcast %113 : vector<1x10x10x1xf32> to vector<1x10x10x16xf32>
    %115 = arith.mulf %110, %114 : vector<1x10x10x16xf32>
    %116 = vector.shape_cast %93 : vector<1x16xf32> to vector<1x1x1x16xf32>
    %117 = vector.broadcast %116 : vector<1x1x1x16xf32> to vector<1x10x10x16xf32>
    %118 = arith.mulf %115, %117 : vector<1x10x10x16xf32>
    %119 = vector.shape_cast %94 : vector<1x16xf32> to vector<1x1x1x16xf32>
    %120 = vector.broadcast %119 : vector<1x1x1x16xf32> to vector<1x10x10x16xf32>
    %121 = arith.addf %118, %120 : vector<1x10x10x16xf32>
    %122 = tpu.iota {dimensions = array<i32: 1>} : vector<1x10x10x1xi32>
    %123 = tpu.iota {dimensions = array<i32: 2>} : vector<1x10x10x1xi32>
    %c1_i32_48 = arith.constant 1 : i32
    %124 = vector.broadcast %c1_i32_48 : i32 to vector<1x10x10x1xi32>
    %125 = arith.cmpi sge, %122, %124 : vector<1x10x10x1xi32>
    %c8_i32 = arith.constant 8 : i32
    %126 = vector.broadcast %c8_i32 : i32 to vector<1x10x10x1xi32>
    %127 = arith.cmpi sle, %122, %126 : vector<1x10x10x1xi32>
    %128 = arith.andi %125, %127 : vector<1x10x10x1xi1>
    %c1_i32_49 = arith.constant 1 : i32
    %129 = vector.broadcast %c1_i32_49 : i32 to vector<1x10x10x1xi32>
    %130 = arith.cmpi sge, %123, %129 : vector<1x10x10x1xi32>
    %131 = arith.andi %128, %130 : vector<1x10x10x1xi1>
    %c8_i32_50 = arith.constant 8 : i32
    %132 = vector.broadcast %c8_i32_50 : i32 to vector<1x10x10x1xi32>
    %133 = arith.cmpi sle, %123, %132 : vector<1x10x10x1xi32>
    %134 = arith.andi %131, %133 : vector<1x10x10x1xi1>
    %cst_51 = arith.constant 0.000000e+00 : f32
    %135 = vector.shape_cast %134 : vector<1x10x10x1xi1> to vector<1x10x10x1xi1>
    %136 = vector.broadcast %135 : vector<1x10x10x1xi1> to vector<1x10x10x16xi1>
    %137 = vector.broadcast %cst_51 : f32 to vector<1x10x10x16xf32>
    %138 = arith.select %136, %121, %137 : vector<1x10x10x16xi1>, vector<1x10x10x16xf32>
    %139 = vector.extract_strided_slice %138 {offsets = [0, 0, 0, 0], sizes = [1, 8, 8, 16], strides = [1, 1, 1, 1]} : vector<1x10x10x16xf32> to vector<1x8x8x16xf32>
    %140 = vector.shape_cast %139 : vector<1x8x8x16xf32> to vector<64x16xf32>
    %141 = vector.extract_strided_slice %138 {offsets = [0, 0, 1, 0], sizes = [1, 8, 8, 16], strides = [1, 1, 1, 1]} : vector<1x10x10x16xf32> to vector<1x8x8x16xf32>
    %142 = vector.shape_cast %141 : vector<1x8x8x16xf32> to vector<64x16xf32>
    %143 = vector.extract_strided_slice %138 {offsets = [0, 0, 2, 0], sizes = [1, 8, 8, 16], strides = [1, 1, 1, 1]} : vector<1x10x10x16xf32> to vector<1x8x8x16xf32>
    %144 = vector.shape_cast %143 : vector<1x8x8x16xf32> to vector<64x16xf32>
    %145 = vector.extract_strided_slice %138 {offsets = [0, 1, 0, 0], sizes = [1, 8, 8, 16], strides = [1, 1, 1, 1]} : vector<1x10x10x16xf32> to vector<1x8x8x16xf32>
    %146 = vector.shape_cast %145 : vector<1x8x8x16xf32> to vector<64x16xf32>
    %147 = vector.extract_strided_slice %138 {offsets = [0, 1, 1, 0], sizes = [1, 8, 8, 16], strides = [1, 1, 1, 1]} : vector<1x10x10x16xf32> to vector<1x8x8x16xf32>
    %148 = vector.shape_cast %147 : vector<1x8x8x16xf32> to vector<64x16xf32>
    %149 = vector.extract_strided_slice %138 {offsets = [0, 1, 2, 0], sizes = [1, 8, 8, 16], strides = [1, 1, 1, 1]} : vector<1x10x10x16xf32> to vector<1x8x8x16xf32>
    %150 = vector.shape_cast %149 : vector<1x8x8x16xf32> to vector<64x16xf32>
    %151 = vector.extract_strided_slice %138 {offsets = [0, 2, 0, 0], sizes = [1, 8, 8, 16], strides = [1, 1, 1, 1]} : vector<1x10x10x16xf32> to vector<1x8x8x16xf32>
    %152 = vector.shape_cast %151 : vector<1x8x8x16xf32> to vector<64x16xf32>
    %153 = vector.extract_strided_slice %138 {offsets = [0, 2, 1, 0], sizes = [1, 8, 8, 16], strides = [1, 1, 1, 1]} : vector<1x10x10x16xf32> to vector<1x8x8x16xf32>
    %154 = vector.shape_cast %153 : vector<1x8x8x16xf32> to vector<64x16xf32>
    %155 = vector.extract_strided_slice %138 {offsets = [0, 2, 2, 0], sizes = [1, 8, 8, 16], strides = [1, 1, 1, 1]} : vector<1x10x10x16xf32> to vector<1x8x8x16xf32>
    %156 = vector.shape_cast %155 : vector<1x8x8x16xf32> to vector<64x16xf32>
    %157 = tpu.concatenate %140, %142, %144, %146, %148, %150, %152, %154, %156 in 1 : vector<64x16xf32>, vector<64x16xf32>, vector<64x16xf32>, vector<64x16xf32>, vector<64x16xf32>, vector<64x16xf32>, vector<64x16xf32>, vector<64x16xf32>, vector<64x16xf32> -> vector<64x144xf32>
    %cst_52 = arith.constant dense<0.000000e+00> : vector<64x16xf32>
    %158 = tpu.matmul %157, %95, %cst_52 {dimension_numbers = #tpu.dot_dimension_numbers<[1], [0], [0], [1], [0, 0, 1, 1], [], []>} : vector<64x144xf32>, vector<144x16xf32>, vector<64x16xf32> -> vector<64x16xf32>
    %cst_53 = arith.constant dense<0.000000e+00> : vector<64xf32>
    %159 = vector.multi_reduction <add>, %158, %cst_53 [1] : vector<64x16xf32> to vector<64xf32>
    %160 = vector.shape_cast %159 : vector<64xf32> to vector<64x1xf32>
    %cst_54 = arith.constant 1.600000e+01 : f32
    %161 = vector.broadcast %cst_54 : f32 to vector<64x1xf32>
    %162 = arith.divf %160, %161 : vector<64x1xf32>
    %163 = vector.broadcast %162 : vector<64x1xf32> to vector<64x16xf32>
    %164 = arith.subf %158, %163 : vector<64x16xf32>
    %165 = arith.mulf %164, %164 : vector<64x16xf32>
    %cst_55 = arith.constant dense<0.000000e+00> : vector<64xf32>
    %166 = vector.multi_reduction <add>, %165, %cst_55 [1] : vector<64x16xf32> to vector<64xf32>
    %167 = vector.shape_cast %166 : vector<64xf32> to vector<64x1xf32>
    %cst_56 = arith.constant 1.600000e+01 : f32
    %168 = vector.broadcast %cst_56 : f32 to vector<64x1xf32>
    %169 = arith.divf %167, %168 : vector<64x1xf32>
    %170 = vector.broadcast %162 : vector<64x1xf32> to vector<64x16xf32>
    %171 = arith.subf %158, %170 : vector<64x16xf32>
    %cst_57 = arith.constant 9.99999997E-7 : f32
    %172 = vector.broadcast %cst_57 : f32 to vector<64x1xf32>
    %173 = arith.addf %169, %172 : vector<64x1xf32>
    %174 = math.rsqrt %173 : vector<64x1xf32>
    %175 = vector.broadcast %174 : vector<64x1xf32> to vector<64x16xf32>
    %176 = arith.mulf %171, %175 : vector<64x16xf32>
    %177 = vector.broadcast %96 : vector<1x16xf32> to vector<64x16xf32>
    %178 = arith.mulf %176, %177 : vector<64x16xf32>
    %179 = vector.broadcast %97 : vector<1x16xf32> to vector<64x16xf32>
    %180 = arith.addf %178, %179 : vector<64x16xf32>
    %181 = vector.shape_cast %180 : vector<64x16xf32> to vector<1x64x16xf32>
    %182 = tpu.transpose %181, [0, 2, 1] : vector<1x64x16xf32> -> vector<1x16x64xf32>
    %c0_58 = arith.constant 0 : index
    %c0_59 = arith.constant 0 : index
    %c0_60 = arith.constant 0 : index
    %183 = vector.load %arg20[%c0_58, %c0_59, %c0_60] : memref<1x16x64xf32, #tpu.memory_space<vmem>>, vector<1x16x64xf32>
    tpu.vector_store %arg20[%c0_58, %c0_59, %c0_60], %182 {strides = array<i32>} : memref<1x16x64xf32, #tpu.memory_space<vmem>>, vector<1x16x64xf32>,
    %c0_61 = arith.constant 0 : index
    %c0_62 = arith.constant 0 : index
    %c0_63 = arith.constant 0 : index
    %c0_64 = arith.constant 0 : index
    %184 = vector.load %arg13[%c0_61, %c0_62, %c0_63, %c0_64] : memref<1x6x6x32xf32, #tpu.memory_space<vmem>>, vector<1x6x6x32xf32>
    %c0_65 = arith.constant 0 : index
    %c0_66 = arith.constant 0 : index
    %185 = vector.load %arg14[%c0_65, %c0_66] : memref<1x32xf32, #tpu.memory_space<vmem>>, vector<1x32xf32>
    %c0_67 = arith.constant 0 : index
    %c0_68 = arith.constant 0 : index
    %186 = vector.load %arg15[%c0_67, %c0_68] : memref<1x32xf32, #tpu.memory_space<vmem>>, vector<1x32xf32>
    %c0_69 = arith.constant 0 : index
    %c0_70 = arith.constant 0 : index
    %187 = vector.load %arg16[%c0_69, %c0_70] : memref<288x32xf32, #tpu.memory_space<vmem>>, vector<288x32xf32>
    %c0_71 = arith.constant 0 : index
    %c0_72 = arith.constant 0 : index
    %188 = vector.load %arg17[%c0_71, %c0_72] : memref<1x32xf32, #tpu.memory_space<vmem>>, vector<1x32xf32>
    %c0_73 = arith.constant 0 : index
    %c0_74 = arith.constant 0 : index
    %189 = vector.load %arg18[%c0_73, %c0_74] : memref<1x32xf32, #tpu.memory_space<vmem>>, vector<1x32xf32>
    %cst_75 = arith.constant dense<0.000000e+00> : vector<1x6x6xf32>
    %190 = vector.multi_reduction <add>, %184, %cst_75 [3] : vector<1x6x6x32xf32> to vector<1x6x6xf32>
    %191 = vector.shape_cast %190 : vector<1x6x6xf32> to vector<1x6x6x1xf32>
    %cst_76 = arith.constant 3.200000e+01 : f32
    %192 = vector.broadcast %cst_76 : f32 to vector<1x6x6x1xf32>
    %193 = arith.divf %191, %192 : vector<1x6x6x1xf32>
    %194 = vector.broadcast %193 : vector<1x6x6x1xf32> to vector<1x6x6x32xf32>
    %195 = arith.subf %184, %194 : vector<1x6x6x32xf32>
    %196 = arith.mulf %195, %195 : vector<1x6x6x32xf32>
    %cst_77 = arith.constant dense<0.000000e+00> : vector<1x6x6xf32>
    %197 = vector.multi_reduction <add>, %196, %cst_77 [3] : vector<1x6x6x32xf32> to vector<1x6x6xf32>
    %198 = vector.shape_cast %197 : vector<1x6x6xf32> to vector<1x6x6x1xf32>
    %cst_78 = arith.constant 3.200000e+01 : f32
    %199 = vector.broadcast %cst_78 : f32 to vector<1x6x6x1xf32>
    %200 = arith.divf %198, %199 : vector<1x6x6x1xf32>
    %201 = vector.broadcast %193 : vector<1x6x6x1xf32> to vector<1x6x6x32xf32>
    %202 = arith.subf %184, %201 : vector<1x6x6x32xf32>
    %cst_79 = arith.constant 9.99999997E-7 : f32
    %203 = vector.broadcast %cst_79 : f32 to vector<1x6x6x1xf32>
    %204 = arith.addf %200, %203 : vector<1x6x6x1xf32>
    %205 = math.rsqrt %204 : vector<1x6x6x1xf32>
    %206 = vector.broadcast %205 : vector<1x6x6x1xf32> to vector<1x6x6x32xf32>
    %207 = arith.mulf %202, %206 : vector<1x6x6x32xf32>
    %208 = vector.shape_cast %185 : vector<1x32xf32> to vector<1x1x1x32xf32>
    %209 = vector.broadcast %208 : vector<1x1x1x32xf32> to vector<1x6x6x32xf32>
    %210 = arith.mulf %207, %209 : vector<1x6x6x32xf32>
    %211 = vector.shape_cast %186 : vector<1x32xf32> to vector<1x1x1x32xf32>
    %212 = vector.broadcast %211 : vector<1x1x1x32xf32> to vector<1x6x6x32xf32>
    %213 = arith.addf %210, %212 : vector<1x6x6x32xf32>
    %214 = tpu.iota {dimensions = array<i32: 1>} : vector<1x6x6x1xi32>
    %215 = tpu.iota {dimensions = array<i32: 2>} : vector<1x6x6x1xi32>
    %c1_i32_80 = arith.constant 1 : i32
    %216 = vector.broadcast %c1_i32_80 : i32 to vector<1x6x6x1xi32>
    %217 = arith.cmpi sge, %214, %216 : vector<1x6x6x1xi32>
    %c4_i32 = arith.constant 4 : i32
    %218 = vector.broadcast %c4_i32 : i32 to vector<1x6x6x1xi32>
    %219 = arith.cmpi sle, %214, %218 : vector<1x6x6x1xi32>
    %220 = arith.andi %217, %219 : vector<1x6x6x1xi1>
    %c1_i32_81 = arith.constant 1 : i32
    %221 = vector.broadcast %c1_i32_81 : i32 to vector<1x6x6x1xi32>
    %222 = arith.cmpi sge, %215, %221 : vector<1x6x6x1xi32>
    %223 = arith.andi %220, %222 : vector<1x6x6x1xi1>
    %c4_i32_82 = arith.constant 4 : i32
    %224 = vector.broadcast %c4_i32_82 : i32 to vector<1x6x6x1xi32>
    %225 = arith.cmpi sle, %215, %224 : vector<1x6x6x1xi32>
    %226 = arith.andi %223, %225 : vector<1x6x6x1xi1>
    %cst_83 = arith.constant 0.000000e+00 : f32
    %227 = vector.shape_cast %226 : vector<1x6x6x1xi1> to vector<1x6x6x1xi1>
    %228 = vector.broadcast %227 : vector<1x6x6x1xi1> to vector<1x6x6x32xi1>
    %229 = vector.broadcast %cst_83 : f32 to vector<1x6x6x32xf32>
    %230 = arith.select %228, %213, %229 : vector<1x6x6x32xi1>, vector<1x6x6x32xf32>
    %231 = vector.extract_strided_slice %230 {offsets = [0, 0, 0, 0], sizes = [1, 4, 4, 32], strides = [1, 1, 1, 1]} : vector<1x6x6x32xf32> to vector<1x4x4x32xf32>
    %232 = vector.shape_cast %231 : vector<1x4x4x32xf32> to vector<16x32xf32>
    %233 = vector.extract_strided_slice %230 {offsets = [0, 0, 1, 0], sizes = [1, 4, 4, 32], strides = [1, 1, 1, 1]} : vector<1x6x6x32xf32> to vector<1x4x4x32xf32>
    %234 = vector.shape_cast %233 : vector<1x4x4x32xf32> to vector<16x32xf32>
    %235 = vector.extract_strided_slice %230 {offsets = [0, 0, 2, 0], sizes = [1, 4, 4, 32], strides = [1, 1, 1, 1]} : vector<1x6x6x32xf32> to vector<1x4x4x32xf32>
    %236 = vector.shape_cast %235 : vector<1x4x4x32xf32> to vector<16x32xf32>
    %237 = vector.extract_strided_slice %230 {offsets = [0, 1, 0, 0], sizes = [1, 4, 4, 32], strides = [1, 1, 1, 1]} : vector<1x6x6x32xf32> to vector<1x4x4x32xf32>
    %238 = vector.shape_cast %237 : vector<1x4x4x32xf32> to vector<16x32xf32>
    %239 = vector.extract_strided_slice %230 {offsets = [0, 1, 1, 0], sizes = [1, 4, 4, 32], strides = [1, 1, 1, 1]} : vector<1x6x6x32xf32> to vector<1x4x4x32xf32>
    %240 = vector.shape_cast %239 : vector<1x4x4x32xf32> to vector<16x32xf32>
    %241 = vector.extract_strided_slice %230 {offsets = [0, 1, 2, 0], sizes = [1, 4, 4, 32], strides = [1, 1, 1, 1]} : vector<1x6x6x32xf32> to vector<1x4x4x32xf32>
    %242 = vector.shape_cast %241 : vector<1x4x4x32xf32> to vector<16x32xf32>
    %243 = vector.extract_strided_slice %230 {offsets = [0, 2, 0, 0], sizes = [1, 4, 4, 32], strides = [1, 1, 1, 1]} : vector<1x6x6x32xf32> to vector<1x4x4x32xf32>
    %244 = vector.shape_cast %243 : vector<1x4x4x32xf32> to vector<16x32xf32>
    %245 = vector.extract_strided_slice %230 {offsets = [0, 2, 1, 0], sizes = [1, 4, 4, 32], strides = [1, 1, 1, 1]} : vector<1x6x6x32xf32> to vector<1x4x4x32xf32>
    %246 = vector.shape_cast %245 : vector<1x4x4x32xf32> to vector<16x32xf32>
    %247 = vector.extract_strided_slice %230 {offsets = [0, 2, 2, 0], sizes = [1, 4, 4, 32], strides = [1, 1, 1, 1]} : vector<1x6x6x32xf32> to vector<1x4x4x32xf32>
    %248 = vector.shape_cast %247 : vector<1x4x4x32xf32> to vector<16x32xf32>
    %249 = tpu.concatenate %232, %234, %236, %238, %240, %242, %244, %246, %248 in 1 : vector<16x32xf32>, vector<16x32xf32>, vector<16x32xf32>, vector<16x32xf32>, vector<16x32xf32>, vector<16x32xf32>, vector<16x32xf32>, vector<16x32xf32>, vector<16x32xf32> -> vector<16x288xf32>
    %cst_84 = arith.constant dense<0.000000e+00> : vector<16x32xf32>
    %250 = tpu.matmul %249, %187, %cst_84 {dimension_numbers = #tpu.dot_dimension_numbers<[1], [0], [0], [1], [0, 0, 1, 1], [], []>} : vector<16x288xf32>, vector<288x32xf32>, vector<16x32xf32> -> vector<16x32xf32>
    %cst_85 = arith.constant dense<0.000000e+00> : vector<16xf32>
    %251 = vector.multi_reduction <add>, %250, %cst_85 [1] : vector<16x32xf32> to vector<16xf32>
    %252 = vector.shape_cast %251 : vector<16xf32> to vector<16x1xf32>
    %cst_86 = arith.constant 3.200000e+01 : f32
    %253 = vector.broadcast %cst_86 : f32 to vector<16x1xf32>
    %254 = arith.divf %252, %253 : vector<16x1xf32>
    %255 = vector.broadcast %254 : vector<16x1xf32> to vector<16x32xf32>
    %256 = arith.subf %250, %255 : vector<16x32xf32>
    %257 = arith.mulf %256, %256 : vector<16x32xf32>
    %cst_87 = arith.constant dense<0.000000e+00> : vector<16xf32>
    %258 = vector.multi_reduction <add>, %257, %cst_87 [1] : vector<16x32xf32> to vector<16xf32>
    %259 = vector.shape_cast %258 : vector<16xf32> to vector<16x1xf32>
    %cst_88 = arith.constant 3.200000e+01 : f32
    %260 = vector.broadcast %cst_88 : f32 to vector<16x1xf32>
    %261 = arith.divf %259, %260 : vector<16x1xf32>
    %262 = vector.broadcast %254 : vector<16x1xf32> to vector<16x32xf32>
    %263 = arith.subf %250, %262 : vector<16x32xf32>
    %cst_89 = arith.constant 9.99999997E-7 : f32
    %264 = vector.broadcast %cst_89 : f32 to vector<16x1xf32>
    %265 = arith.addf %261, %264 : vector<16x1xf32>
    %266 = math.rsqrt %265 : vector<16x1xf32>
    %267 = vector.broadcast %266 : vector<16x1xf32> to vector<16x32xf32>
    %268 = arith.mulf %263, %267 : vector<16x32xf32>
    %269 = vector.broadcast %188 : vector<1x32xf32> to vector<16x32xf32>
    %270 = arith.mulf %268, %269 : vector<16x32xf32>
    %271 = vector.broadcast %189 : vector<1x32xf32> to vector<16x32xf32>
    %272 = arith.addf %270, %271 : vector<16x32xf32>
    %273 = vector.shape_cast %272 : vector<16x32xf32> to vector<1x16x32xf32>
    %274 = tpu.transpose %273, [0, 2, 1] : vector<1x16x32xf32> -> vector<1x32x16xf32>
    %c0_90 = arith.constant 0 : index
    %c0_91 = arith.constant 0 : index
    %c0_92 = arith.constant 0 : index
    %275 = vector.load %arg21[%c0_90, %c0_91, %c0_92] : memref<1x32x16xf32, #tpu.memory_space<vmem>>, vector<1x32x16xf32>
    tpu.vector_store %arg21[%c0_90, %c0_91, %c0_92], %274 {strides = array<i32>} : memref<1x32x16xf32, #tpu.memory_space<vmem>>, vector<1x32x16xf32>,
    return
  }
  func.func @transform_0(%arg0: i32) -> (i32, i32, i32, i32) {
    %c0_i32 = arith.constant 0 : i32
    %c0_i32_0 = arith.constant 0 : i32
    %c0_i32_1 = arith.constant 0 : i32
    %c0_i32_2 = arith.constant 0 : i32
    return %arg0, %c0_i32, %c0_i32_0, %c0_i32_1 : i32, i32, i32, i32
  }
  func.func @transform_1(%arg0: i32) -> (i32, i32) {
    %c0_i32 = arith.constant 0 : i32
    %c0_i32_0 = arith.constant 0 : i32
    %c0_i32_1 = arith.constant 0 : i32
    return %c0_i32, %c0_i32_0 : i32, i32
  }
  func.func @transform_2(%arg0: i32) -> (i32, i32) {
    %c0_i32 = arith.constant 0 : i32
    %c0_i32_0 = arith.constant 0 : i32
    %c0_i32_1 = arith.constant 0 : i32
    return %c0_i32, %c0_i32_0 : i32, i32
  }
  func.func @transform_3(%arg0: i32) -> (i32, i32) {
    %c0_i32 = arith.constant 0 : i32
    %c0_i32_0 = arith.constant 0 : i32
    %c0_i32_1 = arith.constant 0 : i32
    return %c0_i32, %c0_i32_0 : i32, i32
  }
  func.func @transform_4(%arg0: i32) -> (i32, i32) {
    %c0_i32 = arith.constant 0 : i32
    %c0_i32_0 = arith.constant 0 : i32
    %c0_i32_1 = arith.constant 0 : i32
    return %c0_i32, %c0_i32_0 : i32, i32
  }
  func.func @transform_5(%arg0: i32) -> (i32, i32) {
    %c0_i32 = arith.constant 0 : i32
    %c0_i32_0 = arith.constant 0 : i32
    %c0_i32_1 = arith.constant 0 : i32
    return %c0_i32, %c0_i32_0 : i32, i32
  }
  func.func @transform_6(%arg0: i32) -> (i32, i32, i32, i32) {
    %c0_i32 = arith.constant 0 : i32
    %c0_i32_0 = arith.constant 0 : i32
    %c0_i32_1 = arith.constant 0 : i32
    %c0_i32_2 = arith.constant 0 : i32
    return %arg0, %c0_i32, %c0_i32_0, %c0_i32_1 : i32, i32, i32, i32
  }
  func.func @transform_7(%arg0: i32) -> (i32, i32) {
    %c0_i32 = arith.constant 0 : i32
    %c0_i32_0 = arith.constant 0 : i32
    %c0_i32_1 = arith.constant 0 : i32
    return %c0_i32, %c0_i32_0 : i32, i32
  }
  func.func @transform_8(%arg0: i32) -> (i32, i32) {
    %c0_i32 = arith.constant 0 : i32
    %c0_i32_0 = arith.constant 0 : i32
    %c0_i32_1 = arith.constant 0 : i32
    return %c0_i32, %c0_i32_0 : i32, i32
  }
  func.func @transform_9(%arg0: i32) -> (i32, i32) {
    %c0_i32 = arith.constant 0 : i32
    %c0_i32_0 = arith.constant 0 : i32
    %c0_i32_1 = arith.constant 0 : i32
    return %c0_i32, %c0_i32_0 : i32, i32
  }
  func.func @transform_10(%arg0: i32) -> (i32, i32) {
    %c0_i32 = arith.constant 0 : i32
    %c0_i32_0 = arith.constant 0 : i32
    %c0_i32_1 = arith.constant 0 : i32
    return %c0_i32, %c0_i32_0 : i32, i32
  }
  func.func @transform_11(%arg0: i32) -> (i32, i32) {
    %c0_i32 = arith.constant 0 : i32
    %c0_i32_0 = arith.constant 0 : i32
    %c0_i32_1 = arith.constant 0 : i32
    return %c0_i32, %c0_i32_0 : i32, i32
  }
  func.func @transform_12(%arg0: i32) -> (i32, i32, i32, i32) {
    %c0_i32 = arith.constant 0 : i32
    %c0_i32_0 = arith.constant 0 : i32
    %c0_i32_1 = arith.constant 0 : i32
    %c0_i32_2 = arith.constant 0 : i32
    return %arg0, %c0_i32, %c0_i32_0, %c0_i32_1 : i32, i32, i32, i32
  }
  func.func @transform_13(%arg0: i32) -> (i32, i32) {
    %c0_i32 = arith.constant 0 : i32
    %c0_i32_0 = arith.constant 0 : i32
    %c0_i32_1 = arith.constant 0 : i32
    return %c0_i32, %c0_i32_0 : i32, i32
  }
  func.func @transform_14(%arg0: i32) -> (i32, i32) {
    %c0_i32 = arith.constant 0 : i32
    %c0_i32_0 = arith.constant 0 : i32
    %c0_i32_1 = arith.constant 0 : i32
    return %c0_i32, %c0_i32_0 : i32, i32
  }
  func.func @transform_15(%arg0: i32) -> (i32, i32) {
    %c0_i32 = arith.constant 0 : i32
    %c0_i32_0 = arith.constant 0 : i32
    %c0_i32_1 = arith.constant 0 : i32
    return %c0_i32, %c0_i32_0 : i32, i32
  }
  func.func @transform_16(%arg0: i32) -> (i32, i32) {
    %c0_i32 = arith.constant 0 : i32
    %c0_i32_0 = arith.constant 0 : i32
    %c0_i32_1 = arith.constant 0 : i32
    return %c0_i32, %c0_i32_0 : i32, i32
  }
  func.func @transform_17(%arg0: i32) -> (i32, i32) {
    %c0_i32 = arith.constant 0 : i32
    %c0_i32_0 = arith.constant 0 : i32
    %c0_i32_1 = arith.constant 0 : i32
    return %c0_i32, %c0_i32_0 : i32, i32
  }
  func.func @transform_18(%arg0: i32) -> (i32, i32, i32) {
    %c0_i32 = arith.constant 0 : i32
    %c0_i32_0 = arith.constant 0 : i32
    %c0_i32_1 = arith.constant 0 : i32
    return %arg0, %c0_i32, %c0_i32_0 : i32, i32, i32
  }
  func.func @transform_19(%arg0: i32) -> (i32, i32, i32) {
    %c0_i32 = arith.constant 0 : i32
    %c0_i32_0 = arith.constant 0 : i32
    %c0_i32_1 = arith.constant 0 : i32
    return %arg0, %c0_i32, %c0_i32_0 : i32, i32, i32
  }
  func.func @transform_20(%arg0: i32) -> (i32, i32, i32) {
    %c0_i32 = arith.constant 0 : i32
    %c0_i32_0 = arith.constant 0 : i32
    %c0_i32_1 = arith.constant 0 : i32
    return %arg0, %c0_i32, %c0_i32_0 : i32, i32, i32
  }
}

</mosaic_0001>

<llo_original>
// kernel: fpn_forward_packed.2
$region0: #{fpn_forward_packed.2}
  #allocation0 [shape = 'u32[]', space=smem, size = 0x4, offset = 0x4, fixed_abs, tag = 'smem constant byte address 0x4 - core index']
  #allocation1 [shape = 'u32[144,128]{1,0:T(1,128)}', space=vmem, size = 0x12000, scoped, tag = 'internal scratch']
  %s0 = inlined_call_operand.vmem [shape: f32[2,16,32], index: 0, kind: input, shape index: {}]
  %s1 = inlined_call_operand.hbm [shape: f32[32,160], index: 1, kind: input, shape index: {}]
  %s2 = inlined_call_operand.vmem [shape: f32[1,160], index: 2, kind: input, shape index: {}]
  %s3 = inlined_call_operand.vmem [shape: f32[1,16], index: 3, kind: input, shape index: {}]
  %s4 = inlined_call_operand.vmem [shape: f32[1,16], index: 4, kind: input, shape index: {}]
  %s5 = inlined_call_operand.vmem [shape: f32[16,32], index: 5, kind: input, shape index: {}]
  %s6 = inlined_call_operand.vmem [shape: f32[1,32], index: 6, kind: input, shape index: {}]
  %s7 = inlined_call_operand.vmem [shape: f32[2,16,128], index: 7, kind: output, shape index: {0}]
  %s8 = inlined_call_operand.vmem [shape: f32[2,16,64], index: 8, kind: output, shape index: {1}]
  %s9 = inlined_call_operand.vmem [shape: f32[2,16,32], index: 9, kind: output, shape index: {2}]
  %10 = xla_tuple %s7, %s8, %s9
  %s11 = sld [smem:[#allocation0]]
  $region81: #{fpn_forward_packed.2} parent=0
    _
  %s13 = ssub.s32 1, %s11
  %s14 = scalar_select 0, %s13, %s11
  $region1: #{fpn_forward_packed.2} parent=0
    #allocation2 [shape = 'u8[32768]{0}', space=vmem, size = 0x8000, scoped, tag = 'input window, operand 1, single buffered']
    #allocation3 [shape = 's32[2]{0}', space=sflag, size = 0x8, scoped, tag = 'scoped memory for fpn_forward_packed.2']
    %15 = vsyncpa [#allocation3], 0
    loop: start=0, step=1, limit=4
    $region2: #{fpn_forward_packed.2} parent=1 // loop_pre_header
      _
    $region3: #{fpn_forward_packed.2} parent=1 // loop_header
      %s17 = sphi 0, %s21
      %p18 = scmp.ge.s32.totalorder %s17, 4
      %s27 = sphi 0, %s29
      %s30 = sphi 0, %s27
      %s31 = sphi 0, %s30
      %s47 = sphi 0, %s31
      %s51 = sphi 0, %s51
      %s53 = sphi 0, %s51
      %s54 = sphi 0, %s53
      %s68 = sphi 0, %s54
      %s72 = sphi 0, %s72
      %s74 = sphi 0, %s72
      %s75 = sphi 0, %s74
      %s89 = sphi 0, %s75
      %s93 = sphi 0, %s93
      %s95 = sphi 0, %s93
      %s96 = sphi 0, %s95
      %s110 = sphi 0, %s96
      %s114 = sphi 0, %s114
      %s116 = sphi 0, %s114
      %s117 = sphi 0, %s116
      %s131 = sphi 0, %s117
      %s135 = sphi 0, %s135
      %s137 = sphi 0, %s135
      %s138 = sphi 0, %s137
      %s152 = sphi 0, %s138
      %s156 = sphi 0, %s156
      %s158 = sphi 0, %s156
      %s159 = sphi 0, %s158
      %s173 = sphi 0, %s159
      %s179 = sphi 0, %s181
      %s182 = sphi 0, %s179
      %s183 = sphi 0, %s182
      %s199 = sphi 0, %s183
      %s205 = sphi 0, %s207
      %s208 = sphi 0, %s205
      %s209 = sphi 0, %s208
      %s225 = sphi 0, %s209
      %s231 = sphi 0, %s233
      %s234 = sphi 0, %s231
      %s235 = sphi 0, %s234
      %s251 = sphi 0, %s235
    $region4: #{fpn_forward_packed.2} parent=1 // loop_header_branch
      %20 = sbr.rel (%p18) target = $region8
    $region5: #{fpn_forward_packed.2} parent=1 // loop_body
      %s22 = ssub.s32 %s17, 1
      %s23 = ssub.s32 %s17, 2
      %s24 = sadd.s32 %s17, 1
      %s25 = ssub.s32 %s17, %s24
      %p26 = scmp.eq.s32.totalorder %s25, 0
      %s28 = sadd.s32 %s27, 1
      %s29 = scalar_select %p26, %s27, %s28
      %p32 = pneg %p26
      %p33 = scmp.eq.s32.totalorder %s17, 1
      %p34 = por %p32, %p33
      %p35 = scmp.ne.s32.totalorder %s27, %s30
      %p36 = scmp.eq.s32.totalorder %s17, 0
      %p37 = por %p35, %p36
      %p38 = scmp.ne.s32.totalorder %s27, %s30
      %p39 = scmp.eq.s32.totalorder %s22, 1
      %p40 = por %p38, %p39
      %p41 = scmp.ne.s32.totalorder %s30, %s31
      %p42 = scmp.eq.s32.totalorder %s22, 0
      %p43 = por %p41, %p42
      %p44 = scmp.ne.s32.totalorder %s30, %s31
      %p45 = scmp.eq.s32.totalorder %s23, 1
      %p46 = por %p44, %p45
      %p48 = scmp.ne.s32.totalorder %s31, %s47
      %p49 = scmp.eq.s32.totalorder %s23, 0
      %p50 = por %p48, %p49
      %s52 = sadd.s32 %s51, 1
      %p55 = scmp.eq.s32.totalorder %s17, 1
      %p56 = scmp.ne.s32.totalorder %s51, %s53
      %p57 = scmp.eq.s32.totalorder %s17, 0
      %p58 = por %p56, %p57
      %p59 = scmp.ne.s32.totalorder %s51, %s53
      %p60 = scmp.eq.s32.totalorder %s22, 1
      %p61 = por %p59, %p60
      %p62 = scmp.ne.s32.totalorder %s53, %s54
      %p63 = scmp.eq.s32.totalorder %s22, 0
      %p64 = por %p62, %p63
      %p65 = scmp.ne.s32.totalorder %s53, %s54
      %p66 = scmp.eq.s32.totalorder %s23, 1
      %p67 = por %p65, %p66
      %p69 = scmp.ne.s32.totalorder %s54, %s68
      %p70 = scmp.eq.s32.totalorder %s23, 0
      %p71 = por %p69, %p70
      %s73 = sadd.s32 %s72, 1
      %p76 = scmp.eq.s32.totalorder %s17, 1
      %p77 = scmp.ne.s32.totalorder %s72, %s74
      %p78 = scmp.eq.s32.totalorder %s17, 0
      %p79 = por %p77, %p78
      %p80 = scmp.ne.s32.totalorder %s72, %s74
      %p81 = scmp.eq.s32.totalorder %s22, 1
      %p82 = por %p80, %p81
      %p83 = scmp.ne.s32.totalorder %s74, %s75
      %p84 = scmp.eq.s32.totalorder %s22, 0
      %p85 = por %p83, %p84
      %p86 = scmp.ne.s32.totalorder %s74, %s75
      %p87 = scmp.eq.s32.totalorder %s23, 1
      %p88 = por %p86, %p87
      %p90 = scmp.ne.s32.totalorder %s75, %s89
      %p91 = scmp.eq.s32.totalorder %s23, 0
      %p92 = por %p90, %p91
      %s94 = sadd.s32 %s93, 1
      %p97 = scmp.eq.s32.totalorder %s17, 1
      %p98 = scmp.ne.s32.totalorder %s93, %s95
      %p99 = scmp.eq.s32.totalorder %s17, 0
      %p100 = por %p98, %p99
      %p101 = scmp.ne.s32.totalorder %s93, %s95
      %p102 = scmp.eq.s32.totalorder %s22, 1
      %p103 = por %p101, %p102
      %p104 = scmp.ne.s32.totalorder %s95, %s96
      %p105 = scmp.eq.s32.totalorder %s22, 0
      %p106 = por %p104, %p105
      %p107 = scmp.ne.s32.totalorder %s95, %s96
      %p108 = scmp.eq.s32.totalorder %s23, 1
      %p109 = por %p107, %p108
      %p111 = scmp.ne.s32.totalorder %s96, %s110
      %p112 = scmp.eq.s32.totalorder %s23, 0
      %p113 = por %p111, %p112
      %s115 = sadd.s32 %s114, 1
      %p118 = scmp.eq.s32.totalorder %s17, 1
      %p119 = scmp.ne.s32.totalorder %s114, %s116
      %p120 = scmp.eq.s32.totalorder %s17, 0
      %p121 = por %p119, %p120
      %p122 = scmp.ne.s32.totalorder %s114, %s116
      %p123 = scmp.eq.s32.totalorder %s22, 1
      %p124 = por %p122, %p123
      %p125 = scmp.ne.s32.totalorder %s116, %s117
      %p126 = scmp.eq.s32.totalorder %s22, 0
      %p127 = por %p125, %p126
      %p128 = scmp.ne.s32.totalorder %s116, %s117
      %p129 = scmp.eq.s32.totalorder %s23, 1
      %p130 = por %p128, %p129
      %p132 = scmp.ne.s32.totalorder %s117, %s131
      %p133 = scmp.eq.s32.totalorder %s23, 0
      %p134 = por %p132, %p133
      %s136 = sadd.s32 %s135, 1
      %p139 = scmp.eq.s32.totalorder %s17, 1
      %p140 = scmp.ne.s32.totalorder %s135, %s137
      %p141 = scmp.eq.s32.totalorder %s17, 0
      %p142 = por %p140, %p141
      %p143 = scmp.ne.s32.totalorder %s135, %s137
      %p144 = scmp.eq.s32.totalorder %s22, 1
      %p145 = por %p143, %p144
      %p146 = scmp.ne.s32.totalorder %s137, %s138
      %p147 = scmp.eq.s32.totalorder %s22, 0
      %p148 = por %p146, %p147
      %p149 = scmp.ne.s32.totalorder %s137, %s138
      %p150 = scmp.eq.s32.totalorder %s23, 1
      %p151 = por %p149, %p150
      %p153 = scmp.ne.s32.totalorder %s138, %s152
      %p154 = scmp.eq.s32.totalorder %s23, 0
      %p155 = por %p153, %p154
      %s157 = sadd.s32 %s156, 1
      %p160 = scmp.eq.s32.totalorder %s17, 1
      %p161 = scmp.ne.s32.totalorder %s156, %s158
      %p162 = scmp.eq.s32.totalorder %s17, 0
      %p163 = por %p161, %p162
      %p164 = scmp.ne.s32.totalorder %s156, %s158
      %p165 = scmp.eq.s32.totalorder %s22, 1
      %p166 = por %p164, %p165
      %p167 = scmp.ne.s32.totalorder %s158, %s159
      %p168 = scmp.eq.s32.totalorder %s22, 0
      %p169 = por %p167, %p168
      %p170 = scmp.ne.s32.totalorder %s158, %s159
      %p171 = scmp.eq.s32.totalorder %s23, 1
      %p172 = por %p170, %p171
      %p174 = scmp.ne.s32.totalorder %s159, %s173
      %p175 = scmp.eq.s32.totalorder %s23, 0
      %p176 = por %p174, %p175
      %s177 = ssub.s32 %s17, %s24
      %p178 = scmp.eq.s32.totalorder %s177, 0
      %s180 = sadd.s32 %s179, 1
      %s181 = scalar_select %p178, %s179, %s180
      %p184 = pneg %p178
      %p185 = scmp.eq.s32.totalorder %s17, 1
      %p186 = por %p184, %p185
      %p187 = scmp.ne.s32.totalorder %s179, %s182
      %p188 = scmp.eq.s32.totalorder %s17, 0
      %p189 = por %p187, %p188
      %p190 = scmp.ne.s32.totalorder %s179, %s182
      %p191 = scmp.eq.s32.totalorder %s22, 1
      %p192 = por %p190, %p191
      %p193 = scmp.ne.s32.totalorder %s182, %s183
      %p194 = scmp.eq.s32.totalorder %s22, 0
      %p195 = por %p193, %p194
      %p196 = scmp.ne.s32.totalorder %s182, %s183
      %p197 = scmp.eq.s32.totalorder %s23, 1
      %p198 = por %p196, %p197
      %p200 = scmp.ne.s32.totalorder %s183, %s199
      %p201 = scmp.eq.s32.totalorder %s23, 0
      %p202 = por %p200, %p201
      %s203 = ssub.s32 %s17, %s24
      %p204 = scmp.eq.s32.totalorder %s203, 0
      %s206 = sadd.s32 %s205, 1
      %s207 = scalar_select %p204, %s205, %s206
      %p210 = pneg %p204
      %p211 = scmp.eq.s32.totalorder %s17, 1
      %p212 = por %p210, %p211
      %p213 = scmp.ne.s32.totalorder %s205, %s208
      %p214 = scmp.eq.s32.totalorder %s17, 0
      %p215 = por %p213, %p214
      %p216 = scmp.ne.s32.totalorder %s205, %s208
      %p217 = scmp.eq.s32.totalorder %s22, 1
      %p218 = por %p216, %p217
      %p219 = scmp.ne.s32.totalorder %s208, %s209
      %p220 = scmp.eq.s32.totalorder %s22, 0
      %p221 = por %p219, %p220
      %p222 = scmp.ne.s32.totalorder %s208, %s209
      %p223 = scmp.eq.s32.totalorder %s23, 1
      %p224 = por %p222, %p223
      %p226 = scmp.ne.s32.totalorder %s209, %s225
      %p227 = scmp.eq.s32.totalorder %s23, 0
      %p228 = por %p226, %p227
      %s229 = ssub.s32 %s17, %s24
      %p230 = scmp.eq.s32.totalorder %s229, 0
      %s232 = sadd.s32 %s231, 1
      %s233 = scalar_select %p230, %s231, %s232
      %p236 = pneg %p230
      %p237 = scmp.eq.s32.totalorder %s17, 1
      %p238 = por %p236, %p237
      %p239 = scmp.ne.s32.totalorder %s231, %s234
      %p240 = scmp.eq.s32.totalorder %s17, 0
      %p241 = por %p239, %p240
      %p242 = scmp.ne.s32.totalorder %s231, %s234
      %p243 = scmp.eq.s32.totalorder %s22, 1
      %p244 = por %p242, %p243
      %p245 = scmp.ne.s32.totalorder %s234, %s235
      %p246 = scmp.eq.s32.totalorder %s22, 0
      %p247 = por %p245, %p246
      %p248 = scmp.ne.s32.totalorder %s234, %s235
      %p249 = scmp.eq.s32.totalorder %s23, 1
      %p250 = por %p248, %p249
      %p252 = scmp.ne.s32.totalorder %s235, %s251
      %p253 = scmp.eq.s32.totalorder %s23, 0
      %p254 = por %p252, %p253
      %p255 = scmp.le.s32.totalorder 1, %s17
      %p256 = scmp.lt.s32.totalorder %s17, 3
      %p257 = pnand %p255, %p256
      %p258 = pneg %p257
      // Predicated region
      $region9: #{fpn_forward_packed.2} parent=5 // pred_check
        _
      $region10: #{fpn_forward_packed.2} parent=5 // pred_check_branch
        %260 = sbr.rel (%p257) target = $region12
      $region11: #{fpn_forward_packed.2} parent=5 // pred_region
        %s261 = ssub.s32 %s17, 1
        // Predicated region
        $region13: #{fpn_forward_packed.2} parent=11 // pred_check
          %p262 = pneg %p64
        $region14: #{fpn_forward_packed.2} parent=11 // pred_check_branch
          %264 = sbr.rel (%p262) target = $region16
        $region15: #{fpn_forward_packed.2} parent=11 // pred_region
          %s266 = ssub.s32 1024, 1024
          %267 = vsyncadd [#allocation3], %s266
          %s268 = sshll.u32 [#allocation2], 4
          %s269 = int_to_ptr.vmem [resolvable:$true] %s268
          %274 = dma.hbm_to_vmem [thread:$0]  %s1, 1024, %s269, [#allocation3], 256, 256, 16
        $region16: #{fpn_forward_packed.2} parent=11 // pred_fallthru
          _
        // Predicated region
        $region17: #{fpn_forward_packed.2} parent=11 // pred_check
          %p275 = pneg %p85
        $region18: #{fpn_forward_packed.2} parent=11 // pred_check_branch
          %277 = sbr.rel (%p275) target = $region20
        $region19: #{fpn_forward_packed.2} parent=11 // pred_region
          _
        $region20: #{fpn_forward_packed.2} parent=11 // pred_fallthru
          _
        // Predicated region
        $region21: #{fpn_forward_packed.2} parent=11 // pred_check
          %p278 = pneg %p106
        $region22: #{fpn_forward_packed.2} parent=11 // pred_check_branch
          %280 = sbr.rel (%p278) target = $region24
        $region23: #{fpn_forward_packed.2} parent=11 // pred_region
          _
        $region24: #{fpn_forward_packed.2} parent=11 // pred_fallthru
          _
        // Predicated region
        $region25: #{fpn_forward_packed.2} parent=11 // pred_check
          %p281 = pneg %p127
        $region26: #{fpn_forward_packed.2} parent=11 // pred_check_branch
          %283 = sbr.rel (%p281) target = $region28
        $region27: #{fpn_forward_packed.2} parent=11 // pred_region
          _
        $region28: #{fpn_forward_packed.2} parent=11 // pred_fallthru
          _
        // Predicated region
        $region29: #{fpn_forward_packed.2} parent=11 // pred_check
          %p284 = pneg %p148
        $region30: #{fpn_forward_packed.2} parent=11 // pred_check_branch
          %286 = sbr.rel (%p284) target = $region32
        $region31: #{fpn_forward_packed.2} parent=11 // pred_region
          _
        $region32: #{fpn_forward_packed.2} parent=11 // pred_fallthru
          _
        // Predicated region
        $region33: #{fpn_forward_packed.2} parent=11 // pred_check
          %p287 = pneg %p169
        $region34: #{fpn_forward_packed.2} parent=11 // pred_check_branch
          %289 = sbr.rel (%p287) target = $region36
        $region35: #{fpn_forward_packed.2} parent=11 // pred_region
          _
        $region36: #{fpn_forward_packed.2} parent=11 // pred_fallthru
          _
      $region12: #{fpn_forward_packed.2} parent=5 // pred_fallthru
        _
      %p290 = scmp.lt.s32.totalorder %s17, 2
      // Predicated region
      $region37: #{fpn_forward_packed.2} parent=5 // pred_check
        %p291 = pneg %p290
      $region38: #{fpn_forward_packed.2} parent=5 // pred_check_branch
        %293 = sbr.rel (%p291) target = $region40
      $region39: #{fpn_forward_packed.2} parent=5 // pred_region
        // Predicated region
        $region41: #{fpn_forward_packed.2} parent=39 // pred_check
          %p294 = pneg %p37
        $region42: #{fpn_forward_packed.2} parent=39 // pred_check_branch
          %296 = sbr.rel (%p294) target = $region44
        $region43: #{fpn_forward_packed.2} parent=39 // pred_region
          %p297 = scmp.lt.s32.totalorder %s17, 1
          %s298 = scalar_select %p297, %s17, 1
          %s299 = smul.addr %s298, 2
          %s300 = smul.addr %s299, 8
          %s301 = scalar_lea.vmem %s0, %s300
        $region44: #{fpn_forward_packed.2} parent=39 // pred_fallthru
          _
      $region40: #{fpn_forward_packed.2} parent=5 // pred_fallthru
        _
      %p302 = scmp.le.s32.totalorder 1, %s17
      %p303 = scmp.lt.s32.totalorder %s17, 3
      %p304 = pnand %p302, %p303
      %p305 = pneg %p304
      // Predicated region
      $region45: #{fpn_forward_packed.2} parent=5 // pred_check
        _
      $region46: #{fpn_forward_packed.2} parent=5 // pred_check_branch
        %307 = sbr.rel (%p304) target = $region48
      $region47: #{fpn_forward_packed.2} parent=5 // pred_region
        %s308 = ssub.s32 %s17, 1
        // Predicated region
        $region49: #{fpn_forward_packed.2} parent=47 // pred_check
          %p309 = pneg %p64
        $region50: #{fpn_forward_packed.2} parent=47 // pred_check_branch
          %311 = sbr.rel (%p309) target = $region52
        $region51: #{fpn_forward_packed.2} parent=47 // pred_region
          %312 = dma.done [#allocation3], 1024
        $region52: #{fpn_forward_packed.2} parent=47 // pred_fallthru
          _
        %p313 = scmp.lt.s32.totalorder %s22, 1
        %s314 = scalar_select %p313, %s22, 1
        %s315 = smul.addr %s314, 2
        %s316 = smul.addr %s315, 8
        %s317 = scalar_lea.vmem %s0, %s316
        %p318 = pneg %p43
        %p319 = pneg %p40
        %p320 = pneg %p64
        %p321 = pneg %p61
        %p322 = pneg %p85
        %p323 = pneg %p82
        %p324 = pneg %p106
        %p325 = pneg %p103
        %p326 = pneg %p127
        %p327 = pneg %p124
        %p328 = pneg %p148
        %p329 = pneg %p145
        %p330 = pneg %p169
        %p331 = pneg %p166
        %p332 = pneg %p195
        %p333 = pneg %p192
        %p334 = scmp.lt.s32.totalorder %s22, 1
        %s335 = scalar_select %p334, %s22, 1
        %s336 = smul.addr %s335, 2
        %s337 = smul.addr %s336, 8
        %s338 = scalar_lea.vmem %s7, %s337
        %p339 = pneg %p221
        %p340 = pneg %p218
        %p341 = scmp.lt.s32.totalorder %s22, 1
        %s342 = scalar_select %p341, %s22, 1
        %s343 = smul.addr %s342, 2
        %s344 = smul.addr %s343, 8
        %s345 = scalar_lea.vmem %s8, %s344
        %p346 = pneg %p247
        %p347 = pneg %p244
        %p348 = scmp.lt.s32.totalorder %s22, 1
        %s349 = scalar_select %p348, %s22, 1
        %s350 = smul.addr %s349, 2
        %s351 = smul.addr %s350, 8
        %s352 = scalar_lea.vmem %s9, %s351
        %p353 = scmp.lt.s32.totalorder %s22, 1
        %s354 = scalar_select %p353, %s22, 1
        %s355 = smul.addr %s354, 2
        %s356 = smul.addr %s355, 8
        %s357 = scalar_lea.vmem %s0, %s356
        %p358 = scmp.lt.s32.totalorder %s22, 1
        %s359 = scalar_select %p358, %s22, 1
        %s360 = smul.addr %s359, 2
        %s361 = smul.addr %s360, 8
        %s362 = scalar_lea.vmem %s7, %s361
        %p363 = scmp.lt.s32.totalorder %s22, 1
        %s364 = scalar_select %p363, %s22, 1
        %s365 = smul.addr %s364, 2
        %s366 = smul.addr %s365, 8
        %s367 = scalar_lea.vmem %s8, %s366
        %p368 = scmp.lt.s32.totalorder %s22, 1
        %s369 = scalar_select %p368, %s22, 1
        %s370 = smul.addr %s369, 2
        %s371 = smul.addr %s370, 8
        %s372 = scalar_lea.vmem %s9, %s371
        %v373 = vld [vmem:[%s357] sm:$0xff]
        %v374 = vld [vmem:[%s357 + $0x8] sm:$0xff]
        %v375 = vld [vmem:[#allocation2] sm:$0xff]
        %v376 = vld [vmem:[#allocation2 + $0x8] sm:$0xff]
        %v377 = vld [vmem:[#allocation2 + $0x10] sm:$0xff]
        %v378 = vld [vmem:[#allocation2 + $0x18] sm:$0xff]
        %v379 = vld [vmem:[#allocation2 + $0x20] sm:$0xff]
        %v380 = vld [vmem:[#allocation2 + $0x28] sm:$0xff]
        %v381 = vld [vmem:[#allocation2 + $0x30] sm:$0xff]
        %v382 = vld [vmem:[#allocation2 + $0x38] sm:$0xff]
        %v383 = vld [vmem:[%s2] sm:$0x3]
        %v385 = vlaneseq
        %v386 = vshrl.u32 %v385, 7
        %v387 = vsub.s32 0, %v386
        %v388 = vrot.slane %v383, %v387
        %v389 = vlaneseq
        %v390 = vshrl.u32 %v389, 7
        %v391 = vsub.s32 1, %v390
        %v392 = vrot.slane %v383, %v391
        %vm395 = vcmask 261120
        %v397 = vsel %vm395, %v373, 0
        %v400 = vsel %vm395, %v374, 0
        %402 = vmatprep.subr.mxu0 %v376
        %403 = vmatpush1.msra.mxu0 %v375
        %404 = vmatprep.subr.mxu0 %v378
        %405 = vmatpush1.msra.mxu0 %v377
        %406 = vmatprep.subr.mxu0 %v380
        %407 = vmatpush1.msra.mxu0 %v379
        %408 = vmatprep.subr.mxu0 %v382
        %409 = vmatpush1.msra.mxu0 %v381
        %410 = vmatprep.subr.mxu0 0.0
        %411 = vmatpush1.msra.mxu0 0.0
        %412 = vmatprep.subr.mxu0 0.0
        %413 = vmatpush1.msra.mxu0 0.0
        %414 = vmatprep.subr.mxu0 0.0
        %415 = vmatpush1.msra.mxu0 0.0
        %416 = vmatprep.subr.mxu0 0.0
        %417 = vmatpush1.msra.mxu0 0.0
        %418 = vmatprep.subr.mxu0 0.0
        %419 = vmatpush1.msra.mxu0 0.0
        %420 = vmatprep.subr.mxu0 0.0
        %421 = vmatpush1.msra.mxu0 0.0
        %422 = vmatprep.subr.mxu0 0.0
        %423 = vmatpush1.msra.mxu0 0.0
        %424 = vmatprep.subr.mxu0 0.0
        %425 = vmatpush1.msra.mxu0 0.0
        %426 = vmatprep.subr.mxu0 0.0
        %427 = vmatpush1.msra.mxu0 0.0
        %428 = vmatprep.subr.mxu0 0.0
        %429 = vmatpush1.msra.mxu0 0.0
        %430 = vmatprep.subr.mxu0 0.0
        %431 = vmatpush1.msra.mxu0 0.0
        %432 = vmatprep.subr.mxu0 0.0
        %433 = vmatpush1.msra.mxu0 0.0
        %434 = vmatprep.subr.mxu0 0.0
        %435 = vmatpush1.msra.mxu0 0.0
        %436 = vmatprep.subr.mxu0 0.0
        %437 = vmatpush1.msra.mxu0 0.0
        %438 = vmatprep.subr.mxu0 0.0
        %439 = vmatpush1.msra.mxu0 0.0
        %440 = vmatprep.subr.mxu0 0.0
        %441 = vmatpush1.msra.mxu0 0.0
        %442 = vmatprep.subr.mxu0 0.0
        %443 = vmatpush1.msra.mxu0 0.0
        %444 = vmatprep.subr.mxu0 0.0
        %445 = vmatpush1.msra.mxu0 0.0
        %446 = vmatprep.subr.mxu0 0.0
        %447 = vmatpush1.msra.mxu0 0.0
        %448 = vmatprep.subr.mxu0 0.0
        %449 = vmatpush1.msra.mxu0 0.0
        %450 = vmatprep.subr.mxu0 0.0
        %451 = vmatpush1.msra.mxu0 0.0
        %452 = vmatprep.subr.mxu0 0.0
        %453 = vmatpush1.msra.mxu0 0.0
        %454 = vmatprep.subr.mxu0 0.0
        %455 = vmatpush1.msra.mxu0 0.0
        %456 = vmatprep.subr.mxu0 0.0
        %457 = vmatpush1.msra.mxu0 0.0
        %458 = vmatprep.subr.mxu0 0.0
        %459 = vmatpush1.msra.mxu0 0.0
        %460 = vmatprep.subr.mxu0 0.0
        %461 = vmatpush1.msra.mxu0 0.0
        %462 = vmatprep.subr.mxu0 0.0
        %463 = vmatpush1.msra.mxu0 0.0
        %464 = vmatprep.subr.mxu0 0.0
        %465 = vmatpush1.msra.mxu0 0.0
        %466 = vmatprep.mubr.f32.mxu0 0.0
        %467 = vmatmul.mubr.f32.gmra.mrb[0].mxu0 %v397
        %v468 = vpop.f32.mrb[0].mxu0
        %v469 = vadd.f32 %v388, %v468
        %v470 = vpop.f32.mrb[0].mxu0
        %v471 = vadd.f32 %v392, %v470
        %472 = vmatprep.mubr.f32.mxu0 0.0
        %473 = vmatmul.mubr.f32.gmra.mrb[0].mxu0 %v400
        %v474 = vpop.f32.mrb[0].mxu0
        %v475 = vadd.f32 %v388, %v474
        %v476 = vpop.f32.mrb[0].mxu0
        %v477 = vadd.f32 %v392, %v476
        %478 = vdwg.mxu0
        %v479 = vld [vmem:[%s3] sm:$0x1]
        %v480 = vld [vmem:[%s4] sm:$0x1]
        %vm481 = vcmask 130048
        %v482 = vsel %vm481, %v469, 0.0
        %483 = vadd.xlane.f32.xlu0 %v482
        %v484 = vpop.xlane.xlu0 %483
        %v485 = vsel %vm481, %v475, 0.0
        %486 = vadd.xlane.f32.xlu0 %v485
        %v487 = vpop.xlane.xlu0 %486
        %v488 = vrcp.pop 16.0
        %v489 = vmul.f32 %v484, %v488
        %v490 = vmul.f32 %v487, %v488
        %v491 = vsub.f32 %v469, %v489
        %v492 = vsub.f32 %v475, %v490
        %v493 = vmul.f32 %v491, %v491
        %v494 = vmul.f32 %v492, %v492
        %v495 = vsel %vm481, %v493, 0.0
        %496 = vadd.xlane.f32.xlu0 %v495
        %v497 = vpop.xlane.xlu0 %496
        %v498 = vsel %vm481, %v494, 0.0
        %499 = vadd.xlane.f32.xlu0 %v498
        %v500 = vpop.xlane.xlu0 %499
        %v501 = vmul.f32 %v497, %v488
        %v502 = vmul.f32 %v500, %v488
        %v503 = vadd.f32 %v501, 1e-06
        %v504 = vadd.f32 %v502, 1e-06
        %v505 = vrsqrt.pop %v503
        %v506 = vrsqrt.pop %v504
        %v507 = vmul.f32 %v491, %v505
        %v508 = vmul.f32 %v492, %v506
        %v510 = vlaneseq
        %v511 = vshrl.u32 %v510, 7
        %v512 = vsub.s32 0, %v511
        %v513 = vrot.slane %v479, %v512
        %v515 = vmul.f32 %v507, %v513
        %v516 = vmul.f32 %v508, %v513
        %v518 = vlaneseq
        %v519 = vshrl.u32 %v518, 7
        %v520 = vsub.s32 0, %v519
        %v521 = vrot.slane %v480, %v520
        %v523 = vadd.f32 %v515, %v521
        %v524 = vadd.f32 %v516, %v521
        %v525 = vmul.f32 %v523, 0.5
        %v526 = vmul.f32 %v524, 0.5
        %v527 = vmul.f32 %v523, 0.70710677
        %v528 = vmul.f32 %v524, 0.70710677
        %v529 = verf.f32.pop %v527
        %v530 = verf.f32.pop %v528
        %v531 = vadd.f32 %v529, 1.0
        %v532 = vadd.f32 %v530, 1.0
        %v533 = vmul.f32 %v525, %v531
        %v534 = vmul.f32 %v526, %v532
        %v535 = vld [vmem:[%s5] sm:$0xff]
        %v536 = vld [vmem:[%s5 + $0x8] sm:$0xff]
        %v537 = vld [vmem:[%s6] sm:$0x1]
        %v539 = vlaneseq
        %v540 = vshrl.u32 %v539, 7
        %v541 = vsub.s32 0, %v540
        %v542 = vrot.slane %v537, %v541
        %v545 = vsel %vm481, %v533, 0
        %v548 = vsel %vm481, %v534, 0
        %550 = vmatprep.subr.mxu0 0.0
        %551 = vmatpush1.msra.mxu0 %v535
        %552 = vmatprep.subr.mxu0 0.0
        %553 = vmatpush1.msra.mxu0 %v536
        %554 = vmatprep.subr.mxu0 0.0
        %555 = vmatpush1.msra.mxu0 0.0
        %556 = vmatprep.subr.mxu0 0.0
        %557 = vmatpush1.msra.mxu0 0.0
        %558 = vmatprep.subr.mxu0 0.0
        %559 = vmatpush1.msra.mxu0 0.0
        %560 = vmatprep.subr.mxu0 0.0
        %561 = vmatpush1.msra.mxu0 0.0
        %562 = vmatprep.subr.mxu0 0.0
        %563 = vmatpush1.msra.mxu0 0.0
        %564 = vmatprep.subr.mxu0 0.0
        %565 = vmatpush1.msra.mxu0 0.0
        %566 = vmatprep.subr.mxu0 0.0
        %567 = vmatpush1.msra.mxu0 0.0
        %568 = vmatprep.subr.mxu0 0.0
        %569 = vmatpush1.msra.mxu0 0.0
        %570 = vmatprep.subr.mxu0 0.0
        %571 = vmatpush1.msra.mxu0 0.0
        %572 = vmatprep.subr.mxu0 0.0
        %573 = vmatpush1.msra.mxu0 0.0
        %574 = vmatprep.subr.mxu0 0.0
        %575 = vmatpush1.msra.mxu0 0.0
        %576 = vmatprep.subr.mxu0 0.0
        %577 = vmatpush1.msra.mxu0 0.0
        %578 = vmatprep.subr.mxu0 0.0
        %579 = vmatpush1.msra.mxu0 0.0
        %580 = vmatprep.subr.mxu0 0.0
        %581 = vmatpush1.msra.mxu0 0.0
        %582 = vmatprep.subr.mxu0 0.0
        %583 = vmatpush1.msra.mxu0 0.0
        %584 = vmatprep.subr.mxu0 0.0
        %585 = vmatpush1.msra.mxu0 0.0
        %586 = vmatprep.subr.mxu0 0.0
        %587 = vmatpush1.msra.mxu0 0.0
        %588 = vmatprep.subr.mxu0 0.0
        %589 = vmatpush1.msra.mxu0 0.0
        %590 = vmatprep.subr.mxu0 0.0
        %591 = vmatpush1.msra.mxu0 0.0
        %592 = vmatprep.subr.mxu0 0.0
        %593 = vmatpush1.msra.mxu0 0.0
        %594 = vmatprep.subr.mxu0 0.0
        %595 = vmatpush1.msra.mxu0 0.0
        %596 = vmatprep.subr.mxu0 0.0
        %597 = vmatpush1.msra.mxu0 0.0
        %598 = vmatprep.subr.mxu0 0.0
        %599 = vmatpush1.msra.mxu0 0.0
        %600 = vmatprep.subr.mxu0 0.0
        %601 = vmatpush1.msra.mxu0 0.0
        %602 = vmatprep.subr.mxu0 0.0
        %603 = vmatpush1.msra.mxu0 0.0
        %604 = vmatprep.subr.mxu0 0.0
        %605 = vmatpush1.msra.mxu0 0.0
        %606 = vmatprep.subr.mxu0 0.0
        %607 = vmatpush1.msra.mxu0 0.0
        %608 = vmatprep.subr.mxu0 0.0
        %609 = vmatpush1.msra.mxu0 0.0
        %610 = vmatprep.subr.mxu0 0.0
        %611 = vmatpush1.msra.mxu0 0.0
        %612 = vmatprep.subr.mxu0 0.0
        %613 = vmatpush1.msra.mxu0 0.0
        %614 = vmatprep.mubr.f32.mxu0 0.0
        %615 = vmatmul.mubr.f32.gmra.mrb[0].mxu0 %v545
        %v616 = vpop.f32.mrb[0].mxu0
        %v617 = vadd.f32 %v542, %v616
        %v618 = vpop.f32.mrb[0].mxu0
        %619 = vmatprep.mubr.f32.mxu0 0.0
        %620 = vmatmul.mubr.f32.gmra.mrb[0].mxu0 %v548
        %v621 = vpop.f32.mrb[0].mxu0
        %v622 = vadd.f32 %v542, %v621
        %v623 = vpop.f32.mrb[0].mxu0
        %624 = vdwg.mxu0
        %627 = vrot.lane.b32.xlu0 %v469, 112
        %v628 = vpop.permute.xlu0 %627
        %629 = vrot.lane.b32.xlu0 %v475, 112
        %v630 = vpop.permute.xlu0 %629
        %v633 = vsel %vm481, %v628, 0.0
        %634 = vadd.xlane.f32.xlu0 %v633
        %v635 = vpop.xlane.xlu0 %634
        %v636 = vsel %vm481, %v630, 0.0
        %637 = vadd.xlane.f32.xlu0 %v636
        %v638 = vpop.xlane.xlu0 %637
        %v639 = vmul.f32 %v635, %v488
        %v640 = vmul.f32 %v638, %v488
        %v641 = vsub.f32 %v469, %v639
        %v642 = vsub.f32 %v475, %v640
        %v643 = vmul.f32 %v641, %v641
        %v644 = vmul.f32 %v642, %v642
        %647 = vrot.lane.b32.xlu0 %v643, 112
        %v648 = vpop.permute.xlu0 %647
        %649 = vrot.lane.b32.xlu0 %v644, 112
        %v650 = vpop.permute.xlu0 %649
        %v653 = vsel %vm481, %v648, 0.0
        %654 = vadd.xlane.f32.xlu0 %v653
        %v655 = vpop.xlane.xlu0 %654
        %v656 = vsel %vm481, %v650, 0.0
        %657 = vadd.xlane.f32.xlu0 %v656
        %v658 = vpop.xlane.xlu0 %657
        %v659 = vmul.f32 %v655, %v488
        %v660 = vmul.f32 %v658, %v488
        %v661 = vadd.f32 %v659, 1e-06
        %v662 = vadd.f32 %v660, 1e-06
        %v663 = vrsqrt.pop %v661
        %v664 = vrsqrt.pop %v662
        %v665 = vmul.f32 %v641, %v663
        %v666 = vmul.f32 %v642, %v664
        %667 = vrot.lane.b32.xlu0 %v513, 16
        %v668 = vpop.permute.xlu0 %667
        %v670 = vmul.f32 %v665, %v668
        %v671 = vmul.f32 %v666, %v668
        %672 = vrot.lane.b32.xlu0 %v521, 16
        %v673 = vpop.permute.xlu0 %672
        %v675 = vadd.f32 %v670, %v673
        %v676 = vadd.f32 %v671, %v673
        %v677 = vmul.f32 %v675, 0.5
        %v678 = vmul.f32 %v676, 0.5
        %v679 = vmul.f32 %v675, 0.70710677
        %v680 = vmul.f32 %v676, 0.70710677
        %v681 = verf.f32.pop %v679
        %v682 = verf.f32.pop %v680
        %v683 = vadd.f32 %v681, 1.0
        %v684 = vadd.f32 %v682, 1.0
        %v685 = vmul.f32 %v677, %v683
        %v686 = vmul.f32 %v678, %v684
        %689 = vrot.lane.b32.xlu0 %v685, 112
        %v690 = vpop.permute.xlu0 %689
        %691 = vrot.lane.b32.xlu0 %v686, 112
        %v692 = vpop.permute.xlu0 %691
        %v693 = vsel %vm481, %v690, 0
        %v695 = vsel %vm481, %v692, 0
        %697 = vmatprep.subr.mxu0 0.0
        %698 = vmatpush1.msra.mxu0 %v535
        %699 = vmatprep.subr.mxu0 0.0
        %700 = vmatpush1.msra.mxu0 %v536
        %701 = vmatprep.subr.mxu0 0.0
        %702 = vmatpush1.msra.mxu0 0.0
        %703 = vmatprep.subr.mxu0 0.0
        %704 = vmatpush1.msra.mxu0 0.0
        %705 = vmatprep.subr.mxu0 0.0
        %706 = vmatpush1.msra.mxu0 0.0
        %707 = vmatprep.subr.mxu0 0.0
        %708 = vmatpush1.msra.mxu0 0.0
        %709 = vmatprep.subr.mxu0 0.0
        %710 = vmatpush1.msra.mxu0 0.0
        %711 = vmatprep.subr.mxu0 0.0
        %712 = vmatpush1.msra.mxu0 0.0
        %713 = vmatprep.subr.mxu0 0.0
        %714 = vmatpush1.msra.mxu0 0.0
        %715 = vmatprep.subr.mxu0 0.0
        %716 = vmatpush1.msra.mxu0 0.0
        %717 = vmatprep.subr.mxu0 0.0
        %718 = vmatpush1.msra.mxu0 0.0
        %719 = vmatprep.subr.mxu0 0.0
        %720 = vmatpush1.msra.mxu0 0.0
        %721 = vmatprep.subr.mxu0 0.0
        %722 = vmatpush1.msra.mxu0 0.0
        %723 = vmatprep.subr.mxu0 0.0
        %724 = vmatpush1.msra.mxu0 0.0
        %725 = vmatprep.subr.mxu0 0.0
        %726 = vmatpush1.msra.mxu0 0.0
        %727 = vmatprep.subr.mxu0 0.0
        %728 = vmatpush1.msra.mxu0 0.0
        %729 = vmatprep.subr.mxu0 0.0
        %730 = vmatpush1.msra.mxu0 0.0
        %731 = vmatprep.subr.mxu0 0.0
        %732 = vmatpush1.msra.mxu0 0.0
        %733 = vmatprep.subr.mxu0 0.0
        %734 = vmatpush1.msra.mxu0 0.0
        %735 = vmatprep.subr.mxu0 0.0
        %736 = vmatpush1.msra.mxu0 0.0
        %737 = vmatprep.subr.mxu0 0.0
        %738 = vmatpush1.msra.mxu0 0.0
        %739 = vmatprep.subr.mxu0 0.0
        %740 = vmatpush1.msra.mxu0 0.0
        %741 = vmatprep.subr.mxu0 0.0
        %742 = vmatpush1.msra.mxu0 0.0
        %743 = vmatprep.subr.mxu0 0.0
        %744 = vmatpush1.msra.mxu0 0.0
        %745 = vmatprep.subr.mxu0 0.0
        %746 = vmatpush1.msra.mxu0 0.0
        %747 = vmatprep.subr.mxu0 0.0
        %748 = vmatpush1.msra.mxu0 0.0
        %749 = vmatprep.subr.mxu0 0.0
        %750 = vmatpush1.msra.mxu0 0.0
        %751 = vmatprep.subr.mxu0 0.0
        %752 = vmatpush1.msra.mxu0 0.0
        %753 = vmatprep.subr.mxu0 0.0
        %754 = vmatpush1.msra.mxu0 0.0
        %755 = vmatprep.subr.mxu0 0.0
        %756 = vmatpush1.msra.mxu0 0.0
        %757 = vmatprep.subr.mxu0 0.0
        %758 = vmatpush1.msra.mxu0 0.0
        %759 = vmatprep.subr.mxu0 0.0
        %760 = vmatpush1.msra.mxu0 0.0
        %761 = vmatprep.mubr.f32.mxu0 0.0
        %762 = vmatmul.mubr.f32.gmra.mrb[0].mxu0 %v693
        %v763 = vpop.f32.mrb[0].mxu0
        %v764 = vadd.f32 %v542, %v763
        %v765 = vpop.f32.mrb[0].mxu0
        %766 = vmatprep.mubr.f32.mxu0 0.0
        %767 = vmatmul.mubr.f32.gmra.mrb[0].mxu0 %v695
        %v768 = vpop.f32.mrb[0].mxu0
        %v769 = vadd.f32 %v542, %v768
        %v770 = vpop.f32.mrb[0].mxu0
        %771 = vdwg.mxu0
        %772 = vrot.lane.b32.xlu0 %v469, 96
        %v773 = vpop.permute.xlu0 %772
        %774 = vrot.lane.b32.xlu0 %v475, 96
        %v775 = vpop.permute.xlu0 %774
        %v778 = vsel %vm481, %v773, 0.0
        %779 = vadd.xlane.f32.xlu0 %v778
        %v780 = vpop.xlane.xlu0 %779
        %v781 = vsel %vm481, %v775, 0.0
        %782 = vadd.xlane.f32.xlu0 %v781
        %v783 = vpop.xlane.xlu0 %782
        %v784 = vmul.f32 %v780, %v488
        %v785 = vmul.f32 %v783, %v488
        %v786 = vsub.f32 %v469, %v784
        %v787 = vsub.f32 %v475, %v785
        %v788 = vmul.f32 %v786, %v786
        %v789 = vmul.f32 %v787, %v787
        %792 = vrot.lane.b32.xlu0 %v788, 96
        %v793 = vpop.permute.xlu0 %792
        %794 = vrot.lane.b32.xlu0 %v789, 96
        %v795 = vpop.permute.xlu0 %794
        %v798 = vsel %vm481, %v793, 0.0
        %799 = vadd.xlane.f32.xlu0 %v798
        %v800 = vpop.xlane.xlu0 %799
        %v801 = vsel %vm481, %v795, 0.0
        %802 = vadd.xlane.f32.xlu0 %v801
        %v803 = vpop.xlane.xlu0 %802
        %v804 = vmul.f32 %v800, %v488
        %v805 = vmul.f32 %v803, %v488
        %v806 = vadd.f32 %v804, 1e-06
        %v807 = vadd.f32 %v805, 1e-06
        %v808 = vrsqrt.pop %v806
        %v809 = vrsqrt.pop %v807
        %v810 = vmul.f32 %v786, %v808
        %v811 = vmul.f32 %v787, %v809
        %812 = vrot.lane.b32.xlu0 %v513, 32
        %v813 = vpop.permute.xlu0 %812
        %v815 = vmul.f32 %v810, %v813
        %v816 = vmul.f32 %v811, %v813
        %817 = vrot.lane.b32.xlu0 %v521, 32
        %v818 = vpop.permute.xlu0 %817
        %v820 = vadd.f32 %v815, %v818
        %v821 = vadd.f32 %v816, %v818
        %v822 = vmul.f32 %v820, 0.5
        %v823 = vmul.f32 %v821, 0.5
        %v824 = vmul.f32 %v820, 0.70710677
        %v825 = vmul.f32 %v821, 0.70710677
        %v826 = verf.f32.pop %v824
        %v827 = verf.f32.pop %v825
        %v828 = vadd.f32 %v826, 1.0
        %v829 = vadd.f32 %v827, 1.0
        %v830 = vmul.f32 %v822, %v828
        %v831 = vmul.f32 %v823, %v829
        %834 = vrot.lane.b32.xlu0 %v830, 96
        %v835 = vpop.permute.xlu0 %834
        %836 = vrot.lane.b32.xlu0 %v831, 96
        %v837 = vpop.permute.xlu0 %836
        %v838 = vsel %vm481, %v835, 0
        %v840 = vsel %vm481, %v837, 0
        %842 = vmatprep.subr.mxu0 0.0
        %843 = vmatpush1.msra.mxu0 %v535
        %844 = vmatprep.subr.mxu0 0.0
        %845 = vmatpush1.msra.mxu0 %v536
        %846 = vmatprep.subr.mxu0 0.0
        %847 = vmatpush1.msra.mxu0 0.0
        %848 = vmatprep.subr.mxu0 0.0
        %849 = vmatpush1.msra.mxu0 0.0
        %850 = vmatprep.subr.mxu0 0.0
        %851 = vmatpush1.msra.mxu0 0.0
        %852 = vmatprep.subr.mxu0 0.0
        %853 = vmatpush1.msra.mxu0 0.0
        %854 = vmatprep.subr.mxu0 0.0
        %855 = vmatpush1.msra.mxu0 0.0
        %856 = vmatprep.subr.mxu0 0.0
        %857 = vmatpush1.msra.mxu0 0.0
        %858 = vmatprep.subr.mxu0 0.0
        %859 = vmatpush1.msra.mxu0 0.0
        %860 = vmatprep.subr.mxu0 0.0
        %861 = vmatpush1.msra.mxu0 0.0
        %862 = vmatprep.subr.mxu0 0.0
        %863 = vmatpush1.msra.mxu0 0.0
        %864 = vmatprep.subr.mxu0 0.0
        %865 = vmatpush1.msra.mxu0 0.0
        %866 = vmatprep.subr.mxu0 0.0
        %867 = vmatpush1.msra.mxu0 0.0
        %868 = vmatprep.subr.mxu0 0.0
        %869 = vmatpush1.msra.mxu0 0.0
        %870 = vmatprep.subr.mxu0 0.0
        %871 = vmatpush1.msra.mxu0 0.0
        %872 = vmatprep.subr.mxu0 0.0
        %873 = vmatpush1.msra.mxu0 0.0
        %874 = vmatprep.subr.mxu0 0.0
        %875 = vmatpush1.msra.mxu0 0.0
        %876 = vmatprep.subr.mxu0 0.0
        %877 = vmatpush1.msra.mxu0 0.0
        %878 = vmatprep.subr.mxu0 0.0
        %879 = vmatpush1.msra.mxu0 0.0
        %880 = vmatprep.subr.mxu0 0.0
        %881 = vmatpush1.msra.mxu0 0.0
        %882 = vmatprep.subr.mxu0 0.0
        %883 = vmatpush1.msra.mxu0 0.0
        %884 = vmatprep.subr.mxu0 0.0
        %885 = vmatpush1.msra.mxu0 0.0
        %886 = vmatprep.subr.mxu0 0.0
        %887 = vmatpush1.msra.mxu0 0.0
        %888 = vmatprep.subr.mxu0 0.0
        %889 = vmatpush1.msra.mxu0 0.0
        %890 = vmatprep.subr.mxu0 0.0
        %891 = vmatpush1.msra.mxu0 0.0
        %892 = vmatprep.subr.mxu0 0.0
        %893 = vmatpush1.msra.mxu0 0.0
        %894 = vmatprep.subr.mxu0 0.0
        %895 = vmatpush1.msra.mxu0 0.0
        %896 = vmatprep.subr.mxu0 0.0
        %897 = vmatpush1.msra.mxu0 0.0
        %898 = vmatprep.subr.mxu0 0.0
        %899 = vmatpush1.msra.mxu0 0.0
        %900 = vmatprep.subr.mxu0 0.0
        %901 = vmatpush1.msra.mxu0 0.0
        %902 = vmatprep.subr.mxu0 0.0
        %903 = vmatpush1.msra.mxu0 0.0
        %904 = vmatprep.subr.mxu0 0.0
        %905 = vmatpush1.msra.mxu0 0.0
        %906 = vmatprep.mubr.f32.mxu0 0.0
        %907 = vmatmul.mubr.f32.gmra.mrb[0].mxu0 %v838
        %v908 = vpop.f32.mrb[0].mxu0
        %v909 = vadd.f32 %v542, %v908
        %v910 = vpop.f32.mrb[0].mxu0
        %911 = vmatprep.mubr.f32.mxu0 0.0
        %912 = vmatmul.mubr.f32.gmra.mrb[0].mxu0 %v840
        %v913 = vpop.f32.mrb[0].mxu0
        %v914 = vadd.f32 %v542, %v913
        %v915 = vpop.f32.mrb[0].mxu0
        %916 = vdwg.mxu0
        %917 = vrot.lane.b32.xlu0 %v469, 80
        %v918 = vpop.permute.xlu0 %917
        %919 = vrot.lane.b32.xlu0 %v475, 80
        %v920 = vpop.permute.xlu0 %919
        %v923 = vsel %vm481, %v918, 0.0
        %924 = vadd.xlane.f32.xlu0 %v923
        %v925 = vpop.xlane.xlu0 %924
        %v926 = vsel %vm481, %v920, 0.0
        %927 = vadd.xlane.f32.xlu0 %v926
        %v928 = vpop.xlane.xlu0 %927
        %v929 = vmul.f32 %v925, %v488
        %v930 = vmul.f32 %v928, %v488
        %v931 = vsub.f32 %v469, %v929
        %v932 = vsub.f32 %v475, %v930
        %v933 = vmul.f32 %v931, %v931
        %v934 = vmul.f32 %v932, %v932
        %937 = vrot.lane.b32.xlu0 %v933, 80
        %v938 = vpop.permute.xlu0 %937
        %939 = vrot.lane.b32.xlu0 %v934, 80
        %v940 = vpop.permute.xlu0 %939
        %v943 = vsel %vm481, %v938, 0.0
        %944 = vadd.xlane.f32.xlu0 %v943
        %v945 = vpop.xlane.xlu0 %944
        %v946 = vsel %vm481, %v940, 0.0
        %947 = vadd.xlane.f32.xlu0 %v946
        %v948 = vpop.xlane.xlu0 %947
        %v949 = vmul.f32 %v945, %v488
        %v950 = vmul.f32 %v948, %v488
        %v951 = vadd.f32 %v949, 1e-06
        %v952 = vadd.f32 %v950, 1e-06
        %v953 = vrsqrt.pop %v951
        %v954 = vrsqrt.pop %v952
        %v955 = vmul.f32 %v931, %v953
        %v956 = vmul.f32 %v932, %v954
        %957 = vrot.lane.b32.xlu0 %v513, 48
        %v958 = vpop.permute.xlu0 %957
        %v960 = vmul.f32 %v955, %v958
        %v961 = vmul.f32 %v956, %v958
        %962 = vrot.lane.b32.xlu0 %v521, 48
        %v963 = vpop.permute.xlu0 %962
        %v965 = vadd.f32 %v960, %v963
        %v966 = vadd.f32 %v961, %v963
        %v967 = vmul.f32 %v965, 0.5
        %v968 = vmul.f32 %v966, 0.5
        %v969 = vmul.f32 %v965, 0.70710677
        %v970 = vmul.f32 %v966, 0.70710677
        %v971 = verf.f32.pop %v969
        %v972 = verf.f32.pop %v970
        %v973 = vadd.f32 %v971, 1.0
        %v974 = vadd.f32 %v972, 1.0
        %v975 = vmul.f32 %v967, %v973
        %v976 = vmul.f32 %v968, %v974
        %979 = vrot.lane.b32.xlu0 %v975, 80
        %v980 = vpop.permute.xlu0 %979
        %981 = vrot.lane.b32.xlu0 %v976, 80
        %v982 = vpop.permute.xlu0 %981
        %v983 = vsel %vm481, %v980, 0
        %v985 = vsel %vm481, %v982, 0
        %987 = vmatprep.subr.mxu0 0.0
        %988 = vmatpush1.msra.mxu0 %v535
        %989 = vmatprep.subr.mxu0 0.0
        %990 = vmatpush1.msra.mxu0 %v536
        %991 = vmatprep.subr.mxu0 0.0
        %992 = vmatpush1.msra.mxu0 0.0
        %993 = vmatprep.subr.mxu0 0.0
        %994 = vmatpush1.msra.mxu0 0.0
        %995 = vmatprep.subr.mxu0 0.0
        %996 = vmatpush1.msra.mxu0 0.0
        %997 = vmatprep.subr.mxu0 0.0
        %998 = vmatpush1.msra.mxu0 0.0
        %999 = vmatprep.subr.mxu0 0.0
        %1000 = vmatpush1.msra.mxu0 0.0
        %1001 = vmatprep.subr.mxu0 0.0
        %1002 = vmatpush1.msra.mxu0 0.0
        %1003 = vmatprep.subr.mxu0 0.0
        %1004 = vmatpush1.msra.mxu0 0.0
        %1005 = vmatprep.subr.mxu0 0.0
        %1006 = vmatpush1.msra.mxu0 0.0
        %1007 = vmatprep.subr.mxu0 0.0
        %1008 = vmatpush1.msra.mxu0 0.0
        %1009 = vmatprep.subr.mxu0 0.0
        %1010 = vmatpush1.msra.mxu0 0.0
        %1011 = vmatprep.subr.mxu0 0.0
        %1012 = vmatpush1.msra.mxu0 0.0
        %1013 = vmatprep.subr.mxu0 0.0
        %1014 = vmatpush1.msra.mxu0 0.0
        %1015 = vmatprep.subr.mxu0 0.0
        %1016 = vmatpush1.msra.mxu0 0.0
        %1017 = vmatprep.subr.mxu0 0.0
        %1018 = vmatpush1.msra.mxu0 0.0
        %1019 = vmatprep.subr.mxu0 0.0
        %1020 = vmatpush1.msra.mxu0 0.0
        %1021 = vmatprep.subr.mxu0 0.0
        %1022 = vmatpush1.msra.mxu0 0.0
        %1023 = vmatprep.subr.mxu0 0.0
        %1024 = vmatpush1.msra.mxu0 0.0
        %1025 = vmatprep.subr.mxu0 0.0
        %1026 = vmatpush1.msra.mxu0 0.0
        %1027 = vmatprep.subr.mxu0 0.0
        %1028 = vmatpush1.msra.mxu0 0.0
        %1029 = vmatprep.subr.mxu0 0.0
        %1030 = vmatpush1.msra.mxu0 0.0
        %1031 = vmatprep.subr.mxu0 0.0
        %1032 = vmatpush1.msra.mxu0 0.0
        %1033 = vmatprep.subr.mxu0 0.0
        %1034 = vmatpush1.msra.mxu0 0.0
        %1035 = vmatprep.subr.mxu0 0.0
        %1036 = vmatpush1.msra.mxu0 0.0
        %1037 = vmatprep.subr.mxu0 0.0
        %1038 = vmatpush1.msra.mxu0 0.0
        %1039 = vmatprep.subr.mxu0 0.0
        %1040 = vmatpush1.msra.mxu0 0.0
        %1041 = vmatprep.subr.mxu0 0.0
        %1042 = vmatpush1.msra.mxu0 0.0
        %1043 = vmatprep.subr.mxu0 0.0
        %1044 = vmatpush1.msra.mxu0 0.0
        %1045 = vmatprep.subr.mxu0 0.0
        %1046 = vmatpush1.msra.mxu0 0.0
        %1047 = vmatprep.subr.mxu0 0.0
        %1048 = vmatpush1.msra.mxu0 0.0
        %1049 = vmatprep.subr.mxu0 0.0
        %1050 = vmatpush1.msra.mxu0 0.0
        %1051 = vmatprep.mubr.f32.mxu0 0.0
        %1052 = vmatmul.mubr.f32.gmra.mrb[0].mxu0 %v983
        %v1053 = vpop.f32.mrb[0].mxu0
        %v1054 = vadd.f32 %v542, %v1053
        %v1055 = vpop.f32.mrb[0].mxu0
        %1056 = vmatprep.mubr.f32.mxu0 0.0
        %1057 = vmatmul.mubr.f32.gmra.mrb[0].mxu0 %v985
        %v1058 = vpop.f32.mrb[0].mxu0
        %v1059 = vadd.f32 %v542, %v1058
        %v1060 = vpop.f32.mrb[0].mxu0
        %1061 = vdwg.mxu0
        %1064 = vrot.lane.b32.xlu0 %v764, 32
        %v1065 = vpop.permute.xlu0 %1064
        %1066 = vrot.lane.b32.xlu0 %v769, 32
        %v1067 = vpop.permute.xlu0 %1066
        %1072 = vrot.lane.b32.xlu0 %v909, 64
        %v1073 = vpop.permute.xlu0 %1072
        %1074 = vrot.lane.b32.xlu0 %v914, 64
        %v1075 = vpop.permute.xlu0 %1074
        %1080 = vrot.lane.b32.xlu0 %v1054, 96
        %v1081 = vpop.permute.xlu0 %1080
        %1082 = vrot.lane.b32.xlu0 %v1059, 96
        %v1083 = vpop.permute.xlu0 %1082
        %v1086 = vsel %vm395, %v617, %v1065
        %v1087 = vsel %vm395, %v622, %v1067
        %vm1088 = vcmask 523264
        %v1089 = vsel %vm1088, %v1086, %v1073
        %v1090 = vsel %vm1088, %v1087, %v1075
        %vm1091 = vcmask 785408
        %v1092 = vsel %vm1091, %v1089, %v1081
        %v1093 = vsel %vm1091, %v1090, %v1083
        %1094 = vst [vmem:[%s362] sm:$0xff] %v1092
        %1095 = vst [vmem:[%s362 + $0x8] sm:$0xff] %v1093
        %1096 = vrot.lane.b32.xlu0 %v469, 64
        %v1097 = vpop.permute.xlu0 %1096
        %1098 = vrot.lane.b32.xlu0 %v475, 64
        %v1099 = vpop.permute.xlu0 %1098
        %1102 = vst.msk [vmem:[%s367] sm:$0xff] %vm1088, %v1097
        %1103 = vst.msk [vmem:[%s367 + $0x8] sm:$0xff] %vm1088, %v1099
        %1104 = vst.msk [vmem:[%s372] sm:$0xff] %vm395, %v471
        %1105 = vst.msk [vmem:[%s372 + $0x8] sm:$0xff] %vm395, %v477
        %p1106 = scmp.lt.s32.totalorder %s22, 1
        %s1107 = scalar_select %p1106, %s22, 1
        %s1108 = smul.addr %s1107, 2
        %s1109 = smul.addr %s1108, 8
        %s1110 = scalar_lea.vmem %s7, %s1109
        %p1111 = scmp.lt.s32.totalorder %s22, 1
        %s1112 = scalar_select %p1111, %s22, 1
        %s1113 = smul.addr %s1112, 2
        %s1114 = smul.addr %s1113, 8
        %s1115 = scalar_lea.vmem %s8, %s1114
        %p1116 = scmp.lt.s32.totalorder %s22, 1
        %s1117 = scalar_select %p1116, %s22, 1
        %s1118 = smul.addr %s1117, 2
        %s1119 = smul.addr %s1118, 8
        %s1120 = scalar_lea.vmem %s9, %s1119
        // Predicated region
        $region53: #{fpn_forward_packed.2} parent=47 // pred_check
          %p1121 = pneg %p192
        $region54: #{fpn_forward_packed.2} parent=47 // pred_check_branch
          %1123 = sbr.rel (%p1121) target = $region56
        $region55: #{fpn_forward_packed.2} parent=47 // pred_region
          _
        $region56: #{fpn_forward_packed.2} parent=47 // pred_fallthru
          _
        // Predicated region
        $region57: #{fpn_forward_packed.2} parent=47 // pred_check
          %p1124 = pneg %p218
        $region58: #{fpn_forward_packed.2} parent=47 // pred_check_branch
          %1126 = sbr.rel (%p1124) target = $region60
        $region59: #{fpn_forward_packed.2} parent=47 // pred_region
          _
        $region60: #{fpn_forward_packed.2} parent=47 // pred_fallthru
          _
        // Predicated region
        $region61: #{fpn_forward_packed.2} parent=47 // pred_check
          %p1127 = pneg %p244
        $region62: #{fpn_forward_packed.2} parent=47 // pred_check_branch
          %1129 = sbr.rel (%p1127) target = $region64
        $region63: #{fpn_forward_packed.2} parent=47 // pred_region
          _
        $region64: #{fpn_forward_packed.2} parent=47 // pred_fallthru
          _
      $region48: #{fpn_forward_packed.2} parent=5 // pred_fallthru
        _
      %p1130 = scmp.le.s32.totalorder 2, %s17
      // Predicated region
      $region65: #{fpn_forward_packed.2} parent=5 // pred_check
        %p1131 = pneg %p1130
      $region66: #{fpn_forward_packed.2} parent=5 // pred_check_branch
        %1133 = sbr.rel (%p1131) target = $region68
      $region67: #{fpn_forward_packed.2} parent=5 // pred_region
        %s1134 = ssub.s32 %s17, 2
        // Predicated region
        $region69: #{fpn_forward_packed.2} parent=67 // pred_check
          %p1135 = pneg %p198
        $region70: #{fpn_forward_packed.2} parent=67 // pred_check_branch
          %1137 = sbr.rel (%p1135) target = $region72
        $region71: #{fpn_forward_packed.2} parent=67 // pred_region
          %p1138 = scmp.lt.s32.totalorder %s23, 1
          %s1139 = scalar_select %p1138, %s23, 1
          %s1140 = smul.addr %s1139, 2
          %s1141 = smul.addr %s1140, 8
          %s1142 = scalar_lea.vmem %s7, %s1141
        $region72: #{fpn_forward_packed.2} parent=67 // pred_fallthru
          _
        // Predicated region
        $region73: #{fpn_forward_packed.2} parent=67 // pred_check
          %p1143 = pneg %p224
        $region74: #{fpn_forward_packed.2} parent=67 // pred_check_branch
          %1145 = sbr.rel (%p1143) target = $region76
        $region75: #{fpn_forward_packed.2} parent=67 // pred_region
          %p1146 = scmp.lt.s32.totalorder %s23, 1
          %s1147 = scalar_select %p1146, %s23, 1
          %s1148 = smul.addr %s1147, 2
          %s1149 = smul.addr %s1148, 8
          %s1150 = scalar_lea.vmem %s8, %s1149
        $region76: #{fpn_forward_packed.2} parent=67 // pred_fallthru
          _
        // Predicated region
        $region77: #{fpn_forward_packed.2} parent=67 // pred_check
          %p1151 = pneg %p250
        $region78: #{fpn_forward_packed.2} parent=67 // pred_check_branch
          %1153 = sbr.rel (%p1151) target = $region80
        $region79: #{fpn_forward_packed.2} parent=67 // pred_region
          %p1154 = scmp.lt.s32.totalorder %s23, 1
          %s1155 = scalar_select %p1154, %s23, 1
          %s1156 = smul.addr %s1155, 2
          %s1157 = smul.addr %s1156, 8
          %s1158 = scalar_lea.vmem %s9, %s1157
        $region80: #{fpn_forward_packed.2} parent=67 // pred_fallthru
          _
      $region68: #{fpn_forward_packed.2} parent=5 // pred_fallthru
        _
    $region6: #{fpn_forward_packed.2} parent=1 // loop_footer
      %s21 = sadd.s32 1, %s17
    $region7: #{fpn_forward_packed.2} parent=1 // loop_footer_branch
      %16 = sbr.rel target = $region3
    $region8: #{fpn_forward_packed.2} parent=1 // loop_exit
      _
    %1159 = vsyncpa [#allocation3], 1
    %s1160 = scalar_lea.sflag [#allocation3], 1
    %1161 = vsyncpa %s1160, 1

// kernel: fpn_forward_packed.3
$region0: #{fpn_forward_packed.3}
  #allocation0 [shape = 'u32[]', space=smem, size = 0x4, offset = 0x4, fixed_abs, tag = 'smem constant byte address 0x4 - core index']
  #allocation1 [shape = 'u32[144,128]{1,0:T(1,128)}', space=vmem, size = 0x12000, scoped, tag = 'internal scratch']
  %s0 = inlined_call_operand.vmem [shape: f32[2,18,18,8], index: 0, kind: input, shape index: {}]
  %s1 = inlined_call_operand.vmem [shape: f32[1,8], index: 1, kind: input, shape index: {}]
  %s2 = inlined_call_operand.vmem [shape: f32[1,8], index: 2, kind: input, shape index: {}]
  %s3 = inlined_call_operand.vmem [shape: f32[72,8], index: 3, kind: input, shape index: {}]
  %s4 = inlined_call_operand.vmem [shape: f32[1,8], index: 4, kind: input, shape index: {}]
  %s5 = inlined_call_operand.vmem [shape: f32[1,8], index: 5, kind: input, shape index: {}]
  %s6 = inlined_call_operand.vmem [shape: f32[2,10,10,16], index: 6, kind: input, shape index: {}]
  %s7 = inlined_call_operand.vmem [shape: f32[1,16], index: 7, kind: input, shape index: {}]
  %s8 = inlined_call_operand.vmem [shape: f32[1,16], index: 8, kind: input, shape index: {}]
  %s9 = inlined_call_operand.vmem [shape: f32[144,16], index: 9, kind: input, shape index: {}]
  %s10 = inlined_call_operand.vmem [shape: f32[1,16], index: 10, kind: input, shape index: {}]
  %s11 = inlined_call_operand.vmem [shape: f32[1,16], index: 11, kind: input, shape index: {}]
  %s12 = inlined_call_operand.vmem [shape: f32[2,6,6,32], index: 12, kind: input, shape index: {}]
  %s13 = inlined_call_operand.vmem [shape: f32[1,32], index: 13, kind: input, shape index: {}]
  %s14 = inlined_call_operand.vmem [shape: f32[1,32], index: 14, kind: input, shape index: {}]
  %s15 = inlined_call_operand.vmem [shape: f32[288,32], index: 15, kind: input, shape index: {}]
  %s16 = inlined_call_operand.vmem [shape: f32[1,32], index: 16, kind: input, shape index: {}]
  %s17 = inlined_call_operand.vmem [shape: f32[1,32], index: 17, kind: input, shape index: {}]
  %s18 = inlined_call_operand.vmem [shape: f32[2,8,256], index: 18, kind: output, shape index: {0}]
  %s19 = inlined_call_operand.vmem [shape: f32[2,16,64], index: 19, kind: output, shape index: {1}]
  %s20 = inlined_call_operand.vmem [shape: f32[2,32,16], index: 20, kind: output, shape index: {2}]
  %21 = xla_tuple %s18, %s19, %s20
  %s22 = sld [smem:[#allocation0]]
  $region121: #{fpn_forward_packed.3} parent=0
    _
  %s24 = ssub.s32 1, %s22
  %s25 = scalar_select 0, %s24, %s22
  loop: start=0, step=1, limit=4
  $region2: #{fpn_forward_packed.3} parent=0 // loop_pre_header
    _
  $region3: #{fpn_forward_packed.3} parent=0 // loop_header
    %s27 = sphi 0, %s31
    %p28 = scmp.ge.s32.totalorder %s27, 4
    %s37 = sphi 0, %s39
    %s40 = sphi 0, %s37
    %s41 = sphi 0, %s40
    %s57 = sphi 0, %s41
    %s61 = sphi 0, %s61
    %s63 = sphi 0, %s61
    %s64 = sphi 0, %s63
    %s78 = sphi 0, %s64
    %s82 = sphi 0, %s82
    %s84 = sphi 0, %s82
    %s85 = sphi 0, %s84
    %s99 = sphi 0, %s85
    %s103 = sphi 0, %s103
    %s105 = sphi 0, %s103
    %s106 = sphi 0, %s105
    %s120 = sphi 0, %s106
    %s124 = sphi 0, %s124
    %s126 = sphi 0, %s124
    %s127 = sphi 0, %s126
    %s141 = sphi 0, %s127
    %s145 = sphi 0, %s145
    %s147 = sphi 0, %s145
    %s148 = sphi 0, %s147
    %s162 = sphi 0, %s148
    %s168 = sphi 0, %s170
    %s171 = sphi 0, %s168
    %s172 = sphi 0, %s171
    %s188 = sphi 0, %s172
    %s192 = sphi 0, %s192
    %s194 = sphi 0, %s192
    %s195 = sphi 0, %s194
    %s209 = sphi 0, %s195
    %s213 = sphi 0, %s213
    %s215 = sphi 0, %s213
    %s216 = sphi 0, %s215
    %s230 = sphi 0, %s216
    %s234 = sphi 0, %s234
    %s236 = sphi 0, %s234
    %s237 = sphi 0, %s236
    %s251 = sphi 0, %s237
    %s255 = sphi 0, %s255
    %s257 = sphi 0, %s255
    %s258 = sphi 0, %s257
    %s272 = sphi 0, %s258
    %s276 = sphi 0, %s276
    %s278 = sphi 0, %s276
    %s279 = sphi 0, %s278
    %s293 = sphi 0, %s279
    %s299 = sphi 0, %s301
    %s302 = sphi 0, %s299
    %s303 = sphi 0, %s302
    %s319 = sphi 0, %s303
    %s323 = sphi 0, %s323
    %s325 = sphi 0, %s323
    %s326 = sphi 0, %s325
    %s340 = sphi 0, %s326
    %s344 = sphi 0, %s344
    %s346 = sphi 0, %s344
    %s347 = sphi 0, %s346
    %s361 = sphi 0, %s347
    %s365 = sphi 0, %s365
    %s367 = sphi 0, %s365
    %s368 = sphi 0, %s367
    %s382 = sphi 0, %s368
    %s386 = sphi 0, %s386
    %s388 = sphi 0, %s386
    %s389 = sphi 0, %s388
    %s403 = sphi 0, %s389
    %s407 = sphi 0, %s407
    %s409 = sphi 0, %s407
    %s410 = sphi 0, %s409
    %s424 = sphi 0, %s410
    %s430 = sphi 0, %s432
    %s433 = sphi 0, %s430
    %s434 = sphi 0, %s433
    %s450 = sphi 0, %s434
    %s456 = sphi 0, %s458
    %s459 = sphi 0, %s456
    %s460 = sphi 0, %s459
    %s476 = sphi 0, %s460
    %s482 = sphi 0, %s484
    %s485 = sphi 0, %s482
    %s486 = sphi 0, %s485
    %s502 = sphi 0, %s486
  $region4: #{fpn_forward_packed.3} parent=0 // loop_header_branch
    %30 = sbr.rel (%p28) target = $region8
  $region5: #{fpn_forward_packed.3} parent=0 // loop_body
    %s32 = ssub.s32 %s27, 1
    %s33 = ssub.s32 %s27, 2
    %s34 = sadd.s32 %s27, 1
    %s35 = ssub.s32 %s27, %s34
    %p36 = scmp.eq.s32.totalorder %s35, 0
    %s38 = sadd.s32 %s37, 1
    %s39 = scalar_select %p36, %s37, %s38
    %p42 = pneg %p36
    %p43 = scmp.eq.s32.totalorder %s27, 1
    %p44 = por %p42, %p43
    %p45 = scmp.ne.s32.totalorder %s37, %s40
    %p46 = scmp.eq.s32.totalorder %s27, 0
    %p47 = por %p45, %p46
    %p48 = scmp.ne.s32.totalorder %s37, %s40
    %p49 = scmp.eq.s32.totalorder %s32, 1
    %p50 = por %p48, %p49
    %p51 = scmp.ne.s32.totalorder %s40, %s41
    %p52 = scmp.eq.s32.totalorder %s32, 0
    %p53 = por %p51, %p52
    %p54 = scmp.ne.s32.totalorder %s40, %s41
    %p55 = scmp.eq.s32.totalorder %s33, 1
    %p56 = por %p54, %p55
    %p58 = scmp.ne.s32.totalorder %s41, %s57
    %p59 = scmp.eq.s32.totalorder %s33, 0
    %p60 = por %p58, %p59
    %s62 = sadd.s32 %s61, 1
    %p65 = scmp.eq.s32.totalorder %s27, 1
    %p66 = scmp.ne.s32.totalorder %s61, %s63
    %p67 = scmp.eq.s32.totalorder %s27, 0
    %p68 = por %p66, %p67
    %p69 = scmp.ne.s32.totalorder %s61, %s63
    %p70 = scmp.eq.s32.totalorder %s32, 1
    %p71 = por %p69, %p70
    %p72 = scmp.ne.s32.totalorder %s63, %s64
    %p73 = scmp.eq.s32.totalorder %s32, 0
    %p74 = por %p72, %p73
    %p75 = scmp.ne.s32.totalorder %s63, %s64
    %p76 = scmp.eq.s32.totalorder %s33, 1
    %p77 = por %p75, %p76
    %p79 = scmp.ne.s32.totalorder %s64, %s78
    %p80 = scmp.eq.s32.totalorder %s33, 0
    %p81 = por %p79, %p80
    %s83 = sadd.s32 %s82, 1
    %p86 = scmp.eq.s32.totalorder %s27, 1
    %p87 = scmp.ne.s32.totalorder %s82, %s84
    %p88 = scmp.eq.s32.totalorder %s27, 0
    %p89 = por %p87, %p88
    %p90 = scmp.ne.s32.totalorder %s82, %s84
    %p91 = scmp.eq.s32.totalorder %s32, 1
    %p92 = por %p90, %p91
    %p93 = scmp.ne.s32.totalorder %s84, %s85
    %p94 = scmp.eq.s32.totalorder %s32, 0
    %p95 = por %p93, %p94
    %p96 = scmp.ne.s32.totalorder %s84, %s85
    %p97 = scmp.eq.s32.totalorder %s33, 1
    %p98 = por %p96, %p97
    %p100 = scmp.ne.s32.totalorder %s85, %s99
    %p101 = scmp.eq.s32.totalorder %s33, 0
    %p102 = por %p100, %p101
    %s104 = sadd.s32 %s103, 1
    %p107 = scmp.eq.s32.totalorder %s27, 1
    %p108 = scmp.ne.s32.totalorder %s103, %s105
    %p109 = scmp.eq.s32.totalorder %s27, 0
    %p110 = por %p108, %p109
    %p111 = scmp.ne.s32.totalorder %s103, %s105
    %p112 = scmp.eq.s32.totalorder %s32, 1
    %p113 = por %p111, %p112
    %p114 = scmp.ne.s32.totalorder %s105, %s106
    %p115 = scmp.eq.s32.totalorder %s32, 0
    %p116 = por %p114, %p115
    %p117 = scmp.ne.s32.totalorder %s105, %s106
    %p118 = scmp.eq.s32.totalorder %s33, 1
    %p119 = por %p117, %p118
    %p121 = scmp.ne.s32.totalorder %s106, %s120
    %p122 = scmp.eq.s32.totalorder %s33, 0
    %p123 = por %p121, %p122
    %s125 = sadd.s32 %s124, 1
    %p128 = scmp.eq.s32.totalorder %s27, 1
    %p129 = scmp.ne.s32.totalorder %s124, %s126
    %p130 = scmp.eq.s32.totalorder %s27, 0
    %p131 = por %p129, %p130
    %p132 = scmp.ne.s32.totalorder %s124, %s126
    %p133 = scmp.eq.s32.totalorder %s32, 1
    %p134 = por %p132, %p133
    %p135 = scmp.ne.s32.totalorder %s126, %s127
    %p136 = scmp.eq.s32.totalorder %s32, 0
    %p137 = por %p135, %p136
    %p138 = scmp.ne.s32.totalorder %s126, %s127
    %p139 = scmp.eq.s32.totalorder %s33, 1
    %p140 = por %p138, %p139
    %p142 = scmp.ne.s32.totalorder %s127, %s141
    %p143 = scmp.eq.s32.totalorder %s33, 0
    %p144 = por %p142, %p143
    %s146 = sadd.s32 %s145, 1
    %p149 = scmp.eq.s32.totalorder %s27, 1
    %p150 = scmp.ne.s32.totalorder %s145, %s147
    %p151 = scmp.eq.s32.totalorder %s27, 0
    %p152 = por %p150, %p151
    %p153 = scmp.ne.s32.totalorder %s145, %s147
    %p154 = scmp.eq.s32.totalorder %s32, 1
    %p155 = por %p153, %p154
    %p156 = scmp.ne.s32.totalorder %s147, %s148
    %p157 = scmp.eq.s32.totalorder %s32, 0
    %p158 = por %p156, %p157
    %p159 = scmp.ne.s32.totalorder %s147, %s148
    %p160 = scmp.eq.s32.totalorder %s33, 1
    %p161 = por %p159, %p160
    %p163 = scmp.ne.s32.totalorder %s148, %s162
    %p164 = scmp.eq.s32.totalorder %s33, 0
    %p165 = por %p163, %p164
    %s166 = ssub.s32 %s27, %s34
    %p167 = scmp.eq.s32.totalorder %s166, 0
    %s169 = sadd.s32 %s168, 1
    %s170 = scalar_select %p167, %s168, %s169
    %p173 = pneg %p167
    %p174 = scmp.eq.s32.totalorder %s27, 1
    %p175 = por %p173, %p174
    %p176 = scmp.ne.s32.totalorder %s168, %s171
    %p177 = scmp.eq.s32.totalorder %s27, 0
    %p178 = por %p176, %p177
    %p179 = scmp.ne.s32.totalorder %s168, %s171
    %p180 = scmp.eq.s32.totalorder %s32, 1
    %p181 = por %p179, %p180
    %p182 = scmp.ne.s32.totalorder %s171, %s172
    %p183 = scmp.eq.s32.totalorder %s32, 0
    %p184 = por %p182, %p183
    %p185 = scmp.ne.s32.totalorder %s171, %s172
    %p186 = scmp.eq.s32.totalorder %s33, 1
    %p187 = por %p185, %p186
    %p189 = scmp.ne.s32.totalorder %s172, %s188
    %p190 = scmp.eq.s32.totalorder %s33, 0
    %p191 = por %p189, %p190
    %s193 = sadd.s32 %s192, 1
    %p196 = scmp.eq.s32.totalorder %s27, 1
    %p197 = scmp.ne.s32.totalorder %s192, %s194
    %p198 = scmp.eq.s32.totalorder %s27, 0
    %p199 = por %p197, %p198
    %p200 = scmp.ne.s32.totalorder %s192, %s194
    %p201 = scmp.eq.s32.totalorder %s32, 1
    %p202 = por %p200, %p201
    %p203 = scmp.ne.s32.totalorder %s194, %s195
    %p204 = scmp.eq.s32.totalorder %s32, 0
    %p205 = por %p203, %p204
    %p206 = scmp.ne.s32.totalorder %s194, %s195
    %p207 = scmp.eq.s32.totalorder %s33, 1
    %p208 = por %p206, %p207
    %p210 = scmp.ne.s32.totalorder %s195, %s209
    %p211 = scmp.eq.s32.totalorder %s33, 0
    %p212 = por %p210, %p211
    %s214 = sadd.s32 %s213, 1
    %p217 = scmp.eq.s32.totalorder %s27, 1
    %p218 = scmp.ne.s32.totalorder %s213, %s215
    %p219 = scmp.eq.s32.totalorder %s27, 0
    %p220 = por %p218, %p219
    %p221 = scmp.ne.s32.totalorder %s213, %s215
    %p222 = scmp.eq.s32.totalorder %s32, 1
    %p223 = por %p221, %p222
    %p224 = scmp.ne.s32.totalorder %s215, %s216
    %p225 = scmp.eq.s32.totalorder %s32, 0
    %p226 = por %p224, %p225
    %p227 = scmp.ne.s32.totalorder %s215, %s216
    %p228 = scmp.eq.s32.totalorder %s33, 1
    %p229 = por %p227, %p228
    %p231 = scmp.ne.s32.totalorder %s216, %s230
    %p232 = scmp.eq.s32.totalorder %s33, 0
    %p233 = por %p231, %p232
    %s235 = sadd.s32 %s234, 1
    %p238 = scmp.eq.s32.totalorder %s27, 1
    %p239 = scmp.ne.s32.totalorder %s234, %s236
    %p240 = scmp.eq.s32.totalorder %s27, 0
    %p241 = por %p239, %p240
    %p242 = scmp.ne.s32.totalorder %s234, %s236
    %p243 = scmp.eq.s32.totalorder %s32, 1
    %p244 = por %p242, %p243
    %p245 = scmp.ne.s32.totalorder %s236, %s237
    %p246 = scmp.eq.s32.totalorder %s32, 0
    %p247 = por %p245, %p246
    %p248 = scmp.ne.s32.totalorder %s236, %s237
    %p249 = scmp.eq.s32.totalorder %s33, 1
    %p250 = por %p248, %p249
    %p252 = scmp.ne.s32.totalorder %s237, %s251
    %p253 = scmp.eq.s32.totalorder %s33, 0
    %p254 = por %p252, %p253
    %s256 = sadd.s32 %s255, 1
    %p259 = scmp.eq.s32.totalorder %s27, 1
    %p260 = scmp.ne.s32.totalorder %s255, %s257
    %p261 = scmp.eq.s32.totalorder %s27, 0
    %p262 = por %p260, %p261
    %p263 = scmp.ne.s32.totalorder %s255, %s257
    %p264 = scmp.eq.s32.totalorder %s32, 1
    %p265 = por %p263, %p264
    %p266 = scmp.ne.s32.totalorder %s257, %s258
    %p267 = scmp.eq.s32.totalorder %s32, 0
    %p268 = por %p266, %p267
    %p269 = scmp.ne.s32.totalorder %s257, %s258
    %p270 = scmp.eq.s32.totalorder %s33, 1
    %p271 = por %p269, %p270
    %p273 = scmp.ne.s32.totalorder %s258, %s272
    %p274 = scmp.eq.s32.totalorder %s33, 0
    %p275 = por %p273, %p274
    %s277 = sadd.s32 %s276, 1
    %p280 = scmp.eq.s32.totalorder %s27, 1
    %p281 = scmp.ne.s32.totalorder %s276, %s278
    %p282 = scmp.eq.s32.totalorder %s27, 0
    %p283 = por %p281, %p282
    %p284 = scmp.ne.s32.totalorder %s276, %s278
    %p285 = scmp.eq.s32.totalorder %s32, 1
    %p286 = por %p284, %p285
    %p287 = scmp.ne.s32.totalorder %s278, %s279
    %p288 = scmp.eq.s32.totalorder %s32, 0
    %p289 = por %p287, %p288
    %p290 = scmp.ne.s32.totalorder %s278, %s279
    %p291 = scmp.eq.s32.totalorder %s33, 1
    %p292 = por %p290, %p291
    %p294 = scmp.ne.s32.totalorder %s279, %s293
    %p295 = scmp.eq.s32.totalorder %s33, 0
    %p296 = por %p294, %p295
    %s297 = ssub.s32 %s27, %s34
    %p298 = scmp.eq.s32.totalorder %s297, 0
    %s300 = sadd.s32 %s299, 1
    %s301 = scalar_select %p298, %s299, %s300
    %p304 = pneg %p298
    %p305 = scmp.eq.s32.totalorder %s27, 1
    %p306 = por %p304, %p305
    %p307 = scmp.ne.s32.totalorder %s299, %s302
    %p308 = scmp.eq.s32.totalorder %s27, 0
    %p309 = por %p307, %p308
    %p310 = scmp.ne.s32.totalorder %s299, %s302
    %p311 = scmp.eq.s32.totalorder %s32, 1
    %p312 = por %p310, %p311
    %p313 = scmp.ne.s32.totalorder %s302, %s303
    %p314 = scmp.eq.s32.totalorder %s32, 0
    %p315 = por %p313, %p314
    %p316 = scmp.ne.s32.totalorder %s302, %s303
    %p317 = scmp.eq.s32.totalorder %s33, 1
    %p318 = por %p316, %p317
    %p320 = scmp.ne.s32.totalorder %s303, %s319
    %p321 = scmp.eq.s32.totalorder %s33, 0
    %p322 = por %p320, %p321
    %s324 = sadd.s32 %s323, 1
    %p327 = scmp.eq.s32.totalorder %s27, 1
    %p328 = scmp.ne.s32.totalorder %s323, %s325
    %p329 = scmp.eq.s32.totalorder %s27, 0
    %p330 = por %p328, %p329
    %p331 = scmp.ne.s32.totalorder %s323, %s325
    %p332 = scmp.eq.s32.totalorder %s32, 1
    %p333 = por %p331, %p332
    %p334 = scmp.ne.s32.totalorder %s325, %s326
    %p335 = scmp.eq.s32.totalorder %s32, 0
    %p336 = por %p334, %p335
    %p337 = scmp.ne.s32.totalorder %s325, %s326
    %p338 = scmp.eq.s32.totalorder %s33, 1
    %p339 = por %p337, %p338
    %p341 = scmp.ne.s32.totalorder %s326, %s340
    %p342 = scmp.eq.s32.totalorder %s33, 0
    %p343 = por %p341, %p342
    %s345 = sadd.s32 %s344, 1
    %p348 = scmp.eq.s32.totalorder %s27, 1
    %p349 = scmp.ne.s32.totalorder %s344, %s346
    %p350 = scmp.eq.s32.totalorder %s27, 0
    %p351 = por %p349, %p350
    %p352 = scmp.ne.s32.totalorder %s344, %s346
    %p353 = scmp.eq.s32.totalorder %s32, 1
    %p354 = por %p352, %p353
    %p355 = scmp.ne.s32.totalorder %s346, %s347
    %p356 = scmp.eq.s32.totalorder %s32, 0
    %p357 = por %p355, %p356
    %p358 = scmp.ne.s32.totalorder %s346, %s347
    %p359 = scmp.eq.s32.totalorder %s33, 1
    %p360 = por %p358, %p359
    %p362 = scmp.ne.s32.totalorder %s347, %s361
    %p363 = scmp.eq.s32.totalorder %s33, 0
    %p364 = por %p362, %p363
    %s366 = sadd.s32 %s365, 1
    %p369 = scmp.eq.s32.totalorder %s27, 1
    %p370 = scmp.ne.s32.totalorder %s365, %s367
    %p371 = scmp.eq.s32.totalorder %s27, 0
    %p372 = por %p370, %p371
    %p373 = scmp.ne.s32.totalorder %s365, %s367
    %p374 = scmp.eq.s32.totalorder %s32, 1
    %p375 = por %p373, %p374
    %p376 = scmp.ne.s32.totalorder %s367, %s368
    %p377 = scmp.eq.s32.totalorder %s32, 0
    %p378 = por %p376, %p377
    %p379 = scmp.ne.s32.totalorder %s367, %s368
    %p380 = scmp.eq.s32.totalorder %s33, 1
    %p381 = por %p379, %p380
    %p383 = scmp.ne.s32.totalorder %s368, %s382
    %p384 = scmp.eq.s32.totalorder %s33, 0
    %p385 = por %p383, %p384
    %s387 = sadd.s32 %s386, 1
    %p390 = scmp.eq.s32.totalorder %s27, 1
    %p391 = scmp.ne.s32.totalorder %s386, %s388
    %p392 = scmp.eq.s32.totalorder %s27, 0
    %p393 = por %p391, %p392
    %p394 = scmp.ne.s32.totalorder %s386, %s388
    %p395 = scmp.eq.s32.totalorder %s32, 1
    %p396 = por %p394, %p395
    %p397 = scmp.ne.s32.totalorder %s388, %s389
    %p398 = scmp.eq.s32.totalorder %s32, 0
    %p399 = por %p397, %p398
    %p400 = scmp.ne.s32.totalorder %s388, %s389
    %p401 = scmp.eq.s32.totalorder %s33, 1
    %p402 = por %p400, %p401
    %p404 = scmp.ne.s32.totalorder %s389, %s403
    %p405 = scmp.eq.s32.totalorder %s33, 0
    %p406 = por %p404, %p405
    %s408 = sadd.s32 %s407, 1
    %p411 = scmp.eq.s32.totalorder %s27, 1
    %p412 = scmp.ne.s32.totalorder %s407, %s409
    %p413 = scmp.eq.s32.totalorder %s27, 0
    %p414 = por %p412, %p413
    %p415 = scmp.ne.s32.totalorder %s407, %s409
    %p416 = scmp.eq.s32.totalorder %s32, 1
    %p417 = por %p415, %p416
    %p418 = scmp.ne.s32.totalorder %s409, %s410
    %p419 = scmp.eq.s32.totalorder %s32, 0
    %p420 = por %p418, %p419
    %p421 = scmp.ne.s32.totalorder %s409, %s410
    %p422 = scmp.eq.s32.totalorder %s33, 1
    %p423 = por %p421, %p422
    %p425 = scmp.ne.s32.totalorder %s410, %s424
    %p426 = scmp.eq.s32.totalorder %s33, 0
    %p427 = por %p425, %p426
    %s428 = ssub.s32 %s27, %s34
    %p429 = scmp.eq.s32.totalorder %s428, 0
    %s431 = sadd.s32 %s430, 1
    %s432 = scalar_select %p429, %s430, %s431
    %p435 = pneg %p429
    %p436 = scmp.eq.s32.totalorder %s27, 1
    %p437 = por %p435, %p436
    %p438 = scmp.ne.s32.totalorder %s430, %s433
    %p439 = scmp.eq.s32.totalorder %s27, 0
    %p440 = por %p438, %p439
    %p441 = scmp.ne.s32.totalorder %s430, %s433
    %p442 = scmp.eq.s32.totalorder %s32, 1
    %p443 = por %p441, %p442
    %p444 = scmp.ne.s32.totalorder %s433, %s434
    %p445 = scmp.eq.s32.totalorder %s32, 0
    %p446 = por %p444, %p445
    %p447 = scmp.ne.s32.totalorder %s433, %s434
    %p448 = scmp.eq.s32.totalorder %s33, 1
    %p449 = por %p447, %p448
    %p451 = scmp.ne.s32.totalorder %s434, %s450
    %p452 = scmp.eq.s32.totalorder %s33, 0
    %p453 = por %p451, %p452
    %s454 = ssub.s32 %s27, %s34
    %p455 = scmp.eq.s32.totalorder %s454, 0
    %s457 = sadd.s32 %s456, 1
    %s458 = scalar_select %p455, %s456, %s457
    %p461 = pneg %p455
    %p462 = scmp.eq.s32.totalorder %s27, 1
    %p463 = por %p461, %p462
    %p464 = scmp.ne.s32.totalorder %s456, %s459
    %p465 = scmp.eq.s32.totalorder %s27, 0
    %p466 = por %p464, %p465
    %p467 = scmp.ne.s32.totalorder %s456, %s459
    %p468 = scmp.eq.s32.totalorder %s32, 1
    %p469 = por %p467, %p468
    %p470 = scmp.ne.s32.totalorder %s459, %s460
    %p471 = scmp.eq.s32.totalorder %s32, 0
    %p472 = por %p470, %p471
    %p473 = scmp.ne.s32.totalorder %s459, %s460
    %p474 = scmp.eq.s32.totalorder %s33, 1
    %p475 = por %p473, %p474
    %p477 = scmp.ne.s32.totalorder %s460, %s476
    %p478 = scmp.eq.s32.totalorder %s33, 0
    %p479 = por %p477, %p478
    %s480 = ssub.s32 %s27, %s34
    %p481 = scmp.eq.s32.totalorder %s480, 0
    %s483 = sadd.s32 %s482, 1
    %s484 = scalar_select %p481, %s482, %s483
    %p487 = pneg %p481
    %p488 = scmp.eq.s32.totalorder %s27, 1
    %p489 = por %p487, %p488
    %p490 = scmp.ne.s32.totalorder %s482, %s485
    %p491 = scmp.eq.s32.totalorder %s27, 0
    %p492 = por %p490, %p491
    %p493 = scmp.ne.s32.totalorder %s482, %s485
    %p494 = scmp.eq.s32.totalorder %s32, 1
    %p495 = por %p493, %p494
    %p496 = scmp.ne.s32.totalorder %s485, %s486
    %p497 = scmp.eq.s32.totalorder %s32, 0
    %p498 = por %p496, %p497
    %p499 = scmp.ne.s32.totalorder %s485, %s486
    %p500 = scmp.eq.s32.totalorder %s33, 1
    %p501 = por %p499, %p500
    %p503 = scmp.ne.s32.totalorder %s486, %s502
    %p504 = scmp.eq.s32.totalorder %s33, 0
    %p505 = por %p503, %p504
    %p506 = scmp.le.s32.totalorder 1, %s27
    %p507 = scmp.lt.s32.totalorder %s27, 3
    %p508 = pnand %p506, %p507
    %p509 = pneg %p508
    // Predicated region
    $region9: #{fpn_forward_packed.3} parent=5 // pred_check
      _
    $region10: #{fpn_forward_packed.3} parent=5 // pred_check_branch
      %511 = sbr.rel (%p508) target = $region12
    $region11: #{fpn_forward_packed.3} parent=5 // pred_region
      %s512 = ssub.s32 %s27, 1
      // Predicated region
      $region13: #{fpn_forward_packed.3} parent=11 // pred_check
        %p513 = pneg %p74
      $region14: #{fpn_forward_packed.3} parent=11 // pred_check_branch
        %515 = sbr.rel (%p513) target = $region16
      $region15: #{fpn_forward_packed.3} parent=11 // pred_region
        _
      $region16: #{fpn_forward_packed.3} parent=11 // pred_fallthru
        _
      // Predicated region
      $region17: #{fpn_forward_packed.3} parent=11 // pred_check
        %p516 = pneg %p95
      $region18: #{fpn_forward_packed.3} parent=11 // pred_check_branch
        %518 = sbr.rel (%p516) target = $region20
      $region19: #{fpn_forward_packed.3} parent=11 // pred_region
        _
      $region20: #{fpn_forward_packed.3} parent=11 // pred_fallthru
        _
      // Predicated region
      $region21: #{fpn_forward_packed.3} parent=11 // pred_check
        %p519 = pneg %p116
      $region22: #{fpn_forward_packed.3} parent=11 // pred_check_branch
        %521 = sbr.rel (%p519) target = $region24
      $region23: #{fpn_forward_packed.3} parent=11 // pred_region
        _
      $region24: #{fpn_forward_packed.3} parent=11 // pred_fallthru
        _
      // Predicated region
      $region25: #{fpn_forward_packed.3} parent=11 // pred_check
        %p522 = pneg %p137
      $region26: #{fpn_forward_packed.3} parent=11 // pred_check_branch
        %524 = sbr.rel (%p522) target = $region28
      $region27: #{fpn_forward_packed.3} parent=11 // pred_region
        _
      $region28: #{fpn_forward_packed.3} parent=11 // pred_fallthru
        _
      // Predicated region
      $region29: #{fpn_forward_packed.3} parent=11 // pred_check
        %p525 = pneg %p158
      $region30: #{fpn_forward_packed.3} parent=11 // pred_check_branch
        %527 = sbr.rel (%p525) target = $region32
      $region31: #{fpn_forward_packed.3} parent=11 // pred_region
        _
      $region32: #{fpn_forward_packed.3} parent=11 // pred_fallthru
        _
      // Predicated region
      $region33: #{fpn_forward_packed.3} parent=11 // pred_check
        %p528 = pneg %p205
      $region34: #{fpn_forward_packed.3} parent=11 // pred_check_branch
        %530 = sbr.rel (%p528) target = $region36
      $region35: #{fpn_forward_packed.3} parent=11 // pred_region
        _
      $region36: #{fpn_forward_packed.3} parent=11 // pred_fallthru
        _
      // Predicated region
      $region37: #{fpn_forward_packed.3} parent=11 // pred_check
        %p531 = pneg %p226
      $region38: #{fpn_forward_packed.3} parent=11 // pred_check_branch
        %533 = sbr.rel (%p531) target = $region40
      $region39: #{fpn_forward_packed.3} parent=11 // pred_region
        _
      $region40: #{fpn_forward_packed.3} parent=11 // pred_fallthru
        _
      // Predicated region
      $region41: #{fpn_forward_packed.3} parent=11 // pred_check
        %p534 = pneg %p247
      $region42: #{fpn_forward_packed.3} parent=11 // pred_check_branch
        %536 = sbr.rel (%p534) target = $region44
      $region43: #{fpn_forward_packed.3} parent=11 // pred_region
        _
      $region44: #{fpn_forward_packed.3} parent=11 // pred_fallthru
        _
      // Predicated region
      $region45: #{fpn_forward_packed.3} parent=11 // pred_check
        %p537 = pneg %p268
      $region46: #{fpn_forward_packed.3} parent=11 // pred_check_branch
        %539 = sbr.rel (%p537) target = $region48
      $region47: #{fpn_forward_packed.3} parent=11 // pred_region
        _
      $region48: #{fpn_forward_packed.3} parent=11 // pred_fallthru
        _
      // Predicated region
      $region49: #{fpn_forward_packed.3} parent=11 // pred_check
        %p540 = pneg %p289
      $region50: #{fpn_forward_packed.3} parent=11 // pred_check_branch
        %542 = sbr.rel (%p540) target = $region52
      $region51: #{fpn_forward_packed.3} parent=11 // pred_region
        _
      $region52: #{fpn_forward_packed.3} parent=11 // pred_fallthru
        _
      // Predicated region
      $region53: #{fpn_forward_packed.3} parent=11 // pred_check
        %p543 = pneg %p336
      $region54: #{fpn_forward_packed.3} parent=11 // pred_check_branch
        %545 = sbr.rel (%p543) target = $region56
      $region55: #{fpn_forward_packed.3} parent=11 // pred_region
        _
      $region56: #{fpn_forward_packed.3} parent=11 // pred_fallthru
        _
      // Predicated region
      $region57: #{fpn_forward_packed.3} parent=11 // pred_check
        %p546 = pneg %p357
      $region58: #{fpn_forward_packed.3} parent=11 // pred_check_branch
        %548 = sbr.rel (%p546) target = $region60
      $region59: #{fpn_forward_packed.3} parent=11 // pred_region
        _
      $region60: #{fpn_forward_packed.3} parent=11 // pred_fallthru
        _
      // Predicated region
      $region61: #{fpn_forward_packed.3} parent=11 // pred_check
        %p549 = pneg %p378
      $region62: #{fpn_forward_packed.3} parent=11 // pred_check_branch
        %551 = sbr.rel (%p549) target = $region64
      $region63: #{fpn_forward_packed.3} parent=11 // pred_region
        _
      $region64: #{fpn_forward_packed.3} parent=11 // pred_fallthru
        _
      // Predicated region
      $region65: #{fpn_forward_packed.3} parent=11 // pred_check
        %p552 = pneg %p399
      $region66: #{fpn_forward_packed.3} parent=11 // pred_check_branch
        %554 = sbr.rel (%p552) target = $region68
      $region67: #{fpn_forward_packed.3} parent=11 // pred_region
        _
      $region68: #{fpn_forward_packed.3} parent=11 // pred_fallthru
        _
      // Predicated region
      $region69: #{fpn_forward_packed.3} parent=11 // pred_check
        %p555 = pneg %p420
      $region70: #{fpn_forward_packed.3} parent=11 // pred_check_branch
        %557 = sbr.rel (%p555) target = $region72
      $region71: #{fpn_forward_packed.3} parent=11 // pred_region
        _
      $region72: #{fpn_forward_packed.3} parent=11 // pred_fallthru
        _
    $region12: #{fpn_forward_packed.3} parent=5 // pred_fallthru
      _
    %p558 = scmp.lt.s32.totalorder %s27, 2
    // Predicated region
    $region73: #{fpn_forward_packed.3} parent=5 // pred_check
      %p559 = pneg %p558
    $region74: #{fpn_forward_packed.3} parent=5 // pred_check_branch
      %561 = sbr.rel (%p559) target = $region76
    $region75: #{fpn_forward_packed.3} parent=5 // pred_region
      // Predicated region
      $region77: #{fpn_forward_packed.3} parent=75 // pred_check
        %p562 = pneg %p47
      $region78: #{fpn_forward_packed.3} parent=75 // pred_check_branch
        %564 = sbr.rel (%p562) target = $region80
      $region79: #{fpn_forward_packed.3} parent=75 // pred_region
        %p565 = scmp.lt.s32.totalorder %s27, 1
        %s566 = scalar_select %p565, %s27, 1
        %s567 = smul.addr %s566, 54
        %s568 = smul.addr %s567, 8
        %s569 = scalar_lea.vmem %s0, %s568
      $region80: #{fpn_forward_packed.3} parent=75 // pred_fallthru
        _
      // Predicated region
      $region81: #{fpn_forward_packed.3} parent=75 // pred_check
        %p570 = pneg %p178
      $region82: #{fpn_forward_packed.3} parent=75 // pred_check_branch
        %572 = sbr.rel (%p570) target = $region84
      $region83: #{fpn_forward_packed.3} parent=75 // pred_region
        %p573 = scmp.lt.s32.totalorder %s27, 1
        %s574 = scalar_select %p573, %s27, 1
        %s575 = smul.addr %s574, 20
        %s576 = smul.addr %s575, 8
        %s577 = scalar_lea.vmem %s6, %s576
      $region84: #{fpn_forward_packed.3} parent=75 // pred_fallthru
        _
      // Predicated region
      $region85: #{fpn_forward_packed.3} parent=75 // pred_check
        %p578 = pneg %p309
      $region86: #{fpn_forward_packed.3} parent=75 // pred_check_branch
        %580 = sbr.rel (%p578) target = $region88
      $region87: #{fpn_forward_packed.3} parent=75 // pred_region
        %p581 = scmp.lt.s32.totalorder %s27, 1
        %s582 = scalar_select %p581, %s27, 1
        %s583 = smul.addr %s582, 6
        %s584 = smul.addr %s583, 8
        %s585 = scalar_lea.vmem %s12, %s584
      $region88: #{fpn_forward_packed.3} parent=75 // pred_fallthru
        _
    $region76: #{fpn_forward_packed.3} parent=5 // pred_fallthru
      _
    %p586 = scmp.le.s32.totalorder 1, %s27
    %p587 = scmp.lt.s32.totalorder %s27, 3
    %p588 = pnand %p586, %p587
    %p589 = pneg %p588
    // Predicated region
    $region89: #{fpn_forward_packed.3} parent=5 // pred_check
      _
    $region90: #{fpn_forward_packed.3} parent=5 // pred_check_branch
      %591 = sbr.rel (%p588) target = $region92
    $region91: #{fpn_forward_packed.3} parent=5 // pred_region
      %s592 = ssub.s32 %s27, 1
      %p593 = scmp.lt.s32.totalorder %s32, 1
      %s594 = scalar_select %p593, %s32, 1
      %s595 = smul.addr %s594, 54
      %s596 = smul.addr %s595, 8
      %s597 = scalar_lea.vmem %s0, %s596
      %p598 = pneg %p53
      %p599 = pneg %p50
      %p600 = pneg %p74
      %p601 = pneg %p71
      %p602 = pneg %p95
      %p603 = pneg %p92
      %p604 = pneg %p116
      %p605 = pneg %p113
      %p606 = pneg %p137
      %p607 = pneg %p134
      %p608 = pneg %p158
      %p609 = pneg %p155
      %p610 = scmp.lt.s32.totalorder %s32, 1
      %s611 = scalar_select %p610, %s32, 1
      %s612 = smul.addr %s611, 20
      %s613 = smul.addr %s612, 8
      %s614 = scalar_lea.vmem %s6, %s613
      %p615 = pneg %p184
      %p616 = pneg %p181
      %p617 = pneg %p205
      %p618 = pneg %p202
      %p619 = pneg %p226
      %p620 = pneg %p223
      %p621 = pneg %p247
      %p622 = pneg %p244
      %p623 = pneg %p268
      %p624 = pneg %p265
      %p625 = pneg %p289
      %p626 = pneg %p286
      %p627 = scmp.lt.s32.totalorder %s32, 1
      %s628 = scalar_select %p627, %s32, 1
      %s629 = smul.addr %s628, 6
      %s630 = smul.addr %s629, 8
      %s631 = scalar_lea.vmem %s12, %s630
      %p632 = pneg %p315
      %p633 = pneg %p312
      %p634 = pneg %p336
      %p635 = pneg %p333
      %p636 = pneg %p357
      %p637 = pneg %p354
      %p638 = pneg %p378
      %p639 = pneg %p375
      %p640 = pneg %p399
      %p641 = pneg %p396
      %p642 = pneg %p420
      %p643 = pneg %p417
      %p644 = pneg %p446
      %p645 = pneg %p443
      %p646 = scmp.lt.s32.totalorder %s32, 1
      %s647 = scalar_select %p646, %s32, 1
      %s648 = smul.addr %s647, 2
      %s649 = smul.addr %s648, 8
      %s650 = scalar_lea.vmem %s18, %s649
      %p651 = pneg %p472
      %p652 = pneg %p469
      %p653 = scmp.lt.s32.totalorder %s32, 1
      %s654 = scalar_select %p653, %s32, 1
      %s655 = smul.addr %s654, 2
      %s656 = smul.addr %s655, 8
      %s657 = scalar_lea.vmem %s19, %s656
      %p658 = pneg %p498
      %p659 = pneg %p495
      %p660 = scmp.lt.s32.totalorder %s32, 1
      %s661 = scalar_select %p660, %s32, 1
      %s662 = smul.addr %s661, 4
      %s663 = smul.addr %s662, 8
      %s664 = scalar_lea.vmem %s20, %s663
      %p665 = scmp.lt.s32.totalorder %s32, 1
      %s666 = scalar_select %p665, %s32, 1
      %s667 = smul.addr %s666, 54
      %s668 = smul.addr %s667, 8
      %s669 = scalar_lea.vmem %s0, %s668
      %p670 = scmp.lt.s32.totalorder %s32, 1
      %s671 = scalar_select %p670, %s32, 1
      %s672 = smul.addr %s671, 20
      %s673 = smul.addr %s672, 8
      %s674 = scalar_lea.vmem %s6, %s673
      %p675 = scmp.lt.s32.totalorder %s32, 1
      %s676 = scalar_select %p675, %s32, 1
      %s677 = smul.addr %s676, 6
      %s678 = smul.addr %s677, 8
      %s679 = scalar_lea.vmem %s12, %s678
      %p680 = scmp.lt.s32.totalorder %s32, 1
      %s681 = scalar_select %p680, %s32, 1
      %s682 = smul.addr %s681, 2
      %s683 = smul.addr %s682, 8
      %s684 = scalar_lea.vmem %s18, %s683
      %p685 = scmp.lt.s32.totalorder %s32, 1
      %s686 = scalar_select %p685, %s32, 1
      %s687 = smul.addr %s686, 2
      %s688 = smul.addr %s687, 8
      %s689 = scalar_lea.vmem %s19, %s688
      %p690 = scmp.lt.s32.totalorder %s32, 1
      %s691 = scalar_select %p690, %s32, 1
      %s692 = smul.addr %s691, 4
      %s693 = smul.addr %s692, 8
      %s694 = scalar_lea.vmem %s20, %s693
      %v695 = vld [vmem:[%s669] sm:$0xff]
      %v696 = vld [vmem:[%s669 + $0x8] sm:$0xff]
      %v697 = vld [vmem:[%s669 + $0x10] sm:$0x3]
      %v698 = vld [vmem:[%s669 + $0x18] sm:$0xff]
      %v699 = vld [vmem:[%s669 + $0x20] sm:$0xff]
      %v700 = vld [vmem:[%s669 + $0x28] sm:$0x3]
      %v701 = vld [vmem:[%s669 + $0x30] sm:$0xff]
      %v702 = vld [vmem:[%s669 + $0x38] sm:$0xff]
      %v703 = vld [vmem:[%s669 + $0x40] sm:$0x3]
      %v704 = vld [vmem:[%s669 + $0x48] sm:$0xff]
      %v705 = vld [vmem:[%s669 + $0x50] sm:$0xff]
      %v706 = vld [vmem:[%s669 + $0x58] sm:$0x3]
      %v707 = vld [vmem:[%s669 + $0x60] sm:$0xff]
      %v708 = vld [vmem:[%s669 + $0x68] sm:$0xff]
      %v709 = vld [vmem:[%s669 + $0x70] sm:$0x3]
      %v710 = vld [vmem:[%s669 + $0x78] sm:$0xff]
      %v711 = vld [vmem:[%s669 + $0x80] sm:$0xff]
      %v712 = vld [vmem:[%s669 + $0x88] sm:$0x3]
      %v713 = vld [vmem:[%s669 + $0x90] sm:$0xff]
      %v714 = vld [vmem:[%s669 + $0x98] sm:$0xff]
      %v715 = vld [vmem:[%s669 + $0xa0] sm:$0x3]
      %v716 = vld [vmem:[%s669 + $0xa8] sm:$0xff]
      %v717 = vld [vmem:[%s669 + $0xb0] sm:$0xff]
      %v718 = vld [vmem:[%s669 + $0xb8] sm:$0x3]
      %v719 = vld [vmem:[%s669 + $0xc0] sm:$0xff]
      %v720 = vld [vmem:[%s669 + $0xc8] sm:$0xff]
      %v721 = vld [vmem:[%s669 + $0xd0] sm:$0x3]
      %v722 = vld [vmem:[%s669 + $0xd8] sm:$0xff]
      %v723 = vld [vmem:[%s669 + $0xe0] sm:$0xff]
      %v724 = vld [vmem:[%s669 + $0xe8] sm:$0x3]
      %v725 = vld [vmem:[%s669 + $0xf0] sm:$0xff]
      %v726 = vld [vmem:[%s669 + $0xf8] sm:$0xff]
      %v727 = vld [vmem:[%s669 + $0x100] sm:$0x3]
      %v728 = vld [vmem:[%s669 + $0x108] sm:$0xff]
      %v729 = vld [vmem:[%s669 + $0x110] sm:$0xff]
      %v730 = vld [vmem:[%s669 + $0x118] sm:$0x3]
      %v731 = vld [vmem:[%s669 + $0x120] sm:$0xff]
      %v732 = vld [vmem:[%s669 + $0x128] sm:$0xff]
      %v733 = vld [vmem:[%s669 + $0x130] sm:$0x3]
      %v734 = vld [vmem:[%s669 + $0x138] sm:$0xff]
      %v735 = vld [vmem:[%s669 + $0x140] sm:$0xff]
      %v736 = vld [vmem:[%s669 + $0x148] sm:$0x3]
      %v737 = vld [vmem:[%s669 + $0x150] sm:$0xff]
      %v738 = vld [vmem:[%s669 + $0x158] sm:$0xff]
      %v739 = vld [vmem:[%s669 + $0x160] sm:$0x3]
      %v740 = vld [vmem:[%s669 + $0x168] sm:$0xff]
      %v741 = vld [vmem:[%s669 + $0x170] sm:$0xff]
      %v742 = vld [vmem:[%s669 + $0x178] sm:$0x3]
      %v743 = vld [vmem:[%s669 + $0x180] sm:$0xff]
      %v744 = vld [vmem:[%s669 + $0x188] sm:$0xff]
      %v745 = vld [vmem:[%s669 + $0x190] sm:$0x3]
      %v746 = vld [vmem:[%s669 + $0x198] sm:$0xff]
      %v747 = vld [vmem:[%s669 + $0x1a0] sm:$0xff]
      %v748 = vld [vmem:[%s669 + $0x1a8] sm:$0x3]
      %v749 = vld [vmem:[%s1] sm:$0x1]
      %v750 = vld [vmem:[%s2] sm:$0x1]
      %v751 = vld [vmem:[%s3] sm:$0xff]
      %v752 = vld [vmem:[%s3 + $0x8] sm:$0xff]
      %v753 = vld [vmem:[%s3 + $0x10] sm:$0xff]
      %v754 = vld [vmem:[%s3 + $0x18] sm:$0xff]
      %v755 = vld [vmem:[%s3 + $0x20] sm:$0xff]
      %v756 = vld [vmem:[%s3 + $0x28] sm:$0xff]
      %v757 = vld [vmem:[%s3 + $0x30] sm:$0xff]
      %v758 = vld [vmem:[%s3 + $0x38] sm:$0xff]
      %v759 = vld [vmem:[%s3 + $0x40] sm:$0xff]
      %v760 = vld [vmem:[%s4] sm:$0x1]
      %v761 = vld [vmem:[%s5] sm:$0x1]
      %vm762 = vcmask 64512
      %v763 = vsel %vm762, %v695, 0.0
      %764 = vadd.xlane.f32.xlu0 %v763
      %v765 = vpop.xlane.xlu0 %764
      %v766 = vsel %vm762, %v696, 0.0
      %767 = vadd.xlane.f32.xlu0 %v766
      %v768 = vpop.xlane.xlu0 %767
      %vm769 = vcmask 58368
      %v770 = vsel %vm769, %v697, 0.0
      %771 = vadd.xlane.f32.xlu0 %v770
      %v772 = vpop.xlane.xlu0 %771
      %v773 = vsel %vm762, %v698, 0.0
      %774 = vadd.xlane.f32.xlu0 %v773
      %v775 = vpop.xlane.xlu0 %774
      %v776 = vsel %vm762, %v699, 0.0
      %777 = vadd.xlane.f32.xlu0 %v776
      %v778 = vpop.xlane.xlu0 %777
      %v779 = vsel %vm769, %v700, 0.0
      %780 = vadd.xlane.f32.xlu0 %v779
      %v781 = vpop.xlane.xlu0 %780
      %v782 = vsel %vm762, %v701, 0.0
      %783 = vadd.xlane.f32.xlu0 %v782
      %v784 = vpop.xlane.xlu0 %783
      %v785 = vsel %vm762, %v702, 0.0
      %786 = vadd.xlane.f32.xlu0 %v785
      %v787 = vpop.xlane.xlu0 %786
      %v788 = vsel %vm769, %v703, 0.0
      %789 = vadd.xlane.f32.xlu0 %v788
      %v790 = vpop.xlane.xlu0 %789
      %v791 = vsel %vm762, %v704, 0.0
      %792 = vadd.xlane.f32.xlu0 %v791
      %v793 = vpop.xlane.xlu0 %792
      %v794 = vsel %vm762, %v705, 0.0
      %795 = vadd.xlane.f32.xlu0 %v794
      %v796 = vpop.xlane.xlu0 %795
      %v797 = vsel %vm769, %v706, 0.0
      %798 = vadd.xlane.f32.xlu0 %v797
      %v799 = vpop.xlane.xlu0 %798
      %v800 = vsel %vm762, %v707, 0.0
      %801 = vadd.xlane.f32.xlu0 %v800
      %v802 = vpop.xlane.xlu0 %801
      %v803 = vsel %vm762, %v708, 0.0
      %804 = vadd.xlane.f32.xlu0 %v803
      %v805 = vpop.xlane.xlu0 %804
      %v806 = vsel %vm769, %v709, 0.0
      %807 = vadd.xlane.f32.xlu0 %v806
      %v808 = vpop.xlane.xlu0 %807
      %v809 = vsel %vm762, %v710, 0.0
      %810 = vadd.xlane.f32.xlu0 %v809
      %v811 = vpop.xlane.xlu0 %810
      %v812 = vsel %vm762, %v711, 0.0
      %813 = vadd.xlane.f32.xlu0 %v812
      %v814 = vpop.xlane.xlu0 %813
      %v815 = vsel %vm769, %v712, 0.0
      %816 = vadd.xlane.f32.xlu0 %v815
      %v817 = vpop.xlane.xlu0 %816
      %v818 = vsel %vm762, %v713, 0.0
      %819 = vadd.xlane.f32.xlu0 %v818
      %v820 = vpop.xlane.xlu0 %819
      %v821 = vsel %vm762, %v714, 0.0
      %822 = vadd.xlane.f32.xlu0 %v821
      %v823 = vpop.xlane.xlu0 %822
      %v824 = vsel %vm769, %v715, 0.0
      %825 = vadd.xlane.f32.xlu0 %v824
      %v826 = vpop.xlane.xlu0 %825
      %v827 = vsel %vm762, %v716, 0.0
      %828 = vadd.xlane.f32.xlu0 %v827
      %v829 = vpop.xlane.xlu0 %828
      %v830 = vsel %vm762, %v717, 0.0
      %831 = vadd.xlane.f32.xlu0 %v830
      %v832 = vpop.xlane.xlu0 %831
      %v833 = vsel %vm769, %v718, 0.0
      %834 = vadd.xlane.f32.xlu0 %v833
      %v835 = vpop.xlane.xlu0 %834
      %v836 = vsel %vm762, %v719, 0.0
      %837 = vadd.xlane.f32.xlu0 %v836
      %v838 = vpop.xlane.xlu0 %837
      %v839 = vsel %vm762, %v720, 0.0
      %840 = vadd.xlane.f32.xlu0 %v839
      %v841 = vpop.xlane.xlu0 %840
      %v842 = vsel %vm769, %v721, 0.0
      %843 = vadd.xlane.f32.xlu0 %v842
      %v844 = vpop.xlane.xlu0 %843
      %v845 = vsel %vm762, %v722, 0.0
      %846 = vadd.xlane.f32.xlu0 %v845
      %v847 = vpop.xlane.xlu0 %846
      %v848 = vsel %vm762, %v723, 0.0
      %849 = vadd.xlane.f32.xlu0 %v848
      %v850 = vpop.xlane.xlu0 %849
      %v851 = vsel %vm769, %v724, 0.0
      %852 = vadd.xlane.f32.xlu0 %v851
      %v853 = vpop.xlane.xlu0 %852
      %v854 = vsel %vm762, %v725, 0.0
      %855 = vadd.xlane.f32.xlu0 %v854
      %v856 = vpop.xlane.xlu0 %855
      %v857 = vsel %vm762, %v726, 0.0
      %858 = vadd.xlane.f32.xlu0 %v857
      %v859 = vpop.xlane.xlu0 %858
      %v860 = vsel %vm769, %v727, 0.0
      %861 = vadd.xlane.f32.xlu0 %v860
      %v862 = vpop.xlane.xlu0 %861
      %v863 = vsel %vm762, %v728, 0.0
      %864 = vadd.xlane.f32.xlu0 %v863
      %v865 = vpop.xlane.xlu0 %864
      %v866 = vsel %vm762, %v729, 0.0
      %867 = vadd.xlane.f32.xlu0 %v866
      %v868 = vpop.xlane.xlu0 %867
      %v869 = vsel %vm769, %v730, 0.0
      %870 = vadd.xlane.f32.xlu0 %v869
      %v871 = vpop.xlane.xlu0 %870
      %v872 = vsel %vm762, %v731, 0.0
      %873 = vadd.xlane.f32.xlu0 %v872
      %v874 = vpop.xlane.xlu0 %873
      %v875 = vsel %vm762, %v732, 0.0
      %876 = vadd.xlane.f32.xlu0 %v875
      %v877 = vpop.xlane.xlu0 %876
      %v878 = vsel %vm769, %v733, 0.0
      %879 = vadd.xlane.f32.xlu0 %v878
      %v880 = vpop.xlane.xlu0 %879
      %v881 = vsel %vm762, %v734, 0.0
      %882 = vadd.xlane.f32.xlu0 %v881
      %v883 = vpop.xlane.xlu0 %882
      %v884 = vsel %vm762, %v735, 0.0
      %885 = vadd.xlane.f32.xlu0 %v884
      %v886 = vpop.xlane.xlu0 %885
      %v887 = vsel %vm769, %v736, 0.0
      %888 = vadd.xlane.f32.xlu0 %v887
      %v889 = vpop.xlane.xlu0 %888
      %v890 = vsel %vm762, %v737, 0.0
      %891 = vadd.xlane.f32.xlu0 %v890
      %v892 = vpop.xlane.xlu0 %891
      %v893 = vsel %vm762, %v738, 0.0
      %894 = vadd.xlane.f32.xlu0 %v893
      %v895 = vpop.xlane.xlu0 %894
      %v896 = vsel %vm769, %v739, 0.0
      %897 = vadd.xlane.f32.xlu0 %v896
      %v898 = vpop.xlane.xlu0 %897
      %v899 = vsel %vm762, %v740, 0.0
      %900 = vadd.xlane.f32.xlu0 %v899
      %v901 = vpop.xlane.xlu0 %900
      %v902 = vsel %vm762, %v741, 0.0
      %903 = vadd.xlane.f32.xlu0 %v902
      %v904 = vpop.xlane.xlu0 %903
      %v905 = vsel %vm769, %v742, 0.0
      %906 = vadd.xlane.f32.xlu0 %v905
      %v907 = vpop.xlane.xlu0 %906
      %v908 = vsel %vm762, %v743, 0.0
      %909 = vadd.xlane.f32.xlu0 %v908
      %v910 = vpop.xlane.xlu0 %909
      %v911 = vsel %vm762, %v744, 0.0
      %912 = vadd.xlane.f32.xlu0 %v911
      %v913 = vpop.xlane.xlu0 %912
      %v914 = vsel %vm769, %v745, 0.0
      %915 = vadd.xlane.f32.xlu0 %v914
      %v916 = vpop.xlane.xlu0 %915
      %v917 = vsel %vm762, %v746, 0.0
      %918 = vadd.xlane.f32.xlu0 %v917
      %v919 = vpop.xlane.xlu0 %918
      %v920 = vsel %vm762, %v747, 0.0
      %921 = vadd.xlane.f32.xlu0 %v920
      %v922 = vpop.xlane.xlu0 %921
      %v923 = vsel %vm769, %v748, 0.0
      %924 = vadd.xlane.f32.xlu0 %v923
      %v925 = vpop.xlane.xlu0 %924
      %v926 = vrcp.pop 8.0
      %v927 = vmul.f32 %v765, %v926
      %v928 = vmul.f32 %v768, %v926
      %v929 = vmul.f32 %v772, %v926
      %v930 = vmul.f32 %v775, %v926
      %v931 = vmul.f32 %v778, %v926
      %v932 = vmul.f32 %v781, %v926
      %v933 = vmul.f32 %v784, %v926
      %v934 = vmul.f32 %v787, %v926
      %v935 = vmul.f32 %v790, %v926
      %v936 = vmul.f32 %v793, %v926
      %v937 = vmul.f32 %v796, %v926
      %v938 = vmul.f32 %v799, %v926
      %v939 = vmul.f32 %v802, %v926
      %v940 = vmul.f32 %v805, %v926
      %v941 = vmul.f32 %v808, %v926
      %v942 = vmul.f32 %v811, %v926
      %v943 = vmul.f32 %v814, %v926
      %v944 = vmul.f32 %v817, %v926
      %v945 = vmul.f32 %v820, %v926
      %v946 = vmul.f32 %v823, %v926
      %v947 = vmul.f32 %v826, %v926
      %v948 = vmul.f32 %v829, %v926
      %v949 = vmul.f32 %v832, %v926
      %v950 = vmul.f32 %v835, %v926
      %v951 = vmul.f32 %v838, %v926
      %v952 = vmul.f32 %v841, %v926
      %v953 = vmul.f32 %v844, %v926
      %v954 = vmul.f32 %v847, %v926
      %v955 = vmul.f32 %v850, %v926
      %v956 = vmul.f32 %v853, %v926
      %v957 = vmul.f32 %v856, %v926
      %v958 = vmul.f32 %v859, %v926
      %v959 = vmul.f32 %v862, %v926
      %v960 = vmul.f32 %v865, %v926
      %v961 = vmul.f32 %v868, %v926
      %v962 = vmul.f32 %v871, %v926
      %v963 = vmul.f32 %v874, %v926
      %v964 = vmul.f32 %v877, %v926
      %v965 = vmul.f32 %v880, %v926
      %v966 = vmul.f32 %v883, %v926
      %v967 = vmul.f32 %v886, %v926
      %v968 = vmul.f32 %v889, %v926
      %v969 = vmul.f32 %v892, %v926
      %v970 = vmul.f32 %v895, %v926
      %v971 = vmul.f32 %v898, %v926
      %v972 = vmul.f32 %v901, %v926
      %v973 = vmul.f32 %v904, %v926
      %v974 = vmul.f32 %v907, %v926
      %v975 = vmul.f32 %v910, %v926
      %v976 = vmul.f32 %v913, %v926
      %v977 = vmul.f32 %v916, %v926
      %v978 = vmul.f32 %v919, %v926
      %v979 = vmul.f32 %v922, %v926
      %v980 = vmul.f32 %v925, %v926
      %v981 = vsub.f32 %v695, %v927
      %v982 = vsub.f32 %v696, %v928
      %v983 = vsub.f32 %v697, %v929
      %v984 = vsub.f32 %v698, %v930
      %v985 = vsub.f32 %v699, %v931
      %v986 = vsub.f32 %v700, %v932
      %v987 = vsub.f32 %v701, %v933
      %v988 = vsub.f32 %v702, %v934
      %v989 = vsub.f32 %v703, %v935
      %v990 = vsub.f32 %v704, %v936
      %v991 = vsub.f32 %v705, %v937
      %v992 = vsub.f32 %v706, %v938
      %v993 = vsub.f32 %v707, %v939
      %v994 = vsub.f32 %v708, %v940
      %v995 = vsub.f32 %v709, %v941
      %v996 = vsub.f32 %v710, %v942
      %v997 = vsub.f32 %v711, %v943
      %v998 = vsub.f32 %v712, %v944
      %v999 = vsub.f32 %v713, %v945
      %v1000 = vsub.f32 %v714, %v946
      %v1001 = vsub.f32 %v715, %v947
      %v1002 = vsub.f32 %v716, %v948
      %v1003 = vsub.f32 %v717, %v949
      %v1004 = vsub.f32 %v718, %v950
      %v1005 = vsub.f32 %v719, %v951
      %v1006 = vsub.f32 %v720, %v952
      %v1007 = vsub.f32 %v721, %v953
      %v1008 = vsub.f32 %v722, %v954
      %v1009 = vsub.f32 %v723, %v955
      %v1010 = vsub.f32 %v724, %v956
      %v1011 = vsub.f32 %v725, %v957
      %v1012 = vsub.f32 %v726, %v958
      %v1013 = vsub.f32 %v727, %v959
      %v1014 = vsub.f32 %v728, %v960
      %v1015 = vsub.f32 %v729, %v961
      %v1016 = vsub.f32 %v730, %v962
      %v1017 = vsub.f32 %v731, %v963
      %v1018 = vsub.f32 %v732, %v964
      %v1019 = vsub.f32 %v733, %v965
      %v1020 = vsub.f32 %v734, %v966
      %v1021 = vsub.f32 %v735, %v967
      %v1022 = vsub.f32 %v736, %v968
      %v1023 = vsub.f32 %v737, %v969
      %v1024 = vsub.f32 %v738, %v970
      %v1025 = vsub.f32 %v739, %v971
      %v1026 = vsub.f32 %v740, %v972
      %v1027 = vsub.f32 %v741, %v973
      %v1028 = vsub.f32 %v742, %v974
      %v1029 = vsub.f32 %v743, %v975
      %v1030 = vsub.f32 %v744, %v976
      %v1031 = vsub.f32 %v745, %v977
      %v1032 = vsub.f32 %v746, %v978
      %v1033 = vsub.f32 %v747, %v979
      %v1034 = vsub.f32 %v748, %v980
      %v1035 = vmul.f32 %v981, %v981
      %v1036 = vmul.f32 %v982, %v982
      %v1037 = vmul.f32 %v983, %v983
      %v1038 = vmul.f32 %v984, %v984
      %v1039 = vmul.f32 %v985, %v985
      %v1040 = vmul.f32 %v986, %v986
      %v1041 = vmul.f32 %v987, %v987
      %v1042 = vmul.f32 %v988, %v988
      %v1043 = vmul.f32 %v989, %v989
      %v1044 = vmul.f32 %v990, %v990
      %v1045 = vmul.f32 %v991, %v991
      %v1046 = vmul.f32 %v992, %v992
      %v1047 = vmul.f32 %v993, %v993
      %v1048 = vmul.f32 %v994, %v994
      %v1049 = vmul.f32 %v995, %v995
      %v1050 = vmul.f32 %v996, %v996
      %v1051 = vmul.f32 %v997, %v997
      %v1052 = vmul.f32 %v998, %v998
      %v1053 = vmul.f32 %v999, %v999
      %v1054 = vmul.f32 %v1000, %v1000
      %v1055 = vmul.f32 %v1001, %v1001
      %v1056 = vmul.f32 %v1002, %v1002
      %v1057 = vmul.f32 %v1003, %v1003
      %v1058 = vmul.f32 %v1004, %v1004
      %v1059 = vmul.f32 %v1005, %v1005
      %v1060 = vmul.f32 %v1006, %v1006
      %v1061 = vmul.f32 %v1007, %v1007
      %v1062 = vmul.f32 %v1008, %v1008
      %v1063 = vmul.f32 %v1009, %v1009
      %v1064 = vmul.f32 %v1010, %v1010
      %v1065 = vmul.f32 %v1011, %v1011
      %v1066 = vmul.f32 %v1012, %v1012
      %v1067 = vmul.f32 %v1013, %v1013
      %v1068 = vmul.f32 %v1014, %v1014
      %v1069 = vmul.f32 %v1015, %v1015
      %v1070 = vmul.f32 %v1016, %v1016
      %v1071 = vmul.f32 %v1017, %v1017
      %v1072 = vmul.f32 %v1018, %v1018
      %v1073 = vmul.f32 %v1019, %v1019
      %v1074 = vmul.f32 %v1020, %v1020
      %v1075 = vmul.f32 %v1021, %v1021
      %v1076 = vmul.f32 %v1022, %v1022
      %v1077 = vmul.f32 %v1023, %v1023
      %v1078 = vmul.f32 %v1024, %v1024
      %v1079 = vmul.f32 %v1025, %v1025
      %v1080 = vmul.f32 %v1026, %v1026
      %v1081 = vmul.f32 %v1027, %v1027
      %v1082 = vmul.f32 %v1028, %v1028
      %v1083 = vmul.f32 %v1029, %v1029
      %v1084 = vmul.f32 %v1030, %v1030
      %v1085 = vmul.f32 %v1031, %v1031
      %v1086 = vmul.f32 %v1032, %v1032
      %v1087 = vmul.f32 %v1033, %v1033
      %v1088 = vmul.f32 %v1034, %v1034
      %v1089 = vsel %vm762, %v1035, 0.0
      %1090 = vadd.xlane.f32.xlu0 %v1089
      %v1091 = vpop.xlane.xlu0 %1090
      %v1092 = vsel %vm762, %v1036, 0.0
      %1093 = vadd.xlane.f32.xlu0 %v1092
      %v1094 = vpop.xlane.xlu0 %1093
      %v1095 = vsel %vm769, %v1037, 0.0
      %1096 = vadd.xlane.f32.xlu0 %v1095
      %v1097 = vpop.xlane.xlu0 %1096
      %v1098 = vsel %vm762, %v1038, 0.0
      %1099 = vadd.xlane.f32.xlu0 %v1098
      %v1100 = vpop.xlane.xlu0 %1099
      %v1101 = vsel %vm762, %v1039, 0.0
      %1102 = vadd.xlane.f32.xlu0 %v1101
      %v1103 = vpop.xlane.xlu0 %1102
      %v1104 = vsel %vm769, %v1040, 0.0
      %1105 = vadd.xlane.f32.xlu0 %v1104
      %v1106 = vpop.xlane.xlu0 %1105
      %v1107 = vsel %vm762, %v1041, 0.0
      %1108 = vadd.xlane.f32.xlu0 %v1107
      %v1109 = vpop.xlane.xlu0 %1108
      %v1110 = vsel %vm762, %v1042, 0.0
      %1111 = vadd.xlane.f32.xlu0 %v1110
      %v1112 = vpop.xlane.xlu0 %1111
      %v1113 = vsel %vm769, %v1043, 0.0
      %1114 = vadd.xlane.f32.xlu0 %v1113
      %v1115 = vpop.xlane.xlu0 %1114
      %v1116 = vsel %vm762, %v1044, 0.0
      %1117 = vadd.xlane.f32.xlu0 %v1116
      %v1118 = vpop.xlane.xlu0 %1117
      %v1119 = vsel %vm762, %v1045, 0.0
      %1120 = vadd.xlane.f32.xlu0 %v1119
      %v1121 = vpop.xlane.xlu0 %1120
      %v1122 = vsel %vm769, %v1046, 0.0
      %1123 = vadd.xlane.f32.xlu0 %v1122
      %v1124 = vpop.xlane.xlu0 %1123
      %v1125 = vsel %vm762, %v1047, 0.0
      %1126 = vadd.xlane.f32.xlu0 %v1125
      %v1127 = vpop.xlane.xlu0 %1126
      %v1128 = vsel %vm762, %v1048, 0.0
      %1129 = vadd.xlane.f32.xlu0 %v1128
      %v1130 = vpop.xlane.xlu0 %1129
      %v1131 = vsel %vm769, %v1049, 0.0
      %1132 = vadd.xlane.f32.xlu0 %v1131
      %v1133 = vpop.xlane.xlu0 %1132
      %v1134 = vsel %vm762, %v1050, 0.0
      %1135 = vadd.xlane.f32.xlu0 %v1134
      %v1136 = vpop.xlane.xlu0 %1135
      %v1137 = vsel %vm762, %v1051, 0.0
      %1138 = vadd.xlane.f32.xlu0 %v1137
      %v1139 = vpop.xlane.xlu0 %1138
      %v1140 = vsel %vm769, %v1052, 0.0
      %1141 = vadd.xlane.f32.xlu0 %v1140
      %v1142 = vpop.xlane.xlu0 %1141
      %v1143 = vsel %vm762, %v1053, 0.0
      %1144 = vadd.xlane.f32.xlu0 %v1143
      %v1145 = vpop.xlane.xlu0 %1144
      %v1146 = vsel %vm762, %v1054, 0.0
      %1147 = vadd.xlane.f32.xlu0 %v1146
      %v1148 = vpop.xlane.xlu0 %1147
      %v1149 = vsel %vm769, %v1055, 0.0
      %1150 = vadd.xlane.f32.xlu0 %v1149
      %v1151 = vpop.xlane.xlu0 %1150
      %v1152 = vsel %vm762, %v1056, 0.0
      %1153 = vadd.xlane.f32.xlu0 %v1152
      %v1154 = vpop.xlane.xlu0 %1153
      %v1155 = vsel %vm762, %v1057, 0.0
      %1156 = vadd.xlane.f32.xlu0 %v1155
      %v1157 = vpop.xlane.xlu0 %1156
      %v1158 = vsel %vm769, %v1058, 0.0
      %1159 = vadd.xlane.f32.xlu0 %v1158
      %v1160 = vpop.xlane.xlu0 %1159
      %v1161 = vsel %vm762, %v1059, 0.0
      %1162 = vadd.xlane.f32.xlu0 %v1161
      %v1163 = vpop.xlane.xlu0 %1162
      %v1164 = vsel %vm762, %v1060, 0.0
      %1165 = vadd.xlane.f32.xlu0 %v1164
      %v1166 = vpop.xlane.xlu0 %1165
      %v1167 = vsel %vm769, %v1061, 0.0
      %1168 = vadd.xlane.f32.xlu0 %v1167
      %v1169 = vpop.xlane.xlu0 %1168
      %v1170 = vsel %vm762, %v1062, 0.0
      %1171 = vadd.xlane.f32.xlu0 %v1170
      %v1172 = vpop.xlane.xlu0 %1171
      %v1173 = vsel %vm762, %v1063, 0.0
      %1174 = vadd.xlane.f32.xlu0 %v1173
      %v1175 = vpop.xlane.xlu0 %1174
      %v1176 = vsel %vm769, %v1064, 0.0
      %1177 = vadd.xlane.f32.xlu0 %v1176
      %v1178 = vpop.xlane.xlu0 %1177
      %v1179 = vsel %vm762, %v1065, 0.0
      %1180 = vadd.xlane.f32.xlu0 %v1179
      %v1181 = vpop.xlane.xlu0 %1180
      %v1182 = vsel %vm762, %v1066, 0.0
      %1183 = vadd.xlane.f32.xlu0 %v1182
      %v1184 = vpop.xlane.xlu0 %1183
      %v1185 = vsel %vm769, %v1067, 0.0
      %1186 = vadd.xlane.f32.xlu0 %v1185
      %v1187 = vpop.xlane.xlu0 %1186
      %v1188 = vsel %vm762, %v1068, 0.0
      %1189 = vadd.xlane.f32.xlu0 %v1188
      %v1190 = vpop.xlane.xlu0 %1189
      %v1191 = vsel %vm762, %v1069, 0.0
      %1192 = vadd.xlane.f32.xlu0 %v1191
      %v1193 = vpop.xlane.xlu0 %1192
      %v1194 = vsel %vm769, %v1070, 0.0
      %1195 = vadd.xlane.f32.xlu0 %v1194
      %v1196 = vpop.xlane.xlu0 %1195
      %v1197 = vsel %vm762, %v1071, 0.0
      %1198 = vadd.xlane.f32.xlu0 %v1197
      %v1199 = vpop.xlane.xlu0 %1198
      %v1200 = vsel %vm762, %v1072, 0.0
      %1201 = vadd.xlane.f32.xlu0 %v1200
      %v1202 = vpop.xlane.xlu0 %1201
      %v1203 = vsel %vm769, %v1073, 0.0
      %1204 = vadd.xlane.f32.xlu0 %v1203
      %v1205 = vpop.xlane.xlu0 %1204
      %v1206 = vsel %vm762, %v1074, 0.0
      %1207 = vadd.xlane.f32.xlu0 %v1206
      %v1208 = vpop.xlane.xlu0 %1207
      %v1209 = vsel %vm762, %v1075, 0.0
      %1210 = vadd.xlane.f32.xlu0 %v1209
      %v1211 = vpop.xlane.xlu0 %1210
      %v1212 = vsel %vm769, %v1076, 0.0
      %1213 = vadd.xlane.f32.xlu0 %v1212
      %v1214 = vpop.xlane.xlu0 %1213
      %v1215 = vsel %vm762, %v1077, 0.0
      %1216 = vadd.xlane.f32.xlu0 %v1215
      %v1217 = vpop.xlane.xlu0 %1216
      %v1218 = vsel %vm762, %v1078, 0.0
      %1219 = vadd.xlane.f32.xlu0 %v1218
      %v1220 = vpop.xlane.xlu0 %1219
      %v1221 = vsel %vm769, %v1079, 0.0
      %1222 = vadd.xlane.f32.xlu0 %v1221
      %v1223 = vpop.xlane.xlu0 %1222
      %v1224 = vsel %vm762, %v1080, 0.0
      %1225 = vadd.xlane.f32.xlu0 %v1224
      %v1226 = vpop.xlane.xlu0 %1225
      %v1227 = vsel %vm762, %v1081, 0.0
      %1228 = vadd.xlane.f32.xlu0 %v1227
      %v1229 = vpop.xlane.xlu0 %1228
      %v1230 = vsel %vm769, %v1082, 0.0
      %1231 = vadd.xlane.f32.xlu0 %v1230
      %v1232 = vpop.xlane.xlu0 %1231
      %v1233 = vsel %vm762, %v1083, 0.0
      %1234 = vadd.xlane.f32.xlu0 %v1233
      %v1235 = vpop.xlane.xlu0 %1234
      %v1236 = vsel %vm762, %v1084, 0.0
      %1237 = vadd.xlane.f32.xlu0 %v1236
      %v1238 = vpop.xlane.xlu0 %1237
      %v1239 = vsel %vm769, %v1085, 0.0
      %1240 = vadd.xlane.f32.xlu0 %v1239
      %v1241 = vpop.xlane.xlu0 %1240
      %v1242 = vsel %vm762, %v1086, 0.0
      %1243 = vadd.xlane.f32.xlu0 %v1242
      %v1244 = vpop.xlane.xlu0 %1243
      %v1245 = vsel %vm762, %v1087, 0.0
      %1246 = vadd.xlane.f32.xlu0 %v1245
      %v1247 = vpop.xlane.xlu0 %1246
      %v1248 = vsel %vm769, %v1088, 0.0
      %1249 = vadd.xlane.f32.xlu0 %v1248
      %v1250 = vpop.xlane.xlu0 %1249
      %v1251 = vmul.f32 %v1091, %v926
      %v1252 = vmul.f32 %v1094, %v926
      %v1253 = vmul.f32 %v1097, %v926
      %v1254 = vmul.f32 %v1100, %v926
      %v1255 = vmul.f32 %v1103, %v926
      %v1256 = vmul.f32 %v1106, %v926
      %v1257 = vmul.f32 %v1109, %v926
      %v1258 = vmul.f32 %v1112, %v926
      %v1259 = vmul.f32 %v1115, %v926
      %v1260 = vmul.f32 %v1118, %v926
      %v1261 = vmul.f32 %v1121, %v926
      %v1262 = vmul.f32 %v1124, %v926
      %v1263 = vmul.f32 %v1127, %v926
      %v1264 = vmul.f32 %v1130, %v926
      %v1265 = vmul.f32 %v1133, %v926
      %v1266 = vmul.f32 %v1136, %v926
      %v1267 = vmul.f32 %v1139, %v926
      %v1268 = vmul.f32 %v1142, %v926
      %v1269 = vmul.f32 %v1145, %v926
      %v1270 = vmul.f32 %v1148, %v926
      %v1271 = vmul.f32 %v1151, %v926
      %v1272 = vmul.f32 %v1154, %v926
      %v1273 = vmul.f32 %v1157, %v926
      %v1274 = vmul.f32 %v1160, %v926
      %v1275 = vmul.f32 %v1163, %v926
      %v1276 = vmul.f32 %v1166, %v926
      %v1277 = vmul.f32 %v1169, %v926
      %v1278 = vmul.f32 %v1172, %v926
      %v1279 = vmul.f32 %v1175, %v926
      %v1280 = vmul.f32 %v1178, %v926
      %v1281 = vmul.f32 %v1181, %v926
      %v1282 = vmul.f32 %v1184, %v926
      %v1283 = vmul.f32 %v1187, %v926
      %v1284 = vmul.f32 %v1190, %v926
      %v1285 = vmul.f32 %v1193, %v926
      %v1286 = vmul.f32 %v1196, %v926
      %v1287 = vmul.f32 %v1199, %v926
      %v1288 = vmul.f32 %v1202, %v926
      %v1289 = vmul.f32 %v1205, %v926
      %v1290 = vmul.f32 %v1208, %v926
      %v1291 = vmul.f32 %v1211, %v926
      %v1292 = vmul.f32 %v1214, %v926
      %v1293 = vmul.f32 %v1217, %v926
      %v1294 = vmul.f32 %v1220, %v926
      %v1295 = vmul.f32 %v1223, %v926
      %v1296 = vmul.f32 %v1226, %v926
      %v1297 = vmul.f32 %v1229, %v926
      %v1298 = vmul.f32 %v1232, %v926
      %v1299 = vmul.f32 %v1235, %v926
      %v1300 = vmul.f32 %v1238, %v926
      %v1301 = vmul.f32 %v1241, %v926
      %v1302 = vmul.f32 %v1244, %v926
      %v1303 = vmul.f32 %v1247, %v926
      %v1304 = vmul.f32 %v1250, %v926
      %v1305 = vadd.f32 %v1251, 1e-06
      %v1306 = vadd.f32 %v1252, 1e-06
      %v1307 = vadd.f32 %v1253, 1e-06
      %v1308 = vadd.f32 %v1254, 1e-06
      %v1309 = vadd.f32 %v1255, 1e-06
      %v1310 = vadd.f32 %v1256, 1e-06
      %v1311 = vadd.f32 %v1257, 1e-06
      %v1312 = vadd.f32 %v1258, 1e-06
      %v1313 = vadd.f32 %v1259, 1e-06
      %v1314 = vadd.f32 %v1260, 1e-06
      %v1315 = vadd.f32 %v1261, 1e-06
      %v1316 = vadd.f32 %v1262, 1e-06
      %v1317 = vadd.f32 %v1263, 1e-06
      %v1318 = vadd.f32 %v1264, 1e-06
      %v1319 = vadd.f32 %v1265, 1e-06
      %v1320 = vadd.f32 %v1266, 1e-06
      %v1321 = vadd.f32 %v1267, 1e-06
      %v1322 = vadd.f32 %v1268, 1e-06
      %v1323 = vadd.f32 %v1269, 1e-06
      %v1324 = vadd.f32 %v1270, 1e-06
      %v1325 = vadd.f32 %v1271, 1e-06
      %v1326 = vadd.f32 %v1272, 1e-06
      %v1327 = vadd.f32 %v1273, 1e-06
      %v1328 = vadd.f32 %v1274, 1e-06
      %v1329 = vadd.f32 %v1275, 1e-06
      %v1330 = vadd.f32 %v1276, 1e-06
      %v1331 = vadd.f32 %v1277, 1e-06
      %v1332 = vadd.f32 %v1278, 1e-06
      %v1333 = vadd.f32 %v1279, 1e-06
      %v1334 = vadd.f32 %v1280, 1e-06
      %v1335 = vadd.f32 %v1281, 1e-06
      %v1336 = vadd.f32 %v1282, 1e-06
      %v1337 = vadd.f32 %v1283, 1e-06
      %v1338 = vadd.f32 %v1284, 1e-06
      %v1339 = vadd.f32 %v1285, 1e-06
      %v1340 = vadd.f32 %v1286, 1e-06
      %v1341 = vadd.f32 %v1287, 1e-06
      %v1342 = vadd.f32 %v1288, 1e-06
      %v1343 = vadd.f32 %v1289, 1e-06
      %v1344 = vadd.f32 %v1290, 1e-06
      %v1345 = vadd.f32 %v1291, 1e-06
      %v1346 = vadd.f32 %v1292, 1e-06
      %v1347 = vadd.f32 %v1293, 1e-06
      %v1348 = vadd.f32 %v1294, 1e-06
      %v1349 = vadd.f32 %v1295, 1e-06
      %v1350 = vadd.f32 %v1296, 1e-06
      %v1351 = vadd.f32 %v1297, 1e-06
      %v1352 = vadd.f32 %v1298, 1e-06
      %v1353 = vadd.f32 %v1299, 1e-06
      %v1354 = vadd.f32 %v1300, 1e-06
      %v1355 = vadd.f32 %v1301, 1e-06
      %v1356 = vadd.f32 %v1302, 1e-06
      %v1357 = vadd.f32 %v1303, 1e-06
      %v1358 = vadd.f32 %v1304, 1e-06
      %v1359 = vrsqrt.pop %v1305
      %v1360 = vrsqrt.pop %v1306
      %v1361 = vrsqrt.pop %v1307
      %v1362 = vrsqrt.pop %v1308
      %v1363 = vrsqrt.pop %v1309
      %v1364 = vrsqrt.pop %v1310
      %v1365 = vrsqrt.pop %v1311
      %v1366 = vrsqrt.pop %v1312
      %v1367 = vrsqrt.pop %v1313
      %v1368 = vrsqrt.pop %v1314
      %v1369 = vrsqrt.pop %v1315
      %v1370 = vrsqrt.pop %v1316
      %v1371 = vrsqrt.pop %v1317
      %v1372 = vrsqrt.pop %v1318
      %v1373 = vrsqrt.pop %v1319
      %v1374 = vrsqrt.pop %v1320
      %v1375 = vrsqrt.pop %v1321
      %v1376 = vrsqrt.pop %v1322
      %v1377 = vrsqrt.pop %v1323
      %v1378 = vrsqrt.pop %v1324
      %v1379 = vrsqrt.pop %v1325
      %v1380 = vrsqrt.pop %v1326
      %v1381 = vrsqrt.pop %v1327
      %v1382 = vrsqrt.pop %v1328
      %v1383 = vrsqrt.pop %v1329
      %v1384 = vrsqrt.pop %v1330
      %v1385 = vrsqrt.pop %v1331
      %v1386 = vrsqrt.pop %v1332
      %v1387 = vrsqrt.pop %v1333
      %v1388 = vrsqrt.pop %v1334
      %v1389 = vrsqrt.pop %v1335
      %v1390 = vrsqrt.pop %v1336
      %v1391 = vrsqrt.pop %v1337
      %v1392 = vrsqrt.pop %v1338
      %v1393 = vrsqrt.pop %v1339
      %v1394 = vrsqrt.pop %v1340
      %v1395 = vrsqrt.pop %v1341
      %v1396 = vrsqrt.pop %v1342
      %v1397 = vrsqrt.pop %v1343
      %v1398 = vrsqrt.pop %v1344
      %v1399 = vrsqrt.pop %v1345
      %v1400 = vrsqrt.pop %v1346
      %v1401 = vrsqrt.pop %v1347
      %v1402 = vrsqrt.pop %v1348
      %v1403 = vrsqrt.pop %v1349
      %v1404 = vrsqrt.pop %v1350
      %v1405 = vrsqrt.pop %v1351
      %v1406 = vrsqrt.pop %v1352
      %v1407 = vrsqrt.pop %v1353
      %v1408 = vrsqrt.pop %v1354
      %v1409 = vrsqrt.pop %v1355
      %v1410 = vrsqrt.pop %v1356
      %v1411 = vrsqrt.pop %v1357
      %v1412 = vrsqrt.pop %v1358
      %v1413 = vmul.f32 %v981, %v1359
      %v1414 = vmul.f32 %v982, %v1360
      %v1415 = vmul.f32 %v983, %v1361
      %v1416 = vmul.f32 %v984, %v1362
      %v1417 = vmul.f32 %v985, %v1363
      %v1418 = vmul.f32 %v986, %v1364
      %v1419 = vmul.f32 %v987, %v1365
      %v1420 = vmul.f32 %v988, %v1366
      %v1421 = vmul.f32 %v989, %v1367
      %v1422 = vmul.f32 %v990, %v1368
      %v1423 = vmul.f32 %v991, %v1369
      %v1424 = vmul.f32 %v992, %v1370
      %v1425 = vmul.f32 %v993, %v1371
      %v1426 = vmul.f32 %v994, %v1372
      %v1427 = vmul.f32 %v995, %v1373
      %v1428 = vmul.f32 %v996, %v1374
      %v1429 = vmul.f32 %v997, %v1375
      %v1430 = vmul.f32 %v998, %v1376
      %v1431 = vmul.f32 %v999, %v1377
      %v1432 = vmul.f32 %v1000, %v1378
      %v1433 = vmul.f32 %v1001, %v1379
      %v1434 = vmul.f32 %v1002, %v1380
      %v1435 = vmul.f32 %v1003, %v1381
      %v1436 = vmul.f32 %v1004, %v1382
      %v1437 = vmul.f32 %v1005, %v1383
      %v1438 = vmul.f32 %v1006, %v1384
      %v1439 = vmul.f32 %v1007, %v1385
      %v1440 = vmul.f32 %v1008, %v1386
      %v1441 = vmul.f32 %v1009, %v1387
      %v1442 = vmul.f32 %v1010, %v1388
      %v1443 = vmul.f32 %v1011, %v1389
      %v1444 = vmul.f32 %v1012, %v1390
      %v1445 = vmul.f32 %v1013, %v1391
      %v1446 = vmul.f32 %v1014, %v1392
      %v1447 = vmul.f32 %v1015, %v1393
      %v1448 = vmul.f32 %v1016, %v1394
      %v1449 = vmul.f32 %v1017, %v1395
      %v1450 = vmul.f32 %v1018, %v1396
      %v1451 = vmul.f32 %v1019, %v1397
      %v1452 = vmul.f32 %v1020, %v1398
      %v1453 = vmul.f32 %v1021, %v1399
      %v1454 = vmul.f32 %v1022, %v1400
      %v1455 = vmul.f32 %v1023, %v1401
      %v1456 = vmul.f32 %v1024, %v1402
      %v1457 = vmul.f32 %v1025, %v1403
      %v1458 = vmul.f32 %v1026, %v1404
      %v1459 = vmul.f32 %v1027, %v1405
      %v1460 = vmul.f32 %v1028, %v1406
      %v1461 = vmul.f32 %v1029, %v1407
      %v1462 = vmul.f32 %v1030, %v1408
      %v1463 = vmul.f32 %v1031, %v1409
      %v1464 = vmul.f32 %v1032, %v1410
      %v1465 = vmul.f32 %v1033, %v1411
      %v1466 = vmul.f32 %v1034, %v1412
      %v1468 = vlaneseq
      %v1469 = vshrl.u32 %v1468, 7
      %v1470 = vsub.s32 0, %v1469
      %v1471 = vrot.slane %v749, %v1470
      %v1473 = vmul.f32 %v1413, %v1471
      %v1474 = vmul.f32 %v1414, %v1471
      %v1475 = vmul.f32 %v1415, %v1471
      %v1476 = vmul.f32 %v1416, %v1471
      %v1477 = vmul.f32 %v1417, %v1471
      %v1478 = vmul.f32 %v1418, %v1471
      %v1479 = vmul.f32 %v1419, %v1471
      %v1480 = vmul.f32 %v1420, %v1471
      %v1481 = vmul.f32 %v1421, %v1471
      %v1482 = vmul.f32 %v1422, %v1471
      %v1483 = vmul.f32 %v1423, %v1471
      %v1484 = vmul.f32 %v1424, %v1471
      %v1485 = vmul.f32 %v1425, %v1471
      %v1486 = vmul.f32 %v1426, %v1471
      %v1487 = vmul.f32 %v1427, %v1471
      %v1488 = vmul.f32 %v1428, %v1471
      %v1489 = vmul.f32 %v1429, %v1471
      %v1490 = vmul.f32 %v1430, %v1471
      %v1491 = vmul.f32 %v1431, %v1471
      %v1492 = vmul.f32 %v1432, %v1471
      %v1493 = vmul.f32 %v1433, %v1471
      %v1494 = vmul.f32 %v1434, %v1471
      %v1495 = vmul.f32 %v1435, %v1471
      %v1496 = vmul.f32 %v1436, %v1471
      %v1497 = vmul.f32 %v1437, %v1471
      %v1498 = vmul.f32 %v1438, %v1471
      %v1499 = vmul.f32 %v1439, %v1471
      %v1500 = vmul.f32 %v1440, %v1471
      %v1501 = vmul.f32 %v1441, %v1471
      %v1502 = vmul.f32 %v1442, %v1471
      %v1503 = vmul.f32 %v1443, %v1471
      %v1504 = vmul.f32 %v1444, %v1471
      %v1505 = vmul.f32 %v1445, %v1471
      %v1506 = vmul.f32 %v1446, %v1471
      %v1507 = vmul.f32 %v1447, %v1471
      %v1508 = vmul.f32 %v1448, %v1471
      %v1509 = vmul.f32 %v1449, %v1471
      %v1510 = vmul.f32 %v1450, %v1471
      %v1511 = vmul.f32 %v1451, %v1471
      %v1512 = vmul.f32 %v1452, %v1471
      %v1513 = vmul.f32 %v1453, %v1471
      %v1514 = vmul.f32 %v1454, %v1471
      %v1515 = vmul.f32 %v1455, %v1471
      %v1516 = vmul.f32 %v1456, %v1471
      %v1517 = vmul.f32 %v1457, %v1471
      %v1518 = vmul.f32 %v1458, %v1471
      %v1519 = vmul.f32 %v1459, %v1471
      %v1520 = vmul.f32 %v1460, %v1471
      %v1521 = vmul.f32 %v1461, %v1471
      %v1522 = vmul.f32 %v1462, %v1471
      %v1523 = vmul.f32 %v1463, %v1471
      %v1524 = vmul.f32 %v1464, %v1471
      %v1525 = vmul.f32 %v1465, %v1471
      %v1526 = vmul.f32 %v1466, %v1471
      %v1528 = vlaneseq
      %v1529 = vshrl.u32 %v1528, 7
      %v1530 = vsub.s32 0, %v1529
      %v1531 = vrot.slane %v750, %v1530
      %v1533 = vadd.f32 %v1473, %v1531
      %v1534 = vadd.f32 %v1474, %v1531
      %v1535 = vadd.f32 %v1475, %v1531
      %v1536 = vadd.f32 %v1476, %v1531
      %v1537 = vadd.f32 %v1477, %v1531
      %v1538 = vadd.f32 %v1478, %v1531
      %v1539 = vadd.f32 %v1479, %v1531
      %v1540 = vadd.f32 %v1480, %v1531
      %v1541 = vadd.f32 %v1481, %v1531
      %v1542 = vadd.f32 %v1482, %v1531
      %v1543 = vadd.f32 %v1483, %v1531
      %v1544 = vadd.f32 %v1484, %v1531
      %v1545 = vadd.f32 %v1485, %v1531
      %v1546 = vadd.f32 %v1486, %v1531
      %v1547 = vadd.f32 %v1487, %v1531
      %v1548 = vadd.f32 %v1488, %v1531
      %v1549 = vadd.f32 %v1489, %v1531
      %v1550 = vadd.f32 %v1490, %v1531
      %v1551 = vadd.f32 %v1491, %v1531
      %v1552 = vadd.f32 %v1492, %v1531
      %v1553 = vadd.f32 %v1493, %v1531
      %v1554 = vadd.f32 %v1494, %v1531
      %v1555 = vadd.f32 %v1495, %v1531
      %v1556 = vadd.f32 %v1496, %v1531
      %v1557 = vadd.f32 %v1497, %v1531
      %v1558 = vadd.f32 %v1498, %v1531
      %v1559 = vadd.f32 %v1499, %v1531
      %v1560 = vadd.f32 %v1500, %v1531
      %v1561 = vadd.f32 %v1501, %v1531
      %v1562 = vadd.f32 %v1502, %v1531
      %v1563 = vadd.f32 %v1503, %v1531
      %v1564 = vadd.f32 %v1504, %v1531
      %v1565 = vadd.f32 %v1505, %v1531
      %v1566 = vadd.f32 %v1506, %v1531
      %v1567 = vadd.f32 %v1507, %v1531
      %v1568 = vadd.f32 %v1508, %v1531
      %v1569 = vadd.f32 %v1509, %v1531
      %v1570 = vadd.f32 %v1510, %v1531
      %v1571 = vadd.f32 %v1511, %v1531
      %v1572 = vadd.f32 %v1512, %v1531
      %v1573 = vadd.f32 %v1513, %v1531
      %v1574 = vadd.f32 %v1514, %v1531
      %v1575 = vadd.f32 %v1515, %v1531
      %v1576 = vadd.f32 %v1516, %v1531
      %v1577 = vadd.f32 %v1517, %v1531
      %v1578 = vadd.f32 %v1518, %v1531
      %v1579 = vadd.f32 %v1519, %v1531
      %v1580 = vadd.f32 %v1520, %v1531
      %v1581 = vadd.f32 %v1521, %v1531
      %v1582 = vadd.f32 %v1522, %v1531
      %v1583 = vadd.f32 %v1523, %v1531
      %v1584 = vadd.f32 %v1524, %v1531
      %v1585 = vadd.f32 %v1525, %v1531
      %v1586 = vadd.f32 %v1526, %v1531
      %v1587 = vlaneseq
      %v1588 = vshrl.u32 %v1587, 7
      %v1589 = vadd.s32 %v1588, 8
      %v1590 = vadd.s32 %v1588, 16
      %vm1591 = vcmp.ge.s32.totalorder %v1588, 1
      %vm1592 = vcmp.ge.s32.totalorder %v1589, 1
      %vm1593 = vcmp.ge.s32.totalorder %v1590, 1
      %vm1594 = vmand 0, %vm1591
      %vm1595 = vmand 0, %vm1592
      %vm1596 = vmand 0, %vm1593
      %vm1597 = vmand 1, %vm1591
      %vm1598 = vmand 1, %vm1592
      %vm1599 = vmand 1, %vm1593
      %vm1600 = vcmp.le.s32.totalorder %v1588, 16
      %vm1601 = vcmp.le.s32.totalorder %v1589, 16
      %vm1602 = vcmp.le.s32.totalorder %v1590, 16
      %vm1603 = vmand %vm1594, %vm1600
      %vm1604 = vmand %vm1595, %vm1601
      %vm1605 = vmand %vm1596, %vm1602
      %vm1606 = vmand %vm1597, %vm1600
      %vm1607 = vmand %vm1598, %vm1601
      %vm1608 = vmand %vm1599, %vm1602
      %v1609 = vsel %vm1603, 1, 0
      %v1610 = vsel %vm1604, 1, 0
      %v1611 = vsel %vm1605, 1, 0
      %v1612 = vsel %vm1606, 1, 0
      %v1613 = vsel %vm1607, 1, 0
      %v1614 = vsel %vm1608, 1, 0
      %vm1615 = vcmp.eq.s32.totalorder %v1609, 1
      %vm1616 = vcmp.eq.s32.totalorder %v1610, 1
      %vm1617 = vcmp.eq.s32.totalorder %v1611, 1
      %vm1618 = vcmp.eq.s32.totalorder %v1612, 1
      %vm1619 = vcmp.eq.s32.totalorder %v1613, 1
      %vm1620 = vcmp.eq.s32.totalorder %v1614, 1
      %v1621 = vsel %vm1615, %v1533, 0.0
      %v1622 = vsel %vm1616, %v1534, 0.0
      %v1623 = vsel %vm1617, %v1535, 0.0
      %v1624 = vsel %vm1618, %v1536, 0.0
      %v1625 = vsel %vm1619, %v1537, 0.0
      %v1626 = vsel %vm1620, %v1538, 0.0
      %v1627 = vsel %vm1618, %v1539, 0.0
      %v1628 = vsel %vm1619, %v1540, 0.0
      %v1629 = vsel %vm1620, %v1541, 0.0
      %v1630 = vsel %vm1618, %v1542, 0.0
      %v1631 = vsel %vm1619, %v1543, 0.0
      %v1632 = vsel %vm1620, %v1544, 0.0
      %v1633 = vsel %vm1618, %v1545, 0.0
      %v1634 = vsel %vm1619, %v1546, 0.0
      %v1635 = vsel %vm1620, %v1547, 0.0
      %v1636 = vsel %vm1618, %v1548, 0.0
      %v1637 = vsel %vm1619, %v1549, 0.0
      %v1638 = vsel %vm1620, %v1550, 0.0
      %v1639 = vsel %vm1618, %v1551, 0.0
      %v1640 = vsel %vm1619, %v1552, 0.0
      %v1641 = vsel %vm1620, %v1553, 0.0
      %v1642 = vsel %vm1618, %v1554, 0.0
      %v1643 = vsel %vm1619, %v1555, 0.0
      %v1644 = vsel %vm1620, %v1556, 0.0
      %v1645 = vsel %vm1618, %v1557, 0.0
      %v1646 = vsel %vm1619, %v1558, 0.0
      %v1647 = vsel %vm1620, %v1559, 0.0
      %v1648 = vsel %vm1618, %v1560, 0.0
      %v1649 = vsel %vm1619, %v1561, 0.0
      %v1650 = vsel %vm1620, %v1562, 0.0
      %v1651 = vsel %vm1618, %v1563, 0.0
      %v1652 = vsel %vm1619, %v1564, 0.0
      %v1653 = vsel %vm1620, %v1565, 0.0
      %v1654 = vsel %vm1618, %v1566, 0.0
      %v1655 = vsel %vm1619, %v1567, 0.0
      %v1656 = vsel %vm1620, %v1568, 0.0
      %v1657 = vsel %vm1618, %v1569, 0.0
      %v1658 = vsel %vm1619, %v1570, 0.0
      %v1659 = vsel %vm1620, %v1571, 0.0
      %v1660 = vsel %vm1618, %v1572, 0.0
      %v1661 = vsel %vm1619, %v1573, 0.0
      %v1662 = vsel %vm1620, %v1574, 0.0
      %v1663 = vsel %vm1618, %v1575, 0.0
      %v1664 = vsel %vm1619, %v1576, 0.0
      %v1665 = vsel %vm1620, %v1577, 0.0
      %v1666 = vsel %vm1618, %v1578, 0.0
      %v1667 = vsel %vm1619, %v1579, 0.0
      %v1668 = vsel %vm1620, %v1580, 0.0
      %v1669 = vsel %vm1618, %v1581, 0.0
      %v1670 = vsel %vm1619, %v1582, 0.0
      %v1671 = vsel %vm1620, %v1583, 0.0
      %v1672 = vsel %vm1615, %v1584, 0.0
      %v1673 = vsel %vm1616, %v1585, 0.0
      %v1674 = vsel %vm1617, %v1586, 0.0
      %vm1723 = vcmask 1046528
      %v1724 = vrot.slane %v1621, 1
      %v1725 = vrot.slane %v1622, 1
      %v1726 = vsel %vm1723, %v1724, %v1725
      %v1727 = vrot.slane %v1623, 1
      %v1728 = vsel %vm1723, %v1725, %v1727
      %v1729 = vrot.slane %v1624, 1
      %v1730 = vrot.slane %v1625, 1
      %v1731 = vsel %vm1723, %v1729, %v1730
      %v1732 = vrot.slane %v1626, 1
      %v1733 = vsel %vm1723, %v1730, %v1732
      %v1734 = vrot.slane %v1627, 1
      %v1735 = vrot.slane %v1628, 1
      %v1736 = vsel %vm1723, %v1734, %v1735
      %v1737 = vrot.slane %v1629, 1
      %v1738 = vsel %vm1723, %v1735, %v1737
      %v1739 = vrot.slane %v1630, 1
      %v1740 = vrot.slane %v1631, 1
      %v1741 = vsel %vm1723, %v1739, %v1740
      %v1742 = vrot.slane %v1632, 1
      %v1743 = vsel %vm1723, %v1740, %v1742
      %v1744 = vrot.slane %v1633, 1
      %v1745 = vrot.slane %v1634, 1
      %v1746 = vsel %vm1723, %v1744, %v1745
      %v1747 = vrot.slane %v1635, 1
      %v1748 = vsel %vm1723, %v1745, %v1747
      %v1749 = vrot.slane %v1636, 1
      %v1750 = vrot.slane %v1637, 1
      %v1751 = vsel %vm1723, %v1749, %v1750
      %v1752 = vrot.slane %v1638, 1
      %v1753 = vsel %vm1723, %v1750, %v1752
      %v1754 = vrot.slane %v1639, 1
      %v1755 = vrot.slane %v1640, 1
      %v1756 = vsel %vm1723, %v1754, %v1755
      %v1757 = vrot.slane %v1641, 1
      %v1758 = vsel %vm1723, %v1755, %v1757
      %v1759 = vrot.slane %v1642, 1
      %v1760 = vrot.slane %v1643, 1
      %v1761 = vsel %vm1723, %v1759, %v1760
      %v1762 = vrot.slane %v1644, 1
      %v1763 = vsel %vm1723, %v1760, %v1762
      %v1764 = vrot.slane %v1645, 1
      %v1765 = vrot.slane %v1646, 1
      %v1766 = vsel %vm1723, %v1764, %v1765
      %v1767 = vrot.slane %v1647, 1
      %v1768 = vsel %vm1723, %v1765, %v1767
      %v1769 = vrot.slane %v1648, 1
      %v1770 = vrot.slane %v1649, 1
      %v1771 = vsel %vm1723, %v1769, %v1770
      %v1772 = vrot.slane %v1650, 1
      %v1773 = vsel %vm1723, %v1770, %v1772
      %v1774 = vrot.slane %v1651, 1
      %v1775 = vrot.slane %v1652, 1
      %v1776 = vsel %vm1723, %v1774, %v1775
      %v1777 = vrot.slane %v1653, 1
      %v1778 = vsel %vm1723, %v1775, %v1777
      %v1779 = vrot.slane %v1654, 1
      %v1780 = vrot.slane %v1655, 1
      %v1781 = vsel %vm1723, %v1779, %v1780
      %v1782 = vrot.slane %v1656, 1
      %v1783 = vsel %vm1723, %v1780, %v1782
      %v1784 = vrot.slane %v1657, 1
      %v1785 = vrot.slane %v1658, 1
      %v1786 = vsel %vm1723, %v1784, %v1785
      %v1787 = vrot.slane %v1659, 1
      %v1788 = vsel %vm1723, %v1785, %v1787
      %v1789 = vrot.slane %v1660, 1
      %v1790 = vrot.slane %v1661, 1
      %v1791 = vsel %vm1723, %v1789, %v1790
      %v1792 = vrot.slane %v1662, 1
      %v1793 = vsel %vm1723, %v1790, %v1792
      %v1794 = vrot.slane %v1663, 1
      %v1795 = vrot.slane %v1664, 1
      %v1796 = vsel %vm1723, %v1794, %v1795
      %v1797 = vrot.slane %v1665, 1
      %v1798 = vsel %vm1723, %v1795, %v1797
      %v1799 = vrot.slane %v1666, 1
      %v1800 = vrot.slane %v1667, 1
      %v1801 = vsel %vm1723, %v1799, %v1800
      %v1802 = vrot.slane %v1668, 1
      %v1803 = vsel %vm1723, %v1800, %v1802
      %vm1804 = vcmask 1045504
      %v1805 = vrot.slane %v1621, 2
      %v1806 = vrot.slane %v1622, 2
      %v1807 = vsel %vm1804, %v1805, %v1806
      %v1808 = vrot.slane %v1623, 2
      %v1809 = vsel %vm1804, %v1806, %v1808
      %v1810 = vrot.slane %v1624, 2
      %v1811 = vrot.slane %v1625, 2
      %v1812 = vsel %vm1804, %v1810, %v1811
      %v1813 = vrot.slane %v1626, 2
      %v1814 = vsel %vm1804, %v1811, %v1813
      %v1815 = vrot.slane %v1627, 2
      %v1816 = vrot.slane %v1628, 2
      %v1817 = vsel %vm1804, %v1815, %v1816
      %v1818 = vrot.slane %v1629, 2
      %v1819 = vsel %vm1804, %v1816, %v1818
      %v1820 = vrot.slane %v1630, 2
      %v1821 = vrot.slane %v1631, 2
      %v1822 = vsel %vm1804, %v1820, %v1821
      %v1823 = vrot.slane %v1632, 2
      %v1824 = vsel %vm1804, %v1821, %v1823
      %v1825 = vrot.slane %v1633, 2
      %v1826 = vrot.slane %v1634, 2
      %v1827 = vsel %vm1804, %v1825, %v1826
      %v1828 = vrot.slane %v1635, 2
      %v1829 = vsel %vm1804, %v1826, %v1828
      %v1830 = vrot.slane %v1636, 2
      %v1831 = vrot.slane %v1637, 2
      %v1832 = vsel %vm1804, %v1830, %v1831
      %v1833 = vrot.slane %v1638, 2
      %v1834 = vsel %vm1804, %v1831, %v1833
      %v1835 = vrot.slane %v1639, 2
      %v1836 = vrot.slane %v1640, 2
      %v1837 = vsel %vm1804, %v1835, %v1836
      %v1838 = vrot.slane %v1641, 2
      %v1839 = vsel %vm1804, %v1836, %v1838
      %v1840 = vrot.slane %v1642, 2
      %v1841 = vrot.slane %v1643, 2
      %v1842 = vsel %vm1804, %v1840, %v1841
      %v1843 = vrot.slane %v1644, 2
      %v1844 = vsel %vm1804, %v1841, %v1843
      %v1845 = vrot.slane %v1645, 2
      %v1846 = vrot.slane %v1646, 2
      %v1847 = vsel %vm1804, %v1845, %v1846
      %v1848 = vrot.slane %v1647, 2
      %v1849 = vsel %vm1804, %v1846, %v1848
      %v1850 = vrot.slane %v1648, 2
      %v1851 = vrot.slane %v1649, 2
      %v1852 = vsel %vm1804, %v1850, %v1851
      %v1853 = vrot.slane %v1650, 2
      %v1854 = vsel %vm1804, %v1851, %v1853
      %v1855 = vrot.slane %v1651, 2
      %v1856 = vrot.slane %v1652, 2
      %v1857 = vsel %vm1804, %v1855, %v1856
      %v1858 = vrot.slane %v1653, 2
      %v1859 = vsel %vm1804, %v1856, %v1858
      %v1860 = vrot.slane %v1654, 2
      %v1861 = vrot.slane %v1655, 2
      %v1862 = vsel %vm1804, %v1860, %v1861
      %v1863 = vrot.slane %v1656, 2
      %v1864 = vsel %vm1804, %v1861, %v1863
      %v1865 = vrot.slane %v1657, 2
      %v1866 = vrot.slane %v1658, 2
      %v1867 = vsel %vm1804, %v1865, %v1866
      %v1868 = vrot.slane %v1659, 2
      %v1869 = vsel %vm1804, %v1866, %v1868
      %v1870 = vrot.slane %v1660, 2
      %v1871 = vrot.slane %v1661, 2
      %v1872 = vsel %vm1804, %v1870, %v1871
      %v1873 = vrot.slane %v1662, 2
      %v1874 = vsel %vm1804, %v1871, %v1873
      %v1875 = vrot.slane %v1663, 2
      %v1876 = vrot.slane %v1664, 2
      %v1877 = vsel %vm1804, %v1875, %v1876
      %v1878 = vrot.slane %v1665, 2
      %v1879 = vsel %vm1804, %v1876, %v1878
      %v1880 = vrot.slane %v1666, 2
      %v1881 = vrot.slane %v1667, 2
      %v1882 = vsel %vm1804, %v1880, %v1881
      %v1883 = vrot.slane %v1668, 2
      %v1884 = vsel %vm1804, %v1881, %v1883
      %v1888 = vrot.slane %v1669, 1
      %v1889 = vrot.slane %v1670, 1
      %v1890 = vsel %vm1723, %v1888, %v1889
      %v1891 = vrot.slane %v1671, 1
      %v1892 = vsel %vm1723, %v1889, %v1891
      %v1893 = vrot.slane %v1669, 2
      %v1894 = vrot.slane %v1670, 2
      %v1895 = vsel %vm1804, %v1893, %v1894
      %v1896 = vrot.slane %v1671, 2
      %v1897 = vsel %vm1804, %v1894, %v1896
      %v1901 = vrot.slane %v1672, 1
      %v1902 = vrot.slane %v1673, 1
      %v1903 = vsel %vm1723, %v1901, %v1902
      %v1904 = vrot.slane %v1674, 1
      %v1905 = vsel %vm1723, %v1902, %v1904
      %v1906 = vrot.slane %v1672, 2
      %v1907 = vrot.slane %v1673, 2
      %v1908 = vsel %vm1804, %v1906, %v1907
      %v1909 = vrot.slane %v1674, 2
      %v1910 = vsel %vm1804, %v1907, %v1909
      %1911 = vrot.lane.b32.xlu0 %v1726, 8
      %v1912 = vpop.permute.xlu0 %1911
      %1913 = vrot.lane.b32.xlu0 %v1728, 8
      %v1914 = vpop.permute.xlu0 %1913
      %1915 = vrot.lane.b32.xlu0 %v1731, 8
      %v1916 = vpop.permute.xlu0 %1915
      %1917 = vrot.lane.b32.xlu0 %v1733, 8
      %v1918 = vpop.permute.xlu0 %1917
      %1919 = vrot.lane.b32.xlu0 %v1736, 8
      %v1920 = vpop.permute.xlu0 %1919
      %1921 = vrot.lane.b32.xlu0 %v1738, 8
      %v1922 = vpop.permute.xlu0 %1921
      %1923 = vrot.lane.b32.xlu0 %v1741, 8
      %v1924 = vpop.permute.xlu0 %1923
      %1925 = vrot.lane.b32.xlu0 %v1743, 8
      %v1926 = vpop.permute.xlu0 %1925
      %1927 = vrot.lane.b32.xlu0 %v1746, 8
      %v1928 = vpop.permute.xlu0 %1927
      %1929 = vrot.lane.b32.xlu0 %v1748, 8
      %v1930 = vpop.permute.xlu0 %1929
      %1931 = vrot.lane.b32.xlu0 %v1751, 8
      %v1932 = vpop.permute.xlu0 %1931
      %1933 = vrot.lane.b32.xlu0 %v1753, 8
      %v1934 = vpop.permute.xlu0 %1933
      %1935 = vrot.lane.b32.xlu0 %v1756, 8
      %v1936 = vpop.permute.xlu0 %1935
      %1937 = vrot.lane.b32.xlu0 %v1758, 8
      %v1938 = vpop.permute.xlu0 %1937
      %1939 = vrot.lane.b32.xlu0 %v1761, 8
      %v1940 = vpop.permute.xlu0 %1939
      %1941 = vrot.lane.b32.xlu0 %v1763, 8
      %v1942 = vpop.permute.xlu0 %1941
      %1943 = vrot.lane.b32.xlu0 %v1766, 8
      %v1944 = vpop.permute.xlu0 %1943
      %1945 = vrot.lane.b32.xlu0 %v1768, 8
      %v1946 = vpop.permute.xlu0 %1945
      %1947 = vrot.lane.b32.xlu0 %v1771, 8
      %v1948 = vpop.permute.xlu0 %1947
      %1949 = vrot.lane.b32.xlu0 %v1773, 8
      %v1950 = vpop.permute.xlu0 %1949
      %1951 = vrot.lane.b32.xlu0 %v1776, 8
      %v1952 = vpop.permute.xlu0 %1951
      %1953 = vrot.lane.b32.xlu0 %v1778, 8
      %v1954 = vpop.permute.xlu0 %1953
      %1955 = vrot.lane.b32.xlu0 %v1781, 8
      %v1956 = vpop.permute.xlu0 %1955
      %1957 = vrot.lane.b32.xlu0 %v1783, 8
      %v1958 = vpop.permute.xlu0 %1957
      %1959 = vrot.lane.b32.xlu0 %v1786, 8
      %v1960 = vpop.permute.xlu0 %1959
      %1961 = vrot.lane.b32.xlu0 %v1788, 8
      %v1962 = vpop.permute.xlu0 %1961
      %1963 = vrot.lane.b32.xlu0 %v1791, 8
      %v1964 = vpop.permute.xlu0 %1963
      %1965 = vrot.lane.b32.xlu0 %v1793, 8
      %v1966 = vpop.permute.xlu0 %1965
      %1967 = vrot.lane.b32.xlu0 %v1796, 8
      %v1968 = vpop.permute.xlu0 %1967
      %1969 = vrot.lane.b32.xlu0 %v1798, 8
      %v1970 = vpop.permute.xlu0 %1969
      %1971 = vrot.lane.b32.xlu0 %v1801, 8
      %v1972 = vpop.permute.xlu0 %1971
      %1973 = vrot.lane.b32.xlu0 %v1803, 8
      %v1974 = vpop.permute.xlu0 %1973
      %2007 = vrot.lane.b32.xlu0 %v1807, 16
      %v2008 = vpop.permute.xlu0 %2007
      %2009 = vrot.lane.b32.xlu0 %v1809, 16
      %v2010 = vpop.permute.xlu0 %2009
      %2011 = vrot.lane.b32.xlu0 %v1812, 16
      %v2012 = vpop.permute.xlu0 %2011
      %2013 = vrot.lane.b32.xlu0 %v1814, 16
      %v2014 = vpop.permute.xlu0 %2013
      %2015 = vrot.lane.b32.xlu0 %v1817, 16
      %v2016 = vpop.permute.xlu0 %2015
      %2017 = vrot.lane.b32.xlu0 %v1819, 16
      %v2018 = vpop.permute.xlu0 %2017
      %2019 = vrot.lane.b32.xlu0 %v1822, 16
      %v2020 = vpop.permute.xlu0 %2019
      %2021 = vrot.lane.b32.xlu0 %v1824, 16
      %v2022 = vpop.permute.xlu0 %2021
      %2023 = vrot.lane.b32.xlu0 %v1827, 16
      %v2024 = vpop.permute.xlu0 %2023
      %2025 = vrot.lane.b32.xlu0 %v1829, 16
      %v2026 = vpop.permute.xlu0 %2025
      %2027 = vrot.lane.b32.xlu0 %v1832, 16
      %v2028 = vpop.permute.xlu0 %2027
      %2029 = vrot.lane.b32.xlu0 %v1834, 16
      %v2030 = vpop.permute.xlu0 %2029
      %2031 = vrot.lane.b32.xlu0 %v1837, 16
      %v2032 = vpop.permute.xlu0 %2031
      %2033 = vrot.lane.b32.xlu0 %v1839, 16
      %v2034 = vpop.permute.xlu0 %2033
      %2035 = vrot.lane.b32.xlu0 %v1842, 16
      %v2036 = vpop.permute.xlu0 %2035
      %2037 = vrot.lane.b32.xlu0 %v1844, 16
      %v2038 = vpop.permute.xlu0 %2037
      %2039 = vrot.lane.b32.xlu0 %v1847, 16
      %v2040 = vpop.permute.xlu0 %2039
      %2041 = vrot.lane.b32.xlu0 %v1849, 16
      %v2042 = vpop.permute.xlu0 %2041
      %2043 = vrot.lane.b32.xlu0 %v1852, 16
      %v2044 = vpop.permute.xlu0 %2043
      %2045 = vrot.lane.b32.xlu0 %v1854, 16
      %v2046 = vpop.permute.xlu0 %2045
      %2047 = vrot.lane.b32.xlu0 %v1857, 16
      %v2048 = vpop.permute.xlu0 %2047
      %2049 = vrot.lane.b32.xlu0 %v1859, 16
      %v2050 = vpop.permute.xlu0 %2049
      %2051 = vrot.lane.b32.xlu0 %v1862, 16
      %v2052 = vpop.permute.xlu0 %2051
      %2053 = vrot.lane.b32.xlu0 %v1864, 16
      %v2054 = vpop.permute.xlu0 %2053
      %2055 = vrot.lane.b32.xlu0 %v1867, 16
      %v2056 = vpop.permute.xlu0 %2055
      %2057 = vrot.lane.b32.xlu0 %v1869, 16
      %v2058 = vpop.permute.xlu0 %2057
      %2059 = vrot.lane.b32.xlu0 %v1872, 16
      %v2060 = vpop.permute.xlu0 %2059
      %2061 = vrot.lane.b32.xlu0 %v1874, 16
      %v2062 = vpop.permute.xlu0 %2061
      %2063 = vrot.lane.b32.xlu0 %v1877, 16
      %v2064 = vpop.permute.xlu0 %2063
      %2065 = vrot.lane.b32.xlu0 %v1879, 16
      %v2066 = vpop.permute.xlu0 %2065
      %2067 = vrot.lane.b32.xlu0 %v1882, 16
      %v2068 = vpop.permute.xlu0 %2067
      %2069 = vrot.lane.b32.xlu0 %v1884, 16
      %v2070 = vpop.permute.xlu0 %2069
      %2103 = vrot.lane.b32.xlu0 %v1624, 24
      %v2104 = vpop.permute.xlu0 %2103
      %2105 = vrot.lane.b32.xlu0 %v1625, 24
      %v2106 = vpop.permute.xlu0 %2105
      %2107 = vrot.lane.b32.xlu0 %v1627, 24
      %v2108 = vpop.permute.xlu0 %2107
      %2109 = vrot.lane.b32.xlu0 %v1628, 24
      %v2110 = vpop.permute.xlu0 %2109
      %2111 = vrot.lane.b32.xlu0 %v1630, 24
      %v2112 = vpop.permute.xlu0 %2111
      %2113 = vrot.lane.b32.xlu0 %v1631, 24
      %v2114 = vpop.permute.xlu0 %2113
      %2115 = vrot.lane.b32.xlu0 %v1633, 24
      %v2116 = vpop.permute.xlu0 %2115
      %2117 = vrot.lane.b32.xlu0 %v1634, 24
      %v2118 = vpop.permute.xlu0 %2117
      %2119 = vrot.lane.b32.xlu0 %v1636, 24
      %v2120 = vpop.permute.xlu0 %2119
      %2121 = vrot.lane.b32.xlu0 %v1637, 24
      %v2122 = vpop.permute.xlu0 %2121
      %2123 = vrot.lane.b32.xlu0 %v1639, 24
      %v2124 = vpop.permute.xlu0 %2123
      %2125 = vrot.lane.b32.xlu0 %v1640, 24
      %v2126 = vpop.permute.xlu0 %2125
      %2127 = vrot.lane.b32.xlu0 %v1642, 24
      %v2128 = vpop.permute.xlu0 %2127
      %2129 = vrot.lane.b32.xlu0 %v1643, 24
      %v2130 = vpop.permute.xlu0 %2129
      %2131 = vrot.lane.b32.xlu0 %v1645, 24
      %v2132 = vpop.permute.xlu0 %2131
      %2133 = vrot.lane.b32.xlu0 %v1646, 24
      %v2134 = vpop.permute.xlu0 %2133
      %2135 = vrot.lane.b32.xlu0 %v1648, 24
      %v2136 = vpop.permute.xlu0 %2135
      %2137 = vrot.lane.b32.xlu0 %v1649, 24
      %v2138 = vpop.permute.xlu0 %2137
      %2139 = vrot.lane.b32.xlu0 %v1651, 24
      %v2140 = vpop.permute.xlu0 %2139
      %2141 = vrot.lane.b32.xlu0 %v1652, 24
      %v2142 = vpop.permute.xlu0 %2141
      %2143 = vrot.lane.b32.xlu0 %v1654, 24
      %v2144 = vpop.permute.xlu0 %2143
      %2145 = vrot.lane.b32.xlu0 %v1655, 24
      %v2146 = vpop.permute.xlu0 %2145
      %2147 = vrot.lane.b32.xlu0 %v1657, 24
      %v2148 = vpop.permute.xlu0 %2147
      %2149 = vrot.lane.b32.xlu0 %v1658, 24
      %v2150 = vpop.permute.xlu0 %2149
      %2151 = vrot.lane.b32.xlu0 %v1660, 24
      %v2152 = vpop.permute.xlu0 %2151
      %2153 = vrot.lane.b32.xlu0 %v1661, 24
      %v2154 = vpop.permute.xlu0 %2153
      %2155 = vrot.lane.b32.xlu0 %v1663, 24
      %v2156 = vpop.permute.xlu0 %2155
      %2157 = vrot.lane.b32.xlu0 %v1664, 24
      %v2158 = vpop.permute.xlu0 %2157
      %2159 = vrot.lane.b32.xlu0 %v1666, 24
      %v2160 = vpop.permute.xlu0 %2159
      %2161 = vrot.lane.b32.xlu0 %v1667, 24
      %v2162 = vpop.permute.xlu0 %2161
      %2163 = vrot.lane.b32.xlu0 %v1669, 24
      %v2164 = vpop.permute.xlu0 %2163
      %2165 = vrot.lane.b32.xlu0 %v1670, 24
      %v2166 = vpop.permute.xlu0 %2165
      %2199 = vrot.lane.b32.xlu0 %v1731, 32
      %v2200 = vpop.permute.xlu0 %2199
      %2201 = vrot.lane.b32.xlu0 %v1733, 32
      %v2202 = vpop.permute.xlu0 %2201
      %2203 = vrot.lane.b32.xlu0 %v1736, 32
      %v2204 = vpop.permute.xlu0 %2203
      %2205 = vrot.lane.b32.xlu0 %v1738, 32
      %v2206 = vpop.permute.xlu0 %2205
      %2207 = vrot.lane.b32.xlu0 %v1741, 32
      %v2208 = vpop.permute.xlu0 %2207
      %2209 = vrot.lane.b32.xlu0 %v1743, 32
      %v2210 = vpop.permute.xlu0 %2209
      %2211 = vrot.lane.b32.xlu0 %v1746, 32
      %v2212 = vpop.permute.xlu0 %2211
      %2213 = vrot.lane.b32.xlu0 %v1748, 32
      %v2214 = vpop.permute.xlu0 %2213
      %2215 = vrot.lane.b32.xlu0 %v1751, 32
      %v2216 = vpop.permute.xlu0 %2215
      %2217 = vrot.lane.b32.xlu0 %v1753, 32
      %v2218 = vpop.permute.xlu0 %2217
      %2219 = vrot.lane.b32.xlu0 %v1756, 32
      %v2220 = vpop.permute.xlu0 %2219
      %2221 = vrot.lane.b32.xlu0 %v1758, 32
      %v2222 = vpop.permute.xlu0 %2221
      %2223 = vrot.lane.b32.xlu0 %v1761, 32
      %v2224 = vpop.permute.xlu0 %2223
      %2225 = vrot.lane.b32.xlu0 %v1763, 32
      %v2226 = vpop.permute.xlu0 %2225
      %2227 = vrot.lane.b32.xlu0 %v1766, 32
      %v2228 = vpop.permute.xlu0 %2227
      %2229 = vrot.lane.b32.xlu0 %v1768, 32
      %v2230 = vpop.permute.xlu0 %2229
      %2231 = vrot.lane.b32.xlu0 %v1771, 32
      %v2232 = vpop.permute.xlu0 %2231
      %2233 = vrot.lane.b32.xlu0 %v1773, 32
      %v2234 = vpop.permute.xlu0 %2233
      %2235 = vrot.lane.b32.xlu0 %v1776, 32
      %v2236 = vpop.permute.xlu0 %2235
      %2237 = vrot.lane.b32.xlu0 %v1778, 32
      %v2238 = vpop.permute.xlu0 %2237
      %2239 = vrot.lane.b32.xlu0 %v1781, 32
      %v2240 = vpop.permute.xlu0 %2239
      %2241 = vrot.lane.b32.xlu0 %v1783, 32
      %v2242 = vpop.permute.xlu0 %2241
      %2243 = vrot.lane.b32.xlu0 %v1786, 32
      %v2244 = vpop.permute.xlu0 %2243
      %2245 = vrot.lane.b32.xlu0 %v1788, 32
      %v2246 = vpop.permute.xlu0 %2245
      %2247 = vrot.lane.b32.xlu0 %v1791, 32
      %v2248 = vpop.permute.xlu0 %2247
      %2249 = vrot.lane.b32.xlu0 %v1793, 32
      %v2250 = vpop.permute.xlu0 %2249
      %2251 = vrot.lane.b32.xlu0 %v1796, 32
      %v2252 = vpop.permute.xlu0 %2251
      %2253 = vrot.lane.b32.xlu0 %v1798, 32
      %v2254 = vpop.permute.xlu0 %2253
      %2255 = vrot.lane.b32.xlu0 %v1801, 32
      %v2256 = vpop.permute.xlu0 %2255
      %2257 = vrot.lane.b32.xlu0 %v1803, 32
      %v2258 = vpop.permute.xlu0 %2257
      %2259 = vrot.lane.b32.xlu0 %v1890, 32
      %v2260 = vpop.permute.xlu0 %2259
      %2261 = vrot.lane.b32.xlu0 %v1892, 32
      %v2262 = vpop.permute.xlu0 %2261
      %2295 = vrot.lane.b32.xlu0 %v1812, 40
      %v2296 = vpop.permute.xlu0 %2295
      %2297 = vrot.lane.b32.xlu0 %v1814, 40
      %v2298 = vpop.permute.xlu0 %2297
      %2299 = vrot.lane.b32.xlu0 %v1817, 40
      %v2300 = vpop.permute.xlu0 %2299
      %2301 = vrot.lane.b32.xlu0 %v1819, 40
      %v2302 = vpop.permute.xlu0 %2301
      %2303 = vrot.lane.b32.xlu0 %v1822, 40
      %v2304 = vpop.permute.xlu0 %2303
      %2305 = vrot.lane.b32.xlu0 %v1824, 40
      %v2306 = vpop.permute.xlu0 %2305
      %2307 = vrot.lane.b32.xlu0 %v1827, 40
      %v2308 = vpop.permute.xlu0 %2307
      %2309 = vrot.lane.b32.xlu0 %v1829, 40
      %v2310 = vpop.permute.xlu0 %2309
      %2311 = vrot.lane.b32.xlu0 %v1832, 40
      %v2312 = vpop.permute.xlu0 %2311
      %2313 = vrot.lane.b32.xlu0 %v1834, 40
      %v2314 = vpop.permute.xlu0 %2313
      %2315 = vrot.lane.b32.xlu0 %v1837, 40
      %v2316 = vpop.permute.xlu0 %2315
      %2317 = vrot.lane.b32.xlu0 %v1839, 40
      %v2318 = vpop.permute.xlu0 %2317
      %2319 = vrot.lane.b32.xlu0 %v1842, 40
      %v2320 = vpop.permute.xlu0 %2319
      %2321 = vrot.lane.b32.xlu0 %v1844, 40
      %v2322 = vpop.permute.xlu0 %2321
      %2323 = vrot.lane.b32.xlu0 %v1847, 40
      %v2324 = vpop.permute.xlu0 %2323
      %2325 = vrot.lane.b32.xlu0 %v1849, 40
      %v2326 = vpop.permute.xlu0 %2325
      %2327 = vrot.lane.b32.xlu0 %v1852, 40
      %v2328 = vpop.permute.xlu0 %2327
      %2329 = vrot.lane.b32.xlu0 %v1854, 40
      %v2330 = vpop.permute.xlu0 %2329
      %2331 = vrot.lane.b32.xlu0 %v1857, 40
      %v2332 = vpop.permute.xlu0 %2331
      %2333 = vrot.lane.b32.xlu0 %v1859, 40
      %v2334 = vpop.permute.xlu0 %2333
      %2335 = vrot.lane.b32.xlu0 %v1862, 40
      %v2336 = vpop.permute.xlu0 %2335
      %2337 = vrot.lane.b32.xlu0 %v1864, 40
      %v2338 = vpop.permute.xlu0 %2337
      %2339 = vrot.lane.b32.xlu0 %v1867, 40
      %v2340 = vpop.permute.xlu0 %2339
      %2341 = vrot.lane.b32.xlu0 %v1869, 40
      %v2342 = vpop.permute.xlu0 %2341
      %2343 = vrot.lane.b32.xlu0 %v1872, 40
      %v2344 = vpop.permute.xlu0 %2343
      %2345 = vrot.lane.b32.xlu0 %v1874, 40
      %v2346 = vpop.permute.xlu0 %2345
      %2347 = vrot.lane.b32.xlu0 %v1877, 40
      %v2348 = vpop.permute.xlu0 %2347
      %2349 = vrot.lane.b32.xlu0 %v1879, 40
      %v2350 = vpop.permute.xlu0 %2349
      %2351 = vrot.lane.b32.xlu0 %v1882, 40
      %v2352 = vpop.permute.xlu0 %2351
      %2353 = vrot.lane.b32.xlu0 %v1884, 40
      %v2354 = vpop.permute.xlu0 %2353
      %2355 = vrot.lane.b32.xlu0 %v1895, 40
      %v2356 = vpop.permute.xlu0 %2355
      %2357 = vrot.lane.b32.xlu0 %v1897, 40
      %v2358 = vpop.permute.xlu0 %2357
      %2391 = vrot.lane.b32.xlu0 %v1627, 48
      %v2392 = vpop.permute.xlu0 %2391
      %2393 = vrot.lane.b32.xlu0 %v1628, 48
      %v2394 = vpop.permute.xlu0 %2393
      %2395 = vrot.lane.b32.xlu0 %v1630, 48
      %v2396 = vpop.permute.xlu0 %2395
      %2397 = vrot.lane.b32.xlu0 %v1631, 48
      %v2398 = vpop.permute.xlu0 %2397
      %2399 = vrot.lane.b32.xlu0 %v1633, 48
      %v2400 = vpop.permute.xlu0 %2399
      %2401 = vrot.lane.b32.xlu0 %v1634, 48
      %v2402 = vpop.permute.xlu0 %2401
      %2403 = vrot.lane.b32.xlu0 %v1636, 48
      %v2404 = vpop.permute.xlu0 %2403
      %2405 = vrot.lane.b32.xlu0 %v1637, 48
      %v2406 = vpop.permute.xlu0 %2405
      %2407 = vrot.lane.b32.xlu0 %v1639, 48
      %v2408 = vpop.permute.xlu0 %2407
      %2409 = vrot.lane.b32.xlu0 %v1640, 48
      %v2410 = vpop.permute.xlu0 %2409
      %2411 = vrot.lane.b32.xlu0 %v1642, 48
      %v2412 = vpop.permute.xlu0 %2411
      %2413 = vrot.lane.b32.xlu0 %v1643, 48
      %v2414 = vpop.permute.xlu0 %2413
      %2415 = vrot.lane.b32.xlu0 %v1645, 48
      %v2416 = vpop.permute.xlu0 %2415
      %2417 = vrot.lane.b32.xlu0 %v1646, 48
      %v2418 = vpop.permute.xlu0 %2417
      %2419 = vrot.lane.b32.xlu0 %v1648, 48
      %v2420 = vpop.permute.xlu0 %2419
      %2421 = vrot.lane.b32.xlu0 %v1649, 48
      %v2422 = vpop.permute.xlu0 %2421
      %2423 = vrot.lane.b32.xlu0 %v1651, 48
      %v2424 = vpop.permute.xlu0 %2423
      %2425 = vrot.lane.b32.xlu0 %v1652, 48
      %v2426 = vpop.permute.xlu0 %2425
      %2427 = vrot.lane.b32.xlu0 %v1654, 48
      %v2428 = vpop.permute.xlu0 %2427
      %2429 = vrot.lane.b32.xlu0 %v1655, 48
      %v2430 = vpop.permute.xlu0 %2429
      %2431 = vrot.lane.b32.xlu0 %v1657, 48
      %v2432 = vpop.permute.xlu0 %2431
      %2433 = vrot.lane.b32.xlu0 %v1658, 48
      %v2434 = vpop.permute.xlu0 %2433
      %2435 = vrot.lane.b32.xlu0 %v1660, 48
      %v2436 = vpop.permute.xlu0 %2435
      %2437 = vrot.lane.b32.xlu0 %v1661, 48
      %v2438 = vpop.permute.xlu0 %2437
      %2439 = vrot.lane.b32.xlu0 %v1663, 48
      %v2440 = vpop.permute.xlu0 %2439
      %2441 = vrot.lane.b32.xlu0 %v1664, 48
      %v2442 = vpop.permute.xlu0 %2441
      %2443 = vrot.lane.b32.xlu0 %v1666, 48
      %v2444 = vpop.permute.xlu0 %2443
      %2445 = vrot.lane.b32.xlu0 %v1667, 48
      %v2446 = vpop.permute.xlu0 %2445
      %2447 = vrot.lane.b32.xlu0 %v1669, 48
      %v2448 = vpop.permute.xlu0 %2447
      %2449 = vrot.lane.b32.xlu0 %v1670, 48
      %v2450 = vpop.permute.xlu0 %2449
      %2451 = vrot.lane.b32.xlu0 %v1672, 48
      %v2452 = vpop.permute.xlu0 %2451
      %2453 = vrot.lane.b32.xlu0 %v1673, 48
      %v2454 = vpop.permute.xlu0 %2453
      %2487 = vrot.lane.b32.xlu0 %v1736, 56
      %v2488 = vpop.permute.xlu0 %2487
      %2489 = vrot.lane.b32.xlu0 %v1738, 56
      %v2490 = vpop.permute.xlu0 %2489
      %2491 = vrot.lane.b32.xlu0 %v1741, 56
      %v2492 = vpop.permute.xlu0 %2491
      %2493 = vrot.lane.b32.xlu0 %v1743, 56
      %v2494 = vpop.permute.xlu0 %2493
      %2495 = vrot.lane.b32.xlu0 %v1746, 56
      %v2496 = vpop.permute.xlu0 %2495
      %2497 = vrot.lane.b32.xlu0 %v1748, 56
      %v2498 = vpop.permute.xlu0 %2497
      %2499 = vrot.lane.b32.xlu0 %v1751, 56
      %v2500 = vpop.permute.xlu0 %2499
      %2501 = vrot.lane.b32.xlu0 %v1753, 56
      %v2502 = vpop.permute.xlu0 %2501
      %2503 = vrot.lane.b32.xlu0 %v1756, 56
      %v2504 = vpop.permute.xlu0 %2503
      %2505 = vrot.lane.b32.xlu0 %v1758, 56
      %v2506 = vpop.permute.xlu0 %2505
      %2507 = vrot.lane.b32.xlu0 %v1761, 56
      %v2508 = vpop.permute.xlu0 %2507
      %2509 = vrot.lane.b32.xlu0 %v1763, 56
      %v2510 = vpop.permute.xlu0 %2509
      %2511 = vrot.lane.b32.xlu0 %v1766, 56
      %v2512 = vpop.permute.xlu0 %2511
      %2513 = vrot.lane.b32.xlu0 %v1768, 56
      %v2514 = vpop.permute.xlu0 %2513
      %2515 = vrot.lane.b32.xlu0 %v1771, 56
      %v2516 = vpop.permute.xlu0 %2515
      %2517 = vrot.lane.b32.xlu0 %v1773, 56
      %v2518 = vpop.permute.xlu0 %2517
      %2519 = vrot.lane.b32.xlu0 %v1776, 56
      %v2520 = vpop.permute.xlu0 %2519
      %2521 = vrot.lane.b32.xlu0 %v1778, 56
      %v2522 = vpop.permute.xlu0 %2521
      %2523 = vrot.lane.b32.xlu0 %v1781, 56
      %v2524 = vpop.permute.xlu0 %2523
      %2525 = vrot.lane.b32.xlu0 %v1783, 56
      %v2526 = vpop.permute.xlu0 %2525
      %2527 = vrot.lane.b32.xlu0 %v1786, 56
      %v2528 = vpop.permute.xlu0 %2527
      %2529 = vrot.lane.b32.xlu0 %v1788, 56
      %v2530 = vpop.permute.xlu0 %2529
      %2531 = vrot.lane.b32.xlu0 %v1791, 56
      %v2532 = vpop.permute.xlu0 %2531
      %2533 = vrot.lane.b32.xlu0 %v1793, 56
      %v2534 = vpop.permute.xlu0 %2533
      %2535 = vrot.lane.b32.xlu0 %v1796, 56
      %v2536 = vpop.permute.xlu0 %2535
      %2537 = vrot.lane.b32.xlu0 %v1798, 56
      %v2538 = vpop.permute.xlu0 %2537
      %2539 = vrot.lane.b32.xlu0 %v1801, 56
      %v2540 = vpop.permute.xlu0 %2539
      %2541 = vrot.lane.b32.xlu0 %v1803, 56
      %v2542 = vpop.permute.xlu0 %2541
      %2543 = vrot.lane.b32.xlu0 %v1890, 56
      %v2544 = vpop.permute.xlu0 %2543
      %2545 = vrot.lane.b32.xlu0 %v1892, 56
      %v2546 = vpop.permute.xlu0 %2545
      %2547 = vrot.lane.b32.xlu0 %v1903, 56
      %v2548 = vpop.permute.xlu0 %2547
      %2549 = vrot.lane.b32.xlu0 %v1905, 56
      %v2550 = vpop.permute.xlu0 %2549
      %2583 = vrot.lane.b32.xlu0 %v1817, 64
      %v2584 = vpop.permute.xlu0 %2583
      %2585 = vrot.lane.b32.xlu0 %v1819, 64
      %v2586 = vpop.permute.xlu0 %2585
      %2587 = vrot.lane.b32.xlu0 %v1822, 64
      %v2588 = vpop.permute.xlu0 %2587
      %2589 = vrot.lane.b32.xlu0 %v1824, 64
      %v2590 = vpop.permute.xlu0 %2589
      %2591 = vrot.lane.b32.xlu0 %v1827, 64
      %v2592 = vpop.permute.xlu0 %2591
      %2593 = vrot.lane.b32.xlu0 %v1829, 64
      %v2594 = vpop.permute.xlu0 %2593
      %2595 = vrot.lane.b32.xlu0 %v1832, 64
      %v2596 = vpop.permute.xlu0 %2595
      %2597 = vrot.lane.b32.xlu0 %v1834, 64
      %v2598 = vpop.permute.xlu0 %2597
      %2599 = vrot.lane.b32.xlu0 %v1837, 64
      %v2600 = vpop.permute.xlu0 %2599
      %2601 = vrot.lane.b32.xlu0 %v1839, 64
      %v2602 = vpop.permute.xlu0 %2601
      %2603 = vrot.lane.b32.xlu0 %v1842, 64
      %v2604 = vpop.permute.xlu0 %2603
      %2605 = vrot.lane.b32.xlu0 %v1844, 64
      %v2606 = vpop.permute.xlu0 %2605
      %2607 = vrot.lane.b32.xlu0 %v1847, 64
      %v2608 = vpop.permute.xlu0 %2607
      %2609 = vrot.lane.b32.xlu0 %v1849, 64
      %v2610 = vpop.permute.xlu0 %2609
      %2611 = vrot.lane.b32.xlu0 %v1852, 64
      %v2612 = vpop.permute.xlu0 %2611
      %2613 = vrot.lane.b32.xlu0 %v1854, 64
      %v2614 = vpop.permute.xlu0 %2613
      %2615 = vrot.lane.b32.xlu0 %v1857, 64
      %v2616 = vpop.permute.xlu0 %2615
      %2617 = vrot.lane.b32.xlu0 %v1859, 64
      %v2618 = vpop.permute.xlu0 %2617
      %2619 = vrot.lane.b32.xlu0 %v1862, 64
      %v2620 = vpop.permute.xlu0 %2619
      %2621 = vrot.lane.b32.xlu0 %v1864, 64
      %v2622 = vpop.permute.xlu0 %2621
      %2623 = vrot.lane.b32.xlu0 %v1867, 64
      %v2624 = vpop.permute.xlu0 %2623
      %2625 = vrot.lane.b32.xlu0 %v1869, 64
      %v2626 = vpop.permute.xlu0 %2625
      %2627 = vrot.lane.b32.xlu0 %v1872, 64
      %v2628 = vpop.permute.xlu0 %2627
      %2629 = vrot.lane.b32.xlu0 %v1874, 64
      %v2630 = vpop.permute.xlu0 %2629
      %2631 = vrot.lane.b32.xlu0 %v1877, 64
      %v2632 = vpop.permute.xlu0 %2631
      %2633 = vrot.lane.b32.xlu0 %v1879, 64
      %v2634 = vpop.permute.xlu0 %2633
      %2635 = vrot.lane.b32.xlu0 %v1882, 64
      %v2636 = vpop.permute.xlu0 %2635
      %2637 = vrot.lane.b32.xlu0 %v1884, 64
      %v2638 = vpop.permute.xlu0 %2637
      %2639 = vrot.lane.b32.xlu0 %v1895, 64
      %v2640 = vpop.permute.xlu0 %2639
      %2641 = vrot.lane.b32.xlu0 %v1897, 64
      %v2642 = vpop.permute.xlu0 %2641
      %2643 = vrot.lane.b32.xlu0 %v1908, 64
      %v2644 = vpop.permute.xlu0 %2643
      %2645 = vrot.lane.b32.xlu0 %v1910, 64
      %v2646 = vpop.permute.xlu0 %2645
      %v2679 = vsel %vm762, %v1621, %v1912
      %v2680 = vsel %vm762, %v1622, %v1914
      %v2681 = vsel %vm762, %v1624, %v1916
      %v2682 = vsel %vm762, %v1625, %v1918
      %v2683 = vsel %vm762, %v1627, %v1920
      %v2684 = vsel %vm762, %v1628, %v1922
      %v2685 = vsel %vm762, %v1630, %v1924
      %v2686 = vsel %vm762, %v1631, %v1926
      %v2687 = vsel %vm762, %v1633, %v1928
      %v2688 = vsel %vm762, %v1634, %v1930
      %v2689 = vsel %vm762, %v1636, %v1932
      %v2690 = vsel %vm762, %v1637, %v1934
      %v2691 = vsel %vm762, %v1639, %v1936
      %v2692 = vsel %vm762, %v1640, %v1938
      %v2693 = vsel %vm762, %v1642, %v1940
      %v2694 = vsel %vm762, %v1643, %v1942
      %v2695 = vsel %vm762, %v1645, %v1944
      %v2696 = vsel %vm762, %v1646, %v1946
      %v2697 = vsel %vm762, %v1648, %v1948
      %v2698 = vsel %vm762, %v1649, %v1950
      %v2699 = vsel %vm762, %v1651, %v1952
      %v2700 = vsel %vm762, %v1652, %v1954
      %v2701 = vsel %vm762, %v1654, %v1956
      %v2702 = vsel %vm762, %v1655, %v1958
      %v2703 = vsel %vm762, %v1657, %v1960
      %v2704 = vsel %vm762, %v1658, %v1962
      %v2705 = vsel %vm762, %v1660, %v1964
      %v2706 = vsel %vm762, %v1661, %v1966
      %v2707 = vsel %vm762, %v1663, %v1968
      %v2708 = vsel %vm762, %v1664, %v1970
      %v2709 = vsel %vm762, %v1666, %v1972
      %v2710 = vsel %vm762, %v1667, %v1974
      %vm2711 = vcmask 130048
      %v2712 = vsel %vm2711, %v2679, %v2008
      %v2713 = vsel %vm2711, %v2680, %v2010
      %v2714 = vsel %vm2711, %v2681, %v2012
      %v2715 = vsel %vm2711, %v2682, %v2014
      %v2716 = vsel %vm2711, %v2683, %v2016
      %v2717 = vsel %vm2711, %v2684, %v2018
      %v2718 = vsel %vm2711, %v2685, %v2020
      %v2719 = vsel %vm2711, %v2686, %v2022
      %v2720 = vsel %vm2711, %v2687, %v2024
      %v2721 = vsel %vm2711, %v2688, %v2026
      %v2722 = vsel %vm2711, %v2689, %v2028
      %v2723 = vsel %vm2711, %v2690, %v2030
      %v2724 = vsel %vm2711, %v2691, %v2032
      %v2725 = vsel %vm2711, %v2692, %v2034
      %v2726 = vsel %vm2711, %v2693, %v2036
      %v2727 = vsel %vm2711, %v2694, %v2038
      %v2728 = vsel %vm2711, %v2695, %v2040
      %v2729 = vsel %vm2711, %v2696, %v2042
      %v2730 = vsel %vm2711, %v2697, %v2044
      %v2731 = vsel %vm2711, %v2698, %v2046
      %v2732 = vsel %vm2711, %v2699, %v2048
      %v2733 = vsel %vm2711, %v2700, %v2050
      %v2734 = vsel %vm2711, %v2701, %v2052
      %v2735 = vsel %vm2711, %v2702, %v2054
      %v2736 = vsel %vm2711, %v2703, %v2056
      %v2737 = vsel %vm2711, %v2704, %v2058
      %v2738 = vsel %vm2711, %v2705, %v2060
      %v2739 = vsel %vm2711, %v2706, %v2062
      %v2740 = vsel %vm2711, %v2707, %v2064
      %v2741 = vsel %vm2711, %v2708, %v2066
      %v2742 = vsel %vm2711, %v2709, %v2068
      %v2743 = vsel %vm2711, %v2710, %v2070
      %vm2744 = vcmask 195584
      %v2745 = vsel %vm2744, %v2712, %v2104
      %v2746 = vsel %vm2744, %v2713, %v2106
      %v2747 = vsel %vm2744, %v2714, %v2108
      %v2748 = vsel %vm2744, %v2715, %v2110
      %v2749 = vsel %vm2744, %v2716, %v2112
      %v2750 = vsel %vm2744, %v2717, %v2114
      %v2751 = vsel %vm2744, %v2718, %v2116
      %v2752 = vsel %vm2744, %v2719, %v2118
      %v2753 = vsel %vm2744, %v2720, %v2120
      %v2754 = vsel %vm2744, %v2721, %v2122
      %v2755 = vsel %vm2744, %v2722, %v2124
      %v2756 = vsel %vm2744, %v2723, %v2126
      %v2757 = vsel %vm2744, %v2724, %v2128
      %v2758 = vsel %vm2744, %v2725, %v2130
      %v2759 = vsel %vm2744, %v2726, %v2132
      %v2760 = vsel %vm2744, %v2727, %v2134
      %v2761 = vsel %vm2744, %v2728, %v2136
      %v2762 = vsel %vm2744, %v2729, %v2138
      %v2763 = vsel %vm2744, %v2730, %v2140
      %v2764 = vsel %vm2744, %v2731, %v2142
      %v2765 = vsel %vm2744, %v2732, %v2144
      %v2766 = vsel %vm2744, %v2733, %v2146
      %v2767 = vsel %vm2744, %v2734, %v2148
      %v2768 = vsel %vm2744, %v2735, %v2150
      %v2769 = vsel %vm2744, %v2736, %v2152
      %v2770 = vsel %vm2744, %v2737, %v2154
      %v2771 = vsel %vm2744, %v2738, %v2156
      %v2772 = vsel %vm2744, %v2739, %v2158
      %v2773 = vsel %vm2744, %v2740, %v2160
      %v2774 = vsel %vm2744, %v2741, %v2162
      %v2775 = vsel %vm2744, %v2742, %v2164
      %v2776 = vsel %vm2744, %v2743, %v2166
      %vm2777 = vcmask 261120
      %v2778 = vsel %vm2777, %v2745, %v2200
      %v2779 = vsel %vm2777, %v2746, %v2202
      %v2780 = vsel %vm2777, %v2747, %v2204
      %v2781 = vsel %vm2777, %v2748, %v2206
      %v2782 = vsel %vm2777, %v2749, %v2208
      %v2783 = vsel %vm2777, %v2750, %v2210
      %v2784 = vsel %vm2777, %v2751, %v2212
      %v2785 = vsel %vm2777, %v2752, %v2214
      %v2786 = vsel %vm2777, %v2753, %v2216
      %v2787 = vsel %vm2777, %v2754, %v2218
      %v2788 = vsel %vm2777, %v2755, %v2220
      %v2789 = vsel %vm2777, %v2756, %v2222
      %v2790 = vsel %vm2777, %v2757, %v2224
      %v2791 = vsel %vm2777, %v2758, %v2226
      %v2792 = vsel %vm2777, %v2759, %v2228
      %v2793 = vsel %vm2777, %v2760, %v2230
      %v2794 = vsel %vm2777, %v2761, %v2232
      %v2795 = vsel %vm2777, %v2762, %v2234
      %v2796 = vsel %vm2777, %v2763, %v2236
      %v2797 = vsel %vm2777, %v2764, %v2238
      %v2798 = vsel %vm2777, %v2765, %v2240
      %v2799 = vsel %vm2777, %v2766, %v2242
      %v2800 = vsel %vm2777, %v2767, %v2244
      %v2801 = vsel %vm2777, %v2768, %v2246
      %v2802 = vsel %vm2777, %v2769, %v2248
      %v2803 = vsel %vm2777, %v2770, %v2250
      %v2804 = vsel %vm2777, %v2771, %v2252
      %v2805 = vsel %vm2777, %v2772, %v2254
      %v2806 = vsel %vm2777, %v2773, %v2256
      %v2807 = vsel %vm2777, %v2774, %v2258
      %v2808 = vsel %vm2777, %v2775, %v2260
      %v2809 = vsel %vm2777, %v2776, %v2262
      %vm2810 = vcmask 326656
      %v2811 = vsel %vm2810, %v2778, %v2296
      %v2812 = vsel %vm2810, %v2779, %v2298
      %v2813 = vsel %vm2810, %v2780, %v2300
      %v2814 = vsel %vm2810, %v2781, %v2302
      %v2815 = vsel %vm2810, %v2782, %v2304
      %v2816 = vsel %vm2810, %v2783, %v2306
      %v2817 = vsel %vm2810, %v2784, %v2308
      %v2818 = vsel %vm2810, %v2785, %v2310
      %v2819 = vsel %vm2810, %v2786, %v2312
      %v2820 = vsel %vm2810, %v2787, %v2314
      %v2821 = vsel %vm2810, %v2788, %v2316
      %v2822 = vsel %vm2810, %v2789, %v2318
      %v2823 = vsel %vm2810, %v2790, %v2320
      %v2824 = vsel %vm2810, %v2791, %v2322
      %v2825 = vsel %vm2810, %v2792, %v2324
      %v2826 = vsel %vm2810, %v2793, %v2326
      %v2827 = vsel %vm2810, %v2794, %v2328
      %v2828 = vsel %vm2810, %v2795, %v2330
      %v2829 = vsel %vm2810, %v2796, %v2332
      %v2830 = vsel %vm2810, %v2797, %v2334
      %v2831 = vsel %vm2810, %v2798, %v2336
      %v2832 = vsel %vm2810, %v2799, %v2338
      %v2833 = vsel %vm2810, %v2800, %v2340
      %v2834 = vsel %vm2810, %v2801, %v2342
      %v2835 = vsel %vm2810, %v2802, %v2344
      %v2836 = vsel %vm2810, %v2803, %v2346
      %v2837 = vsel %vm2810, %v2804, %v2348
      %v2838 = vsel %vm2810, %v2805, %v2350
      %v2839 = vsel %vm2810, %v2806, %v2352
      %v2840 = vsel %vm2810, %v2807, %v2354
      %v2841 = vsel %vm2810, %v2808, %v2356
      %v2842 = vsel %vm2810, %v2809, %v2358
      %vm2843 = vcmask 392192
      %v2844 = vsel %vm2843, %v2811, %v2392
      %v2845 = vsel %vm2843, %v2812, %v2394
      %v2846 = vsel %vm2843, %v2813, %v2396
      %v2847 = vsel %vm2843, %v2814, %v2398
      %v2848 = vsel %vm2843, %v2815, %v2400
      %v2849 = vsel %vm2843, %v2816, %v2402
      %v2850 = vsel %vm2843, %v2817, %v2404
      %v2851 = vsel %vm2843, %v2818, %v2406
      %v2852 = vsel %vm2843, %v2819, %v2408
      %v2853 = vsel %vm2843, %v2820, %v2410
      %v2854 = vsel %vm2843, %v2821, %v2412
      %v2855 = vsel %vm2843, %v2822, %v2414
      %v2856 = vsel %vm2843, %v2823, %v2416
      %v2857 = vsel %vm2843, %v2824, %v2418
      %v2858 = vsel %vm2843, %v2825, %v2420
      %v2859 = vsel %vm2843, %v2826, %v2422
      %v2860 = vsel %vm2843, %v2827, %v2424
      %v2861 = vsel %vm2843, %v2828, %v2426
      %v2862 = vsel %vm2843, %v2829, %v2428
      %v2863 = vsel %vm2843, %v2830, %v2430
      %v2864 = vsel %vm2843, %v2831, %v2432
      %v2865 = vsel %vm2843, %v2832, %v2434
      %v2866 = vsel %vm2843, %v2833, %v2436
      %v2867 = vsel %vm2843, %v2834, %v2438
      %v2868 = vsel %vm2843, %v2835, %v2440
      %v2869 = vsel %vm2843, %v2836, %v2442
      %v2870 = vsel %vm2843, %v2837, %v2444
      %v2871 = vsel %vm2843, %v2838, %v2446
      %v2872 = vsel %vm2843, %v2839, %v2448
      %v2873 = vsel %vm2843, %v2840, %v2450
      %v2874 = vsel %vm2843, %v2841, %v2452
      %v2875 = vsel %vm2843, %v2842, %v2454
      %vm2876 = vcmask 457728
      %v2877 = vsel %vm2876, %v2844, %v2488
      %v2878 = vsel %vm2876, %v2845, %v2490
      %v2879 = vsel %vm2876, %v2846, %v2492
      %v2880 = vsel %vm2876, %v2847, %v2494
      %v2881 = vsel %vm2876, %v2848, %v2496
      %v2882 = vsel %vm2876, %v2849, %v2498
      %v2883 = vsel %vm2876, %v2850, %v2500
      %v2884 = vsel %vm2876, %v2851, %v2502
      %v2885 = vsel %vm2876, %v2852, %v2504
      %v2886 = vsel %vm2876, %v2853, %v2506
      %v2887 = vsel %vm2876, %v2854, %v2508
      %v2888 = vsel %vm2876, %v2855, %v2510
      %v2889 = vsel %vm2876, %v2856, %v2512
      %v2890 = vsel %vm2876, %v2857, %v2514
      %v2891 = vsel %vm2876, %v2858, %v2516
      %v2892 = vsel %vm2876, %v2859, %v2518
      %v2893 = vsel %vm2876, %v2860, %v2520
      %v2894 = vsel %vm2876, %v2861, %v2522
      %v2895 = vsel %vm2876, %v2862, %v2524
      %v2896 = vsel %vm2876, %v2863, %v2526
      %v2897 = vsel %vm2876, %v2864, %v2528
      %v2898 = vsel %vm2876, %v2865, %v2530
      %v2899 = vsel %vm2876, %v2866, %v2532
      %v2900 = vsel %vm2876, %v2867, %v2534
      %v2901 = vsel %vm2876, %v2868, %v2536
      %v2902 = vsel %vm2876, %v2869, %v2538
      %v2903 = vsel %vm2876, %v2870, %v2540
      %v2904 = vsel %vm2876, %v2871, %v2542
      %v2905 = vsel %vm2876, %v2872, %v2544
      %v2906 = vsel %vm2876, %v2873, %v2546
      %v2907 = vsel %vm2876, %v2874, %v2548
      %v2908 = vsel %vm2876, %v2875, %v2550
      %vm2909 = vcmask 523264
      %v2910 = vsel %vm2909, %v2877, %v2584
      %v2911 = vsel %vm2909, %v2878, %v2586
      %v2912 = vsel %vm2909, %v2879, %v2588
      %v2913 = vsel %vm2909, %v2880, %v2590
      %v2914 = vsel %vm2909, %v2881, %v2592
      %v2915 = vsel %vm2909, %v2882, %v2594
      %v2916 = vsel %vm2909, %v2883, %v2596
      %v2917 = vsel %vm2909, %v2884, %v2598
      %v2918 = vsel %vm2909, %v2885, %v2600
      %v2919 = vsel %vm2909, %v2886, %v2602
      %v2920 = vsel %vm2909, %v2887, %v2604
      %v2921 = vsel %vm2909, %v2888, %v2606
      %v2922 = vsel %vm2909, %v2889, %v2608
      %v2923 = vsel %vm2909, %v2890, %v2610
      %v2924 = vsel %vm2909, %v2891, %v2612
      %v2925 = vsel %vm2909, %v2892, %v2614
      %v2926 = vsel %vm2909, %v2893, %v2616
      %v2927 = vsel %vm2909, %v2894, %v2618
      %v2928 = vsel %vm2909, %v2895, %v2620
      %v2929 = vsel %vm2909, %v2896, %v2622
      %v2930 = vsel %vm2909, %v2897, %v2624
      %v2931 = vsel %vm2909, %v2898, %v2626
      %v2932 = vsel %vm2909, %v2899, %v2628
      %v2933 = vsel %vm2909, %v2900, %v2630
      %v2934 = vsel %vm2909, %v2901, %v2632
      %v2935 = vsel %vm2909, %v2902, %v2634
      %v2936 = vsel %vm2909, %v2903, %v2636
      %v2937 = vsel %vm2909, %v2904, %v2638
      %v2938 = vsel %vm2909, %v2905, %v2640
      %v2939 = vsel %vm2909, %v2906, %v2642
      %v2940 = vsel %vm2909, %v2907, %v2644
      %v2941 = vsel %vm2909, %v2908, %v2646
      %vm2942 = vcmask 588800
      %v2944 = vsel %vm2942, %v2910, 0
      %v2947 = vsel %vm2942, %v2911, 0
      %v2950 = vsel %vm2942, %v2912, 0
      %v2953 = vsel %vm2942, %v2913, 0
      %v2956 = vsel %vm2942, %v2914, 0
      %v2959 = vsel %vm2942, %v2915, 0
      %v2962 = vsel %vm2942, %v2916, 0
      %v2965 = vsel %vm2942, %v2917, 0
      %v2968 = vsel %vm2942, %v2918, 0
      %v2971 = vsel %vm2942, %v2919, 0
      %v2974 = vsel %vm2942, %v2920, 0
      %v2977 = vsel %vm2942, %v2921, 0
      %v2980 = vsel %vm2942, %v2922, 0
      %v2983 = vsel %vm2942, %v2923, 0
      %v2986 = vsel %vm2942, %v2924, 0
      %v2989 = vsel %vm2942, %v2925, 0
      %v2992 = vsel %vm2942, %v2926, 0
      %v2995 = vsel %vm2942, %v2927, 0
      %v2998 = vsel %vm2942, %v2928, 0
      %v3001 = vsel %vm2942, %v2929, 0
      %v3004 = vsel %vm2942, %v2930, 0
      %v3007 = vsel %vm2942, %v2931, 0
      %v3010 = vsel %vm2942, %v2932, 0
      %v3013 = vsel %vm2942, %v2933, 0
      %v3016 = vsel %vm2942, %v2934, 0
      %v3019 = vsel %vm2942, %v2935, 0
      %v3022 = vsel %vm2942, %v2936, 0
      %v3025 = vsel %vm2942, %v2937, 0
      %v3028 = vsel %vm2942, %v2938, 0
      %v3031 = vsel %vm2942, %v2939, 0
      %v3034 = vsel %vm2942, %v2940, 0
      %v3037 = vsel %vm2942, %v2941, 0
      %3039 = vmatprep.subr.mxu0 0.0
      %3040 = vmatpush1.msra.mxu0 %v751
      %3041 = vmatprep.subr.mxu0 0.0
      %3042 = vmatpush1.msra.mxu0 %v752
      %3043 = vmatprep.subr.mxu0 0.0
      %3044 = vmatpush1.msra.mxu0 %v753
      %3045 = vmatprep.subr.mxu0 0.0
      %3046 = vmatpush1.msra.mxu0 %v754
      %3047 = vmatprep.subr.mxu0 0.0
      %3048 = vmatpush1.msra.mxu0 %v755
      %3049 = vmatprep.subr.mxu0 0.0
      %3050 = vmatpush1.msra.mxu0 %v756
      %3051 = vmatprep.subr.mxu0 0.0
      %3052 = vmatpush1.msra.mxu0 %v757
      %3053 = vmatprep.subr.mxu0 0.0
      %3054 = vmatpush1.msra.mxu0 %v758
      %3055 = vmatprep.subr.mxu0 0.0
      %3056 = vmatpush1.msra.mxu0 %v759
      %3057 = vmatprep.subr.mxu0 0.0
      %3058 = vmatpush1.msra.mxu0 0.0
      %3059 = vmatprep.subr.mxu0 0.0
      %3060 = vmatpush1.msra.mxu0 0.0
      %3061 = vmatprep.subr.mxu0 0.0
      %3062 = vmatpush1.msra.mxu0 0.0
      %3063 = vmatprep.subr.mxu0 0.0
      %3064 = vmatpush1.msra.mxu0 0.0
      %3065 = vmatprep.subr.mxu0 0.0
      %3066 = vmatpush1.msra.mxu0 0.0
      %3067 = vmatprep.subr.mxu0 0.0
      %3068 = vmatpush1.msra.mxu0 0.0
      %3069 = vmatprep.subr.mxu0 0.0
      %3070 = vmatpush1.msra.mxu0 0.0
      %3071 = vmatprep.subr.mxu0 0.0
      %3072 = vmatpush1.msra.mxu0 0.0
      %3073 = vmatprep.subr.mxu0 0.0
      %3074 = vmatpush1.msra.mxu0 0.0
      %3075 = vmatprep.subr.mxu0 0.0
      %3076 = vmatpush1.msra.mxu0 0.0
      %3077 = vmatprep.subr.mxu0 0.0
      %3078 = vmatpush1.msra.mxu0 0.0
      %3079 = vmatprep.subr.mxu0 0.0
      %3080 = vmatpush1.msra.mxu0 0.0
      %3081 = vmatprep.subr.mxu0 0.0
      %3082 = vmatpush1.msra.mxu0 0.0
      %3083 = vmatprep.subr.mxu0 0.0
      %3084 = vmatpush1.msra.mxu0 0.0
      %3085 = vmatprep.subr.mxu0 0.0
      %3086 = vmatpush1.msra.mxu0 0.0
      %3087 = vmatprep.subr.mxu0 0.0
      %3088 = vmatpush1.msra.mxu0 0.0
      %3089 = vmatprep.subr.mxu0 0.0
      %3090 = vmatpush1.msra.mxu0 0.0
      %3091 = vmatprep.subr.mxu0 0.0
      %3092 = vmatpush1.msra.mxu0 0.0
      %3093 = vmatprep.subr.mxu0 0.0
      %3094 = vmatpush1.msra.mxu0 0.0
      %3095 = vmatprep.subr.mxu0 0.0
      %3096 = vmatpush1.msra.mxu0 0.0
      %3097 = vmatprep.subr.mxu0 0.0
      %3098 = vmatpush1.msra.mxu0 0.0
      %3099 = vmatprep.subr.mxu0 0.0
      %3100 = vmatpush1.msra.mxu0 0.0
      %3101 = vmatprep.subr.mxu0 0.0
      %3102 = vmatpush1.msra.mxu0 0.0
      %3103 = vmatprep.mubr.f32.mxu0 0.0
      %3104 = vmatmul.mubr.f32.gmra.mrb[0].mxu0 %v2944
      %v3105 = vpop.f32.mrb[0].mxu0
      %v3106 = vadd.f32 0.0, %v3105
      %v3107 = vpop.f32.mrb[0].mxu0
      %3108 = vmatprep.mubr.f32.mxu0 0.0
      %3109 = vmatmul.mubr.f32.gmra.mrb[0].mxu0 %v2947
      %v3110 = vpop.f32.mrb[0].mxu0
      %v3111 = vadd.f32 0.0, %v3110
      %v3112 = vpop.f32.mrb[0].mxu0
      %3113 = vmatprep.mubr.f32.mxu0 0.0
      %3114 = vmatmul.mubr.f32.gmra.mrb[0].mxu0 %v2950
      %v3115 = vpop.f32.mrb[0].mxu0
      %v3116 = vadd.f32 0.0, %v3115
      %v3117 = vpop.f32.mrb[0].mxu0
      %3118 = vmatprep.mubr.f32.mxu0 0.0
      %3119 = vmatmul.mubr.f32.gmra.mrb[0].mxu0 %v2953
      %v3120 = vpop.f32.mrb[0].mxu0
      %v3121 = vadd.f32 0.0, %v3120
      %v3122 = vpop.f32.mrb[0].mxu0
      %3123 = vmatprep.mubr.f32.mxu0 0.0
      %3124 = vmatmul.mubr.f32.gmra.mrb[0].mxu0 %v2956
      %v3125 = vpop.f32.mrb[0].mxu0
      %v3126 = vadd.f32 0.0, %v3125
      %v3127 = vpop.f32.mrb[0].mxu0
      %3128 = vmatprep.mubr.f32.mxu0 0.0
      %3129 = vmatmul.mubr.f32.gmra.mrb[0].mxu0 %v2959
      %v3130 = vpop.f32.mrb[0].mxu0
      %v3131 = vadd.f32 0.0, %v3130
      %v3132 = vpop.f32.mrb[0].mxu0
      %3133 = vmatprep.mubr.f32.mxu0 0.0
      %3134 = vmatmul.mubr.f32.gmra.mrb[0].mxu0 %v2962
      %v3135 = vpop.f32.mrb[0].mxu0
      %v3136 = vadd.f32 0.0, %v3135
      %v3137 = vpop.f32.mrb[0].mxu0
      %3138 = vmatprep.mubr.f32.mxu0 0.0
      %3139 = vmatmul.mubr.f32.gmra.mrb[0].mxu0 %v2965
      %v3140 = vpop.f32.mrb[0].mxu0
      %v3141 = vadd.f32 0.0, %v3140
      %v3142 = vpop.f32.mrb[0].mxu0
      %3143 = vmatprep.mubr.f32.mxu0 0.0
      %3144 = vmatmul.mubr.f32.gmra.mrb[0].mxu0 %v2968
      %v3145 = vpop.f32.mrb[0].mxu0
      %v3146 = vadd.f32 0.0, %v3145
      %v3147 = vpop.f32.mrb[0].mxu0
      %3148 = vmatprep.mubr.f32.mxu0 0.0
      %3149 = vmatmul.mubr.f32.gmra.mrb[0].mxu0 %v2971
      %v3150 = vpop.f32.mrb[0].mxu0
      %v3151 = vadd.f32 0.0, %v3150
      %v3152 = vpop.f32.mrb[0].mxu0
      %3153 = vmatprep.mubr.f32.mxu0 0.0
      %3154 = vmatmul.mubr.f32.gmra.mrb[0].mxu0 %v2974
      %v3155 = vpop.f32.mrb[0].mxu0
      %v3156 = vadd.f32 0.0, %v3155
      %v3157 = vpop.f32.mrb[0].mxu0
      %3158 = vmatprep.mubr.f32.mxu0 0.0
      %3159 = vmatmul.mubr.f32.gmra.mrb[0].mxu0 %v2977
      %v3160 = vpop.f32.mrb[0].mxu0
      %v3161 = vadd.f32 0.0, %v3160
      %v3162 = vpop.f32.mrb[0].mxu0
      %3163 = vmatprep.mubr.f32.mxu0 0.0
      %3164 = vmatmul.mubr.f32.gmra.mrb[0].mxu0 %v2980
      %v3165 = vpop.f32.mrb[0].mxu0
      %v3166 = vadd.f32 0.0, %v3165
      %v3167 = vpop.f32.mrb[0].mxu0
      %3168 = vmatprep.mubr.f32.mxu0 0.0
      %3169 = vmatmul.mubr.f32.gmra.mrb[0].mxu0 %v2983
      %v3170 = vpop.f32.mrb[0].mxu0
      %v3171 = vadd.f32 0.0, %v3170
      %v3172 = vpop.f32.mrb[0].mxu0
      %3173 = vmatprep.mubr.f32.mxu0 0.0
      %3174 = vmatmul.mubr.f32.gmra.mrb[0].mxu0 %v2986
      %v3175 = vpop.f32.mrb[0].mxu0
      %v3176 = vadd.f32 0.0, %v3175
      %v3177 = vpop.f32.mrb[0].mxu0
      %3178 = vmatprep.mubr.f32.mxu0 0.0
      %3179 = vmatmul.mubr.f32.gmra.mrb[0].mxu0 %v2989
      %v3180 = vpop.f32.mrb[0].mxu0
      %v3181 = vadd.f32 0.0, %v3180
      %v3182 = vpop.f32.mrb[0].mxu0
      %3183 = vmatprep.mubr.f32.mxu0 0.0
      %3184 = vmatmul.mubr.f32.gmra.mrb[0].mxu0 %v2992
      %v3185 = vpop.f32.mrb[0].mxu0
      %v3186 = vadd.f32 0.0, %v3185
      %v3187 = vpop.f32.mrb[0].mxu0
      %3188 = vmatprep.mubr.f32.mxu0 0.0
      %3189 = vmatmul.mubr.f32.gmra.mrb[0].mxu0 %v2995
      %v3190 = vpop.f32.mrb[0].mxu0
      %v3191 = vadd.f32 0.0, %v3190
      %v3192 = vpop.f32.mrb[0].mxu0
      %3193 = vmatprep.mubr.f32.mxu0 0.0
      %3194 = vmatmul.mubr.f32.gmra.mrb[0].mxu0 %v2998
      %v3195 = vpop.f32.mrb[0].mxu0
      %v3196 = vadd.f32 0.0, %v3195
      %v3197 = vpop.f32.mrb[0].mxu0
      %3198 = vmatprep.mubr.f32.mxu0 0.0
      %3199 = vmatmul.mubr.f32.gmra.mrb[0].mxu0 %v3001
      %v3200 = vpop.f32.mrb[0].mxu0
      %v3201 = vadd.f32 0.0, %v3200
      %v3202 = vpop.f32.mrb[0].mxu0
      %3203 = vmatprep.mubr.f32.mxu0 0.0
      %3204 = vmatmul.mubr.f32.gmra.mrb[0].mxu0 %v3004
      %v3205 = vpop.f32.mrb[0].mxu0
      %v3206 = vadd.f32 0.0, %v3205
      %v3207 = vpop.f32.mrb[0].mxu0
      %3208 = vmatprep.mubr.f32.mxu0 0.0
      %3209 = vmatmul.mubr.f32.gmra.mrb[0].mxu0 %v3007
      %v3210 = vpop.f32.mrb[0].mxu0
      %v3211 = vadd.f32 0.0, %v3210
      %v3212 = vpop.f32.mrb[0].mxu0
      %3213 = vmatprep.mubr.f32.mxu0 0.0
      %3214 = vmatmul.mubr.f32.gmra.mrb[0].mxu0 %v3010
      %v3215 = vpop.f32.mrb[0].mxu0
      %v3216 = vadd.f32 0.0, %v3215
      %v3217 = vpop.f32.mrb[0].mxu0
      %3218 = vmatprep.mubr.f32.mxu0 0.0
      %3219 = vmatmul.mubr.f32.gmra.mrb[0].mxu0 %v3013
      %v3220 = vpop.f32.mrb[0].mxu0
      %v3221 = vadd.f32 0.0, %v3220
      %v3222 = vpop.f32.mrb[0].mxu0
      %3223 = vmatprep.mubr.f32.mxu0 0.0
      %3224 = vmatmul.mubr.f32.gmra.mrb[0].mxu0 %v3016
      %v3225 = vpop.f32.mrb[0].mxu0
      %v3226 = vadd.f32 0.0, %v3225
      %v3227 = vpop.f32.mrb[0].mxu0
      %3228 = vmatprep.mubr.f32.mxu0 0.0
      %3229 = vmatmul.mubr.f32.gmra.mrb[0].mxu0 %v3019
      %v3230 = vpop.f32.mrb[0].mxu0
      %v3231 = vadd.f32 0.0, %v3230
      %v3232 = vpop.f32.mrb[0].mxu0
      %3233 = vmatprep.mubr.f32.mxu0 0.0
      %3234 = vmatmul.mubr.f32.gmra.mrb[0].mxu0 %v3022
      %v3235 = vpop.f32.mrb[0].mxu0
      %v3236 = vadd.f32 0.0, %v3235
      %v3237 = vpop.f32.mrb[0].mxu0
      %3238 = vmatprep.mubr.f32.mxu0 0.0
      %3239 = vmatmul.mubr.f32.gmra.mrb[0].mxu0 %v3025
      %v3240 = vpop.f32.mrb[0].mxu0
      %v3241 = vadd.f32 0.0, %v3240
      %v3242 = vpop.f32.mrb[0].mxu0
      %3243 = vmatprep.mubr.f32.mxu0 0.0
      %3244 = vmatmul.mubr.f32.gmra.mrb[0].mxu0 %v3028
      %v3245 = vpop.f32.mrb[0].mxu0
      %v3246 = vadd.f32 0.0, %v3245
      %v3247 = vpop.f32.mrb[0].mxu0
      %3248 = vmatprep.mubr.f32.mxu0 0.0
      %3249 = vmatmul.mubr.f32.gmra.mrb[0].mxu0 %v3031
      %v3250 = vpop.f32.mrb[0].mxu0
      %v3251 = vadd.f32 0.0, %v3250
      %v3252 = vpop.f32.mrb[0].mxu0
      %3253 = vmatprep.mubr.f32.mxu0 0.0
      %3254 = vmatmul.mubr.f32.gmra.mrb[0].mxu0 %v3034
      %v3255 = vpop.f32.mrb[0].mxu0
      %v3256 = vadd.f32 0.0, %v3255
      %v3257 = vpop.f32.mrb[0].mxu0
      %3258 = vmatprep.mubr.f32.mxu0 0.0
      %3259 = vmatmul.mubr.f32.gmra.mrb[0].mxu0 %v3037
      %v3260 = vpop.f32.mrb[0].mxu0
      %v3261 = vadd.f32 0.0, %v3260
      %v3262 = vpop.f32.mrb[0].mxu0
      %3263 = vdwg.mxu0
      %v3264 = vsel %vm762, %v3106, 0.0
      %3265 = vadd.xlane.f32.xlu0 %v3264
      %v3266 = vpop.xlane.xlu0 %3265
      %v3267 = vsel %vm762, %v3111, 0.0
      %3268 = vadd.xlane.f32.xlu0 %v3267
      %v3269 = vpop.xlane.xlu0 %3268
      %v3270 = vsel %vm762, %v3116, 0.0
      %3271 = vadd.xlane.f32.xlu0 %v3270
      %v3272 = vpop.xlane.xlu0 %3271
      %v3273 = vsel %vm762, %v3121, 0.0
      %3274 = vadd.xlane.f32.xlu0 %v3273
      %v3275 = vpop.xlane.xlu0 %3274
      %v3276 = vsel %vm762, %v3126, 0.0
      %3277 = vadd.xlane.f32.xlu0 %v3276
      %v3278 = vpop.xlane.xlu0 %3277
      %v3279 = vsel %vm762, %v3131, 0.0
      %3280 = vadd.xlane.f32.xlu0 %v3279
      %v3281 = vpop.xlane.xlu0 %3280
      %v3282 = vsel %vm762, %v3136, 0.0
      %3283 = vadd.xlane.f32.xlu0 %v3282
      %v3284 = vpop.xlane.xlu0 %3283
      %v3285 = vsel %vm762, %v3141, 0.0
      %3286 = vadd.xlane.f32.xlu0 %v3285
      %v3287 = vpop.xlane.xlu0 %3286
      %v3288 = vsel %vm762, %v3146, 0.0
      %3289 = vadd.xlane.f32.xlu0 %v3288
      %v3290 = vpop.xlane.xlu0 %3289
      %v3291 = vsel %vm762, %v3151, 0.0
      %3292 = vadd.xlane.f32.xlu0 %v3291
      %v3293 = vpop.xlane.xlu0 %3292
      %v3294 = vsel %vm762, %v3156, 0.0
      %3295 = vadd.xlane.f32.xlu0 %v3294
      %v3296 = vpop.xlane.xlu0 %3295
      %v3297 = vsel %vm762, %v3161, 0.0
      %3298 = vadd.xlane.f32.xlu0 %v3297
      %v3299 = vpop.xlane.xlu0 %3298
      %v3300 = vsel %vm762, %v3166, 0.0
      %3301 = vadd.xlane.f32.xlu0 %v3300
      %v3302 = vpop.xlane.xlu0 %3301
      %v3303 = vsel %vm762, %v3171, 0.0
      %3304 = vadd.xlane.f32.xlu0 %v3303
      %v3305 = vpop.xlane.xlu0 %3304
      %v3306 = vsel %vm762, %v3176, 0.0
      %3307 = vadd.xlane.f32.xlu0 %v3306
      %v3308 = vpop.xlane.xlu0 %3307
      %v3309 = vsel %vm762, %v3181, 0.0
      %3310 = vadd.xlane.f32.xlu0 %v3309
      %v3311 = vpop.xlane.xlu0 %3310
      %v3312 = vsel %vm762, %v3186, 0.0
      %3313 = vadd.xlane.f32.xlu0 %v3312
      %v3314 = vpop.xlane.xlu0 %3313
      %v3315 = vsel %vm762, %v3191, 0.0
      %3316 = vadd.xlane.f32.xlu0 %v3315
      %v3317 = vpop.xlane.xlu0 %3316
      %v3318 = vsel %vm762, %v3196, 0.0
      %3319 = vadd.xlane.f32.xlu0 %v3318
      %v3320 = vpop.xlane.xlu0 %3319
      %v3321 = vsel %vm762, %v3201, 0.0
      %3322 = vadd.xlane.f32.xlu0 %v3321
      %v3323 = vpop.xlane.xlu0 %3322
      %v3324 = vsel %vm762, %v3206, 0.0
      %3325 = vadd.xlane.f32.xlu0 %v3324
      %v3326 = vpop.xlane.xlu0 %3325
      %v3327 = vsel %vm762, %v3211, 0.0
      %3328 = vadd.xlane.f32.xlu0 %v3327
      %v3329 = vpop.xlane.xlu0 %3328
      %v3330 = vsel %vm762, %v3216, 0.0
      %3331 = vadd.xlane.f32.xlu0 %v3330
      %v3332 = vpop.xlane.xlu0 %3331
      %v3333 = vsel %vm762, %v3221, 0.0
      %3334 = vadd.xlane.f32.xlu0 %v3333
      %v3335 = vpop.xlane.xlu0 %3334
      %v3336 = vsel %vm762, %v3226, 0.0
      %3337 = vadd.xlane.f32.xlu0 %v3336
      %v3338 = vpop.xlane.xlu0 %3337
      %v3339 = vsel %vm762, %v3231, 0.0
      %3340 = vadd.xlane.f32.xlu0 %v3339
      %v3341 = vpop.xlane.xlu0 %3340
      %v3342 = vsel %vm762, %v3236, 0.0
      %3343 = vadd.xlane.f32.xlu0 %v3342
      %v3344 = vpop.xlane.xlu0 %3343
      %v3345 = vsel %vm762, %v3241, 0.0
      %3346 = vadd.xlane.f32.xlu0 %v3345
      %v3347 = vpop.xlane.xlu0 %3346
      %v3348 = vsel %vm762, %v3246, 0.0
      %3349 = vadd.xlane.f32.xlu0 %v3348
      %v3350 = vpop.xlane.xlu0 %3349
      %v3351 = vsel %vm762, %v3251, 0.0
      %3352 = vadd.xlane.f32.xlu0 %v3351
      %v3353 = vpop.xlane.xlu0 %3352
      %v3354 = vsel %vm762, %v3256, 0.0
      %3355 = vadd.xlane.f32.xlu0 %v3354
      %v3356 = vpop.xlane.xlu0 %3355
      %v3357 = vsel %vm762, %v3261, 0.0
      %3358 = vadd.xlane.f32.xlu0 %v3357
      %v3359 = vpop.xlane.xlu0 %3358
      %v3360 = vmul.f32 %v3266, %v926
      %v3361 = vmul.f32 %v3269, %v926
      %v3362 = vmul.f32 %v3272, %v926
      %v3363 = vmul.f32 %v3275, %v926
      %v3364 = vmul.f32 %v3278, %v926
      %v3365 = vmul.f32 %v3281, %v926
      %v3366 = vmul.f32 %v3284, %v926
      %v3367 = vmul.f32 %v3287, %v926
      %v3368 = vmul.f32 %v3290, %v926
      %v3369 = vmul.f32 %v3293, %v926
      %v3370 = vmul.f32 %v3296, %v926
      %v3371 = vmul.f32 %v3299, %v926
      %v3372 = vmul.f32 %v3302, %v926
      %v3373 = vmul.f32 %v3305, %v926
      %v3374 = vmul.f32 %v3308, %v926
      %v3375 = vmul.f32 %v3311, %v926
      %v3376 = vmul.f32 %v3314, %v926
      %v3377 = vmul.f32 %v3317, %v926
      %v3378 = vmul.f32 %v3320, %v926
      %v3379 = vmul.f32 %v3323, %v926
      %v3380 = vmul.f32 %v3326, %v926
      %v3381 = vmul.f32 %v3329, %v926
      %v3382 = vmul.f32 %v3332, %v926
      %v3383 = vmul.f32 %v3335, %v926
      %v3384 = vmul.f32 %v3338, %v926
      %v3385 = vmul.f32 %v3341, %v926
      %v3386 = vmul.f32 %v3344, %v926
      %v3387 = vmul.f32 %v3347, %v926
      %v3388 = vmul.f32 %v3350, %v926
      %v3389 = vmul.f32 %v3353, %v926
      %v3390 = vmul.f32 %v3356, %v926
      %v3391 = vmul.f32 %v3359, %v926
      %v3392 = vsub.f32 %v3106, %v3360
      %v3393 = vsub.f32 %v3111, %v3361
      %v3394 = vsub.f32 %v3116, %v3362
      %v3395 = vsub.f32 %v3121, %v3363
      %v3396 = vsub.f32 %v3126, %v3364
      %v3397 = vsub.f32 %v3131, %v3365
      %v3398 = vsub.f32 %v3136, %v3366
      %v3399 = vsub.f32 %v3141, %v3367
      %v3400 = vsub.f32 %v3146, %v3368
      %v3401 = vsub.f32 %v3151, %v3369
      %v3402 = vsub.f32 %v3156, %v3370
      %v3403 = vsub.f32 %v3161, %v3371
      %v3404 = vsub.f32 %v3166, %v3372
      %v3405 = vsub.f32 %v3171, %v3373
      %v3406 = vsub.f32 %v3176, %v3374
      %v3407 = vsub.f32 %v3181, %v3375
      %v3408 = vsub.f32 %v3186, %v3376
      %v3409 = vsub.f32 %v3191, %v3377
      %v3410 = vsub.f32 %v3196, %v3378
      %v3411 = vsub.f32 %v3201, %v3379
      %v3412 = vsub.f32 %v3206, %v3380
      %v3413 = vsub.f32 %v3211, %v3381
      %v3414 = vsub.f32 %v3216, %v3382
      %v3415 = vsub.f32 %v3221, %v3383
      %v3416 = vsub.f32 %v3226, %v3384
      %v3417 = vsub.f32 %v3231, %v3385
      %v3418 = vsub.f32 %v3236, %v3386
      %v3419 = vsub.f32 %v3241, %v3387
      %v3420 = vsub.f32 %v3246, %v3388
      %v3421 = vsub.f32 %v3251, %v3389
      %v3422 = vsub.f32 %v3256, %v3390
      %v3423 = vsub.f32 %v3261, %v3391
      %v3424 = vmul.f32 %v3392, %v3392
      %v3425 = vmul.f32 %v3393, %v3393
      %v3426 = vmul.f32 %v3394, %v3394
      %v3427 = vmul.f32 %v3395, %v3395
      %v3428 = vmul.f32 %v3396, %v3396
      %v3429 = vmul.f32 %v3397, %v3397
      %v3430 = vmul.f32 %v3398, %v3398
      %v3431 = vmul.f32 %v3399, %v3399
      %v3432 = vmul.f32 %v3400, %v3400
      %v3433 = vmul.f32 %v3401, %v3401
      %v3434 = vmul.f32 %v3402, %v3402
      %v3435 = vmul.f32 %v3403, %v3403
      %v3436 = vmul.f32 %v3404, %v3404
      %v3437 = vmul.f32 %v3405, %v3405
      %v3438 = vmul.f32 %v3406, %v3406
      %v3439 = vmul.f32 %v3407, %v3407
      %v3440 = vmul.f32 %v3408, %v3408
      %v3441 = vmul.f32 %v3409, %v3409
      %v3442 = vmul.f32 %v3410, %v3410
      %v3443 = vmul.f32 %v3411, %v3411
      %v3444 = vmul.f32 %v3412, %v3412
      %v3445 = vmul.f32 %v3413, %v3413
      %v3446 = vmul.f32 %v3414, %v3414
      %v3447 = vmul.f32 %v3415, %v3415
      %v3448 = vmul.f32 %v3416, %v3416
      %v3449 = vmul.f32 %v3417, %v3417
      %v3450 = vmul.f32 %v3418, %v3418
      %v3451 = vmul.f32 %v3419, %v3419
      %v3452 = vmul.f32 %v3420, %v3420
      %v3453 = vmul.f32 %v3421, %v3421
      %v3454 = vmul.f32 %v3422, %v3422
      %v3455 = vmul.f32 %v3423, %v3423
      %v3456 = vsel %vm762, %v3424, 0.0
      %3457 = vadd.xlane.f32.xlu0 %v3456
      %v3458 = vpop.xlane.xlu0 %3457
      %v3459 = vsel %vm762, %v3425, 0.0
      %3460 = vadd.xlane.f32.xlu0 %v3459
      %v3461 = vpop.xlane.xlu0 %3460
      %v3462 = vsel %vm762, %v3426, 0.0
      %3463 = vadd.xlane.f32.xlu0 %v3462
      %v3464 = vpop.xlane.xlu0 %3463
      %v3465 = vsel %vm762, %v3427, 0.0
      %3466 = vadd.xlane.f32.xlu0 %v3465
      %v3467 = vpop.xlane.xlu0 %3466
      %v3468 = vsel %vm762, %v3428, 0.0
      %3469 = vadd.xlane.f32.xlu0 %v3468
      %v3470 = vpop.xlane.xlu0 %3469
      %v3471 = vsel %vm762, %v3429, 0.0
      %3472 = vadd.xlane.f32.xlu0 %v3471
      %v3473 = vpop.xlane.xlu0 %3472
      %v3474 = vsel %vm762, %v3430, 0.0
      %3475 = vadd.xlane.f32.xlu0 %v3474
      %v3476 = vpop.xlane.xlu0 %3475
      %v3477 = vsel %vm762, %v3431, 0.0
      %3478 = vadd.xlane.f32.xlu0 %v3477
      %v3479 = vpop.xlane.xlu0 %3478
      %v3480 = vsel %vm762, %v3432, 0.0
      %3481 = vadd.xlane.f32.xlu0 %v3480
      %v3482 = vpop.xlane.xlu0 %3481
      %v3483 = vsel %vm762, %v3433, 0.0
      %3484 = vadd.xlane.f32.xlu0 %v3483
      %v3485 = vpop.xlane.xlu0 %3484
      %v3486 = vsel %vm762, %v3434, 0.0
      %3487 = vadd.xlane.f32.xlu0 %v3486
      %v3488 = vpop.xlane.xlu0 %3487
      %v3489 = vsel %vm762, %v3435, 0.0
      %3490 = vadd.xlane.f32.xlu0 %v3489
      %v3491 = vpop.xlane.xlu0 %3490
      %v3492 = vsel %vm762, %v3436, 0.0
      %3493 = vadd.xlane.f32.xlu0 %v3492
      %v3494 = vpop.xlane.xlu0 %3493
      %v3495 = vsel %vm762, %v3437, 0.0
      %3496 = vadd.xlane.f32.xlu0 %v3495
      %v3497 = vpop.xlane.xlu0 %3496
      %v3498 = vsel %vm762, %v3438, 0.0
      %3499 = vadd.xlane.f32.xlu0 %v3498
      %v3500 = vpop.xlane.xlu0 %3499
      %v3501 = vsel %vm762, %v3439, 0.0
      %3502 = vadd.xlane.f32.xlu0 %v3501
      %v3503 = vpop.xlane.xlu0 %3502
      %v3504 = vsel %vm762, %v3440, 0.0
      %3505 = vadd.xlane.f32.xlu0 %v3504
      %v3506 = vpop.xlane.xlu0 %3505
      %v3507 = vsel %vm762, %v3441, 0.0
      %3508 = vadd.xlane.f32.xlu0 %v3507
      %v3509 = vpop.xlane.xlu0 %3508
      %v3510 = vsel %vm762, %v3442, 0.0
      %3511 = vadd.xlane.f32.xlu0 %v3510
      %v3512 = vpop.xlane.xlu0 %3511
      %v3513 = vsel %vm762, %v3443, 0.0
      %3514 = vadd.xlane.f32.xlu0 %v3513
      %v3515 = vpop.xlane.xlu0 %3514
      %v3516 = vsel %vm762, %v3444, 0.0
      %3517 = vadd.xlane.f32.xlu0 %v3516
      %v3518 = vpop.xlane.xlu0 %3517
      %v3519 = vsel %vm762, %v3445, 0.0
      %3520 = vadd.xlane.f32.xlu0 %v3519
      %v3521 = vpop.xlane.xlu0 %3520
      %v3522 = vsel %vm762, %v3446, 0.0
      %3523 = vadd.xlane.f32.xlu0 %v3522
      %v3524 = vpop.xlane.xlu0 %3523
      %v3525 = vsel %vm762, %v3447, 0.0
      %3526 = vadd.xlane.f32.xlu0 %v3525
      %v3527 = vpop.xlane.xlu0 %3526
      %v3528 = vsel %vm762, %v3448, 0.0
      %3529 = vadd.xlane.f32.xlu0 %v3528
      %v3530 = vpop.xlane.xlu0 %3529
      %v3531 = vsel %vm762, %v3449, 0.0
      %3532 = vadd.xlane.f32.xlu0 %v3531
      %v3533 = vpop.xlane.xlu0 %3532
      %v3534 = vsel %vm762, %v3450, 0.0
      %3535 = vadd.xlane.f32.xlu0 %v3534
      %v3536 = vpop.xlane.xlu0 %3535
      %v3537 = vsel %vm762, %v3451, 0.0
      %3538 = vadd.xlane.f32.xlu0 %v3537
      %v3539 = vpop.xlane.xlu0 %3538
      %v3540 = vsel %vm762, %v3452, 0.0
      %3541 = vadd.xlane.f32.xlu0 %v3540
      %v3542 = vpop.xlane.xlu0 %3541
      %v3543 = vsel %vm762, %v3453, 0.0
      %3544 = vadd.xlane.f32.xlu0 %v3543
      %v3545 = vpop.xlane.xlu0 %3544
      %v3546 = vsel %vm762, %v3454, 0.0
      %3547 = vadd.xlane.f32.xlu0 %v3546
      %v3548 = vpop.xlane.xlu0 %3547
      %v3549 = vsel %vm762, %v3455, 0.0
      %3550 = vadd.xlane.f32.xlu0 %v3549
      %v3551 = vpop.xlane.xlu0 %3550
      %v3552 = vmul.f32 %v3458, %v926
      %v3553 = vmul.f32 %v3461, %v926
      %v3554 = vmul.f32 %v3464, %v926
      %v3555 = vmul.f32 %v3467, %v926
      %v3556 = vmul.f32 %v3470, %v926
      %v3557 = vmul.f32 %v3473, %v926
      %v3558 = vmul.f32 %v3476, %v926
      %v3559 = vmul.f32 %v3479, %v926
      %v3560 = vmul.f32 %v3482, %v926
      %v3561 = vmul.f32 %v3485, %v926
      %v3562 = vmul.f32 %v3488, %v926
      %v3563 = vmul.f32 %v3491, %v926
      %v3564 = vmul.f32 %v3494, %v926
      %v3565 = vmul.f32 %v3497, %v926
      %v3566 = vmul.f32 %v3500, %v926
      %v3567 = vmul.f32 %v3503, %v926
      %v3568 = vmul.f32 %v3506, %v926
      %v3569 = vmul.f32 %v3509, %v926
      %v3570 = vmul.f32 %v3512, %v926
      %v3571 = vmul.f32 %v3515, %v926
      %v3572 = vmul.f32 %v3518, %v926
      %v3573 = vmul.f32 %v3521, %v926
      %v3574 = vmul.f32 %v3524, %v926
      %v3575 = vmul.f32 %v3527, %v926
      %v3576 = vmul.f32 %v3530, %v926
      %v3577 = vmul.f32 %v3533, %v926
      %v3578 = vmul.f32 %v3536, %v926
      %v3579 = vmul.f32 %v3539, %v926
      %v3580 = vmul.f32 %v3542, %v926
      %v3581 = vmul.f32 %v3545, %v926
      %v3582 = vmul.f32 %v3548, %v926
      %v3583 = vmul.f32 %v3551, %v926
      %v3584 = vadd.f32 %v3552, 1e-06
      %v3585 = vadd.f32 %v3553, 1e-06
      %v3586 = vadd.f32 %v3554, 1e-06
      %v3587 = vadd.f32 %v3555, 1e-06
      %v3588 = vadd.f32 %v3556, 1e-06
      %v3589 = vadd.f32 %v3557, 1e-06
      %v3590 = vadd.f32 %v3558, 1e-06
      %v3591 = vadd.f32 %v3559, 1e-06
      %v3592 = vadd.f32 %v3560, 1e-06
      %v3593 = vadd.f32 %v3561, 1e-06
      %v3594 = vadd.f32 %v3562, 1e-06
      %v3595 = vadd.f32 %v3563, 1e-06
      %v3596 = vadd.f32 %v3564, 1e-06
      %v3597 = vadd.f32 %v3565, 1e-06
      %v3598 = vadd.f32 %v3566, 1e-06
      %v3599 = vadd.f32 %v3567, 1e-06
      %v3600 = vadd.f32 %v3568, 1e-06
      %v3601 = vadd.f32 %v3569, 1e-06
      %v3602 = vadd.f32 %v3570, 1e-06
      %v3603 = vadd.f32 %v3571, 1e-06
      %v3604 = vadd.f32 %v3572, 1e-06
      %v3605 = vadd.f32 %v3573, 1e-06
      %v3606 = vadd.f32 %v3574, 1e-06
      %v3607 = vadd.f32 %v3575, 1e-06
      %v3608 = vadd.f32 %v3576, 1e-06
      %v3609 = vadd.f32 %v3577, 1e-06
      %v3610 = vadd.f32 %v3578, 1e-06
      %v3611 = vadd.f32 %v3579, 1e-06
      %v3612 = vadd.f32 %v3580, 1e-06
      %v3613 = vadd.f32 %v3581, 1e-06
      %v3614 = vadd.f32 %v3582, 1e-06
      %v3615 = vadd.f32 %v3583, 1e-06
      %v3616 = vrsqrt.pop %v3584
      %v3617 = vrsqrt.pop %v3585
      %v3618 = vrsqrt.pop %v3586
      %v3619 = vrsqrt.pop %v3587
      %v3620 = vrsqrt.pop %v3588
      %v3621 = vrsqrt.pop %v3589
      %v3622 = vrsqrt.pop %v3590
      %v3623 = vrsqrt.pop %v3591
      %v3624 = vrsqrt.pop %v3592
      %v3625 = vrsqrt.pop %v3593
      %v3626 = vrsqrt.pop %v3594
      %v3627 = vrsqrt.pop %v3595
      %v3628 = vrsqrt.pop %v3596
      %v3629 = vrsqrt.pop %v3597
      %v3630 = vrsqrt.pop %v3598
      %v3631 = vrsqrt.pop %v3599
      %v3632 = vrsqrt.pop %v3600
      %v3633 = vrsqrt.pop %v3601
      %v3634 = vrsqrt.pop %v3602
      %v3635 = vrsqrt.pop %v3603
      %v3636 = vrsqrt.pop %v3604
      %v3637 = vrsqrt.pop %v3605
      %v3638 = vrsqrt.pop %v3606
      %v3639 = vrsqrt.pop %v3607
      %v3640 = vrsqrt.pop %v3608
      %v3641 = vrsqrt.pop %v3609
      %v3642 = vrsqrt.pop %v3610
      %v3643 = vrsqrt.pop %v3611
      %v3644 = vrsqrt.pop %v3612
      %v3645 = vrsqrt.pop %v3613
      %v3646 = vrsqrt.pop %v3614
      %v3647 = vrsqrt.pop %v3615
      %v3648 = vmul.f32 %v3392, %v3616
      %v3649 = vmul.f32 %v3393, %v3617
      %v3650 = vmul.f32 %v3394, %v3618
      %v3651 = vmul.f32 %v3395, %v3619
      %v3652 = vmul.f32 %v3396, %v3620
      %v3653 = vmul.f32 %v3397, %v3621
      %v3654 = vmul.f32 %v3398, %v3622
      %v3655 = vmul.f32 %v3399, %v3623
      %v3656 = vmul.f32 %v3400, %v3624
      %v3657 = vmul.f32 %v3401, %v3625
      %v3658 = vmul.f32 %v3402, %v3626
      %v3659 = vmul.f32 %v3403, %v3627
      %v3660 = vmul.f32 %v3404, %v3628
      %v3661 = vmul.f32 %v3405, %v3629
      %v3662 = vmul.f32 %v3406, %v3630
      %v3663 = vmul.f32 %v3407, %v3631
      %v3664 = vmul.f32 %v3408, %v3632
      %v3665 = vmul.f32 %v3409, %v3633
      %v3666 = vmul.f32 %v3410, %v3634
      %v3667 = vmul.f32 %v3411, %v3635
      %v3668 = vmul.f32 %v3412, %v3636
      %v3669 = vmul.f32 %v3413, %v3637
      %v3670 = vmul.f32 %v3414, %v3638
      %v3671 = vmul.f32 %v3415, %v3639
      %v3672 = vmul.f32 %v3416, %v3640
      %v3673 = vmul.f32 %v3417, %v3641
      %v3674 = vmul.f32 %v3418, %v3642
      %v3675 = vmul.f32 %v3419, %v3643
      %v3676 = vmul.f32 %v3420, %v3644
      %v3677 = vmul.f32 %v3421, %v3645
      %v3678 = vmul.f32 %v3422, %v3646
      %v3679 = vmul.f32 %v3423, %v3647
      %v3681 = vlaneseq
      %v3682 = vshrl.u32 %v3681, 7
      %v3683 = vsub.s32 0, %v3682
      %v3684 = vrot.slane %v760, %v3683
      %v3686 = vmul.f32 %v3648, %v3684
      %v3687 = vmul.f32 %v3649, %v3684
      %v3688 = vmul.f32 %v3650, %v3684
      %v3689 = vmul.f32 %v3651, %v3684
      %v3690 = vmul.f32 %v3652, %v3684
      %v3691 = vmul.f32 %v3653, %v3684
      %v3692 = vmul.f32 %v3654, %v3684
      %v3693 = vmul.f32 %v3655, %v3684
      %v3694 = vmul.f32 %v3656, %v3684
      %v3695 = vmul.f32 %v3657, %v3684
      %v3696 = vmul.f32 %v3658, %v3684
      %v3697 = vmul.f32 %v3659, %v3684
      %v3698 = vmul.f32 %v3660, %v3684
      %v3699 = vmul.f32 %v3661, %v3684
      %v3700 = vmul.f32 %v3662, %v3684
      %v3701 = vmul.f32 %v3663, %v3684
      %v3702 = vmul.f32 %v3664, %v3684
      %v3703 = vmul.f32 %v3665, %v3684
      %v3704 = vmul.f32 %v3666, %v3684
      %v3705 = vmul.f32 %v3667, %v3684
      %v3706 = vmul.f32 %v3668, %v3684
      %v3707 = vmul.f32 %v3669, %v3684
      %v3708 = vmul.f32 %v3670, %v3684
      %v3709 = vmul.f32 %v3671, %v3684
      %v3710 = vmul.f32 %v3672, %v3684
      %v3711 = vmul.f32 %v3673, %v3684
      %v3712 = vmul.f32 %v3674, %v3684
      %v3713 = vmul.f32 %v3675, %v3684
      %v3714 = vmul.f32 %v3676, %v3684
      %v3715 = vmul.f32 %v3677, %v3684
      %v3716 = vmul.f32 %v3678, %v3684
      %v3717 = vmul.f32 %v3679, %v3684
      %v3719 = vlaneseq
      %v3720 = vshrl.u32 %v3719, 7
      %v3721 = vsub.s32 0, %v3720
      %v3722 = vrot.slane %v761, %v3721
      %v3724 = vadd.f32 %v3686, %v3722
      %v3725 = vadd.f32 %v3687, %v3722
      %v3726 = vadd.f32 %v3688, %v3722
      %v3727 = vadd.f32 %v3689, %v3722
      %v3728 = vadd.f32 %v3690, %v3722
      %v3729 = vadd.f32 %v3691, %v3722
      %v3730 = vadd.f32 %v3692, %v3722
      %v3731 = vadd.f32 %v3693, %v3722
      %v3732 = vadd.f32 %v3694, %v3722
      %v3733 = vadd.f32 %v3695, %v3722
      %v3734 = vadd.f32 %v3696, %v3722
      %v3735 = vadd.f32 %v3697, %v3722
      %v3736 = vadd.f32 %v3698, %v3722
      %v3737 = vadd.f32 %v3699, %v3722
      %v3738 = vadd.f32 %v3700, %v3722
      %v3739 = vadd.f32 %v3701, %v3722
      %v3740 = vadd.f32 %v3702, %v3722
      %v3741 = vadd.f32 %v3703, %v3722
      %v3742 = vadd.f32 %v3704, %v3722
      %v3743 = vadd.f32 %v3705, %v3722
      %v3744 = vadd.f32 %v3706, %v3722
      %v3745 = vadd.f32 %v3707, %v3722
      %v3746 = vadd.f32 %v3708, %v3722
      %v3747 = vadd.f32 %v3709, %v3722
      %v3748 = vadd.f32 %v3710, %v3722
      %v3749 = vadd.f32 %v3711, %v3722
      %v3750 = vadd.f32 %v3712, %v3722
      %v3751 = vadd.f32 %v3713, %v3722
      %v3752 = vadd.f32 %v3714, %v3722
      %v3753 = vadd.f32 %v3715, %v3722
      %v3754 = vadd.f32 %v3716, %v3722
      %v3755 = vadd.f32 %v3717, %v3722
      %3756 = vxpose.xlu0.b32.start [1/16] %v3724, 128
      %3757 = vxpose.xlu0.b32.cont [2/16] %v3725, 128
      %3758 = vxpose.xlu0.b32.cont [3/16] %v3726, 128
      %3759 = vxpose.xlu0.b32.cont [4/16] %v3727, 128
      %3760 = vxpose.xlu0.b32.cont [5/16] %v3728, 128
      %3761 = vxpose.xlu0.b32.cont [6/16] %v3729, 128
      %3762 = vxpose.xlu0.b32.cont [7/16] %v3730, 128
      %3763 = vxpose.xlu0.b32.cont [8/16] %v3731, 128
      %3764 = vxpose.xlu0.b32.cont [9/16] %v3732, 128
      %3765 = vxpose.xlu0.b32.cont [10/16] %v3733, 128
      %3766 = vxpose.xlu0.b32.cont [11/16] %v3734, 128
      %3767 = vxpose.xlu0.b32.cont [12/16] %v3735, 128
      %3768 = vxpose.xlu0.b32.cont [13/16] %v3736, 128
      %3769 = vxpose.xlu0.b32.cont [14/16] %v3737, 128
      %3770 = vxpose.xlu0.b32.cont [15/16] %v3738, 128
      %3771 = vxpose.xlu0.b32.end [16/16] %v3739, 128
      %v3772 = vpop.trf.xlu0
      %v3773 = vpop.trf.xlu0
      %v3774 = vpop.trf.xlu0
      %v3775 = vpop.trf.xlu0
      %v3776 = vpop.trf.xlu0
      %v3777 = vpop.trf.xlu0
      %v3778 = vpop.trf.xlu0
      %v3779 = vpop.trf.xlu0
      %v3780 = vpop.trf.xlu0
      %v3781 = vpop.trf.xlu0
      %v3782 = vpop.trf.xlu0
      %v3783 = vpop.trf.xlu0
      %v3784 = vpop.trf.xlu0
      %v3785 = vpop.trf.xlu0
      %v3786 = vpop.trf.xlu0
      %v3787 = vpop.trf.xlu0
      %3788 = vxpose.xlu0.b32.start [1/16] %v3740, 128
      %3789 = vxpose.xlu0.b32.cont [2/16] %v3741, 128
      %3790 = vxpose.xlu0.b32.cont [3/16] %v3742, 128
      %3791 = vxpose.xlu0.b32.cont [4/16] %v3743, 128
      %3792 = vxpose.xlu0.b32.cont [5/16] %v3744, 128
      %3793 = vxpose.xlu0.b32.cont [6/16] %v3745, 128
      %3794 = vxpose.xlu0.b32.cont [7/16] %v3746, 128
      %3795 = vxpose.xlu0.b32.cont [8/16] %v3747, 128
      %3796 = vxpose.xlu0.b32.cont [9/16] %v3748, 128
      %3797 = vxpose.xlu0.b32.cont [10/16] %v3749, 128
      %3798 = vxpose.xlu0.b32.cont [11/16] %v3750, 128
      %3799 = vxpose.xlu0.b32.cont [12/16] %v3751, 128
      %3800 = vxpose.xlu0.b32.cont [13/16] %v3752, 128
      %3801 = vxpose.xlu0.b32.cont [14/16] %v3753, 128
      %3802 = vxpose.xlu0.b32.cont [15/16] %v3754, 128
      %3803 = vxpose.xlu0.b32.end [16/16] %v3755, 128
      %v3804 = vpop.trf.xlu0
      %v3805 = vpop.trf.xlu0
      %v3806 = vpop.trf.xlu0
      %v3807 = vpop.trf.xlu0
      %v3808 = vpop.trf.xlu0
      %v3809 = vpop.trf.xlu0
      %v3810 = vpop.trf.xlu0
      %v3811 = vpop.trf.xlu0
      %v3812 = vpop.trf.xlu0
      %v3813 = vpop.trf.xlu0
      %v3814 = vpop.trf.xlu0
      %v3815 = vpop.trf.xlu0
      %v3816 = vpop.trf.xlu0
      %v3817 = vpop.trf.xlu0
      %v3818 = vpop.trf.xlu0
      %v3819 = vpop.trf.xlu0
      %3820 = vst [vmem:[%s684] sm:$0xff] %v3772
      %3821 = vst [vmem:[%s684 + $0x8] sm:$0xff] %v3804
      %v3822 = vld [vmem:[%s674] sm:$0xff]
      %v3823 = vld [vmem:[%s674 + $0x8] sm:$0x3]
      %v3824 = vld [vmem:[%s674 + $0x10] sm:$0xff]
      %v3825 = vld [vmem:[%s674 + $0x18] sm:$0x3]
      %v3826 = vld [vmem:[%s674 + $0x20] sm:$0xff]
      %v3827 = vld [vmem:[%s674 + $0x28] sm:$0x3]
      %v3828 = vld [vmem:[%s674 + $0x30] sm:$0xff]
      %v3829 = vld [vmem:[%s674 + $0x38] sm:$0x3]
      %v3830 = vld [vmem:[%s674 + $0x40] sm:$0xff]
      %v3831 = vld [vmem:[%s674 + $0x48] sm:$0x3]
      %v3832 = vld [vmem:[%s674 + $0x50] sm:$0xff]
      %v3833 = vld [vmem:[%s674 + $0x58] sm:$0x3]
      %v3834 = vld [vmem:[%s674 + $0x60] sm:$0xff]
      %v3835 = vld [vmem:[%s674 + $0x68] sm:$0x3]
      %v3836 = vld [vmem:[%s674 + $0x70] sm:$0xff]
      %v3837 = vld [vmem:[%s674 + $0x78] sm:$0x3]
      %v3838 = vld [vmem:[%s674 + $0x80] sm:$0xff]
      %v3839 = vld [vmem:[%s674 + $0x88] sm:$0x3]
      %v3840 = vld [vmem:[%s674 + $0x90] sm:$0xff]
      %v3841 = vld [vmem:[%s674 + $0x98] sm:$0x3]
      %v3842 = vld [vmem:[%s7] sm:$0x1]
      %v3843 = vld [vmem:[%s8] sm:$0x1]
      %v3844 = vld [vmem:[%s9] sm:$0xff]
      %v3845 = vld [vmem:[%s9 + $0x8] sm:$0xff]
      %v3846 = vld [vmem:[%s9 + $0x10] sm:$0xff]
      %v3847 = vld [vmem:[%s9 + $0x18] sm:$0xff]
      %v3848 = vld [vmem:[%s9 + $0x20] sm:$0xff]
      %v3849 = vld [vmem:[%s9 + $0x28] sm:$0xff]
      %v3850 = vld [vmem:[%s9 + $0x30] sm:$0xff]
      %v3851 = vld [vmem:[%s9 + $0x38] sm:$0xff]
      %v3852 = vld [vmem:[%s9 + $0x40] sm:$0xff]
      %v3853 = vld [vmem:[%s9 + $0x48] sm:$0xff]
      %v3854 = vld [vmem:[%s9 + $0x50] sm:$0xff]
      %v3855 = vld [vmem:[%s9 + $0x58] sm:$0xff]
      %v3856 = vld [vmem:[%s9 + $0x60] sm:$0xff]
      %v3857 = vld [vmem:[%s9 + $0x68] sm:$0xff]
      %v3858 = vld [vmem:[%s9 + $0x70] sm:$0xff]
      %v3859 = vld [vmem:[%s9 + $0x78] sm:$0xff]
      %v3860 = vld [vmem:[%s9 + $0x80] sm:$0xff]
      %v3861 = vld [vmem:[%s9 + $0x88] sm:$0xff]
      %v3862 = vld [vmem:[%s10] sm:$0x1]
      %v3863 = vld [vmem:[%s11] sm:$0x1]
      %v3864 = vsel %vm2711, %v3822, 0.0
      %3865 = vadd.xlane.f32.xlu0 %v3864
      %v3866 = vpop.xlane.xlu0 %3865
      %vm3867 = vcmask 123904
      %v3868 = vsel %vm3867, %v3823, 0.0
      %3869 = vadd.xlane.f32.xlu0 %v3868
      %v3870 = vpop.xlane.xlu0 %3869
      %v3871 = vsel %vm2711, %v3824, 0.0
      %3872 = vadd.xlane.f32.xlu0 %v3871
      %v3873 = vpop.xlane.xlu0 %3872
      %v3874 = vsel %vm3867, %v3825, 0.0
      %3875 = vadd.xlane.f32.xlu0 %v3874
      %v3876 = vpop.xlane.xlu0 %3875
      %v3877 = vsel %vm2711, %v3826, 0.0
      %3878 = vadd.xlane.f32.xlu0 %v3877
      %v3879 = vpop.xlane.xlu0 %3878
      %v3880 = vsel %vm3867, %v3827, 0.0
      %3881 = vadd.xlane.f32.xlu0 %v3880
      %v3882 = vpop.xlane.xlu0 %3881
      %v3883 = vsel %vm2711, %v3828, 0.0
      %3884 = vadd.xlane.f32.xlu0 %v3883
      %v3885 = vpop.xlane.xlu0 %3884
      %v3886 = vsel %vm3867, %v3829, 0.0
      %3887 = vadd.xlane.f32.xlu0 %v3886
      %v3888 = vpop.xlane.xlu0 %3887
      %v3889 = vsel %vm2711, %v3830, 0.0
      %3890 = vadd.xlane.f32.xlu0 %v3889
      %v3891 = vpop.xlane.xlu0 %3890
      %v3892 = vsel %vm3867, %v3831, 0.0
      %3893 = vadd.xlane.f32.xlu0 %v3892
      %v3894 = vpop.xlane.xlu0 %3893
      %v3895 = vsel %vm2711, %v3832, 0.0
      %3896 = vadd.xlane.f32.xlu0 %v3895
      %v3897 = vpop.xlane.xlu0 %3896
      %v3898 = vsel %vm3867, %v3833, 0.0
      %3899 = vadd.xlane.f32.xlu0 %v3898
      %v3900 = vpop.xlane.xlu0 %3899
      %v3901 = vsel %vm2711, %v3834, 0.0
      %3902 = vadd.xlane.f32.xlu0 %v3901
      %v3903 = vpop.xlane.xlu0 %3902
      %v3904 = vsel %vm3867, %v3835, 0.0
      %3905 = vadd.xlane.f32.xlu0 %v3904
      %v3906 = vpop.xlane.xlu0 %3905
      %v3907 = vsel %vm2711, %v3836, 0.0
      %3908 = vadd.xlane.f32.xlu0 %v3907
      %v3909 = vpop.xlane.xlu0 %3908
      %v3910 = vsel %vm3867, %v3837, 0.0
      %3911 = vadd.xlane.f32.xlu0 %v3910
      %v3912 = vpop.xlane.xlu0 %3911
      %v3913 = vsel %vm2711, %v3838, 0.0
      %3914 = vadd.xlane.f32.xlu0 %v3913
      %v3915 = vpop.xlane.xlu0 %3914
      %v3916 = vsel %vm3867, %v3839, 0.0
      %3917 = vadd.xlane.f32.xlu0 %v3916
      %v3918 = vpop.xlane.xlu0 %3917
      %v3919 = vsel %vm2711, %v3840, 0.0
      %3920 = vadd.xlane.f32.xlu0 %v3919
      %v3921 = vpop.xlane.xlu0 %3920
      %v3922 = vsel %vm3867, %v3841, 0.0
      %3923 = vadd.xlane.f32.xlu0 %v3922
      %v3924 = vpop.xlane.xlu0 %3923
      %v3925 = vrcp.pop 16.0
      %v3926 = vmul.f32 %v3866, %v3925
      %v3927 = vmul.f32 %v3870, %v3925
      %v3928 = vmul.f32 %v3873, %v3925
      %v3929 = vmul.f32 %v3876, %v3925
      %v3930 = vmul.f32 %v3879, %v3925
      %v3931 = vmul.f32 %v3882, %v3925
      %v3932 = vmul.f32 %v3885, %v3925
      %v3933 = vmul.f32 %v3888, %v3925
      %v3934 = vmul.f32 %v3891, %v3925
      %v3935 = vmul.f32 %v3894, %v3925
      %v3936 = vmul.f32 %v3897, %v3925
      %v3937 = vmul.f32 %v3900, %v3925
      %v3938 = vmul.f32 %v3903, %v3925
      %v3939 = vmul.f32 %v3906, %v3925
      %v3940 = vmul.f32 %v3909, %v3925
      %v3941 = vmul.f32 %v3912, %v3925
      %v3942 = vmul.f32 %v3915, %v3925
      %v3943 = vmul.f32 %v3918, %v3925
      %v3944 = vmul.f32 %v3921, %v3925
      %v3945 = vmul.f32 %v3924, %v3925
      %v3946 = vsub.f32 %v3822, %v3926
      %v3947 = vsub.f32 %v3823, %v3927
      %v3948 = vsub.f32 %v3824, %v3928
      %v3949 = vsub.f32 %v3825, %v3929
      %v3950 = vsub.f32 %v3826, %v3930
      %v3951 = vsub.f32 %v3827, %v3931
      %v3952 = vsub.f32 %v3828, %v3932
      %v3953 = vsub.f32 %v3829, %v3933
      %v3954 = vsub.f32 %v3830, %v3934
      %v3955 = vsub.f32 %v3831, %v3935
      %v3956 = vsub.f32 %v3832, %v3936
      %v3957 = vsub.f32 %v3833, %v3937
      %v3958 = vsub.f32 %v3834, %v3938
      %v3959 = vsub.f32 %v3835, %v3939
      %v3960 = vsub.f32 %v3836, %v3940
      %v3961 = vsub.f32 %v3837, %v3941
      %v3962 = vsub.f32 %v3838, %v3942
      %v3963 = vsub.f32 %v3839, %v3943
      %v3964 = vsub.f32 %v3840, %v3944
      %v3965 = vsub.f32 %v3841, %v3945
      %v3966 = vmul.f32 %v3946, %v3946
      %v3967 = vmul.f32 %v3947, %v3947
      %v3968 = vmul.f32 %v3948, %v3948
      %v3969 = vmul.f32 %v3949, %v3949
      %v3970 = vmul.f32 %v3950, %v3950
      %v3971 = vmul.f32 %v3951, %v3951
      %v3972 = vmul.f32 %v3952, %v3952
      %v3973 = vmul.f32 %v3953, %v3953
      %v3974 = vmul.f32 %v3954, %v3954
      %v3975 = vmul.f32 %v3955, %v3955
      %v3976 = vmul.f32 %v3956, %v3956
      %v3977 = vmul.f32 %v3957, %v3957
      %v3978 = vmul.f32 %v3958, %v3958
      %v3979 = vmul.f32 %v3959, %v3959
      %v3980 = vmul.f32 %v3960, %v3960
      %v3981 = vmul.f32 %v3961, %v3961
      %v3982 = vmul.f32 %v3962, %v3962
      %v3983 = vmul.f32 %v3963, %v3963
      %v3984 = vmul.f32 %v3964, %v3964
      %v3985 = vmul.f32 %v3965, %v3965
      %v3986 = vsel %vm2711, %v3966, 0.0
      %3987 = vadd.xlane.f32.xlu0 %v3986
      %v3988 = vpop.xlane.xlu0 %3987
      %v3989 = vsel %vm3867, %v3967, 0.0
      %3990 = vadd.xlane.f32.xlu0 %v3989
      %v3991 = vpop.xlane.xlu0 %3990
      %v3992 = vsel %vm2711, %v3968, 0.0
      %3993 = vadd.xlane.f32.xlu0 %v3992
      %v3994 = vpop.xlane.xlu0 %3993
      %v3995 = vsel %vm3867, %v3969, 0.0
      %3996 = vadd.xlane.f32.xlu0 %v3995
      %v3997 = vpop.xlane.xlu0 %3996
      %v3998 = vsel %vm2711, %v3970, 0.0
      %3999 = vadd.xlane.f32.xlu0 %v3998
      %v4000 = vpop.xlane.xlu0 %3999
      %v4001 = vsel %vm3867, %v3971, 0.0
      %4002 = vadd.xlane.f32.xlu0 %v4001
      %v4003 = vpop.xlane.xlu0 %4002
      %v4004 = vsel %vm2711, %v3972, 0.0
      %4005 = vadd.xlane.f32.xlu0 %v4004
      %v4006 = vpop.xlane.xlu0 %4005
      %v4007 = vsel %vm3867, %v3973, 0.0
      %4008 = vadd.xlane.f32.xlu0 %v4007
      %v4009 = vpop.xlane.xlu0 %4008
      %v4010 = vsel %vm2711, %v3974, 0.0
      %4011 = vadd.xlane.f32.xlu0 %v4010
      %v4012 = vpop.xlane.xlu0 %4011
      %v4013 = vsel %vm3867, %v3975, 0.0
      %4014 = vadd.xlane.f32.xlu0 %v4013
      %v4015 = vpop.xlane.xlu0 %4014
      %v4016 = vsel %vm2711, %v3976, 0.0
      %4017 = vadd.xlane.f32.xlu0 %v4016
      %v4018 = vpop.xlane.xlu0 %4017
      %v4019 = vsel %vm3867, %v3977, 0.0
      %4020 = vadd.xlane.f32.xlu0 %v4019
      %v4021 = vpop.xlane.xlu0 %4020
      %v4022 = vsel %vm2711, %v3978, 0.0
      %4023 = vadd.xlane.f32.xlu0 %v4022
      %v4024 = vpop.xlane.xlu0 %4023
      %v4025 = vsel %vm3867, %v3979, 0.0
      %4026 = vadd.xlane.f32.xlu0 %v4025
      %v4027 = vpop.xlane.xlu0 %4026
      %v4028 = vsel %vm2711, %v3980, 0.0
      %4029 = vadd.xlane.f32.xlu0 %v4028
      %v4030 = vpop.xlane.xlu0 %4029
      %v4031 = vsel %vm3867, %v3981, 0.0
      %4032 = vadd.xlane.f32.xlu0 %v4031
      %v4033 = vpop.xlane.xlu0 %4032
      %v4034 = vsel %vm2711, %v3982, 0.0
      %4035 = vadd.xlane.f32.xlu0 %v4034
      %v4036 = vpop.xlane.xlu0 %4035
      %v4037 = vsel %vm3867, %v3983, 0.0
      %4038 = vadd.xlane.f32.xlu0 %v4037
      %v4039 = vpop.xlane.xlu0 %4038
      %v4040 = vsel %vm2711, %v3984, 0.0
      %4041 = vadd.xlane.f32.xlu0 %v4040
      %v4042 = vpop.xlane.xlu0 %4041
      %v4043 = vsel %vm3867, %v3985, 0.0
      %4044 = vadd.xlane.f32.xlu0 %v4043
      %v4045 = vpop.xlane.xlu0 %4044
      %v4046 = vmul.f32 %v3988, %v3925
      %v4047 = vmul.f32 %v3991, %v3925
      %v4048 = vmul.f32 %v3994, %v3925
      %v4049 = vmul.f32 %v3997, %v3925
      %v4050 = vmul.f32 %v4000, %v3925
      %v4051 = vmul.f32 %v4003, %v3925
      %v4052 = vmul.f32 %v4006, %v3925
      %v4053 = vmul.f32 %v4009, %v3925
      %v4054 = vmul.f32 %v4012, %v3925
      %v4055 = vmul.f32 %v4015, %v3925
      %v4056 = vmul.f32 %v4018, %v3925
      %v4057 = vmul.f32 %v4021, %v3925
      %v4058 = vmul.f32 %v4024, %v3925
      %v4059 = vmul.f32 %v4027, %v3925
      %v4060 = vmul.f32 %v4030, %v3925
      %v4061 = vmul.f32 %v4033, %v3925
      %v4062 = vmul.f32 %v4036, %v3925
      %v4063 = vmul.f32 %v4039, %v3925
      %v4064 = vmul.f32 %v4042, %v3925
      %v4065 = vmul.f32 %v4045, %v3925
      %v4066 = vadd.f32 %v4046, 1e-06
      %v4067 = vadd.f32 %v4047, 1e-06
      %v4068 = vadd.f32 %v4048, 1e-06
      %v4069 = vadd.f32 %v4049, 1e-06
      %v4070 = vadd.f32 %v4050, 1e-06
      %v4071 = vadd.f32 %v4051, 1e-06
      %v4072 = vadd.f32 %v4052, 1e-06
      %v4073 = vadd.f32 %v4053, 1e-06
      %v4074 = vadd.f32 %v4054, 1e-06
      %v4075 = vadd.f32 %v4055, 1e-06
      %v4076 = vadd.f32 %v4056, 1e-06
      %v4077 = vadd.f32 %v4057, 1e-06
      %v4078 = vadd.f32 %v4058, 1e-06
      %v4079 = vadd.f32 %v4059, 1e-06
      %v4080 = vadd.f32 %v4060, 1e-06
      %v4081 = vadd.f32 %v4061, 1e-06
      %v4082 = vadd.f32 %v4062, 1e-06
      %v4083 = vadd.f32 %v4063, 1e-06
      %v4084 = vadd.f32 %v4064, 1e-06
      %v4085 = vadd.f32 %v4065, 1e-06
      %v4086 = vrsqrt.pop %v4066
      %v4087 = vrsqrt.pop %v4067
      %v4088 = vrsqrt.pop %v4068
      %v4089 = vrsqrt.pop %v4069
      %v4090 = vrsqrt.pop %v4070
      %v4091 = vrsqrt.pop %v4071
      %v4092 = vrsqrt.pop %v4072
      %v4093 = vrsqrt.pop %v4073
      %v4094 = vrsqrt.pop %v4074
      %v4095 = vrsqrt.pop %v4075
      %v4096 = vrsqrt.pop %v4076
      %v4097 = vrsqrt.pop %v4077
      %v4098 = vrsqrt.pop %v4078
      %v4099 = vrsqrt.pop %v4079
      %v4100 = vrsqrt.pop %v4080
      %v4101 = vrsqrt.pop %v4081
      %v4102 = vrsqrt.pop %v4082
      %v4103 = vrsqrt.pop %v4083
      %v4104 = vrsqrt.pop %v4084
      %v4105 = vrsqrt.pop %v4085
      %v4106 = vmul.f32 %v3946, %v4086
      %v4107 = vmul.f32 %v3947, %v4087
      %v4108 = vmul.f32 %v3948, %v4088
      %v4109 = vmul.f32 %v3949, %v4089
      %v4110 = vmul.f32 %v3950, %v4090
      %v4111 = vmul.f32 %v3951, %v4091
      %v4112 = vmul.f32 %v3952, %v4092
      %v4113 = vmul.f32 %v3953, %v4093
      %v4114 = vmul.f32 %v3954, %v4094
      %v4115 = vmul.f32 %v3955, %v4095
      %v4116 = vmul.f32 %v3956, %v4096
      %v4117 = vmul.f32 %v3957, %v4097
      %v4118 = vmul.f32 %v3958, %v4098
      %v4119 = vmul.f32 %v3959, %v4099
      %v4120 = vmul.f32 %v3960, %v4100
      %v4121 = vmul.f32 %v3961, %v4101
      %v4122 = vmul.f32 %v3962, %v4102
      %v4123 = vmul.f32 %v3963, %v4103
      %v4124 = vmul.f32 %v3964, %v4104
      %v4125 = vmul.f32 %v3965, %v4105
      %v4127 = vlaneseq
      %v4128 = vshrl.u32 %v4127, 7
      %v4129 = vsub.s32 0, %v4128
      %v4130 = vrot.slane %v3842, %v4129
      %v4132 = vmul.f32 %v4106, %v4130
      %v4133 = vmul.f32 %v4107, %v4130
      %v4134 = vmul.f32 %v4108, %v4130
      %v4135 = vmul.f32 %v4109, %v4130
      %v4136 = vmul.f32 %v4110, %v4130
      %v4137 = vmul.f32 %v4111, %v4130
      %v4138 = vmul.f32 %v4112, %v4130
      %v4139 = vmul.f32 %v4113, %v4130
      %v4140 = vmul.f32 %v4114, %v4130
      %v4141 = vmul.f32 %v4115, %v4130
      %v4142 = vmul.f32 %v4116, %v4130
      %v4143 = vmul.f32 %v4117, %v4130
      %v4144 = vmul.f32 %v4118, %v4130
      %v4145 = vmul.f32 %v4119, %v4130
      %v4146 = vmul.f32 %v4120, %v4130
      %v4147 = vmul.f32 %v4121, %v4130
      %v4148 = vmul.f32 %v4122, %v4130
      %v4149 = vmul.f32 %v4123, %v4130
      %v4150 = vmul.f32 %v4124, %v4130
      %v4151 = vmul.f32 %v4125, %v4130
      %v4153 = vlaneseq
      %v4154 = vshrl.u32 %v4153, 7
      %v4155 = vsub.s32 0, %v4154
      %v4156 = vrot.slane %v3843, %v4155
      %v4158 = vadd.f32 %v4132, %v4156
      %v4159 = vadd.f32 %v4133, %v4156
      %v4160 = vadd.f32 %v4134, %v4156
      %v4161 = vadd.f32 %v4135, %v4156
      %v4162 = vadd.f32 %v4136, %v4156
      %v4163 = vadd.f32 %v4137, %v4156
      %v4164 = vadd.f32 %v4138, %v4156
      %v4165 = vadd.f32 %v4139, %v4156
      %v4166 = vadd.f32 %v4140, %v4156
      %v4167 = vadd.f32 %v4141, %v4156
      %v4168 = vadd.f32 %v4142, %v4156
      %v4169 = vadd.f32 %v4143, %v4156
      %v4170 = vadd.f32 %v4144, %v4156
      %v4171 = vadd.f32 %v4145, %v4156
      %v4172 = vadd.f32 %v4146, %v4156
      %v4173 = vadd.f32 %v4147, %v4156
      %v4174 = vadd.f32 %v4148, %v4156
      %v4175 = vadd.f32 %v4149, %v4156
      %v4176 = vadd.f32 %v4150, %v4156
      %v4177 = vadd.f32 %v4151, %v4156
      %vm4178 = vcmp.le.s32.totalorder %v1588, 8
      %vm4179 = vcmp.le.s32.totalorder %v1589, 8
      %vm4180 = vmand %vm1594, %vm4178
      %vm4181 = vmand %vm1595, %vm4179
      %vm4182 = vmand %vm1597, %vm4178
      %vm4183 = vmand %vm1598, %vm4179
      %v4184 = vsel %vm4180, 1, 0
      %v4185 = vsel %vm4181, 1, 0
      %v4186 = vsel %vm4182, 1, 0
      %v4187 = vsel %vm4183, 1, 0
      %vm4188 = vcmp.eq.s32.totalorder %v4184, 1
      %vm4189 = vcmp.eq.s32.totalorder %v4185, 1
      %vm4190 = vcmp.eq.s32.totalorder %v4186, 1
      %vm4191 = vcmp.eq.s32.totalorder %v4187, 1
      %v4192 = vsel %vm4188, %v4158, 0.0
      %v4193 = vsel %vm4189, %v4159, 0.0
      %v4194 = vsel %vm4190, %v4160, 0.0
      %v4195 = vsel %vm4191, %v4161, 0.0
      %v4196 = vsel %vm4190, %v4162, 0.0
      %v4197 = vsel %vm4191, %v4163, 0.0
      %v4198 = vsel %vm4190, %v4164, 0.0
      %v4199 = vsel %vm4191, %v4165, 0.0
      %v4200 = vsel %vm4190, %v4166, 0.0
      %v4201 = vsel %vm4191, %v4167, 0.0
      %v4202 = vsel %vm4190, %v4168, 0.0
      %v4203 = vsel %vm4191, %v4169, 0.0
      %v4204 = vsel %vm4190, %v4170, 0.0
      %v4205 = vsel %vm4191, %v4171, 0.0
      %v4206 = vsel %vm4190, %v4172, 0.0
      %v4207 = vsel %vm4191, %v4173, 0.0
      %v4208 = vsel %vm4190, %v4174, 0.0
      %v4209 = vsel %vm4191, %v4175, 0.0
      %v4210 = vsel %vm4188, %v4176, 0.0
      %v4211 = vsel %vm4189, %v4177, 0.0
      %v4228 = vrot.slane %v4192, 1
      %v4229 = vrot.slane %v4193, 1
      %v4230 = vsel %vm1723, %v4228, %v4229
      %v4231 = vrot.slane %v4194, 1
      %v4232 = vrot.slane %v4195, 1
      %v4233 = vsel %vm1723, %v4231, %v4232
      %v4234 = vrot.slane %v4196, 1
      %v4235 = vrot.slane %v4197, 1
      %v4236 = vsel %vm1723, %v4234, %v4235
      %v4237 = vrot.slane %v4198, 1
      %v4238 = vrot.slane %v4199, 1
      %v4239 = vsel %vm1723, %v4237, %v4238
      %v4240 = vrot.slane %v4200, 1
      %v4241 = vrot.slane %v4201, 1
      %v4242 = vsel %vm1723, %v4240, %v4241
      %v4243 = vrot.slane %v4202, 1
      %v4244 = vrot.slane %v4203, 1
      %v4245 = vsel %vm1723, %v4243, %v4244
      %v4246 = vrot.slane %v4204, 1
      %v4247 = vrot.slane %v4205, 1
      %v4248 = vsel %vm1723, %v4246, %v4247
      %v4249 = vrot.slane %v4206, 1
      %v4250 = vrot.slane %v4207, 1
      %v4251 = vsel %vm1723, %v4249, %v4250
      %v4252 = vrot.slane %v4192, 2
      %v4253 = vrot.slane %v4193, 2
      %v4254 = vsel %vm1804, %v4252, %v4253
      %v4255 = vrot.slane %v4194, 2
      %v4256 = vrot.slane %v4195, 2
      %v4257 = vsel %vm1804, %v4255, %v4256
      %v4258 = vrot.slane %v4196, 2
      %v4259 = vrot.slane %v4197, 2
      %v4260 = vsel %vm1804, %v4258, %v4259
      %v4261 = vrot.slane %v4198, 2
      %v4262 = vrot.slane %v4199, 2
      %v4263 = vsel %vm1804, %v4261, %v4262
      %v4264 = vrot.slane %v4200, 2
      %v4265 = vrot.slane %v4201, 2
      %v4266 = vsel %vm1804, %v4264, %v4265
      %v4267 = vrot.slane %v4202, 2
      %v4268 = vrot.slane %v4203, 2
      %v4269 = vsel %vm1804, %v4267, %v4268
      %v4270 = vrot.slane %v4204, 2
      %v4271 = vrot.slane %v4205, 2
      %v4272 = vsel %vm1804, %v4270, %v4271
      %v4273 = vrot.slane %v4206, 2
      %v4274 = vrot.slane %v4207, 2
      %v4275 = vsel %vm1804, %v4273, %v4274
      %v4278 = vrot.slane %v4208, 1
      %v4279 = vrot.slane %v4209, 1
      %v4280 = vsel %vm1723, %v4278, %v4279
      %v4281 = vrot.slane %v4208, 2
      %v4282 = vrot.slane %v4209, 2
      %v4283 = vsel %vm1804, %v4281, %v4282
      %v4286 = vrot.slane %v4210, 1
      %v4287 = vrot.slane %v4211, 1
      %v4288 = vsel %vm1723, %v4286, %v4287
      %v4289 = vrot.slane %v4210, 2
      %v4290 = vrot.slane %v4211, 2
      %v4291 = vsel %vm1804, %v4289, %v4290
      %4292 = vrot.lane.b32.xlu0 %v4230, 16
      %v4293 = vpop.permute.xlu0 %4292
      %4294 = vrot.lane.b32.xlu0 %v4233, 16
      %v4295 = vpop.permute.xlu0 %4294
      %4296 = vrot.lane.b32.xlu0 %v4236, 16
      %v4297 = vpop.permute.xlu0 %4296
      %4298 = vrot.lane.b32.xlu0 %v4239, 16
      %v4299 = vpop.permute.xlu0 %4298
      %4300 = vrot.lane.b32.xlu0 %v4242, 16
      %v4301 = vpop.permute.xlu0 %4300
      %4302 = vrot.lane.b32.xlu0 %v4245, 16
      %v4303 = vpop.permute.xlu0 %4302
      %4304 = vrot.lane.b32.xlu0 %v4248, 16
      %v4305 = vpop.permute.xlu0 %4304
      %4306 = vrot.lane.b32.xlu0 %v4251, 16
      %v4307 = vpop.permute.xlu0 %4306
      %4316 = vrot.lane.b32.xlu0 %v4254, 32
      %v4317 = vpop.permute.xlu0 %4316
      %4318 = vrot.lane.b32.xlu0 %v4257, 32
      %v4319 = vpop.permute.xlu0 %4318
      %4320 = vrot.lane.b32.xlu0 %v4260, 32
      %v4321 = vpop.permute.xlu0 %4320
      %4322 = vrot.lane.b32.xlu0 %v4263, 32
      %v4323 = vpop.permute.xlu0 %4322
      %4324 = vrot.lane.b32.xlu0 %v4266, 32
      %v4325 = vpop.permute.xlu0 %4324
      %4326 = vrot.lane.b32.xlu0 %v4269, 32
      %v4327 = vpop.permute.xlu0 %4326
      %4328 = vrot.lane.b32.xlu0 %v4272, 32
      %v4329 = vpop.permute.xlu0 %4328
      %4330 = vrot.lane.b32.xlu0 %v4275, 32
      %v4331 = vpop.permute.xlu0 %4330
      %4340 = vrot.lane.b32.xlu0 %v4194, 48
      %v4341 = vpop.permute.xlu0 %4340
      %4342 = vrot.lane.b32.xlu0 %v4196, 48
      %v4343 = vpop.permute.xlu0 %4342
      %4344 = vrot.lane.b32.xlu0 %v4198, 48
      %v4345 = vpop.permute.xlu0 %4344
      %4346 = vrot.lane.b32.xlu0 %v4200, 48
      %v4347 = vpop.permute.xlu0 %4346
      %4348 = vrot.lane.b32.xlu0 %v4202, 48
      %v4349 = vpop.permute.xlu0 %4348
      %4350 = vrot.lane.b32.xlu0 %v4204, 48
      %v4351 = vpop.permute.xlu0 %4350
      %4352 = vrot.lane.b32.xlu0 %v4206, 48
      %v4353 = vpop.permute.xlu0 %4352
      %4354 = vrot.lane.b32.xlu0 %v4208, 48
      %v4355 = vpop.permute.xlu0 %4354
      %4364 = vrot.lane.b32.xlu0 %v4233, 64
      %v4365 = vpop.permute.xlu0 %4364
      %4366 = vrot.lane.b32.xlu0 %v4236, 64
      %v4367 = vpop.permute.xlu0 %4366
      %4368 = vrot.lane.b32.xlu0 %v4239, 64
      %v4369 = vpop.permute.xlu0 %4368
      %4370 = vrot.lane.b32.xlu0 %v4242, 64
      %v4371 = vpop.permute.xlu0 %4370
      %4372 = vrot.lane.b32.xlu0 %v4245, 64
      %v4373 = vpop.permute.xlu0 %4372
      %4374 = vrot.lane.b32.xlu0 %v4248, 64
      %v4375 = vpop.permute.xlu0 %4374
      %4376 = vrot.lane.b32.xlu0 %v4251, 64
      %v4377 = vpop.permute.xlu0 %4376
      %4378 = vrot.lane.b32.xlu0 %v4280, 64
      %v4379 = vpop.permute.xlu0 %4378
      %4388 = vrot.lane.b32.xlu0 %v4257, 80
      %v4389 = vpop.permute.xlu0 %4388
      %4390 = vrot.lane.b32.xlu0 %v4260, 80
      %v4391 = vpop.permute.xlu0 %4390
      %4392 = vrot.lane.b32.xlu0 %v4263, 80
      %v4393 = vpop.permute.xlu0 %4392
      %4394 = vrot.lane.b32.xlu0 %v4266, 80
      %v4395 = vpop.permute.xlu0 %4394
      %4396 = vrot.lane.b32.xlu0 %v4269, 80
      %v4397 = vpop.permute.xlu0 %4396
      %4398 = vrot.lane.b32.xlu0 %v4272, 80
      %v4399 = vpop.permute.xlu0 %4398
      %4400 = vrot.lane.b32.xlu0 %v4275, 80
      %v4401 = vpop.permute.xlu0 %4400
      %4402 = vrot.lane.b32.xlu0 %v4283, 80
      %v4403 = vpop.permute.xlu0 %4402
      %4412 = vrot.lane.b32.xlu0 %v4196, 96
      %v4413 = vpop.permute.xlu0 %4412
      %4414 = vrot.lane.b32.xlu0 %v4198, 96
      %v4415 = vpop.permute.xlu0 %4414
      %4416 = vrot.lane.b32.xlu0 %v4200, 96
      %v4417 = vpop.permute.xlu0 %4416
      %4418 = vrot.lane.b32.xlu0 %v4202, 96
      %v4419 = vpop.permute.xlu0 %4418
      %4420 = vrot.lane.b32.xlu0 %v4204, 96
      %v4421 = vpop.permute.xlu0 %4420
      %4422 = vrot.lane.b32.xlu0 %v4206, 96
      %v4423 = vpop.permute.xlu0 %4422
      %4424 = vrot.lane.b32.xlu0 %v4208, 96
      %v4425 = vpop.permute.xlu0 %4424
      %4426 = vrot.lane.b32.xlu0 %v4210, 96
      %v4427 = vpop.permute.xlu0 %4426
      %4436 = vrot.lane.b32.xlu0 %v4236, 112
      %v4437 = vpop.permute.xlu0 %4436
      %4438 = vrot.lane.b32.xlu0 %v4239, 112
      %v4439 = vpop.permute.xlu0 %4438
      %4440 = vrot.lane.b32.xlu0 %v4242, 112
      %v4441 = vpop.permute.xlu0 %4440
      %4442 = vrot.lane.b32.xlu0 %v4245, 112
      %v4443 = vpop.permute.xlu0 %4442
      %4444 = vrot.lane.b32.xlu0 %v4248, 112
      %v4445 = vpop.permute.xlu0 %4444
      %4446 = vrot.lane.b32.xlu0 %v4251, 112
      %v4447 = vpop.permute.xlu0 %4446
      %4448 = vrot.lane.b32.xlu0 %v4280, 112
      %v4449 = vpop.permute.xlu0 %4448
      %4450 = vrot.lane.b32.xlu0 %v4288, 112
      %v4451 = vpop.permute.xlu0 %4450
      %v4460 = vsel %vm2711, %v4192, %v4293
      %v4461 = vsel %vm2711, %v4194, %v4295
      %v4462 = vsel %vm2711, %v4196, %v4297
      %v4463 = vsel %vm2711, %v4198, %v4299
      %v4464 = vsel %vm2711, %v4200, %v4301
      %v4465 = vsel %vm2711, %v4202, %v4303
      %v4466 = vsel %vm2711, %v4204, %v4305
      %v4467 = vsel %vm2711, %v4206, %v4307
      %v4468 = vsel %vm2777, %v4460, %v4317
      %v4469 = vsel %vm2777, %v4461, %v4319
      %v4470 = vsel %vm2777, %v4462, %v4321
      %v4471 = vsel %vm2777, %v4463, %v4323
      %v4472 = vsel %vm2777, %v4464, %v4325
      %v4473 = vsel %vm2777, %v4465, %v4327
      %v4474 = vsel %vm2777, %v4466, %v4329
      %v4475 = vsel %vm2777, %v4467, %v4331
      %v4476 = vsel %vm2843, %v4468, %v4341
      %v4477 = vsel %vm2843, %v4469, %v4343
      %v4478 = vsel %vm2843, %v4470, %v4345
      %v4479 = vsel %vm2843, %v4471, %v4347
      %v4480 = vsel %vm2843, %v4472, %v4349
      %v4481 = vsel %vm2843, %v4473, %v4351
      %v4482 = vsel %vm2843, %v4474, %v4353
      %v4483 = vsel %vm2843, %v4475, %v4355
      %v4484 = vsel %vm2909, %v4476, %v4365
      %v4485 = vsel %vm2909, %v4477, %v4367
      %v4486 = vsel %vm2909, %v4478, %v4369
      %v4487 = vsel %vm2909, %v4479, %v4371
      %v4488 = vsel %vm2909, %v4480, %v4373
      %v4489 = vsel %vm2909, %v4481, %v4375
      %v4490 = vsel %vm2909, %v4482, %v4377
      %v4491 = vsel %vm2909, %v4483, %v4379
      %vm4492 = vcmask 654336
      %v4493 = vsel %vm4492, %v4484, %v4389
      %v4494 = vsel %vm4492, %v4485, %v4391
      %v4495 = vsel %vm4492, %v4486, %v4393
      %v4496 = vsel %vm4492, %v4487, %v4395
      %v4497 = vsel %vm4492, %v4488, %v4397
      %v4498 = vsel %vm4492, %v4489, %v4399
      %v4499 = vsel %vm4492, %v4490, %v4401
      %v4500 = vsel %vm4492, %v4491, %v4403
      %vm4501 = vcmask 785408
      %v4502 = vsel %vm4501, %v4493, %v4413
      %v4503 = vsel %vm4501, %v4494, %v4415
      %v4504 = vsel %vm4501, %v4495, %v4417
      %v4505 = vsel %vm4501, %v4496, %v4419
      %v4506 = vsel %vm4501, %v4497, %v4421
      %v4507 = vsel %vm4501, %v4498, %v4423
      %v4508 = vsel %vm4501, %v4499, %v4425
      %v4509 = vsel %vm4501, %v4500, %v4427
      %vm4510 = vcmask 916480
      %v4511 = vsel %vm4510, %v4502, %v4437
      %v4512 = vsel %vm4510, %v4503, %v4439
      %v4513 = vsel %vm4510, %v4504, %v4441
      %v4514 = vsel %vm4510, %v4505, %v4443
      %v4515 = vsel %vm4510, %v4506, %v4445
      %v4516 = vsel %vm4510, %v4507, %v4447
      %v4517 = vsel %vm4510, %v4508, %v4449
      %v4518 = vsel %vm4510, %v4509, %v4451
      %v4519 = vsel %vm2711, %v4260, 0
      %v4521 = vsel %vm2711, %v4263, 0
      %v4523 = vsel %vm2711, %v4266, 0
      %v4525 = vsel %vm2711, %v4269, 0
      %v4527 = vsel %vm2711, %v4272, 0
      %v4529 = vsel %vm2711, %v4275, 0
      %v4531 = vsel %vm2711, %v4283, 0
      %v4533 = vsel %vm2711, %v4291, 0
      %4535 = vmatprep.subr.mxu0 0.0
      %4536 = vmatpush1.msra.mxu0 %v3844
      %4537 = vmatprep.subr.mxu0 0.0
      %4538 = vmatpush1.msra.mxu0 %v3845
      %4539 = vmatprep.subr.mxu0 0.0
      %4540 = vmatpush1.msra.mxu0 %v3846
      %4541 = vmatprep.subr.mxu0 0.0
      %4542 = vmatpush1.msra.mxu0 %v3847
      %4543 = vmatprep.subr.mxu0 0.0
      %4544 = vmatpush1.msra.mxu0 %v3848
      %4545 = vmatprep.subr.mxu0 0.0
      %4546 = vmatpush1.msra.mxu0 %v3849
      %4547 = vmatprep.subr.mxu0 0.0
      %4548 = vmatpush1.msra.mxu0 %v3850
      %4549 = vmatprep.subr.mxu0 0.0
      %4550 = vmatpush1.msra.mxu0 %v3851
      %4551 = vmatprep.subr.mxu0 0.0
      %4552 = vmatpush1.msra.mxu0 %v3852
      %4553 = vmatprep.subr.mxu0 0.0
      %4554 = vmatpush1.msra.mxu0 %v3853
      %4555 = vmatprep.subr.mxu0 0.0
      %4556 = vmatpush1.msra.mxu0 %v3854
      %4557 = vmatprep.subr.mxu0 0.0
      %4558 = vmatpush1.msra.mxu0 %v3855
      %4559 = vmatprep.subr.mxu0 0.0
      %4560 = vmatpush1.msra.mxu0 %v3856
      %4561 = vmatprep.subr.mxu0 0.0
      %4562 = vmatpush1.msra.mxu0 %v3857
      %4563 = vmatprep.subr.mxu0 0.0
      %4564 = vmatpush1.msra.mxu0 %v3858
      %4565 = vmatprep.subr.mxu0 0.0
      %4566 = vmatpush1.msra.mxu0 %v3859
      %4567 = vmatprep.subr.mxu0 0.0
      %4568 = vmatpush1.msra.mxu0 %v3860
      %4569 = vmatprep.subr.mxu0 0.0
      %4570 = vmatpush1.msra.mxu0 %v3861
      %4571 = vmatprep.subr.mxu0 0.0
      %4572 = vmatpush1.msra.mxu0 0.0
      %4573 = vmatprep.subr.mxu0 0.0
      %4574 = vmatpush1.msra.mxu0 0.0
      %4575 = vmatprep.subr.mxu0 0.0
      %4576 = vmatpush1.msra.mxu0 0.0
      %4577 = vmatprep.subr.mxu0 0.0
      %4578 = vmatpush1.msra.mxu0 0.0
      %4579 = vmatprep.subr.mxu0 0.0
      %4580 = vmatpush1.msra.mxu0 0.0
      %4581 = vmatprep.subr.mxu0 0.0
      %4582 = vmatpush1.msra.mxu0 0.0
      %4583 = vmatprep.subr.mxu0 0.0
      %4584 = vmatpush1.msra.mxu0 0.0
      %4585 = vmatprep.subr.mxu0 0.0
      %4586 = vmatpush1.msra.mxu0 0.0
      %4587 = vmatprep.subr.mxu0 0.0
      %4588 = vmatpush1.msra.mxu0 0.0
      %4589 = vmatprep.subr.mxu0 0.0
      %4590 = vmatpush1.msra.mxu0 0.0
      %4591 = vmatprep.subr.mxu0 0.0
      %4592 = vmatpush1.msra.mxu0 0.0
      %4593 = vmatprep.subr.mxu0 0.0
      %4594 = vmatpush1.msra.mxu0 0.0
      %4595 = vmatprep.subr.mxu0 0.0
      %4596 = vmatpush1.msra.mxu0 0.0
      %4597 = vmatprep.subr.mxu0 0.0
      %4598 = vmatpush1.msra.mxu0 0.0
      %4599 = vmatprep.mubr.f32.mxu0 %v4519
      %4600 = vmatmul.mubr.f32.gmra.mrb[0].mxu0 %v4511
      %v4601 = vpop.f32.mrb[0].mxu0
      %v4602 = vadd.f32 0.0, %v4601
      %v4603 = vpop.f32.mrb[0].mxu0
      %4604 = vmatprep.mubr.f32.mxu0 %v4521
      %4605 = vmatmul.mubr.f32.gmra.mrb[0].mxu0 %v4512
      %v4606 = vpop.f32.mrb[0].mxu0
      %v4607 = vadd.f32 0.0, %v4606
      %v4608 = vpop.f32.mrb[0].mxu0
      %4609 = vmatprep.mubr.f32.mxu0 %v4523
      %4610 = vmatmul.mubr.f32.gmra.mrb[0].mxu0 %v4513
      %v4611 = vpop.f32.mrb[0].mxu0
      %v4612 = vadd.f32 0.0, %v4611
      %v4613 = vpop.f32.mrb[0].mxu0
      %4614 = vmatprep.mubr.f32.mxu0 %v4525
      %4615 = vmatmul.mubr.f32.gmra.mrb[0].mxu0 %v4514
      %v4616 = vpop.f32.mrb[0].mxu0
      %v4617 = vadd.f32 0.0, %v4616
      %v4618 = vpop.f32.mrb[0].mxu0
      %4619 = vmatprep.mubr.f32.mxu0 %v4527
      %4620 = vmatmul.mubr.f32.gmra.mrb[0].mxu0 %v4515
      %v4621 = vpop.f32.mrb[0].mxu0
      %v4622 = vadd.f32 0.0, %v4621
      %v4623 = vpop.f32.mrb[0].mxu0
      %4624 = vmatprep.mubr.f32.mxu0 %v4529
      %4625 = vmatmul.mubr.f32.gmra.mrb[0].mxu0 %v4516
      %v4626 = vpop.f32.mrb[0].mxu0
      %v4627 = vadd.f32 0.0, %v4626
      %v4628 = vpop.f32.mrb[0].mxu0
      %4629 = vmatprep.mubr.f32.mxu0 %v4531
      %4630 = vmatmul.mubr.f32.gmra.mrb[0].mxu0 %v4517
      %v4631 = vpop.f32.mrb[0].mxu0
      %v4632 = vadd.f32 0.0, %v4631
      %v4633 = vpop.f32.mrb[0].mxu0
      %4634 = vmatprep.mubr.f32.mxu0 %v4533
      %4635 = vmatmul.mubr.f32.gmra.mrb[0].mxu0 %v4518
      %v4636 = vpop.f32.mrb[0].mxu0
      %v4637 = vadd.f32 0.0, %v4636
      %v4638 = vpop.f32.mrb[0].mxu0
      %4639 = vdwg.mxu0
      %v4640 = vsel %vm2711, %v4602, 0.0
      %4641 = vadd.xlane.f32.xlu0 %v4640
      %v4642 = vpop.xlane.xlu0 %4641
      %v4643 = vsel %vm2711, %v4607, 0.0
      %4644 = vadd.xlane.f32.xlu0 %v4643
      %v4645 = vpop.xlane.xlu0 %4644
      %v4646 = vsel %vm2711, %v4612, 0.0
      %4647 = vadd.xlane.f32.xlu0 %v4646
      %v4648 = vpop.xlane.xlu0 %4647
      %v4649 = vsel %vm2711, %v4617, 0.0
      %4650 = vadd.xlane.f32.xlu0 %v4649
      %v4651 = vpop.xlane.xlu0 %4650
      %v4652 = vsel %vm2711, %v4622, 0.0
      %4653 = vadd.xlane.f32.xlu0 %v4652
      %v4654 = vpop.xlane.xlu0 %4653
      %v4655 = vsel %vm2711, %v4627, 0.0
      %4656 = vadd.xlane.f32.xlu0 %v4655
      %v4657 = vpop.xlane.xlu0 %4656
      %v4658 = vsel %vm2711, %v4632, 0.0
      %4659 = vadd.xlane.f32.xlu0 %v4658
      %v4660 = vpop.xlane.xlu0 %4659
      %v4661 = vsel %vm2711, %v4637, 0.0
      %4662 = vadd.xlane.f32.xlu0 %v4661
      %v4663 = vpop.xlane.xlu0 %4662
      %v4664 = vmul.f32 %v4642, %v3925
      %v4665 = vmul.f32 %v4645, %v3925
      %v4666 = vmul.f32 %v4648, %v3925
      %v4667 = vmul.f32 %v4651, %v3925
      %v4668 = vmul.f32 %v4654, %v3925
      %v4669 = vmul.f32 %v4657, %v3925
      %v4670 = vmul.f32 %v4660, %v3925
      %v4671 = vmul.f32 %v4663, %v3925
      %v4672 = vsub.f32 %v4602, %v4664
      %v4673 = vsub.f32 %v4607, %v4665
      %v4674 = vsub.f32 %v4612, %v4666
      %v4675 = vsub.f32 %v4617, %v4667
      %v4676 = vsub.f32 %v4622, %v4668
      %v4677 = vsub.f32 %v4627, %v4669
      %v4678 = vsub.f32 %v4632, %v4670
      %v4679 = vsub.f32 %v4637, %v4671
      %v4680 = vmul.f32 %v4672, %v4672
      %v4681 = vmul.f32 %v4673, %v4673
      %v4682 = vmul.f32 %v4674, %v4674
      %v4683 = vmul.f32 %v4675, %v4675
      %v4684 = vmul.f32 %v4676, %v4676
      %v4685 = vmul.f32 %v4677, %v4677
      %v4686 = vmul.f32 %v4678, %v4678
      %v4687 = vmul.f32 %v4679, %v4679
      %v4688 = vsel %vm2711, %v4680, 0.0
      %4689 = vadd.xlane.f32.xlu0 %v4688
      %v4690 = vpop.xlane.xlu0 %4689
      %v4691 = vsel %vm2711, %v4681, 0.0
      %4692 = vadd.xlane.f32.xlu0 %v4691
      %v4693 = vpop.xlane.xlu0 %4692
      %v4694 = vsel %vm2711, %v4682, 0.0
      %4695 = vadd.xlane.f32.xlu0 %v4694
      %v4696 = vpop.xlane.xlu0 %4695
      %v4697 = vsel %vm2711, %v4683, 0.0
      %4698 = vadd.xlane.f32.xlu0 %v4697
      %v4699 = vpop.xlane.xlu0 %4698
      %v4700 = vsel %vm2711, %v4684, 0.0
      %4701 = vadd.xlane.f32.xlu0 %v4700
      %v4702 = vpop.xlane.xlu0 %4701
      %v4703 = vsel %vm2711, %v4685, 0.0
      %4704 = vadd.xlane.f32.xlu0 %v4703
      %v4705 = vpop.xlane.xlu0 %4704
      %v4706 = vsel %vm2711, %v4686, 0.0
      %4707 = vadd.xlane.f32.xlu0 %v4706
      %v4708 = vpop.xlane.xlu0 %4707
      %v4709 = vsel %vm2711, %v4687, 0.0
      %4710 = vadd.xlane.f32.xlu0 %v4709
      %v4711 = vpop.xlane.xlu0 %4710
      %v4712 = vmul.f32 %v4690, %v3925
      %v4713 = vmul.f32 %v4693, %v3925
      %v4714 = vmul.f32 %v4696, %v3925
      %v4715 = vmul.f32 %v4699, %v3925
      %v4716 = vmul.f32 %v4702, %v3925
      %v4717 = vmul.f32 %v4705, %v3925
      %v4718 = vmul.f32 %v4708, %v3925
      %v4719 = vmul.f32 %v4711, %v3925
      %v4720 = vadd.f32 %v4712, 1e-06
      %v4721 = vadd.f32 %v4713, 1e-06
      %v4722 = vadd.f32 %v4714, 1e-06
      %v4723 = vadd.f32 %v4715, 1e-06
      %v4724 = vadd.f32 %v4716, 1e-06
      %v4725 = vadd.f32 %v4717, 1e-06
      %v4726 = vadd.f32 %v4718, 1e-06
      %v4727 = vadd.f32 %v4719, 1e-06
      %v4728 = vrsqrt.pop %v4720
      %v4729 = vrsqrt.pop %v4721
      %v4730 = vrsqrt.pop %v4722
      %v4731 = vrsqrt.pop %v4723
      %v4732 = vrsqrt.pop %v4724
      %v4733 = vrsqrt.pop %v4725
      %v4734 = vrsqrt.pop %v4726
      %v4735 = vrsqrt.pop %v4727
      %v4736 = vmul.f32 %v4672, %v4728
      %v4737 = vmul.f32 %v4673, %v4729
      %v4738 = vmul.f32 %v4674, %v4730
      %v4739 = vmul.f32 %v4675, %v4731
      %v4740 = vmul.f32 %v4676, %v4732
      %v4741 = vmul.f32 %v4677, %v4733
      %v4742 = vmul.f32 %v4678, %v4734
      %v4743 = vmul.f32 %v4679, %v4735
      %v4745 = vlaneseq
      %v4746 = vshrl.u32 %v4745, 7
      %v4747 = vsub.s32 0, %v4746
      %v4748 = vrot.slane %v3862, %v4747
      %v4750 = vmul.f32 %v4736, %v4748
      %v4751 = vmul.f32 %v4737, %v4748
      %v4752 = vmul.f32 %v4738, %v4748
      %v4753 = vmul.f32 %v4739, %v4748
      %v4754 = vmul.f32 %v4740, %v4748
      %v4755 = vmul.f32 %v4741, %v4748
      %v4756 = vmul.f32 %v4742, %v4748
      %v4757 = vmul.f32 %v4743, %v4748
      %v4759 = vlaneseq
      %v4760 = vshrl.u32 %v4759, 7
      %v4761 = vsub.s32 0, %v4760
      %v4762 = vrot.slane %v3863, %v4761
      %v4764 = vadd.f32 %v4750, %v4762
      %v4765 = vadd.f32 %v4751, %v4762
      %v4766 = vadd.f32 %v4752, %v4762
      %v4767 = vadd.f32 %v4753, %v4762
      %v4768 = vadd.f32 %v4754, %v4762
      %v4769 = vadd.f32 %v4755, %v4762
      %v4770 = vadd.f32 %v4756, %v4762
      %v4771 = vadd.f32 %v4757, %v4762
      %4772 = vxpose.xlu0.b32.start [1/16] %v4764, 128
      %4773 = vxpose.xlu0.b32.cont [2/16] %v4765, 128
      %4774 = vxpose.xlu0.b32.cont [3/16] %v4766, 128
      %4775 = vxpose.xlu0.b32.cont [4/16] %v4767, 128
      %4776 = vxpose.xlu0.b32.cont [5/16] %v4768, 128
      %4777 = vxpose.xlu0.b32.cont [6/16] %v4769, 128
      %4778 = vxpose.xlu0.b32.cont [7/16] %v4770, 128
      %4779 = vxpose.xlu0.b32.cont [8/16] %v4771, 128
      %4780 = vxpose.xlu0.b32.cont [9/16] 0.0, 128
      %4781 = vxpose.xlu0.b32.cont [10/16] 0.0, 128
      %4782 = vxpose.xlu0.b32.cont [11/16] 0.0, 128
      %4783 = vxpose.xlu0.b32.cont [12/16] 0.0, 128
      %4784 = vxpose.xlu0.b32.cont [13/16] 0.0, 128
      %4785 = vxpose.xlu0.b32.cont [14/16] 0.0, 128
      %4786 = vxpose.xlu0.b32.cont [15/16] 0.0, 128
      %4787 = vxpose.xlu0.b32.end [16/16] 0.0, 128
      %v4788 = vpop.trf.xlu0
      %v4789 = vpop.trf.xlu0
      %v4790 = vpop.trf.xlu0
      %v4791 = vpop.trf.xlu0
      %v4792 = vpop.trf.xlu0
      %v4793 = vpop.trf.xlu0
      %v4794 = vpop.trf.xlu0
      %v4795 = vpop.trf.xlu0
      %v4796 = vpop.trf.xlu0
      %v4797 = vpop.trf.xlu0
      %v4798 = vpop.trf.xlu0
      %v4799 = vpop.trf.xlu0
      %v4800 = vpop.trf.xlu0
      %v4801 = vpop.trf.xlu0
      %v4802 = vpop.trf.xlu0
      %v4803 = vpop.trf.xlu0
      %4804 = vst.msk [vmem:[%s689] sm:$0xff] %vm2909, %v4788
      %4805 = vst.msk [vmem:[%s689 + $0x8] sm:$0xff] %vm2909, %v4789
      %v4806 = vld [vmem:[%s679] sm:$0x3f]
      %v4807 = vld [vmem:[%s679 + $0x8] sm:$0x3f]
      %v4808 = vld [vmem:[%s679 + $0x10] sm:$0x3f]
      %v4809 = vld [vmem:[%s679 + $0x18] sm:$0x3f]
      %v4810 = vld [vmem:[%s679 + $0x20] sm:$0x3f]
      %v4811 = vld [vmem:[%s679 + $0x28] sm:$0x3f]
      %v4812 = vld [vmem:[%s13] sm:$0x1]
      %v4813 = vld [vmem:[%s14] sm:$0x1]
      %v4814 = vld [vmem:[%s15] sm:$0xff]
      %v4815 = vld [vmem:[%s15 + $0x8] sm:$0xff]
      %v4816 = vld [vmem:[%s15 + $0x10] sm:$0xff]
      %v4817 = vld [vmem:[%s15 + $0x18] sm:$0xff]
      %v4818 = vld [vmem:[%s15 + $0x20] sm:$0xff]
      %v4819 = vld [vmem:[%s15 + $0x28] sm:$0xff]
      %v4820 = vld [vmem:[%s15 + $0x30] sm:$0xff]
      %v4821 = vld [vmem:[%s15 + $0x38] sm:$0xff]
      %v4822 = vld [vmem:[%s15 + $0x40] sm:$0xff]
      %v4823 = vld [vmem:[%s15 + $0x48] sm:$0xff]
      %v4824 = vld [vmem:[%s15 + $0x50] sm:$0xff]
      %v4825 = vld [vmem:[%s15 + $0x58] sm:$0xff]
      %v4826 = vld [vmem:[%s15 + $0x60] sm:$0xff]
      %v4827 = vld [vmem:[%s15 + $0x68] sm:$0xff]
      %v4828 = vld [vmem:[%s15 + $0x70] sm:$0xff]
      %v4829 = vld [vmem:[%s15 + $0x78] sm:$0xff]
      %v4830 = vld [vmem:[%s15 + $0x80] sm:$0xff]
      %v4831 = vld [vmem:[%s15 + $0x88] sm:$0xff]
      %v4832 = vld [vmem:[%s15 + $0x90] sm:$0xff]
      %v4833 = vld [vmem:[%s15 + $0x98] sm:$0xff]
      %v4834 = vld [vmem:[%s15 + $0xa0] sm:$0xff]
      %v4835 = vld [vmem:[%s15 + $0xa8] sm:$0xff]
      %v4836 = vld [vmem:[%s15 + $0xb0] sm:$0xff]
      %v4837 = vld [vmem:[%s15 + $0xb8] sm:$0xff]
      %v4838 = vld [vmem:[%s15 + $0xc0] sm:$0xff]
      %v4839 = vld [vmem:[%s15 + $0xc8] sm:$0xff]
      %v4840 = vld [vmem:[%s15 + $0xd0] sm:$0xff]
      %v4841 = vld [vmem:[%s15 + $0xd8] sm:$0xff]
      %v4842 = vld [vmem:[%s15 + $0xe0] sm:$0xff]
      %v4843 = vld [vmem:[%s15 + $0xe8] sm:$0xff]
      %v4844 = vld [vmem:[%s15 + $0xf0] sm:$0xff]
      %v4845 = vld [vmem:[%s15 + $0xf8] sm:$0xff]
      %v4846 = vld [vmem:[%s15 + $0x100] sm:$0xff]
      %v4847 = vld [vmem:[%s15 + $0x108] sm:$0xff]
      %v4848 = vld [vmem:[%s15 + $0x110] sm:$0xff]
      %v4849 = vld [vmem:[%s15 + $0x118] sm:$0xff]
      %v4850 = vld [vmem:[%s16] sm:$0x1]
      %v4851 = vld [vmem:[%s17] sm:$0x1]
      %vm4852 = vcmask 259072
      %v4853 = vsel %vm4852, %v4806, 0.0
      %4854 = vadd.xlane.f32.xlu0 %v4853
      %v4855 = vpop.xlane.xlu0 %4854
      %v4856 = vsel %vm4852, %v4807, 0.0
      %4857 = vadd.xlane.f32.xlu0 %v4856
      %v4858 = vpop.xlane.xlu0 %4857
      %v4859 = vsel %vm4852, %v4808, 0.0
      %4860 = vadd.xlane.f32.xlu0 %v4859
      %v4861 = vpop.xlane.xlu0 %4860
      %v4862 = vsel %vm4852, %v4809, 0.0
      %4863 = vadd.xlane.f32.xlu0 %v4862
      %v4864 = vpop.xlane.xlu0 %4863
      %v4865 = vsel %vm4852, %v4810, 0.0
      %4866 = vadd.xlane.f32.xlu0 %v4865
      %v4867 = vpop.xlane.xlu0 %4866
      %v4868 = vsel %vm4852, %v4811, 0.0
      %4869 = vadd.xlane.f32.xlu0 %v4868
      %v4870 = vpop.xlane.xlu0 %4869
      %v4871 = vrcp.pop 32.0
      %v4872 = vmul.f32 %v4855, %v4871
      %v4873 = vmul.f32 %v4858, %v4871
      %v4874 = vmul.f32 %v4861, %v4871
      %v4875 = vmul.f32 %v4864, %v4871
      %v4876 = vmul.f32 %v4867, %v4871
      %v4877 = vmul.f32 %v4870, %v4871
      %v4878 = vsub.f32 %v4806, %v4872
      %v4879 = vsub.f32 %v4807, %v4873
      %v4880 = vsub.f32 %v4808, %v4874
      %v4881 = vsub.f32 %v4809, %v4875
      %v4882 = vsub.f32 %v4810, %v4876
      %v4883 = vsub.f32 %v4811, %v4877
      %v4884 = vmul.f32 %v4878, %v4878
      %v4885 = vmul.f32 %v4879, %v4879
      %v4886 = vmul.f32 %v4880, %v4880
      %v4887 = vmul.f32 %v4881, %v4881
      %v4888 = vmul.f32 %v4882, %v4882
      %v4889 = vmul.f32 %v4883, %v4883
      %v4890 = vsel %vm4852, %v4884, 0.0
      %4891 = vadd.xlane.f32.xlu0 %v4890
      %v4892 = vpop.xlane.xlu0 %4891
      %v4893 = vsel %vm4852, %v4885, 0.0
      %4894 = vadd.xlane.f32.xlu0 %v4893
      %v4895 = vpop.xlane.xlu0 %4894
      %v4896 = vsel %vm4852, %v4886, 0.0
      %4897 = vadd.xlane.f32.xlu0 %v4896
      %v4898 = vpop.xlane.xlu0 %4897
      %v4899 = vsel %vm4852, %v4887, 0.0
      %4900 = vadd.xlane.f32.xlu0 %v4899
      %v4901 = vpop.xlane.xlu0 %4900
      %v4902 = vsel %vm4852, %v4888, 0.0
      %4903 = vadd.xlane.f32.xlu0 %v4902
      %v4904 = vpop.xlane.xlu0 %4903
      %v4905 = vsel %vm4852, %v4889, 0.0
      %4906 = vadd.xlane.f32.xlu0 %v4905
      %v4907 = vpop.xlane.xlu0 %4906
      %v4908 = vmul.f32 %v4892, %v4871
      %v4909 = vmul.f32 %v4895, %v4871
      %v4910 = vmul.f32 %v4898, %v4871
      %v4911 = vmul.f32 %v4901, %v4871
      %v4912 = vmul.f32 %v4904, %v4871
      %v4913 = vmul.f32 %v4907, %v4871
      %v4914 = vadd.f32 %v4908, 1e-06
      %v4915 = vadd.f32 %v4909, 1e-06
      %v4916 = vadd.f32 %v4910, 1e-06
      %v4917 = vadd.f32 %v4911, 1e-06
      %v4918 = vadd.f32 %v4912, 1e-06
      %v4919 = vadd.f32 %v4913, 1e-06
      %v4920 = vrsqrt.pop %v4914
      %v4921 = vrsqrt.pop %v4915
      %v4922 = vrsqrt.pop %v4916
      %v4923 = vrsqrt.pop %v4917
      %v4924 = vrsqrt.pop %v4918
      %v4925 = vrsqrt.pop %v4919
      %v4926 = vmul.f32 %v4878, %v4920
      %v4927 = vmul.f32 %v4879, %v4921
      %v4928 = vmul.f32 %v4880, %v4922
      %v4929 = vmul.f32 %v4881, %v4923
      %v4930 = vmul.f32 %v4882, %v4924
      %v4931 = vmul.f32 %v4883, %v4925
      %v4933 = vlaneseq
      %v4934 = vshrl.u32 %v4933, 7
      %v4935 = vsub.s32 0, %v4934
      %v4936 = vrot.slane %v4812, %v4935
      %v4938 = vmul.f32 %v4926, %v4936
      %v4939 = vmul.f32 %v4927, %v4936
      %v4940 = vmul.f32 %v4928, %v4936
      %v4941 = vmul.f32 %v4929, %v4936
      %v4942 = vmul.f32 %v4930, %v4936
      %v4943 = vmul.f32 %v4931, %v4936
      %v4945 = vlaneseq
      %v4946 = vshrl.u32 %v4945, 7
      %v4947 = vsub.s32 0, %v4946
      %v4948 = vrot.slane %v4813, %v4947
      %v4950 = vadd.f32 %v4938, %v4948
      %v4951 = vadd.f32 %v4939, %v4948
      %v4952 = vadd.f32 %v4940, %v4948
      %v4953 = vadd.f32 %v4941, %v4948
      %v4954 = vadd.f32 %v4942, %v4948
      %v4955 = vadd.f32 %v4943, %v4948
      %vm4956 = vcmp.le.s32.totalorder %v1588, 4
      %vm4957 = vmand %vm1594, %vm4956
      %vm4958 = vmand %vm1597, %vm4956
      %v4959 = vsel %vm4957, 1, 0
      %v4960 = vsel %vm4958, 1, 0
      %vm4961 = vcmp.eq.s32.totalorder %v4959, 1
      %vm4962 = vcmp.eq.s32.totalorder %v4960, 1
      %v4963 = vsel %vm4961, %v4950, 0.0
      %v4964 = vsel %vm4962, %v4951, 0.0
      %v4965 = vsel %vm4962, %v4952, 0.0
      %v4966 = vsel %vm4962, %v4953, 0.0
      %v4967 = vsel %vm4962, %v4954, 0.0
      %v4968 = vsel %vm4961, %v4955, 0.0
      %v4973 = vcombine.high %v4963, %v4963
      %v4974 = vcombine.high %v4964, %v4964
      %v4975 = vcombine.high %v4965, %v4965
      %v4976 = vcombine.high %v4966, %v4966
      %vm4977 = vcmask 1042432
      %vm4978 = vcmask 1046532
      %vm4979 = vmor %vm4977, %vm4978
      %v4980 = vrot.slane %v4963, 5
      %v4981 = vrot.slane %v4980, 4
      %v4982 = vrot.slane %v4973, 5
      %v4983 = vsel %vm4979, %v4981, %v4982
      %v4984 = vrot.slane %v4964, 5
      %v4985 = vrot.slane %v4984, 4
      %v4986 = vrot.slane %v4974, 5
      %v4987 = vsel %vm4979, %v4985, %v4986
      %v4988 = vrot.slane %v4965, 5
      %v4989 = vrot.slane %v4988, 4
      %v4990 = vrot.slane %v4975, 5
      %v4991 = vsel %vm4979, %v4989, %v4990
      %v4992 = vrot.slane %v4966, 5
      %v4993 = vrot.slane %v4992, 4
      %v4994 = vrot.slane %v4976, 5
      %v4995 = vsel %vm4979, %v4993, %v4994
      %vm4996 = vcmask 1041408
      %vm4997 = vcmask 1045508
      %vm4998 = vmor %vm4996, %vm4997
      %v4999 = vrot.slane %v4963, 6
      %v5000 = vrot.slane %v4999, 4
      %v5001 = vrot.slane %v4973, 6
      %v5002 = vsel %vm4998, %v5000, %v5001
      %v5003 = vrot.slane %v4964, 6
      %v5004 = vrot.slane %v5003, 4
      %v5005 = vrot.slane %v4974, 6
      %v5006 = vsel %vm4998, %v5004, %v5005
      %v5007 = vrot.slane %v4965, 6
      %v5008 = vrot.slane %v5007, 4
      %v5009 = vrot.slane %v4975, 6
      %v5010 = vsel %vm4998, %v5008, %v5009
      %v5011 = vrot.slane %v4966, 6
      %v5012 = vrot.slane %v5011, 4
      %v5013 = vrot.slane %v4976, 6
      %v5014 = vsel %vm4998, %v5012, %v5013
      %v5016 = vcombine.high %v4967, %v4967
      %v5017 = vrot.slane %v4967, 5
      %v5018 = vrot.slane %v5017, 4
      %v5019 = vrot.slane %v5016, 5
      %v5020 = vsel %vm4979, %v5018, %v5019
      %v5021 = vrot.slane %v4967, 6
      %v5022 = vrot.slane %v5021, 4
      %v5023 = vrot.slane %v5016, 6
      %v5024 = vsel %vm4998, %v5022, %v5023
      %v5026 = vcombine.high %v4968, %v4968
      %v5027 = vrot.slane %v4968, 5
      %v5028 = vrot.slane %v5027, 4
      %v5029 = vrot.slane %v5026, 5
      %v5030 = vsel %vm4979, %v5028, %v5029
      %v5031 = vrot.slane %v4968, 6
      %v5032 = vrot.slane %v5031, 4
      %v5033 = vrot.slane %v5026, 6
      %v5034 = vsel %vm4998, %v5032, %v5033
      %v5035 = vcombine.low %v4963, %v4964
      %v5036 = vcombine.low %v4965, %v4966
      %v5039 = vcombine.low %v4983, %v4987
      %v5040 = vcombine.low %v4991, %v4995
      %5041 = vrot.lane.b32.xlu0 %v5039, 32
      %v5042 = vpop.permute.xlu0 %5041
      %5043 = vrot.lane.b32.xlu0 %v5040, 32
      %v5044 = vpop.permute.xlu0 %5043
      %v5047 = vcombine.low %v5002, %v5006
      %v5048 = vcombine.low %v5010, %v5014
      %5049 = vrot.lane.b32.xlu0 %v5047, 64
      %v5050 = vpop.permute.xlu0 %5049
      %5051 = vrot.lane.b32.xlu0 %v5048, 64
      %v5052 = vpop.permute.xlu0 %5051
      %v5055 = vcombine.low %v4964, %v4965
      %v5056 = vcombine.low %v4966, %v4967
      %5057 = vrot.lane.b32.xlu0 %v5055, 96
      %v5058 = vpop.permute.xlu0 %5057
      %5059 = vrot.lane.b32.xlu0 %v5056, 96
      %v5060 = vpop.permute.xlu0 %5059
      %v5063 = vcombine.low %v4987, %v4991
      %v5064 = vcombine.low %v4995, %v5020
      %v5067 = vcombine.low %v5006, %v5010
      %v5068 = vcombine.low %v5014, %v5024
      %5069 = vrot.lane.b32.xlu0 %v5067, 32
      %v5070 = vpop.permute.xlu0 %5069
      %5071 = vrot.lane.b32.xlu0 %v5068, 32
      %v5072 = vpop.permute.xlu0 %5071
      %v5075 = vcombine.low %v4967, %v4968
      %5076 = vrot.lane.b32.xlu0 %v5036, 64
      %v5077 = vpop.permute.xlu0 %5076
      %5078 = vrot.lane.b32.xlu0 %v5075, 64
      %v5079 = vpop.permute.xlu0 %5078
      %v5082 = vcombine.low %v5020, %v5030
      %5083 = vrot.lane.b32.xlu0 %v5040, 96
      %v5084 = vpop.permute.xlu0 %5083
      %5085 = vrot.lane.b32.xlu0 %v5082, 96
      %v5086 = vpop.permute.xlu0 %5085
      %v5089 = vcombine.low %v5024, %v5034
      %v5090 = vsel %vm2777, %v5035, %v5042
      %v5091 = vsel %vm2777, %v5036, %v5044
      %v5092 = vsel %vm2909, %v5090, %v5050
      %v5093 = vsel %vm2909, %v5091, %v5052
      %v5094 = vsel %vm4501, %v5092, %v5058
      %v5095 = vsel %vm4501, %v5093, %v5060
      %v5096 = vsel %vm2777, %v5063, %v5070
      %v5097 = vsel %vm2777, %v5064, %v5072
      %v5098 = vsel %vm2909, %v5096, %v5077
      %v5099 = vsel %vm2909, %v5097, %v5079
      %v5100 = vsel %vm4501, %v5098, %v5084
      %v5101 = vsel %vm4501, %v5099, %v5086
      %v5102 = vsel %vm2777, %v5048, 0
      %v5104 = vsel %vm2777, %v5089, 0
      %5106 = vmatprep.subr.mxu0 0.0
      %5107 = vmatpush1.msra.mxu0 %v4814
      %5108 = vmatprep.subr.mxu0 0.0
      %5109 = vmatpush1.msra.mxu0 %v4815
      %5110 = vmatprep.subr.mxu0 0.0
      %5111 = vmatpush1.msra.mxu0 %v4816
      %5112 = vmatprep.subr.mxu0 0.0
      %5113 = vmatpush1.msra.mxu0 %v4817
      %5114 = vmatprep.subr.mxu0 0.0
      %5115 = vmatpush1.msra.mxu0 %v4818
      %5116 = vmatprep.subr.mxu0 0.0
      %5117 = vmatpush1.msra.mxu0 %v4819
      %5118 = vmatprep.subr.mxu0 0.0
      %5119 = vmatpush1.msra.mxu0 %v4820
      %5120 = vmatprep.subr.mxu0 0.0
      %5121 = vmatpush1.msra.mxu0 %v4821
      %5122 = vmatprep.subr.mxu0 0.0
      %5123 = vmatpush1.msra.mxu0 %v4822
      %5124 = vmatprep.subr.mxu0 0.0
      %5125 = vmatpush1.msra.mxu0 %v4823
      %5126 = vmatprep.subr.mxu0 0.0
      %5127 = vmatpush1.msra.mxu0 %v4824
      %5128 = vmatprep.subr.mxu0 0.0
      %5129 = vmatpush1.msra.mxu0 %v4825
      %5130 = vmatprep.subr.mxu0 0.0
      %5131 = vmatpush1.msra.mxu0 %v4826
      %5132 = vmatprep.subr.mxu0 0.0
      %5133 = vmatpush1.msra.mxu0 %v4827
      %5134 = vmatprep.subr.mxu0 0.0
      %5135 = vmatpush1.msra.mxu0 %v4828
      %5136 = vmatprep.subr.mxu0 0.0
      %5137 = vmatpush1.msra.mxu0 %v4829
      %5138 = vmatprep.subr.mxu0 0.0
      %5139 = vmatpush1.msra.mxu0 %v4830
      %5140 = vmatprep.subr.mxu0 0.0
      %5141 = vmatpush1.msra.mxu0 %v4831
      %5142 = vmatprep.subr.mxu0 0.0
      %5143 = vmatpush1.msra.mxu0 %v4832
      %5144 = vmatprep.subr.mxu0 0.0
      %5145 = vmatpush1.msra.mxu0 %v4833
      %5146 = vmatprep.subr.mxu0 0.0
      %5147 = vmatpush1.msra.mxu0 %v4834
      %5148 = vmatprep.subr.mxu0 0.0
      %5149 = vmatpush1.msra.mxu0 %v4835
      %5150 = vmatprep.subr.mxu0 0.0
      %5151 = vmatpush1.msra.mxu0 %v4836
      %5152 = vmatprep.subr.mxu0 0.0
      %5153 = vmatpush1.msra.mxu0 %v4837
      %5154 = vmatprep.subr.mxu0 0.0
      %5155 = vmatpush1.msra.mxu0 %v4838
      %5156 = vmatprep.subr.mxu0 0.0
      %5157 = vmatpush1.msra.mxu0 %v4839
      %5158 = vmatprep.subr.mxu0 0.0
      %5159 = vmatpush1.msra.mxu0 %v4840
      %5160 = vmatprep.subr.mxu0 0.0
      %5161 = vmatpush1.msra.mxu0 %v4841
      %5162 = vmatprep.subr.mxu0 0.0
      %5163 = vmatpush1.msra.mxu0 %v4842
      %5164 = vmatprep.subr.mxu0 0.0
      %5165 = vmatpush1.msra.mxu0 %v4843
      %5166 = vmatprep.subr.mxu0 0.0
      %5167 = vmatpush1.msra.mxu0 %v4844
      %5168 = vmatprep.subr.mxu0 0.0
      %5169 = vmatpush1.msra.mxu0 %v4845
      %5170 = vmatprep.mubr.f32.mxu0 %v5100
      %5171 = vmatmul.mubr.f32.gmra.mrb[0].mxu0 %v5094
      %v5172 = vpop.f32.mrb[0].mxu0
      %v5173 = vadd.f32 0.0, %v5172
      %v5174 = vpop.f32.mrb[0].mxu0
      %5175 = vmatprep.mubr.f32.mxu0 %v5101
      %5176 = vmatmul.mubr.f32.gmra.mrb[0].mxu0 %v5095
      %v5177 = vpop.f32.mrb[0].mxu0
      %v5178 = vadd.f32 0.0, %v5177
      %v5179 = vpop.f32.mrb[0].mxu0
      %5180 = vdwg.mxu0
      %5181 = vmatprep.subr.mxu0 0.0
      %5182 = vmatpush1.msra.mxu0 %v4846
      %5183 = vmatprep.subr.mxu0 0.0
      %5184 = vmatpush1.msra.mxu0 %v4847
      %5185 = vmatprep.subr.mxu0 0.0
      %5186 = vmatpush1.msra.mxu0 %v4848
      %5187 = vmatprep.subr.mxu0 0.0
      %5188 = vmatpush1.msra.mxu0 %v4849
      %5189 = vmatprep.subr.mxu0 0.0
      %5190 = vmatpush1.msra.mxu0 0.0
      %5191 = vmatprep.subr.mxu0 0.0
      %5192 = vmatpush1.msra.mxu0 0.0
      %5193 = vmatprep.subr.mxu0 0.0
      %5194 = vmatpush1.msra.mxu0 0.0
      %5195 = vmatprep.subr.mxu0 0.0
      %5196 = vmatpush1.msra.mxu0 0.0
      %5197 = vmatprep.subr.mxu0 0.0
      %5198 = vmatpush1.msra.mxu0 0.0
      %5199 = vmatprep.subr.mxu0 0.0
      %5200 = vmatpush1.msra.mxu0 0.0
      %5201 = vmatprep.subr.mxu0 0.0
      %5202 = vmatpush1.msra.mxu0 0.0
      %5203 = vmatprep.subr.mxu0 0.0
      %5204 = vmatpush1.msra.mxu0 0.0
      %5205 = vmatprep.subr.mxu0 0.0
      %5206 = vmatpush1.msra.mxu0 0.0
      %5207 = vmatprep.subr.mxu0 0.0
      %5208 = vmatpush1.msra.mxu0 0.0
      %5209 = vmatprep.subr.mxu0 0.0
      %5210 = vmatpush1.msra.mxu0 0.0
      %5211 = vmatprep.subr.mxu0 0.0
      %5212 = vmatpush1.msra.mxu0 0.0
      %5213 = vmatprep.subr.mxu0 0.0
      %5214 = vmatpush1.msra.mxu0 0.0
      %5215 = vmatprep.subr.mxu0 0.0
      %5216 = vmatpush1.msra.mxu0 0.0
      %5217 = vmatprep.subr.mxu0 0.0
      %5218 = vmatpush1.msra.mxu0 0.0
      %5219 = vmatprep.subr.mxu0 0.0
      %5220 = vmatpush1.msra.mxu0 0.0
      %5221 = vmatprep.subr.mxu0 0.0
      %5222 = vmatpush1.msra.mxu0 0.0
      %5223 = vmatprep.subr.mxu0 0.0
      %5224 = vmatpush1.msra.mxu0 0.0
      %5225 = vmatprep.subr.mxu0 0.0
      %5226 = vmatpush1.msra.mxu0 0.0
      %5227 = vmatprep.subr.mxu0 0.0
      %5228 = vmatpush1.msra.mxu0 0.0
      %5229 = vmatprep.subr.mxu0 0.0
      %5230 = vmatpush1.msra.mxu0 0.0
      %5231 = vmatprep.subr.mxu0 0.0
      %5232 = vmatpush1.msra.mxu0 0.0
      %5233 = vmatprep.subr.mxu0 0.0
      %5234 = vmatpush1.msra.mxu0 0.0
      %5235 = vmatprep.subr.mxu0 0.0
      %5236 = vmatpush1.msra.mxu0 0.0
      %5237 = vmatprep.subr.mxu0 0.0
      %5238 = vmatpush1.msra.mxu0 0.0
      %5239 = vmatprep.subr.mxu0 0.0
      %5240 = vmatpush1.msra.mxu0 0.0
      %5241 = vmatprep.subr.mxu0 0.0
      %5242 = vmatpush1.msra.mxu0 0.0
      %5243 = vmatprep.subr.mxu0 0.0
      %5244 = vmatpush1.msra.mxu0 0.0
      %5245 = vmatprep.mubr.f32.mxu0 0.0
      %5246 = vmatmul.mubr.f32.gmra.mrb[0].mxu0 %v5102
      %v5247 = vpop.f32.mrb[0].mxu0
      %v5248 = vadd.f32 %v5173, %v5247
      %v5249 = vpop.f32.mrb[0].mxu0
      %5250 = vmatprep.mubr.f32.mxu0 0.0
      %5251 = vmatmul.mubr.f32.gmra.mrb[0].mxu0 %v5104
      %v5252 = vpop.f32.mrb[0].mxu0
      %v5253 = vadd.f32 %v5178, %v5252
      %v5254 = vpop.f32.mrb[0].mxu0
      %5255 = vdwg.mxu0
      %v5256 = vsel %vm2777, %v5248, 0.0
      %5257 = vadd.xlane.f32.xlu0 %v5256
      %v5258 = vpop.xlane.xlu0 %5257
      %v5259 = vsel %vm2777, %v5253, 0.0
      %5260 = vadd.xlane.f32.xlu0 %v5259
      %v5261 = vpop.xlane.xlu0 %5260
      %v5262 = vmul.f32 %v5258, %v4871
      %v5263 = vmul.f32 %v5261, %v4871
      %v5264 = vsub.f32 %v5248, %v5262
      %v5265 = vsub.f32 %v5253, %v5263
      %v5266 = vmul.f32 %v5264, %v5264
      %v5267 = vmul.f32 %v5265, %v5265
      %v5268 = vsel %vm2777, %v5266, 0.0
      %5269 = vadd.xlane.f32.xlu0 %v5268
      %v5270 = vpop.xlane.xlu0 %5269
      %v5271 = vsel %vm2777, %v5267, 0.0
      %5272 = vadd.xlane.f32.xlu0 %v5271
      %v5273 = vpop.xlane.xlu0 %5272
      %v5274 = vmul.f32 %v5270, %v4871
      %v5275 = vmul.f32 %v5273, %v4871
      %v5276 = vadd.f32 %v5274, 1e-06
      %v5277 = vadd.f32 %v5275, 1e-06
      %v5278 = vrsqrt.pop %v5276
      %v5279 = vrsqrt.pop %v5277
      %v5280 = vmul.f32 %v5264, %v5278
      %v5281 = vmul.f32 %v5265, %v5279
      %v5283 = vlaneseq
      %v5284 = vshrl.u32 %v5283, 7
      %v5285 = vsub.s32 0, %v5284
      %v5286 = vrot.slane %v4850, %v5285
      %v5288 = vmul.f32 %v5280, %v5286
      %v5289 = vmul.f32 %v5281, %v5286
      %v5291 = vlaneseq
      %v5292 = vshrl.u32 %v5291, 7
      %v5293 = vsub.s32 0, %v5292
      %v5294 = vrot.slane %v4851, %v5293
      %v5296 = vadd.f32 %v5288, %v5294
      %v5297 = vadd.f32 %v5289, %v5294
      %5298 = vxpose.xlu0.b32.start [1/16] %v5296, 128
      %5299 = vxpose.xlu0.b32.cont [2/16] %v5297, 128
      %5300 = vxpose.xlu0.b32.cont [3/16] 0.0, 128
      %5301 = vxpose.xlu0.b32.cont [4/16] 0.0, 128
      %5302 = vxpose.xlu0.b32.cont [5/16] 0.0, 128
      %5303 = vxpose.xlu0.b32.cont [6/16] 0.0, 128
      %5304 = vxpose.xlu0.b32.cont [7/16] 0.0, 128
      %5305 = vxpose.xlu0.b32.cont [8/16] 0.0, 128
      %5306 = vxpose.xlu0.b32.cont [9/16] 0.0, 128
      %5307 = vxpose.xlu0.b32.cont [10/16] 0.0, 128
      %5308 = vxpose.xlu0.b32.cont [11/16] 0.0, 128
      %5309 = vxpose.xlu0.b32.cont [12/16] 0.0, 128
      %5310 = vxpose.xlu0.b32.cont [13/16] 0.0, 128
      %5311 = vxpose.xlu0.b32.cont [14/16] 0.0, 128
      %5312 = vxpose.xlu0.b32.cont [15/16] 0.0, 128
      %5313 = vxpose.xlu0.b32.end [16/16] 0.0, 128
      %v5314 = vpop.trf.xlu0
      %v5315 = vpop.trf.xlu0
      %v5316 = vpop.trf.xlu0
      %v5317 = vpop.trf.xlu0
      %v5318 = vpop.trf.xlu0
      %v5319 = vpop.trf.xlu0
      %v5320 = vpop.trf.xlu0
      %v5321 = vpop.trf.xlu0
      %v5322 = vpop.trf.xlu0
      %v5323 = vpop.trf.xlu0
      %v5324 = vpop.trf.xlu0
      %v5325 = vpop.trf.xlu0
      %v5326 = vpop.trf.xlu0
      %v5327 = vpop.trf.xlu0
      %v5328 = vpop.trf.xlu0
      %v5329 = vpop.trf.xlu0
      %5330 = vst.msk [vmem:[%s694] sm:$0xff] %vm2711, %v5314
      %5331 = vst.msk [vmem:[%s694 + $0x8] sm:$0xff] %vm2711, %v5315
      %5332 = vst.msk [vmem:[%s694 + $0x10] sm:$0xff] %vm2711, %v5316
      %5333 = vst.msk [vmem:[%s694 + $0x18] sm:$0xff] %vm2711, %v5317
      %p5334 = scmp.lt.s32.totalorder %s32, 1
      %s5335 = scalar_select %p5334, %s32, 1
      %s5336 = smul.addr %s5335, 2
      %s5337 = smul.addr %s5336, 8
      %s5338 = scalar_lea.vmem %s18, %s5337
      %p5339 = scmp.lt.s32.totalorder %s32, 1
      %s5340 = scalar_select %p5339, %s32, 1
      %s5341 = smul.addr %s5340, 2
      %s5342 = smul.addr %s5341, 8
      %s5343 = scalar_lea.vmem %s19, %s5342
      %p5344 = scmp.lt.s32.totalorder %s32, 1
      %s5345 = scalar_select %p5344, %s32, 1
      %s5346 = smul.addr %s5345, 4
      %s5347 = smul.addr %s5346, 8
      %s5348 = scalar_lea.vmem %s20, %s5347
      // Predicated region
      $region93: #{fpn_forward_packed.3} parent=91 // pred_check
        %p5349 = pneg %p443
      $region94: #{fpn_forward_packed.3} parent=91 // pred_check_branch
        %5351 = sbr.rel (%p5349) target = $region96
      $region95: #{fpn_forward_packed.3} parent=91 // pred_region
        _
      $region96: #{fpn_forward_packed.3} parent=91 // pred_fallthru
        _
      // Predicated region
      $region97: #{fpn_forward_packed.3} parent=91 // pred_check
        %p5352 = pneg %p469
      $region98: #{fpn_forward_packed.3} parent=91 // pred_check_branch
        %5354 = sbr.rel (%p5352) target = $region100
      $region99: #{fpn_forward_packed.3} parent=91 // pred_region
        _
      $region100: #{fpn_forward_packed.3} parent=91 // pred_fallthru
        _
      // Predicated region
      $region101: #{fpn_forward_packed.3} parent=91 // pred_check
        %p5355 = pneg %p495
      $region102: #{fpn_forward_packed.3} parent=91 // pred_check_branch
        %5357 = sbr.rel (%p5355) target = $region104
      $region103: #{fpn_forward_packed.3} parent=91 // pred_region
        _
      $region104: #{fpn_forward_packed.3} parent=91 // pred_fallthru
        _
    $region92: #{fpn_forward_packed.3} parent=5 // pred_fallthru
      _
    %p5358 = scmp.le.s32.totalorder 2, %s27
    // Predicated region
    $region105: #{fpn_forward_packed.3} parent=5 // pred_check
      %p5359 = pneg %p5358
    $region106: #{fpn_forward_packed.3} parent=5 // pred_check_branch
      %5361 = sbr.rel (%p5359) target = $region108
    $region107: #{fpn_forward_packed.3} parent=5 // pred_region
      %s5362 = ssub.s32 %s27, 2
      // Predicated region
      $region109: #{fpn_forward_packed.3} parent=107 // pred_check
        %p5363 = pneg %p449
      $region110: #{fpn_forward_packed.3} parent=107 // pred_check_branch
        %5365 = sbr.rel (%p5363) target = $region112
      $region111: #{fpn_forward_packed.3} parent=107 // pred_region
        %p5366 = scmp.lt.s32.totalorder %s33, 1
        %s5367 = scalar_select %p5366, %s33, 1
        %s5368 = smul.addr %s5367, 2
        %s5369 = smul.addr %s5368, 8
        %s5370 = scalar_lea.vmem %s18, %s5369
      $region112: #{fpn_forward_packed.3} parent=107 // pred_fallthru
        _
      // Predicated region
      $region113: #{fpn_forward_packed.3} parent=107 // pred_check
        %p5371 = pneg %p475
      $region114: #{fpn_forward_packed.3} parent=107 // pred_check_branch
        %5373 = sbr.rel (%p5371) target = $region116
      $region115: #{fpn_forward_packed.3} parent=107 // pred_region
        %p5374 = scmp.lt.s32.totalorder %s33, 1
        %s5375 = scalar_select %p5374, %s33, 1
        %s5376 = smul.addr %s5375, 2
        %s5377 = smul.addr %s5376, 8
        %s5378 = scalar_lea.vmem %s19, %s5377
      $region116: #{fpn_forward_packed.3} parent=107 // pred_fallthru
        _
      // Predicated region
      $region117: #{fpn_forward_packed.3} parent=107 // pred_check
        %p5379 = pneg %p501
      $region118: #{fpn_forward_packed.3} parent=107 // pred_check_branch
        %5381 = sbr.rel (%p5379) target = $region120
      $region119: #{fpn_forward_packed.3} parent=107 // pred_region
        %p5382 = scmp.lt.s32.totalorder %s33, 1
        %s5383 = scalar_select %p5382, %s33, 1
        %s5384 = smul.addr %s5383, 4
        %s5385 = smul.addr %s5384, 8
        %s5386 = scalar_lea.vmem %s20, %s5385
      $region120: #{fpn_forward_packed.3} parent=107 // pred_fallthru
        _
    $region108: #{fpn_forward_packed.3} parent=5 // pred_fallthru
      _
  $region6: #{fpn_forward_packed.3} parent=0 // loop_footer
    %s31 = sadd.s32 1, %s27
  $region7: #{fpn_forward_packed.3} parent=0 // loop_footer_branch
    %26 = sbr.rel target = $region3
  $region8: #{fpn_forward_packed.3} parent=0 // loop_exit
    _

</llo_original>
